<compile_context>
chip_gen: v7x
topology: tpu7x:2x2x1
jax: 0.10.0
libtpu: 0.0.40
codegen_flags: <defaults>
</compile_context>

<pallas_src>
import jax
import jax.numpy as jnp
from jax.experimental import pallas as pl
from jax.experimental.pallas import tpu as pltpu

IN_FEATURES = 2560
OUT_FEATURES = 1000
N_PAD = 1024          # next multiple of 128 >= 1000 (lane-dense stores)


def _default_n_split():
    """2-way N split only on chips with 2 TensorCores (v7x); 1 otherwise."""
    try:
        kind = jax.devices()[0].device_kind.lower()
    except Exception:
        return 1
    return 2 if "v7" in kind else 1


def _linear_kernel(x_ref, w_ref, b_ref, o_ref):
    # grid = (n_split,): each step handles one N-slice, full K in one MXU pass.
    x = x_ref[...].astype(jnp.bfloat16)                    # [B, K] bf16
    acc = jnp.dot(x, w_ref[...],                           # bf16 x bf16 -> f32
                  preferred_element_type=jnp.float32)      # [B, n_blk] f32
    o_ref[...] = acc + b_ref[...]                          # bias in f32


def prepare_linear_params(w_nk, bias, *, n_pad=N_PAD):
    """One-time prep (NOT on the per-call path): transpose PyTorch [N, K]
    weight to [K, N], zero-pad N to a lane-aligned width, store in bf16.
    Bias stays f32 (4 KiB -- negligible traffic, keeps the epilogue exact)."""
    n, k = w_nk.shape
    w_kn = jnp.transpose(w_nk)                                   # [K, N]
    w_kn = jnp.pad(w_kn, ((0, 0), (0, n_pad - n)))               # [K, N_PAD]
    w_kn = w_kn.astype(jnp.bfloat16)                             # halve HBM bytes
    bias_p = jnp.pad(bias, (0, n_pad - n)).reshape(1, n_pad)     # [1, N_PAD] f32
    return w_kn, bias_p


def linear_pallas(x2d, w_kn_pad, bias_pad, *, n_out=OUT_FEATURES, n_split=None):
    """x2d: [B, K] f32, w_kn_pad: [K, N_PAD] bf16, bias_pad: [1, N_PAD] f32
    -> [B, n_out] f32."""
    if n_split is None:
        n_split = _default_n_split()
    B, K = x2d.shape
    Kw, Np = w_kn_pad.shape
    assert K == Kw and Np % (n_split * 128) == 0
    n_blk = Np // n_split

    # VMEM: double-buffered bf16 weight slab dominates; activation/bias/out tiny.
    tile_bytes = 2 * (K * n_blk * 2 + B * K * 4 + n_blk * 4) + B * n_blk * 4
    vmem_limit = max(tile_bytes + (4 << 20), 16 << 20)

    grid_spec = pltpu.PrefetchScalarGridSpec(
        num_scalar_prefetch=0,
        grid=(n_split,),
        in_specs=[
            pl.BlockSpec((B, K), lambda j: (0, 0)),        # activation, resident
            pl.BlockSpec((K, n_blk), lambda j: (0, j)),    # weight N-slice (bf16)
            pl.BlockSpec((1, n_blk), lambda j: (0, j)),    # bias N-slice (f32)
        ],
        out_specs=pl.BlockSpec((B, n_blk), lambda j: (0, j)),
    )

    out_pad = pl.pallas_call(
        _linear_kernel,
        out_shape=jax.ShapeDtypeStruct((B, Np), jnp.float32),
        grid_spec=grid_spec,
        compiler_params=pltpu.CompilerParams(
            dimension_semantics=("parallel",),
            vmem_limit_bytes=vmem_limit,
        ),
    )(x2d, w_kn_pad, bias_pad)

    return out_pad[:, :n_out]


def model_forward(x_nchw, w_kn_pad, bias_pad):
    """Reproduces M.forward: flatten(1) then Linear(2560 -> 1000).
    Takes the pre-transposed / pre-padded bf16 weight (prepared once)."""
    B = x_nchw.shape[0]
    x2d = x_nchw.reshape(B, -1)          # flatten(1): [B, 2560, 1, 1] -> [B, 2560]
    return linear_pallas(x2d, w_kn_pad, bias_pad)


if __name__ == "__main__":
    BATCH = 1

    key = jax.random.PRNGKey(0)
    kx, kw, kb = jax.random.split(key, 3)

    # input matching the module: [1, 2560, 1, 1]
    x = jax.random.normal(kx, (BATCH, IN_FEATURES, 1, 1), dtype=jnp.float32)

    # deterministic PyTorch-style Linear init: U(-1/sqrt(K), 1/sqrt(K))
    bound = 1.0 / (IN_FEATURES ** 0.5)
    w_nk = jax.random.uniform(
        kw, (OUT_FEATURES, IN_FEATURES), minval=-bound, maxval=bound,
        dtype=jnp.float32)
    bias = jax.random.uniform(
        kb, (OUT_FEATURES,), minval=-bound, maxval=bound, dtype=jnp.float32)

    # one-time weight prep (transpose + pad + bf16) — NOT on the per-call path
    w_kn_pad, bias_pad = prepare_linear_params(w_nk, bias)
    w_kn_pad, bias_pad = jax.block_until_ready((w_kn_pad, bias_pad))

    fwd = jax.jit(model_forward)
    out = fwd(x, w_kn_pad, bias_pad)
    out = jax.block_until_ready(out)

    # reference 1: same bf16 weight / bf16 activation path in plain JAX
    x2d = x.reshape(BATCH, -1)
    ref_bf16 = (jnp.dot(x2d.astype(jnp.bfloat16),
                        w_kn_pad[:, :OUT_FEATURES],
                        preferred_element_type=jnp.float32)
                + bias_pad[:, :OUT_FEATURES])
    # reference 2: original f32 module semantics (loose tol due to bf16 weights)
    ref_f32 = x2d @ w_nk.T + bias

    assert out.shape == (BATCH, OUT_FEATURES)
    assert jnp.allclose(out, ref_bf16, atol=1e-3, rtol=1e-3)
    assert jnp.allclose(out, ref_f32, atol=3e-2, rtol=3e-2)

    print("KERNEL_OK")
</pallas_src>

<mosaic_0001>
module attributes {stable_mosaic.version = 11 : i64} {
  func.func @_linear_kernel(%arg0: i32, %arg1: memref<1x2560xf32, #tpu.memory_space<vmem>>, %arg2: memref<2560x1024xbf16, #tpu.memory_space<vmem>>, %arg3: memref<1x1024xf32, #tpu.memory_space<vmem>>, %arg4: memref<1x1024xf32, #tpu.memory_space<vmem>>) attributes {dimension_semantics = [#tpu.dimension_semantics<parallel>], iteration_bounds = array<i64: 1>, scalar_prefetch = 0 : i64, scratch_operands = 0 : i64, tpu.core_type = #tpu.core_type<tc>, window_params = [{pipeline_mode = #tpu.pipeline_mode<synchronous>, transform_indices = @transform_0, window_bounds = array<i64: 1, 2560>}, {transform_indices = @transform_1, window_bounds = array<i64: 2560, 1024>}, {transform_indices = @transform_2, window_bounds = array<i64: 1, 1024>}, {transform_indices = @transform_3, window_bounds = array<i64: 1, 1024>}]} {
    %c0 = arith.constant 0 : index
    %c0_0 = arith.constant 0 : index
    %0 = vector.load %arg1[%c0, %c0_0] : memref<1x2560xf32, #tpu.memory_space<vmem>>, vector<1x2560xf32>
    %1 = arith.truncf %0 : vector<1x2560xf32> to vector<1x2560xbf16>
    %c0_1 = arith.constant 0 : index
    %c0_2 = arith.constant 0 : index
    %2 = vector.load %arg2[%c0_1, %c0_2] : memref<2560x1024xbf16, #tpu.memory_space<vmem>>, vector<2560x1024xbf16>
    %cst = arith.constant dense<0.000000e+00> : vector<1x1024xf32>
    %3 = tpu.matmul %1, %2, %cst {dimension_numbers = #tpu.dot_dimension_numbers<[1], [0], [0], [1], [0, 0, 1, 1], [], []>} : vector<1x2560xbf16>, vector<2560x1024xbf16>, vector<1x1024xf32> -> vector<1x1024xf32>
    %c0_3 = arith.constant 0 : index
    %c0_4 = arith.constant 0 : index
    %4 = vector.load %arg3[%c0_3, %c0_4] : memref<1x1024xf32, #tpu.memory_space<vmem>>, vector<1x1024xf32>
    %5 = arith.addf %3, %4 : vector<1x1024xf32>
    %c0_5 = arith.constant 0 : index
    %c0_6 = arith.constant 0 : index
    %6 = vector.load %arg4[%c0_5, %c0_6] : memref<1x1024xf32, #tpu.memory_space<vmem>>, vector<1x1024xf32>
    tpu.vector_store %arg4[%c0_5, %c0_6], %5 {strides = array<i32>} : memref<1x1024xf32, #tpu.memory_space<vmem>>, vector<1x1024xf32>,
    return
  }
  func.func @transform_0(%arg0: i32) -> (i32, i32) {
    %c0_i32 = arith.constant 0 : i32
    %c0_i32_0 = arith.constant 0 : i32
    %c0_i32_1 = arith.constant 0 : i32
    return %c0_i32, %c0_i32_0 : i32, i32
  }
  func.func @transform_1(%arg0: i32) -> (i32, i32) {
    %c0_i32 = arith.constant 0 : i32
    %c0_i32_0 = arith.constant 0 : i32
    return %c0_i32, %arg0 : i32, i32
  }
  func.func @transform_2(%arg0: i32) -> (i32, i32) {
    %c0_i32 = arith.constant 0 : i32
    %c0_i32_0 = arith.constant 0 : i32
    return %c0_i32, %arg0 : i32, i32
  }
  func.func @transform_3(%arg0: i32) -> (i32, i32) {
    %c0_i32 = arith.constant 0 : i32
    %c0_i32_0 = arith.constant 0 : i32
    return %c0_i32, %arg0 : i32, i32
  }
}

</mosaic_0001>

<llo_original>
// kernel: model_forward.1
$region0: #{model_forward.1}
  #allocation0 [shape = 'u32[]', space=smem, size = 0x4, offset = 0x4, fixed_abs, tag = 'smem constant byte address 0x4 - core index']
  #allocation1 [shape = 'u32[144,128]{1,0:T(1,128)}', space=vmem, size = 0x12000, scoped, tag = 'internal scratch']
  %s0 = inlined_call_operand.hbm [shape: f32[1,2560], index: 0, kind: input, shape index: {}]
  %s1 = inlined_call_operand.hbm [shape: bf16[2560,1024], index: 1, kind: input, shape index: {}]
  %s2 = inlined_call_operand.hbm [shape: f32[1,1024], index: 2, kind: input, shape index: {}]
  %s3 = inlined_call_operand.hbm [shape: f32[1,1024], index: 3, kind: output, shape index: {}]
  %s4 = sld [smem:[#allocation0]]
  $region34: #{model_forward.1} parent=0
    _
  %s6 = ssub.s32 1, %s4
  %s7 = scalar_select 0, %s6, %s4
  $region1: #{model_forward.1} parent=0
    #allocation2 [shape = 'u8[10240]{0}', space=vmem, size = 0x2800, scoped, tag = 'input window, operand 0, single buffered']
    #allocation3 [shape = 's32[1]{0}', space=sflag, size = 0x4, scoped, tag = 'scoped memory for model_forward.1']
    #allocation4 [shape = 's32[1]{0}', space=sflag, size = 0x4, scoped, tag = 'scoped memory for model_forward.1']
    #allocation5 [shape = 'u8[5242880]{0}', space=vmem, size = 0x500000, scoped, tag = 'input window, operand 1, single buffered']
    #allocation6 [shape = 's32[1]{0}', space=sflag, size = 0x4, scoped, tag = 'scoped memory for model_forward.1']
    #allocation7 [shape = 'u8[4096]{0}', space=vmem, size = 0x1000, scoped, tag = 'input window, operand 2, single buffered']
    #allocation8 [shape = 'u8[4096]{0}', space=vmem, size = 0x1000, scoped, tag = 'output window, operand 0, single buffered']
    %8 = vsyncpa [#allocation3], 0
    %9 = vsyncpa [#allocation6], 0
    %10 = vsyncpa [#allocation4], 0
    // Predicated region
    $region2: #{model_forward.1} parent=1 // pred_check
      _
    $region3: #{model_forward.1} parent=1 // pred_check_branch
      %12 = sbr.rel (0) target = $region5
    $region4: #{model_forward.1} parent=1 // pred_region
      %s14 = ssub.s32 320, 320
      %15 = vsyncadd [#allocation3], %s14
      %s17 = sshll.u32 [#allocation2], 4
      %s18 = int_to_ptr.vmem [resolvable:$true] %s17
      %20 = dma.hbm_to_vmem [thread:$0]  %s0, 320, %s18, [#allocation3]
    $region5: #{model_forward.1} parent=1 // pred_fallthru
      _
    // Predicated region
    $region6: #{model_forward.1} parent=1 // pred_check
      _
    $region7: #{model_forward.1} parent=1 // pred_check_branch
      %22 = sbr.rel (0) target = $region9
    $region8: #{model_forward.1} parent=1 // pred_region
      %s24 = ssub.s32 163840, 163840
      %25 = vsyncadd [#allocation6], %s24
      %s26 = sshll.u32 [#allocation5], 4
      %s27 = int_to_ptr.vmem [resolvable:$true] %s26
      %32 = dma.hbm_to_vmem [thread:$0]  %s1, 163840, %s27, [#allocation6], 512, 512, 32
    $region9: #{model_forward.1} parent=1 // pred_fallthru
      _
    // Predicated region
    $region10: #{model_forward.1} parent=1 // pred_check
      _
    $region11: #{model_forward.1} parent=1 // pred_check_branch
      %34 = sbr.rel (0) target = $region13
    $region12: #{model_forward.1} parent=1 // pred_region
      %s36 = ssub.s32 128, 128
      %37 = vsyncadd [#allocation6], %s36
      %s39 = sshll.u32 [#allocation7], 4
      %s40 = int_to_ptr.vmem [resolvable:$true] %s39
      %42 = dma.hbm_to_vmem [thread:$0]  %s2, 128, %s40, [#allocation6]
    $region13: #{model_forward.1} parent=1 // pred_fallthru
      _
    // Predicated region
    $region14: #{model_forward.1} parent=1 // pred_check
      _
    $region15: #{model_forward.1} parent=1 // pred_check_branch
      %44 = sbr.rel (0) target = $region17
    $region16: #{model_forward.1} parent=1 // pred_region
      %45 = dma.done [#allocation3], 320
    $region17: #{model_forward.1} parent=1 // pred_fallthru
      _
    // Predicated region
    $region18: #{model_forward.1} parent=1 // pred_check
      _
    $region19: #{model_forward.1} parent=1 // pred_check_branch
      %47 = sbr.rel (0) target = $region21
    $region20: #{model_forward.1} parent=1 // pred_region
      %48 = dma.done [#allocation6], 163840
    $region21: #{model_forward.1} parent=1 // pred_fallthru
      _
    // Predicated region
    $region22: #{model_forward.1} parent=1 // pred_check
      _
    $region23: #{model_forward.1} parent=1 // pred_check_branch
      %50 = sbr.rel (0) target = $region25
    $region24: #{model_forward.1} parent=1 // pred_region
      %51 = dma.done [#allocation6], 128
    $region25: #{model_forward.1} parent=1 // pred_fallthru
      _
    %v52 = vld [vmem:[#allocation2] sm:$0xff]
    %v53 = vld [vmem:[#allocation2 + $0x8] sm:$0xff]
    %v54 = vld [vmem:[#allocation2 + $0x10] sm:$0xf]
    %v58 = vlaneseq
    %v59 = vshrl.u32 %v58, 7
    %v60 = vsub.s32 0, %v59
    %v61 = vrot.slane %v52, %v60
    %v62 = vlaneseq
    %v63 = vshrl.u32 %v62, 7
    %v64 = vsub.s32 1, %v63
    %v65 = vrot.slane %v52, %v64
    %v66 = vlaneseq
    %v67 = vshrl.u32 %v66, 7
    %v68 = vsub.s32 2, %v67
    %v69 = vrot.slane %v52, %v68
    %v70 = vlaneseq
    %v71 = vshrl.u32 %v70, 7
    %v72 = vsub.s32 3, %v71
    %v73 = vrot.slane %v52, %v72
    %v74 = vlaneseq
    %v75 = vshrl.u32 %v74, 7
    %v76 = vsub.s32 4, %v75
    %v77 = vrot.slane %v52, %v76
    %v78 = vlaneseq
    %v79 = vshrl.u32 %v78, 7
    %v80 = vsub.s32 5, %v79
    %v81 = vrot.slane %v52, %v80
    %v82 = vlaneseq
    %v83 = vshrl.u32 %v82, 7
    %v84 = vsub.s32 6, %v83
    %v85 = vrot.slane %v52, %v84
    %v86 = vlaneseq
    %v87 = vshrl.u32 %v86, 7
    %v88 = vsub.s32 7, %v87
    %v89 = vrot.slane %v52, %v88
    %v90 = vlaneseq
    %v91 = vshrl.u32 %v90, 7
    %v92 = vsub.s32 0, %v91
    %v93 = vrot.slane %v53, %v92
    %v94 = vlaneseq
    %v95 = vshrl.u32 %v94, 7
    %v96 = vsub.s32 1, %v95
    %v97 = vrot.slane %v53, %v96
    %v98 = vlaneseq
    %v99 = vshrl.u32 %v98, 7
    %v100 = vsub.s32 2, %v99
    %v101 = vrot.slane %v53, %v100
    %v102 = vlaneseq
    %v103 = vshrl.u32 %v102, 7
    %v104 = vsub.s32 3, %v103
    %v105 = vrot.slane %v53, %v104
    %v106 = vlaneseq
    %v107 = vshrl.u32 %v106, 7
    %v108 = vsub.s32 4, %v107
    %v109 = vrot.slane %v53, %v108
    %v110 = vlaneseq
    %v111 = vshrl.u32 %v110, 7
    %v112 = vsub.s32 5, %v111
    %v113 = vrot.slane %v53, %v112
    %v114 = vlaneseq
    %v115 = vshrl.u32 %v114, 7
    %v116 = vsub.s32 6, %v115
    %v117 = vrot.slane %v53, %v116
    %v118 = vlaneseq
    %v119 = vshrl.u32 %v118, 7
    %v120 = vsub.s32 7, %v119
    %v121 = vrot.slane %v53, %v120
    %v122 = vlaneseq
    %v123 = vshrl.u32 %v122, 7
    %v124 = vsub.s32 0, %v123
    %v125 = vrot.slane %v54, %v124
    %v126 = vlaneseq
    %v127 = vshrl.u32 %v126, 7
    %v128 = vsub.s32 1, %v127
    %v129 = vrot.slane %v54, %v128
    %v130 = vlaneseq
    %v131 = vshrl.u32 %v130, 7
    %v132 = vsub.s32 2, %v131
    %v133 = vrot.slane %v54, %v132
    %v134 = vlaneseq
    %v135 = vshrl.u32 %v134, 7
    %v136 = vsub.s32 3, %v135
    %v137 = vrot.slane %v54, %v136
    %v158 = vpack.c.bf16 %v61, %v61
    %v159 = vpack.c.bf16 %v65, %v65
    %v160 = vpack.c.bf16 %v69, %v69
    %v161 = vpack.c.bf16 %v73, %v73
    %v162 = vpack.c.bf16 %v77, %v77
    %v163 = vpack.c.bf16 %v81, %v81
    %v164 = vpack.c.bf16 %v85, %v85
    %v165 = vpack.c.bf16 %v89, %v89
    %v166 = vpack.c.bf16 %v93, %v93
    %v167 = vpack.c.bf16 %v97, %v97
    %v168 = vpack.c.bf16 %v101, %v101
    %v169 = vpack.c.bf16 %v105, %v105
    %v170 = vpack.c.bf16 %v109, %v109
    %v171 = vpack.c.bf16 %v113, %v113
    %v172 = vpack.c.bf16 %v117, %v117
    %v173 = vpack.c.bf16 %v121, %v121
    %v174 = vpack.c.bf16 %v125, %v125
    %v175 = vpack.c.bf16 %v129, %v129
    %v176 = vpack.c.bf16 %v133, %v133
    %v177 = vpack.c.bf16 %v137, %v137
    %v178 = vld [vmem:[#allocation5] sm:$0xff]
    %v179 = vld [vmem:[#allocation5 + $0x8] sm:$0xff]
    %v180 = vld [vmem:[#allocation5 + $0x10] sm:$0xff]
    %v181 = vld [vmem:[#allocation5 + $0x18] sm:$0xff]
    %v182 = vld [vmem:[#allocation5 + $0x20] sm:$0xff]
    %v183 = vld [vmem:[#allocation5 + $0x28] sm:$0xff]
    %v184 = vld [vmem:[#allocation5 + $0x30] sm:$0xff]
    %v185 = vld [vmem:[#allocation5 + $0x38] sm:$0xff]
    %v186 = vld [vmem:[#allocation5 + $0x40] sm:$0xff]
    %v187 = vld [vmem:[#allocation5 + $0x48] sm:$0xff]
    %v188 = vld [vmem:[#allocation5 + $0x50] sm:$0xff]
    %v189 = vld [vmem:[#allocation5 + $0x58] sm:$0xff]
    %v190 = vld [vmem:[#allocation5 + $0x60] sm:$0xff]
    %v191 = vld [vmem:[#allocation5 + $0x68] sm:$0xff]
    %v192 = vld [vmem:[#allocation5 + $0x70] sm:$0xff]
    %v193 = vld [vmem:[#allocation5 + $0x78] sm:$0xff]
    %v194 = vld [vmem:[#allocation5 + $0x80] sm:$0xff]
    %v195 = vld [vmem:[#allocation5 + $0x88] sm:$0xff]
    %v196 = vld [vmem:[#allocation5 + $0x90] sm:$0xff]
    %v197 = vld [vmem:[#allocation5 + $0x98] sm:$0xff]
    %v198 = vld [vmem:[#allocation5 + $0xa0] sm:$0xff]
    %v199 = vld [vmem:[#allocation5 + $0xa8] sm:$0xff]
    %v200 = vld [vmem:[#allocation5 + $0xb0] sm:$0xff]
    %v201 = vld [vmem:[#allocation5 + $0xb8] sm:$0xff]
    %v202 = vld [vmem:[#allocation5 + $0xc0] sm:$0xff]
    %v203 = vld [vmem:[#allocation5 + $0xc8] sm:$0xff]
    %v204 = vld [vmem:[#allocation5 + $0xd0] sm:$0xff]
    %v205 = vld [vmem:[#allocation5 + $0xd8] sm:$0xff]
    %v206 = vld [vmem:[#allocation5 + $0xe0] sm:$0xff]
    %v207 = vld [vmem:[#allocation5 + $0xe8] sm:$0xff]
    %v208 = vld [vmem:[#allocation5 + $0xf0] sm:$0xff]
    %v209 = vld [vmem:[#allocation5 + $0xf8] sm:$0xff]
    %v210 = vld [vmem:[#allocation5 + $0x100] sm:$0xff]
    %v211 = vld [vmem:[#allocation5 + $0x108] sm:$0xff]
    %v212 = vld [vmem:[#allocation5 + $0x110] sm:$0xff]
    %v213 = vld [vmem:[#allocation5 + $0x118] sm:$0xff]
    %v214 = vld [vmem:[#allocation5 + $0x120] sm:$0xff]
    %v215 = vld [vmem:[#allocation5 + $0x128] sm:$0xff]
    %v216 = vld [vmem:[#allocation5 + $0x130] sm:$0xff]
    %v217 = vld [vmem:[#allocation5 + $0x138] sm:$0xff]
    %v218 = vld [vmem:[#allocation5 + $0x140] sm:$0xff]
    %v219 = vld [vmem:[#allocation5 + $0x148] sm:$0xff]
    %v220 = vld [vmem:[#allocation5 + $0x150] sm:$0xff]
    %v221 = vld [vmem:[#allocation5 + $0x158] sm:$0xff]
    %v222 = vld [vmem:[#allocation5 + $0x160] sm:$0xff]
    %v223 = vld [vmem:[#allocation5 + $0x168] sm:$0xff]
    %v224 = vld [vmem:[#allocation5 + $0x170] sm:$0xff]
    %v225 = vld [vmem:[#allocation5 + $0x178] sm:$0xff]
    %v226 = vld [vmem:[#allocation5 + $0x180] sm:$0xff]
    %v227 = vld [vmem:[#allocation5 + $0x188] sm:$0xff]
    %v228 = vld [vmem:[#allocation5 + $0x190] sm:$0xff]
    %v229 = vld [vmem:[#allocation5 + $0x198] sm:$0xff]
    %v230 = vld [vmem:[#allocation5 + $0x1a0] sm:$0xff]
    %v231 = vld [vmem:[#allocation5 + $0x1a8] sm:$0xff]
    %v232 = vld [vmem:[#allocation5 + $0x1b0] sm:$0xff]
    %v233 = vld [vmem:[#allocation5 + $0x1b8] sm:$0xff]
    %v234 = vld [vmem:[#allocation5 + $0x1c0] sm:$0xff]
    %v235 = vld [vmem:[#allocation5 + $0x1c8] sm:$0xff]
    %v236 = vld [vmem:[#allocation5 + $0x1d0] sm:$0xff]
    %v237 = vld [vmem:[#allocation5 + $0x1d8] sm:$0xff]
    %v238 = vld [vmem:[#allocation5 + $0x1e0] sm:$0xff]
    %v239 = vld [vmem:[#allocation5 + $0x1e8] sm:$0xff]
    %v240 = vld [vmem:[#allocation5 + $0x1f0] sm:$0xff]
    %v241 = vld [vmem:[#allocation5 + $0x1f8] sm:$0xff]
    %v242 = vld [vmem:[#allocation5 + $0x200] sm:$0xff]
    %v243 = vld [vmem:[#allocation5 + $0x208] sm:$0xff]
    %v244 = vld [vmem:[#allocation5 + $0x210] sm:$0xff]
    %v245 = vld [vmem:[#allocation5 + $0x218] sm:$0xff]
    %v246 = vld [vmem:[#allocation5 + $0x220] sm:$0xff]
    %v247 = vld [vmem:[#allocation5 + $0x228] sm:$0xff]
    %v248 = vld [vmem:[#allocation5 + $0x230] sm:$0xff]
    %v249 = vld [vmem:[#allocation5 + $0x238] sm:$0xff]
    %v250 = vld [vmem:[#allocation5 + $0x240] sm:$0xff]
    %v251 = vld [vmem:[#allocation5 + $0x248] sm:$0xff]
    %v252 = vld [vmem:[#allocation5 + $0x250] sm:$0xff]
    %v253 = vld [vmem:[#allocation5 + $0x258] sm:$0xff]
    %v254 = vld [vmem:[#allocation5 + $0x260] sm:$0xff]
    %v255 = vld [vmem:[#allocation5 + $0x268] sm:$0xff]
    %v256 = vld [vmem:[#allocation5 + $0x270] sm:$0xff]
    %v257 = vld [vmem:[#allocation5 + $0x278] sm:$0xff]
    %v258 = vld [vmem:[#allocation5 + $0x280] sm:$0xff]
    %v259 = vld [vmem:[#allocation5 + $0x288] sm:$0xff]
    %v260 = vld [vmem:[#allocation5 + $0x290] sm:$0xff]
    %v261 = vld [vmem:[#allocation5 + $0x298] sm:$0xff]
    %v262 = vld [vmem:[#allocation5 + $0x2a0] sm:$0xff]
    %v263 = vld [vmem:[#allocation5 + $0x2a8] sm:$0xff]
    %v264 = vld [vmem:[#allocation5 + $0x2b0] sm:$0xff]
    %v265 = vld [vmem:[#allocation5 + $0x2b8] sm:$0xff]
    %v266 = vld [vmem:[#allocation5 + $0x2c0] sm:$0xff]
    %v267 = vld [vmem:[#allocation5 + $0x2c8] sm:$0xff]
    %v268 = vld [vmem:[#allocation5 + $0x2d0] sm:$0xff]
    %v269 = vld [vmem:[#allocation5 + $0x2d8] sm:$0xff]
    %v270 = vld [vmem:[#allocation5 + $0x2e0] sm:$0xff]
    %v271 = vld [vmem:[#allocation5 + $0x2e8] sm:$0xff]
    %v272 = vld [vmem:[#allocation5 + $0x2f0] sm:$0xff]
    %v273 = vld [vmem:[#allocation5 + $0x2f8] sm:$0xff]
    %v274 = vld [vmem:[#allocation5 + $0x300] sm:$0xff]
    %v275 = vld [vmem:[#allocation5 + $0x308] sm:$0xff]
    %v276 = vld [vmem:[#allocation5 + $0x310] sm:$0xff]
    %v277 = vld [vmem:[#allocation5 + $0x318] sm:$0xff]
    %v278 = vld [vmem:[#allocation5 + $0x320] sm:$0xff]
    %v279 = vld [vmem:[#allocation5 + $0x328] sm:$0xff]
    %v280 = vld [vmem:[#allocation5 + $0x330] sm:$0xff]
    %v281 = vld [vmem:[#allocation5 + $0x338] sm:$0xff]
    %v282 = vld [vmem:[#allocation5 + $0x340] sm:$0xff]
    %v283 = vld [vmem:[#allocation5 + $0x348] sm:$0xff]
    %v284 = vld [vmem:[#allocation5 + $0x350] sm:$0xff]
    %v285 = vld [vmem:[#allocation5 + $0x358] sm:$0xff]
    %v286 = vld [vmem:[#allocation5 + $0x360] sm:$0xff]
    %v287 = vld [vmem:[#allocation5 + $0x368] sm:$0xff]
    %v288 = vld [vmem:[#allocation5 + $0x370] sm:$0xff]
    %v289 = vld [vmem:[#allocation5 + $0x378] sm:$0xff]
    %v290 = vld [vmem:[#allocation5 + $0x380] sm:$0xff]
    %v291 = vld [vmem:[#allocation5 + $0x388] sm:$0xff]
    %v292 = vld [vmem:[#allocation5 + $0x390] sm:$0xff]
    %v293 = vld [vmem:[#allocation5 + $0x398] sm:$0xff]
    %v294 = vld [vmem:[#allocation5 + $0x3a0] sm:$0xff]
    %v295 = vld [vmem:[#allocation5 + $0x3a8] sm:$0xff]
    %v296 = vld [vmem:[#allocation5 + $0x3b0] sm:$0xff]
    %v297 = vld [vmem:[#allocation5 + $0x3b8] sm:$0xff]
    %v298 = vld [vmem:[#allocation5 + $0x3c0] sm:$0xff]
    %v299 = vld [vmem:[#allocation5 + $0x3c8] sm:$0xff]
    %v300 = vld [vmem:[#allocation5 + $0x3d0] sm:$0xff]
    %v301 = vld [vmem:[#allocation5 + $0x3d8] sm:$0xff]
    %v302 = vld [vmem:[#allocation5 + $0x3e0] sm:$0xff]
    %v303 = vld [vmem:[#allocation5 + $0x3e8] sm:$0xff]
    %v304 = vld [vmem:[#allocation5 + $0x3f0] sm:$0xff]
    %v305 = vld [vmem:[#allocation5 + $0x3f8] sm:$0xff]
    %v306 = vld [vmem:[#allocation5 + $0x400] sm:$0xff]
    %v307 = vld [vmem:[#allocation5 + $0x408] sm:$0xff]
    %v308 = vld [vmem:[#allocation5 + $0x410] sm:$0xff]
    %v309 = vld [vmem:[#allocation5 + $0x418] sm:$0xff]
    %v310 = vld [vmem:[#allocation5 + $0x420] sm:$0xff]
    %v311 = vld [vmem:[#allocation5 + $0x428] sm:$0xff]
    %v312 = vld [vmem:[#allocation5 + $0x430] sm:$0xff]
    %v313 = vld [vmem:[#allocation5 + $0x438] sm:$0xff]
    %v314 = vld [vmem:[#allocation5 + $0x440] sm:$0xff]
    %v315 = vld [vmem:[#allocation5 + $0x448] sm:$0xff]
    %v316 = vld [vmem:[#allocation5 + $0x450] sm:$0xff]
    %v317 = vld [vmem:[#allocation5 + $0x458] sm:$0xff]
    %v318 = vld [vmem:[#allocation5 + $0x460] sm:$0xff]
    %v319 = vld [vmem:[#allocation5 + $0x468] sm:$0xff]
    %v320 = vld [vmem:[#allocation5 + $0x470] sm:$0xff]
    %v321 = vld [vmem:[#allocation5 + $0x478] sm:$0xff]
    %v322 = vld [vmem:[#allocation5 + $0x480] sm:$0xff]
    %v323 = vld [vmem:[#allocation5 + $0x488] sm:$0xff]
    %v324 = vld [vmem:[#allocation5 + $0x490] sm:$0xff]
    %v325 = vld [vmem:[#allocation5 + $0x498] sm:$0xff]
    %v326 = vld [vmem:[#allocation5 + $0x4a0] sm:$0xff]
    %v327 = vld [vmem:[#allocation5 + $0x4a8] sm:$0xff]
    %v328 = vld [vmem:[#allocation5 + $0x4b0] sm:$0xff]
    %v329 = vld [vmem:[#allocation5 + $0x4b8] sm:$0xff]
    %v330 = vld [vmem:[#allocation5 + $0x4c0] sm:$0xff]
    %v331 = vld [vmem:[#allocation5 + $0x4c8] sm:$0xff]
    %v332 = vld [vmem:[#allocation5 + $0x4d0] sm:$0xff]
    %v333 = vld [vmem:[#allocation5 + $0x4d8] sm:$0xff]
    %v334 = vld [vmem:[#allocation5 + $0x4e0] sm:$0xff]
    %v335 = vld [vmem:[#allocation5 + $0x4e8] sm:$0xff]
    %v336 = vld [vmem:[#allocation5 + $0x4f0] sm:$0xff]
    %v337 = vld [vmem:[#allocation5 + $0x4f8] sm:$0xff]
    %v338 = vld [vmem:[#allocation5 + $0x500] sm:$0xff]
    %v339 = vld [vmem:[#allocation5 + $0x508] sm:$0xff]
    %v340 = vld [vmem:[#allocation5 + $0x510] sm:$0xff]
    %v341 = vld [vmem:[#allocation5 + $0x518] sm:$0xff]
    %v342 = vld [vmem:[#allocation5 + $0x520] sm:$0xff]
    %v343 = vld [vmem:[#allocation5 + $0x528] sm:$0xff]
    %v344 = vld [vmem:[#allocation5 + $0x530] sm:$0xff]
    %v345 = vld [vmem:[#allocation5 + $0x538] sm:$0xff]
    %v346 = vld [vmem:[#allocation5 + $0x540] sm:$0xff]
    %v347 = vld [vmem:[#allocation5 + $0x548] sm:$0xff]
    %v348 = vld [vmem:[#allocation5 + $0x550] sm:$0xff]
    %v349 = vld [vmem:[#allocation5 + $0x558] sm:$0xff]
    %v350 = vld [vmem:[#allocation5 + $0x560] sm:$0xff]
    %v351 = vld [vmem:[#allocation5 + $0x568] sm:$0xff]
    %v352 = vld [vmem:[#allocation5 + $0x570] sm:$0xff]
    %v353 = vld [vmem:[#allocation5 + $0x578] sm:$0xff]
    %v354 = vld [vmem:[#allocation5 + $0x580] sm:$0xff]
    %v355 = vld [vmem:[#allocation5 + $0x588] sm:$0xff]
    %v356 = vld [vmem:[#allocation5 + $0x590] sm:$0xff]
    %v357 = vld [vmem:[#allocation5 + $0x598] sm:$0xff]
    %v358 = vld [vmem:[#allocation5 + $0x5a0] sm:$0xff]
    %v359 = vld [vmem:[#allocation5 + $0x5a8] sm:$0xff]
    %v360 = vld [vmem:[#allocation5 + $0x5b0] sm:$0xff]
    %v361 = vld [vmem:[#allocation5 + $0x5b8] sm:$0xff]
    %v362 = vld [vmem:[#allocation5 + $0x5c0] sm:$0xff]
    %v363 = vld [vmem:[#allocation5 + $0x5c8] sm:$0xff]
    %v364 = vld [vmem:[#allocation5 + $0x5d0] sm:$0xff]
    %v365 = vld [vmem:[#allocation5 + $0x5d8] sm:$0xff]
    %v366 = vld [vmem:[#allocation5 + $0x5e0] sm:$0xff]
    %v367 = vld [vmem:[#allocation5 + $0x5e8] sm:$0xff]
    %v368 = vld [vmem:[#allocation5 + $0x5f0] sm:$0xff]
    %v369 = vld [vmem:[#allocation5 + $0x5f8] sm:$0xff]
    %v370 = vld [vmem:[#allocation5 + $0x600] sm:$0xff]
    %v371 = vld [vmem:[#allocation5 + $0x608] sm:$0xff]
    %v372 = vld [vmem:[#allocation5 + $0x610] sm:$0xff]
    %v373 = vld [vmem:[#allocation5 + $0x618] sm:$0xff]
    %v374 = vld [vmem:[#allocation5 + $0x620] sm:$0xff]
    %v375 = vld [vmem:[#allocation5 + $0x628] sm:$0xff]
    %v376 = vld [vmem:[#allocation5 + $0x630] sm:$0xff]
    %v377 = vld [vmem:[#allocation5 + $0x638] sm:$0xff]
    %v378 = vld [vmem:[#allocation5 + $0x640] sm:$0xff]
    %v379 = vld [vmem:[#allocation5 + $0x648] sm:$0xff]
    %v380 = vld [vmem:[#allocation5 + $0x650] sm:$0xff]
    %v381 = vld [vmem:[#allocation5 + $0x658] sm:$0xff]
    %v382 = vld [vmem:[#allocation5 + $0x660] sm:$0xff]
    %v383 = vld [vmem:[#allocation5 + $0x668] sm:$0xff]
    %v384 = vld [vmem:[#allocation5 + $0x670] sm:$0xff]
    %v385 = vld [vmem:[#allocation5 + $0x678] sm:$0xff]
    %v386 = vld [vmem:[#allocation5 + $0x680] sm:$0xff]
    %v387 = vld [vmem:[#allocation5 + $0x688] sm:$0xff]
    %v388 = vld [vmem:[#allocation5 + $0x690] sm:$0xff]
    %v389 = vld [vmem:[#allocation5 + $0x698] sm:$0xff]
    %v390 = vld [vmem:[#allocation5 + $0x6a0] sm:$0xff]
    %v391 = vld [vmem:[#allocation5 + $0x6a8] sm:$0xff]
    %v392 = vld [vmem:[#allocation5 + $0x6b0] sm:$0xff]
    %v393 = vld [vmem:[#allocation5 + $0x6b8] sm:$0xff]
    %v394 = vld [vmem:[#allocation5 + $0x6c0] sm:$0xff]
    %v395 = vld [vmem:[#allocation5 + $0x6c8] sm:$0xff]
    %v396 = vld [vmem:[#allocation5 + $0x6d0] sm:$0xff]
    %v397 = vld [vmem:[#allocation5 + $0x6d8] sm:$0xff]
    %v398 = vld [vmem:[#allocation5 + $0x6e0] sm:$0xff]
    %v399 = vld [vmem:[#allocation5 + $0x6e8] sm:$0xff]
    %v400 = vld [vmem:[#allocation5 + $0x6f0] sm:$0xff]
    %v401 = vld [vmem:[#allocation5 + $0x6f8] sm:$0xff]
    %v402 = vld [vmem:[#allocation5 + $0x700] sm:$0xff]
    %v403 = vld [vmem:[#allocation5 + $0x708] sm:$0xff]
    %v404 = vld [vmem:[#allocation5 + $0x710] sm:$0xff]
    %v405 = vld [vmem:[#allocation5 + $0x718] sm:$0xff]
    %v406 = vld [vmem:[#allocation5 + $0x720] sm:$0xff]
    %v407 = vld [vmem:[#allocation5 + $0x728] sm:$0xff]
    %v408 = vld [vmem:[#allocation5 + $0x730] sm:$0xff]
    %v409 = vld [vmem:[#allocation5 + $0x738] sm:$0xff]
    %v410 = vld [vmem:[#allocation5 + $0x740] sm:$0xff]
    %v411 = vld [vmem:[#allocation5 + $0x748] sm:$0xff]
    %v412 = vld [vmem:[#allocation5 + $0x750] sm:$0xff]
    %v413 = vld [vmem:[#allocation5 + $0x758] sm:$0xff]
    %v414 = vld [vmem:[#allocation5 + $0x760] sm:$0xff]
    %v415 = vld [vmem:[#allocation5 + $0x768] sm:$0xff]
    %v416 = vld [vmem:[#allocation5 + $0x770] sm:$0xff]
    %v417 = vld [vmem:[#allocation5 + $0x778] sm:$0xff]
    %v418 = vld [vmem:[#allocation5 + $0x780] sm:$0xff]
    %v419 = vld [vmem:[#allocation5 + $0x788] sm:$0xff]
    %v420 = vld [vmem:[#allocation5 + $0x790] sm:$0xff]
    %v421 = vld [vmem:[#allocation5 + $0x798] sm:$0xff]
    %v422 = vld [vmem:[#allocation5 + $0x7a0] sm:$0xff]
    %v423 = vld [vmem:[#allocation5 + $0x7a8] sm:$0xff]
    %v424 = vld [vmem:[#allocation5 + $0x7b0] sm:$0xff]
    %v425 = vld [vmem:[#allocation5 + $0x7b8] sm:$0xff]
    %v426 = vld [vmem:[#allocation5 + $0x7c0] sm:$0xff]
    %v427 = vld [vmem:[#allocation5 + $0x7c8] sm:$0xff]
    %v428 = vld [vmem:[#allocation5 + $0x7d0] sm:$0xff]
    %v429 = vld [vmem:[#allocation5 + $0x7d8] sm:$0xff]
    %v430 = vld [vmem:[#allocation5 + $0x7e0] sm:$0xff]
    %v431 = vld [vmem:[#allocation5 + $0x7e8] sm:$0xff]
    %v432 = vld [vmem:[#allocation5 + $0x7f0] sm:$0xff]
    %v433 = vld [vmem:[#allocation5 + $0x7f8] sm:$0xff]
    %v434 = vld [vmem:[#allocation5 + $0x800] sm:$0xff]
    %v435 = vld [vmem:[#allocation5 + $0x808] sm:$0xff]
    %v436 = vld [vmem:[#allocation5 + $0x810] sm:$0xff]
    %v437 = vld [vmem:[#allocation5 + $0x818] sm:$0xff]
    %v438 = vld [vmem:[#allocation5 + $0x820] sm:$0xff]
    %v439 = vld [vmem:[#allocation5 + $0x828] sm:$0xff]
    %v440 = vld [vmem:[#allocation5 + $0x830] sm:$0xff]
    %v441 = vld [vmem:[#allocation5 + $0x838] sm:$0xff]
    %v442 = vld [vmem:[#allocation5 + $0x840] sm:$0xff]
    %v443 = vld [vmem:[#allocation5 + $0x848] sm:$0xff]
    %v444 = vld [vmem:[#allocation5 + $0x850] sm:$0xff]
    %v445 = vld [vmem:[#allocation5 + $0x858] sm:$0xff]
    %v446 = vld [vmem:[#allocation5 + $0x860] sm:$0xff]
    %v447 = vld [vmem:[#allocation5 + $0x868] sm:$0xff]
    %v448 = vld [vmem:[#allocation5 + $0x870] sm:$0xff]
    %v449 = vld [vmem:[#allocation5 + $0x878] sm:$0xff]
    %v450 = vld [vmem:[#allocation5 + $0x880] sm:$0xff]
    %v451 = vld [vmem:[#allocation5 + $0x888] sm:$0xff]
    %v452 = vld [vmem:[#allocation5 + $0x890] sm:$0xff]
    %v453 = vld [vmem:[#allocation5 + $0x898] sm:$0xff]
    %v454 = vld [vmem:[#allocation5 + $0x8a0] sm:$0xff]
    %v455 = vld [vmem:[#allocation5 + $0x8a8] sm:$0xff]
    %v456 = vld [vmem:[#allocation5 + $0x8b0] sm:$0xff]
    %v457 = vld [vmem:[#allocation5 + $0x8b8] sm:$0xff]
    %v458 = vld [vmem:[#allocation5 + $0x8c0] sm:$0xff]
    %v459 = vld [vmem:[#allocation5 + $0x8c8] sm:$0xff]
    %v460 = vld [vmem:[#allocation5 + $0x8d0] sm:$0xff]
    %v461 = vld [vmem:[#allocation5 + $0x8d8] sm:$0xff]
    %v462 = vld [vmem:[#allocation5 + $0x8e0] sm:$0xff]
    %v463 = vld [vmem:[#allocation5 + $0x8e8] sm:$0xff]
    %v464 = vld [vmem:[#allocation5 + $0x8f0] sm:$0xff]
    %v465 = vld [vmem:[#allocation5 + $0x8f8] sm:$0xff]
    %v466 = vld [vmem:[#allocation5 + $0x900] sm:$0xff]
    %v467 = vld [vmem:[#allocation5 + $0x908] sm:$0xff]
    %v468 = vld [vmem:[#allocation5 + $0x910] sm:$0xff]
    %v469 = vld [vmem:[#allocation5 + $0x918] sm:$0xff]
    %v470 = vld [vmem:[#allocation5 + $0x920] sm:$0xff]
    %v471 = vld [vmem:[#allocation5 + $0x928] sm:$0xff]
    %v472 = vld [vmem:[#allocation5 + $0x930] sm:$0xff]
    %v473 = vld [vmem:[#allocation5 + $0x938] sm:$0xff]
    %v474 = vld [vmem:[#allocation5 + $0x940] sm:$0xff]
    %v475 = vld [vmem:[#allocation5 + $0x948] sm:$0xff]
    %v476 = vld [vmem:[#allocation5 + $0x950] sm:$0xff]
    %v477 = vld [vmem:[#allocation5 + $0x958] sm:$0xff]
    %v478 = vld [vmem:[#allocation5 + $0x960] sm:$0xff]
    %v479 = vld [vmem:[#allocation5 + $0x968] sm:$0xff]
    %v480 = vld [vmem:[#allocation5 + $0x970] sm:$0xff]
    %v481 = vld [vmem:[#allocation5 + $0x978] sm:$0xff]
    %v482 = vld [vmem:[#allocation5 + $0x980] sm:$0xff]
    %v483 = vld [vmem:[#allocation5 + $0x988] sm:$0xff]
    %v484 = vld [vmem:[#allocation5 + $0x990] sm:$0xff]
    %v485 = vld [vmem:[#allocation5 + $0x998] sm:$0xff]
    %v486 = vld [vmem:[#allocation5 + $0x9a0] sm:$0xff]
    %v487 = vld [vmem:[#allocation5 + $0x9a8] sm:$0xff]
    %v488 = vld [vmem:[#allocation5 + $0x9b0] sm:$0xff]
    %v489 = vld [vmem:[#allocation5 + $0x9b8] sm:$0xff]
    %v490 = vld [vmem:[#allocation5 + $0x9c0] sm:$0xff]
    %v491 = vld [vmem:[#allocation5 + $0x9c8] sm:$0xff]
    %v492 = vld [vmem:[#allocation5 + $0x9d0] sm:$0xff]
    %v493 = vld [vmem:[#allocation5 + $0x9d8] sm:$0xff]
    %v494 = vld [vmem:[#allocation5 + $0x9e0] sm:$0xff]
    %v495 = vld [vmem:[#allocation5 + $0x9e8] sm:$0xff]
    %v496 = vld [vmem:[#allocation5 + $0x9f0] sm:$0xff]
    %v497 = vld [vmem:[#allocation5 + $0x9f8] sm:$0xff]
    %v498 = vld [vmem:[#allocation5 + $0xa00] sm:$0xff]
    %v499 = vld [vmem:[#allocation5 + $0xa08] sm:$0xff]
    %v500 = vld [vmem:[#allocation5 + $0xa10] sm:$0xff]
    %v501 = vld [vmem:[#allocation5 + $0xa18] sm:$0xff]
    %v502 = vld [vmem:[#allocation5 + $0xa20] sm:$0xff]
    %v503 = vld [vmem:[#allocation5 + $0xa28] sm:$0xff]
    %v504 = vld [vmem:[#allocation5 + $0xa30] sm:$0xff]
    %v505 = vld [vmem:[#allocation5 + $0xa38] sm:$0xff]
    %v506 = vld [vmem:[#allocation5 + $0xa40] sm:$0xff]
    %v507 = vld [vmem:[#allocation5 + $0xa48] sm:$0xff]
    %v508 = vld [vmem:[#allocation5 + $0xa50] sm:$0xff]
    %v509 = vld [vmem:[#allocation5 + $0xa58] sm:$0xff]
    %v510 = vld [vmem:[#allocation5 + $0xa60] sm:$0xff]
    %v511 = vld [vmem:[#allocation5 + $0xa68] sm:$0xff]
    %v512 = vld [vmem:[#allocation5 + $0xa70] sm:$0xff]
    %v513 = vld [vmem:[#allocation5 + $0xa78] sm:$0xff]
    %v514 = vld [vmem:[#allocation5 + $0xa80] sm:$0xff]
    %v515 = vld [vmem:[#allocation5 + $0xa88] sm:$0xff]
    %v516 = vld [vmem:[#allocation5 + $0xa90] sm:$0xff]
    %v517 = vld [vmem:[#allocation5 + $0xa98] sm:$0xff]
    %v518 = vld [vmem:[#allocation5 + $0xaa0] sm:$0xff]
    %v519 = vld [vmem:[#allocation5 + $0xaa8] sm:$0xff]
    %v520 = vld [vmem:[#allocation5 + $0xab0] sm:$0xff]
    %v521 = vld [vmem:[#allocation5 + $0xab8] sm:$0xff]
    %v522 = vld [vmem:[#allocation5 + $0xac0] sm:$0xff]
    %v523 = vld [vmem:[#allocation5 + $0xac8] sm:$0xff]
    %v524 = vld [vmem:[#allocation5 + $0xad0] sm:$0xff]
    %v525 = vld [vmem:[#allocation5 + $0xad8] sm:$0xff]
    %v526 = vld [vmem:[#allocation5 + $0xae0] sm:$0xff]
    %v527 = vld [vmem:[#allocation5 + $0xae8] sm:$0xff]
    %v528 = vld [vmem:[#allocation5 + $0xaf0] sm:$0xff]
    %v529 = vld [vmem:[#allocation5 + $0xaf8] sm:$0xff]
    %v530 = vld [vmem:[#allocation5 + $0xb00] sm:$0xff]
    %v531 = vld [vmem:[#allocation5 + $0xb08] sm:$0xff]
    %v532 = vld [vmem:[#allocation5 + $0xb10] sm:$0xff]
    %v533 = vld [vmem:[#allocation5 + $0xb18] sm:$0xff]
    %v534 = vld [vmem:[#allocation5 + $0xb20] sm:$0xff]
    %v535 = vld [vmem:[#allocation5 + $0xb28] sm:$0xff]
    %v536 = vld [vmem:[#allocation5 + $0xb30] sm:$0xff]
    %v537 = vld [vmem:[#allocation5 + $0xb38] sm:$0xff]
    %v538 = vld [vmem:[#allocation5 + $0xb40] sm:$0xff]
    %v539 = vld [vmem:[#allocation5 + $0xb48] sm:$0xff]
    %v540 = vld [vmem:[#allocation5 + $0xb50] sm:$0xff]
    %v541 = vld [vmem:[#allocation5 + $0xb58] sm:$0xff]
    %v542 = vld [vmem:[#allocation5 + $0xb60] sm:$0xff]
    %v543 = vld [vmem:[#allocation5 + $0xb68] sm:$0xff]
    %v544 = vld [vmem:[#allocation5 + $0xb70] sm:$0xff]
    %v545 = vld [vmem:[#allocation5 + $0xb78] sm:$0xff]
    %v546 = vld [vmem:[#allocation5 + $0xb80] sm:$0xff]
    %v547 = vld [vmem:[#allocation5 + $0xb88] sm:$0xff]
    %v548 = vld [vmem:[#allocation5 + $0xb90] sm:$0xff]
    %v549 = vld [vmem:[#allocation5 + $0xb98] sm:$0xff]
    %v550 = vld [vmem:[#allocation5 + $0xba0] sm:$0xff]
    %v551 = vld [vmem:[#allocation5 + $0xba8] sm:$0xff]
    %v552 = vld [vmem:[#allocation5 + $0xbb0] sm:$0xff]
    %v553 = vld [vmem:[#allocation5 + $0xbb8] sm:$0xff]
    %v554 = vld [vmem:[#allocation5 + $0xbc0] sm:$0xff]
    %v555 = vld [vmem:[#allocation5 + $0xbc8] sm:$0xff]
    %v556 = vld [vmem:[#allocation5 + $0xbd0] sm:$0xff]
    %v557 = vld [vmem:[#allocation5 + $0xbd8] sm:$0xff]
    %v558 = vld [vmem:[#allocation5 + $0xbe0] sm:$0xff]
    %v559 = vld [vmem:[#allocation5 + $0xbe8] sm:$0xff]
    %v560 = vld [vmem:[#allocation5 + $0xbf0] sm:$0xff]
    %v561 = vld [vmem:[#allocation5 + $0xbf8] sm:$0xff]
    %v562 = vld [vmem:[#allocation5 + $0xc00] sm:$0xff]
    %v563 = vld [vmem:[#allocation5 + $0xc08] sm:$0xff]
    %v564 = vld [vmem:[#allocation5 + $0xc10] sm:$0xff]
    %v565 = vld [vmem:[#allocation5 + $0xc18] sm:$0xff]
    %v566 = vld [vmem:[#allocation5 + $0xc20] sm:$0xff]
    %v567 = vld [vmem:[#allocation5 + $0xc28] sm:$0xff]
    %v568 = vld [vmem:[#allocation5 + $0xc30] sm:$0xff]
    %v569 = vld [vmem:[#allocation5 + $0xc38] sm:$0xff]
    %v570 = vld [vmem:[#allocation5 + $0xc40] sm:$0xff]
    %v571 = vld [vmem:[#allocation5 + $0xc48] sm:$0xff]
    %v572 = vld [vmem:[#allocation5 + $0xc50] sm:$0xff]
    %v573 = vld [vmem:[#allocation5 + $0xc58] sm:$0xff]
    %v574 = vld [vmem:[#allocation5 + $0xc60] sm:$0xff]
    %v575 = vld [vmem:[#allocation5 + $0xc68] sm:$0xff]
    %v576 = vld [vmem:[#allocation5 + $0xc70] sm:$0xff]
    %v577 = vld [vmem:[#allocation5 + $0xc78] sm:$0xff]
    %v578 = vld [vmem:[#allocation5 + $0xc80] sm:$0xff]
    %v579 = vld [vmem:[#allocation5 + $0xc88] sm:$0xff]
    %v580 = vld [vmem:[#allocation5 + $0xc90] sm:$0xff]
    %v581 = vld [vmem:[#allocation5 + $0xc98] sm:$0xff]
    %v582 = vld [vmem:[#allocation5 + $0xca0] sm:$0xff]
    %v583 = vld [vmem:[#allocation5 + $0xca8] sm:$0xff]
    %v584 = vld [vmem:[#allocation5 + $0xcb0] sm:$0xff]
    %v585 = vld [vmem:[#allocation5 + $0xcb8] sm:$0xff]
    %v586 = vld [vmem:[#allocation5 + $0xcc0] sm:$0xff]
    %v587 = vld [vmem:[#allocation5 + $0xcc8] sm:$0xff]
    %v588 = vld [vmem:[#allocation5 + $0xcd0] sm:$0xff]
    %v589 = vld [vmem:[#allocation5 + $0xcd8] sm:$0xff]
    %v590 = vld [vmem:[#allocation5 + $0xce0] sm:$0xff]
    %v591 = vld [vmem:[#allocation5 + $0xce8] sm:$0xff]
    %v592 = vld [vmem:[#allocation5 + $0xcf0] sm:$0xff]
    %v593 = vld [vmem:[#allocation5 + $0xcf8] sm:$0xff]
    %v594 = vld [vmem:[#allocation5 + $0xd00] sm:$0xff]
    %v595 = vld [vmem:[#allocation5 + $0xd08] sm:$0xff]
    %v596 = vld [vmem:[#allocation5 + $0xd10] sm:$0xff]
    %v597 = vld [vmem:[#allocation5 + $0xd18] sm:$0xff]
    %v598 = vld [vmem:[#allocation5 + $0xd20] sm:$0xff]
    %v599 = vld [vmem:[#allocation5 + $0xd28] sm:$0xff]
    %v600 = vld [vmem:[#allocation5 + $0xd30] sm:$0xff]
    %v601 = vld [vmem:[#allocation5 + $0xd38] sm:$0xff]
    %v602 = vld [vmem:[#allocation5 + $0xd40] sm:$0xff]
    %v603 = vld [vmem:[#allocation5 + $0xd48] sm:$0xff]
    %v604 = vld [vmem:[#allocation5 + $0xd50] sm:$0xff]
    %v605 = vld [vmem:[#allocation5 + $0xd58] sm:$0xff]
    %v606 = vld [vmem:[#allocation5 + $0xd60] sm:$0xff]
    %v607 = vld [vmem:[#allocation5 + $0xd68] sm:$0xff]
    %v608 = vld [vmem:[#allocation5 + $0xd70] sm:$0xff]
    %v609 = vld [vmem:[#allocation5 + $0xd78] sm:$0xff]
    %v610 = vld [vmem:[#allocation5 + $0xd80] sm:$0xff]
    %v611 = vld [vmem:[#allocation5 + $0xd88] sm:$0xff]
    %v612 = vld [vmem:[#allocation5 + $0xd90] sm:$0xff]
    %v613 = vld [vmem:[#allocation5 + $0xd98] sm:$0xff]
    %v614 = vld [vmem:[#allocation5 + $0xda0] sm:$0xff]
    %v615 = vld [vmem:[#allocation5 + $0xda8] sm:$0xff]
    %v616 = vld [vmem:[#allocation5 + $0xdb0] sm:$0xff]
    %v617 = vld [vmem:[#allocation5 + $0xdb8] sm:$0xff]
    %v618 = vld [vmem:[#allocation5 + $0xdc0] sm:$0xff]
    %v619 = vld [vmem:[#allocation5 + $0xdc8] sm:$0xff]
    %v620 = vld [vmem:[#allocation5 + $0xdd0] sm:$0xff]
    %v621 = vld [vmem:[#allocation5 + $0xdd8] sm:$0xff]
    %v622 = vld [vmem:[#allocation5 + $0xde0] sm:$0xff]
    %v623 = vld [vmem:[#allocation5 + $0xde8] sm:$0xff]
    %v624 = vld [vmem:[#allocation5 + $0xdf0] sm:$0xff]
    %v625 = vld [vmem:[#allocation5 + $0xdf8] sm:$0xff]
    %v626 = vld [vmem:[#allocation5 + $0xe00] sm:$0xff]
    %v627 = vld [vmem:[#allocation5 + $0xe08] sm:$0xff]
    %v628 = vld [vmem:[#allocation5 + $0xe10] sm:$0xff]
    %v629 = vld [vmem:[#allocation5 + $0xe18] sm:$0xff]
    %v630 = vld [vmem:[#allocation5 + $0xe20] sm:$0xff]
    %v631 = vld [vmem:[#allocation5 + $0xe28] sm:$0xff]
    %v632 = vld [vmem:[#allocation5 + $0xe30] sm:$0xff]
    %v633 = vld [vmem:[#allocation5 + $0xe38] sm:$0xff]
    %v634 = vld [vmem:[#allocation5 + $0xe40] sm:$0xff]
    %v635 = vld [vmem:[#allocation5 + $0xe48] sm:$0xff]
    %v636 = vld [vmem:[#allocation5 + $0xe50] sm:$0xff]
    %v637 = vld [vmem:[#allocation5 + $0xe58] sm:$0xff]
    %v638 = vld [vmem:[#allocation5 + $0xe60] sm:$0xff]
    %v639 = vld [vmem:[#allocation5 + $0xe68] sm:$0xff]
    %v640 = vld [vmem:[#allocation5 + $0xe70] sm:$0xff]
    %v641 = vld [vmem:[#allocation5 + $0xe78] sm:$0xff]
    %v642 = vld [vmem:[#allocation5 + $0xe80] sm:$0xff]
    %v643 = vld [vmem:[#allocation5 + $0xe88] sm:$0xff]
    %v644 = vld [vmem:[#allocation5 + $0xe90] sm:$0xff]
    %v645 = vld [vmem:[#allocation5 + $0xe98] sm:$0xff]
    %v646 = vld [vmem:[#allocation5 + $0xea0] sm:$0xff]
    %v647 = vld [vmem:[#allocation5 + $0xea8] sm:$0xff]
    %v648 = vld [vmem:[#allocation5 + $0xeb0] sm:$0xff]
    %v649 = vld [vmem:[#allocation5 + $0xeb8] sm:$0xff]
    %v650 = vld [vmem:[#allocation5 + $0xec0] sm:$0xff]
    %v651 = vld [vmem:[#allocation5 + $0xec8] sm:$0xff]
    %v652 = vld [vmem:[#allocation5 + $0xed0] sm:$0xff]
    %v653 = vld [vmem:[#allocation5 + $0xed8] sm:$0xff]
    %v654 = vld [vmem:[#allocation5 + $0xee0] sm:$0xff]
    %v655 = vld [vmem:[#allocation5 + $0xee8] sm:$0xff]
    %v656 = vld [vmem:[#allocation5 + $0xef0] sm:$0xff]
    %v657 = vld [vmem:[#allocation5 + $0xef8] sm:$0xff]
    %v658 = vld [vmem:[#allocation5 + $0xf00] sm:$0xff]
    %v659 = vld [vmem:[#allocation5 + $0xf08] sm:$0xff]
    %v660 = vld [vmem:[#allocation5 + $0xf10] sm:$0xff]
    %v661 = vld [vmem:[#allocation5 + $0xf18] sm:$0xff]
    %v662 = vld [vmem:[#allocation5 + $0xf20] sm:$0xff]
    %v663 = vld [vmem:[#allocation5 + $0xf28] sm:$0xff]
    %v664 = vld [vmem:[#allocation5 + $0xf30] sm:$0xff]
    %v665 = vld [vmem:[#allocation5 + $0xf38] sm:$0xff]
    %v666 = vld [vmem:[#allocation5 + $0xf40] sm:$0xff]
    %v667 = vld [vmem:[#allocation5 + $0xf48] sm:$0xff]
    %v668 = vld [vmem:[#allocation5 + $0xf50] sm:$0xff]
    %v669 = vld [vmem:[#allocation5 + $0xf58] sm:$0xff]
    %v670 = vld [vmem:[#allocation5 + $0xf60] sm:$0xff]
    %v671 = vld [vmem:[#allocation5 + $0xf68] sm:$0xff]
    %v672 = vld [vmem:[#allocation5 + $0xf70] sm:$0xff]
    %v673 = vld [vmem:[#allocation5 + $0xf78] sm:$0xff]
    %v674 = vld [vmem:[#allocation5 + $0xf80] sm:$0xff]
    %v675 = vld [vmem:[#allocation5 + $0xf88] sm:$0xff]
    %v676 = vld [vmem:[#allocation5 + $0xf90] sm:$0xff]
    %v677 = vld [vmem:[#allocation5 + $0xf98] sm:$0xff]
    %v678 = vld [vmem:[#allocation5 + $0xfa0] sm:$0xff]
    %v679 = vld [vmem:[#allocation5 + $0xfa8] sm:$0xff]
    %v680 = vld [vmem:[#allocation5 + $0xfb0] sm:$0xff]
    %v681 = vld [vmem:[#allocation5 + $0xfb8] sm:$0xff]
    %v682 = vld [vmem:[#allocation5 + $0xfc0] sm:$0xff]
    %v683 = vld [vmem:[#allocation5 + $0xfc8] sm:$0xff]
    %v684 = vld [vmem:[#allocation5 + $0xfd0] sm:$0xff]
    %v685 = vld [vmem:[#allocation5 + $0xfd8] sm:$0xff]
    %v686 = vld [vmem:[#allocation5 + $0xfe0] sm:$0xff]
    %v687 = vld [vmem:[#allocation5 + $0xfe8] sm:$0xff]
    %v688 = vld [vmem:[#allocation5 + $0xff0] sm:$0xff]
    %v689 = vld [vmem:[#allocation5 + $0xff8] sm:$0xff]
    %v690 = vld [vmem:[#allocation5 + $0x1000] sm:$0xff]
    %v691 = vld [vmem:[#allocation5 + $0x1008] sm:$0xff]
    %v692 = vld [vmem:[#allocation5 + $0x1010] sm:$0xff]
    %v693 = vld [vmem:[#allocation5 + $0x1018] sm:$0xff]
    %v694 = vld [vmem:[#allocation5 + $0x1020] sm:$0xff]
    %v695 = vld [vmem:[#allocation5 + $0x1028] sm:$0xff]
    %v696 = vld [vmem:[#allocation5 + $0x1030] sm:$0xff]
    %v697 = vld [vmem:[#allocation5 + $0x1038] sm:$0xff]
    %v698 = vld [vmem:[#allocation5 + $0x1040] sm:$0xff]
    %v699 = vld [vmem:[#allocation5 + $0x1048] sm:$0xff]
    %v700 = vld [vmem:[#allocation5 + $0x1050] sm:$0xff]
    %v701 = vld [vmem:[#allocation5 + $0x1058] sm:$0xff]
    %v702 = vld [vmem:[#allocation5 + $0x1060] sm:$0xff]
    %v703 = vld [vmem:[#allocation5 + $0x1068] sm:$0xff]
    %v704 = vld [vmem:[#allocation5 + $0x1070] sm:$0xff]
    %v705 = vld [vmem:[#allocation5 + $0x1078] sm:$0xff]
    %v706 = vld [vmem:[#allocation5 + $0x1080] sm:$0xff]
    %v707 = vld [vmem:[#allocation5 + $0x1088] sm:$0xff]
    %v708 = vld [vmem:[#allocation5 + $0x1090] sm:$0xff]
    %v709 = vld [vmem:[#allocation5 + $0x1098] sm:$0xff]
    %v710 = vld [vmem:[#allocation5 + $0x10a0] sm:$0xff]
    %v711 = vld [vmem:[#allocation5 + $0x10a8] sm:$0xff]
    %v712 = vld [vmem:[#allocation5 + $0x10b0] sm:$0xff]
    %v713 = vld [vmem:[#allocation5 + $0x10b8] sm:$0xff]
    %v714 = vld [vmem:[#allocation5 + $0x10c0] sm:$0xff]
    %v715 = vld [vmem:[#allocation5 + $0x10c8] sm:$0xff]
    %v716 = vld [vmem:[#allocation5 + $0x10d0] sm:$0xff]
    %v717 = vld [vmem:[#allocation5 + $0x10d8] sm:$0xff]
    %v718 = vld [vmem:[#allocation5 + $0x10e0] sm:$0xff]
    %v719 = vld [vmem:[#allocation5 + $0x10e8] sm:$0xff]
    %v720 = vld [vmem:[#allocation5 + $0x10f0] sm:$0xff]
    %v721 = vld [vmem:[#allocation5 + $0x10f8] sm:$0xff]
    %v722 = vld [vmem:[#allocation5 + $0x1100] sm:$0xff]
    %v723 = vld [vmem:[#allocation5 + $0x1108] sm:$0xff]
    %v724 = vld [vmem:[#allocation5 + $0x1110] sm:$0xff]
    %v725 = vld [vmem:[#allocation5 + $0x1118] sm:$0xff]
    %v726 = vld [vmem:[#allocation5 + $0x1120] sm:$0xff]
    %v727 = vld [vmem:[#allocation5 + $0x1128] sm:$0xff]
    %v728 = vld [vmem:[#allocation5 + $0x1130] sm:$0xff]
    %v729 = vld [vmem:[#allocation5 + $0x1138] sm:$0xff]
    %v730 = vld [vmem:[#allocation5 + $0x1140] sm:$0xff]
    %v731 = vld [vmem:[#allocation5 + $0x1148] sm:$0xff]
    %v732 = vld [vmem:[#allocation5 + $0x1150] sm:$0xff]
    %v733 = vld [vmem:[#allocation5 + $0x1158] sm:$0xff]
    %v734 = vld [vmem:[#allocation5 + $0x1160] sm:$0xff]
    %v735 = vld [vmem:[#allocation5 + $0x1168] sm:$0xff]
    %v736 = vld [vmem:[#allocation5 + $0x1170] sm:$0xff]
    %v737 = vld [vmem:[#allocation5 + $0x1178] sm:$0xff]
    %v738 = vld [vmem:[#allocation5 + $0x1180] sm:$0xff]
    %v739 = vld [vmem:[#allocation5 + $0x1188] sm:$0xff]
    %v740 = vld [vmem:[#allocation5 + $0x1190] sm:$0xff]
    %v741 = vld [vmem:[#allocation5 + $0x1198] sm:$0xff]
    %v742 = vld [vmem:[#allocation5 + $0x11a0] sm:$0xff]
    %v743 = vld [vmem:[#allocation5 + $0x11a8] sm:$0xff]
    %v744 = vld [vmem:[#allocation5 + $0x11b0] sm:$0xff]
    %v745 = vld [vmem:[#allocation5 + $0x11b8] sm:$0xff]
    %v746 = vld [vmem:[#allocation5 + $0x11c0] sm:$0xff]
    %v747 = vld [vmem:[#allocation5 + $0x11c8] sm:$0xff]
    %v748 = vld [vmem:[#allocation5 + $0x11d0] sm:$0xff]
    %v749 = vld [vmem:[#allocation5 + $0x11d8] sm:$0xff]
    %v750 = vld [vmem:[#allocation5 + $0x11e0] sm:$0xff]
    %v751 = vld [vmem:[#allocation5 + $0x11e8] sm:$0xff]
    %v752 = vld [vmem:[#allocation5 + $0x11f0] sm:$0xff]
    %v753 = vld [vmem:[#allocation5 + $0x11f8] sm:$0xff]
    %v754 = vld [vmem:[#allocation5 + $0x1200] sm:$0xff]
    %v755 = vld [vmem:[#allocation5 + $0x1208] sm:$0xff]
    %v756 = vld [vmem:[#allocation5 + $0x1210] sm:$0xff]
    %v757 = vld [vmem:[#allocation5 + $0x1218] sm:$0xff]
    %v758 = vld [vmem:[#allocation5 + $0x1220] sm:$0xff]
    %v759 = vld [vmem:[#allocation5 + $0x1228] sm:$0xff]
    %v760 = vld [vmem:[#allocation5 + $0x1230] sm:$0xff]
    %v761 = vld [vmem:[#allocation5 + $0x1238] sm:$0xff]
    %v762 = vld [vmem:[#allocation5 + $0x1240] sm:$0xff]
    %v763 = vld [vmem:[#allocation5 + $0x1248] sm:$0xff]
    %v764 = vld [vmem:[#allocation5 + $0x1250] sm:$0xff]
    %v765 = vld [vmem:[#allocation5 + $0x1258] sm:$0xff]
    %v766 = vld [vmem:[#allocation5 + $0x1260] sm:$0xff]
    %v767 = vld [vmem:[#allocation5 + $0x1268] sm:$0xff]
    %v768 = vld [vmem:[#allocation5 + $0x1270] sm:$0xff]
    %v769 = vld [vmem:[#allocation5 + $0x1278] sm:$0xff]
    %v770 = vld [vmem:[#allocation5 + $0x1280] sm:$0xff]
    %v771 = vld [vmem:[#allocation5 + $0x1288] sm:$0xff]
    %v772 = vld [vmem:[#allocation5 + $0x1290] sm:$0xff]
    %v773 = vld [vmem:[#allocation5 + $0x1298] sm:$0xff]
    %v774 = vld [vmem:[#allocation5 + $0x12a0] sm:$0xff]
    %v775 = vld [vmem:[#allocation5 + $0x12a8] sm:$0xff]
    %v776 = vld [vmem:[#allocation5 + $0x12b0] sm:$0xff]
    %v777 = vld [vmem:[#allocation5 + $0x12b8] sm:$0xff]
    %v778 = vld [vmem:[#allocation5 + $0x12c0] sm:$0xff]
    %v779 = vld [vmem:[#allocation5 + $0x12c8] sm:$0xff]
    %v780 = vld [vmem:[#allocation5 + $0x12d0] sm:$0xff]
    %v781 = vld [vmem:[#allocation5 + $0x12d8] sm:$0xff]
    %v782 = vld [vmem:[#allocation5 + $0x12e0] sm:$0xff]
    %v783 = vld [vmem:[#allocation5 + $0x12e8] sm:$0xff]
    %v784 = vld [vmem:[#allocation5 + $0x12f0] sm:$0xff]
    %v785 = vld [vmem:[#allocation5 + $0x12f8] sm:$0xff]
    %v786 = vld [vmem:[#allocation5 + $0x1300] sm:$0xff]
    %v787 = vld [vmem:[#allocation5 + $0x1308] sm:$0xff]
    %v788 = vld [vmem:[#allocation5 + $0x1310] sm:$0xff]
    %v789 = vld [vmem:[#allocation5 + $0x1318] sm:$0xff]
    %v790 = vld [vmem:[#allocation5 + $0x1320] sm:$0xff]
    %v791 = vld [vmem:[#allocation5 + $0x1328] sm:$0xff]
    %v792 = vld [vmem:[#allocation5 + $0x1330] sm:$0xff]
    %v793 = vld [vmem:[#allocation5 + $0x1338] sm:$0xff]
    %v794 = vld [vmem:[#allocation5 + $0x1340] sm:$0xff]
    %v795 = vld [vmem:[#allocation5 + $0x1348] sm:$0xff]
    %v796 = vld [vmem:[#allocation5 + $0x1350] sm:$0xff]
    %v797 = vld [vmem:[#allocation5 + $0x1358] sm:$0xff]
    %v798 = vld [vmem:[#allocation5 + $0x1360] sm:$0xff]
    %v799 = vld [vmem:[#allocation5 + $0x1368] sm:$0xff]
    %v800 = vld [vmem:[#allocation5 + $0x1370] sm:$0xff]
    %v801 = vld [vmem:[#allocation5 + $0x1378] sm:$0xff]
    %v802 = vld [vmem:[#allocation5 + $0x1380] sm:$0xff]
    %v803 = vld [vmem:[#allocation5 + $0x1388] sm:$0xff]
    %v804 = vld [vmem:[#allocation5 + $0x1390] sm:$0xff]
    %v805 = vld [vmem:[#allocation5 + $0x1398] sm:$0xff]
    %v806 = vld [vmem:[#allocation5 + $0x13a0] sm:$0xff]
    %v807 = vld [vmem:[#allocation5 + $0x13a8] sm:$0xff]
    %v808 = vld [vmem:[#allocation5 + $0x13b0] sm:$0xff]
    %v809 = vld [vmem:[#allocation5 + $0x13b8] sm:$0xff]
    %v810 = vld [vmem:[#allocation5 + $0x13c0] sm:$0xff]
    %v811 = vld [vmem:[#allocation5 + $0x13c8] sm:$0xff]
    %v812 = vld [vmem:[#allocation5 + $0x13d0] sm:$0xff]
    %v813 = vld [vmem:[#allocation5 + $0x13d8] sm:$0xff]
    %v814 = vld [vmem:[#allocation5 + $0x13e0] sm:$0xff]
    %v815 = vld [vmem:[#allocation5 + $0x13e8] sm:$0xff]
    %v816 = vld [vmem:[#allocation5 + $0x13f0] sm:$0xff]
    %v817 = vld [vmem:[#allocation5 + $0x13f8] sm:$0xff]
    %v818 = vld [vmem:[#allocation5 + $0x1400] sm:$0xff]
    %v819 = vld [vmem:[#allocation5 + $0x1408] sm:$0xff]
    %v820 = vld [vmem:[#allocation5 + $0x1410] sm:$0xff]
    %v821 = vld [vmem:[#allocation5 + $0x1418] sm:$0xff]
    %v822 = vld [vmem:[#allocation5 + $0x1420] sm:$0xff]
    %v823 = vld [vmem:[#allocation5 + $0x1428] sm:$0xff]
    %v824 = vld [vmem:[#allocation5 + $0x1430] sm:$0xff]
    %v825 = vld [vmem:[#allocation5 + $0x1438] sm:$0xff]
    %v826 = vld [vmem:[#allocation5 + $0x1440] sm:$0xff]
    %v827 = vld [vmem:[#allocation5 + $0x1448] sm:$0xff]
    %v828 = vld [vmem:[#allocation5 + $0x1450] sm:$0xff]
    %v829 = vld [vmem:[#allocation5 + $0x1458] sm:$0xff]
    %v830 = vld [vmem:[#allocation5 + $0x1460] sm:$0xff]
    %v831 = vld [vmem:[#allocation5 + $0x1468] sm:$0xff]
    %v832 = vld [vmem:[#allocation5 + $0x1470] sm:$0xff]
    %v833 = vld [vmem:[#allocation5 + $0x1478] sm:$0xff]
    %v834 = vld [vmem:[#allocation5 + $0x1480] sm:$0xff]
    %v835 = vld [vmem:[#allocation5 + $0x1488] sm:$0xff]
    %v836 = vld [vmem:[#allocation5 + $0x1490] sm:$0xff]
    %v837 = vld [vmem:[#allocation5 + $0x1498] sm:$0xff]
    %v838 = vld [vmem:[#allocation5 + $0x14a0] sm:$0xff]
    %v839 = vld [vmem:[#allocation5 + $0x14a8] sm:$0xff]
    %v840 = vld [vmem:[#allocation5 + $0x14b0] sm:$0xff]
    %v841 = vld [vmem:[#allocation5 + $0x14b8] sm:$0xff]
    %v842 = vld [vmem:[#allocation5 + $0x14c0] sm:$0xff]
    %v843 = vld [vmem:[#allocation5 + $0x14c8] sm:$0xff]
    %v844 = vld [vmem:[#allocation5 + $0x14d0] sm:$0xff]
    %v845 = vld [vmem:[#allocation5 + $0x14d8] sm:$0xff]
    %v846 = vld [vmem:[#allocation5 + $0x14e0] sm:$0xff]
    %v847 = vld [vmem:[#allocation5 + $0x14e8] sm:$0xff]
    %v848 = vld [vmem:[#allocation5 + $0x14f0] sm:$0xff]
    %v849 = vld [vmem:[#allocation5 + $0x14f8] sm:$0xff]
    %v850 = vld [vmem:[#allocation5 + $0x1500] sm:$0xff]
    %v851 = vld [vmem:[#allocation5 + $0x1508] sm:$0xff]
    %v852 = vld [vmem:[#allocation5 + $0x1510] sm:$0xff]
    %v853 = vld [vmem:[#allocation5 + $0x1518] sm:$0xff]
    %v854 = vld [vmem:[#allocation5 + $0x1520] sm:$0xff]
    %v855 = vld [vmem:[#allocation5 + $0x1528] sm:$0xff]
    %v856 = vld [vmem:[#allocation5 + $0x1530] sm:$0xff]
    %v857 = vld [vmem:[#allocation5 + $0x1538] sm:$0xff]
    %v858 = vld [vmem:[#allocation5 + $0x1540] sm:$0xff]
    %v859 = vld [vmem:[#allocation5 + $0x1548] sm:$0xff]
    %v860 = vld [vmem:[#allocation5 + $0x1550] sm:$0xff]
    %v861 = vld [vmem:[#allocation5 + $0x1558] sm:$0xff]
    %v862 = vld [vmem:[#allocation5 + $0x1560] sm:$0xff]
    %v863 = vld [vmem:[#allocation5 + $0x1568] sm:$0xff]
    %v864 = vld [vmem:[#allocation5 + $0x1570] sm:$0xff]
    %v865 = vld [vmem:[#allocation5 + $0x1578] sm:$0xff]
    %v866 = vld [vmem:[#allocation5 + $0x1580] sm:$0xff]
    %v867 = vld [vmem:[#allocation5 + $0x1588] sm:$0xff]
    %v868 = vld [vmem:[#allocation5 + $0x1590] sm:$0xff]
    %v869 = vld [vmem:[#allocation5 + $0x1598] sm:$0xff]
    %v870 = vld [vmem:[#allocation5 + $0x15a0] sm:$0xff]
    %v871 = vld [vmem:[#allocation5 + $0x15a8] sm:$0xff]
    %v872 = vld [vmem:[#allocation5 + $0x15b0] sm:$0xff]
    %v873 = vld [vmem:[#allocation5 + $0x15b8] sm:$0xff]
    %v874 = vld [vmem:[#allocation5 + $0x15c0] sm:$0xff]
    %v875 = vld [vmem:[#allocation5 + $0x15c8] sm:$0xff]
    %v876 = vld [vmem:[#allocation5 + $0x15d0] sm:$0xff]
    %v877 = vld [vmem:[#allocation5 + $0x15d8] sm:$0xff]
    %v878 = vld [vmem:[#allocation5 + $0x15e0] sm:$0xff]
    %v879 = vld [vmem:[#allocation5 + $0x15e8] sm:$0xff]
    %v880 = vld [vmem:[#allocation5 + $0x15f0] sm:$0xff]
    %v881 = vld [vmem:[#allocation5 + $0x15f8] sm:$0xff]
    %v882 = vld [vmem:[#allocation5 + $0x1600] sm:$0xff]
    %v883 = vld [vmem:[#allocation5 + $0x1608] sm:$0xff]
    %v884 = vld [vmem:[#allocation5 + $0x1610] sm:$0xff]
    %v885 = vld [vmem:[#allocation5 + $0x1618] sm:$0xff]
    %v886 = vld [vmem:[#allocation5 + $0x1620] sm:$0xff]
    %v887 = vld [vmem:[#allocation5 + $0x1628] sm:$0xff]
    %v888 = vld [vmem:[#allocation5 + $0x1630] sm:$0xff]
    %v889 = vld [vmem:[#allocation5 + $0x1638] sm:$0xff]
    %v890 = vld [vmem:[#allocation5 + $0x1640] sm:$0xff]
    %v891 = vld [vmem:[#allocation5 + $0x1648] sm:$0xff]
    %v892 = vld [vmem:[#allocation5 + $0x1650] sm:$0xff]
    %v893 = vld [vmem:[#allocation5 + $0x1658] sm:$0xff]
    %v894 = vld [vmem:[#allocation5 + $0x1660] sm:$0xff]
    %v895 = vld [vmem:[#allocation5 + $0x1668] sm:$0xff]
    %v896 = vld [vmem:[#allocation5 + $0x1670] sm:$0xff]
    %v897 = vld [vmem:[#allocation5 + $0x1678] sm:$0xff]
    %v898 = vld [vmem:[#allocation5 + $0x1680] sm:$0xff]
    %v899 = vld [vmem:[#allocation5 + $0x1688] sm:$0xff]
    %v900 = vld [vmem:[#allocation5 + $0x1690] sm:$0xff]
    %v901 = vld [vmem:[#allocation5 + $0x1698] sm:$0xff]
    %v902 = vld [vmem:[#allocation5 + $0x16a0] sm:$0xff]
    %v903 = vld [vmem:[#allocation5 + $0x16a8] sm:$0xff]
    %v904 = vld [vmem:[#allocation5 + $0x16b0] sm:$0xff]
    %v905 = vld [vmem:[#allocation5 + $0x16b8] sm:$0xff]
    %v906 = vld [vmem:[#allocation5 + $0x16c0] sm:$0xff]
    %v907 = vld [vmem:[#allocation5 + $0x16c8] sm:$0xff]
    %v908 = vld [vmem:[#allocation5 + $0x16d0] sm:$0xff]
    %v909 = vld [vmem:[#allocation5 + $0x16d8] sm:$0xff]
    %v910 = vld [vmem:[#allocation5 + $0x16e0] sm:$0xff]
    %v911 = vld [vmem:[#allocation5 + $0x16e8] sm:$0xff]
    %v912 = vld [vmem:[#allocation5 + $0x16f0] sm:$0xff]
    %v913 = vld [vmem:[#allocation5 + $0x16f8] sm:$0xff]
    %v914 = vld [vmem:[#allocation5 + $0x1700] sm:$0xff]
    %v915 = vld [vmem:[#allocation5 + $0x1708] sm:$0xff]
    %v916 = vld [vmem:[#allocation5 + $0x1710] sm:$0xff]
    %v917 = vld [vmem:[#allocation5 + $0x1718] sm:$0xff]
    %v918 = vld [vmem:[#allocation5 + $0x1720] sm:$0xff]
    %v919 = vld [vmem:[#allocation5 + $0x1728] sm:$0xff]
    %v920 = vld [vmem:[#allocation5 + $0x1730] sm:$0xff]
    %v921 = vld [vmem:[#allocation5 + $0x1738] sm:$0xff]
    %v922 = vld [vmem:[#allocation5 + $0x1740] sm:$0xff]
    %v923 = vld [vmem:[#allocation5 + $0x1748] sm:$0xff]
    %v924 = vld [vmem:[#allocation5 + $0x1750] sm:$0xff]
    %v925 = vld [vmem:[#allocation5 + $0x1758] sm:$0xff]
    %v926 = vld [vmem:[#allocation5 + $0x1760] sm:$0xff]
    %v927 = vld [vmem:[#allocation5 + $0x1768] sm:$0xff]
    %v928 = vld [vmem:[#allocation5 + $0x1770] sm:$0xff]
    %v929 = vld [vmem:[#allocation5 + $0x1778] sm:$0xff]
    %v930 = vld [vmem:[#allocation5 + $0x1780] sm:$0xff]
    %v931 = vld [vmem:[#allocation5 + $0x1788] sm:$0xff]
    %v932 = vld [vmem:[#allocation5 + $0x1790] sm:$0xff]
    %v933 = vld [vmem:[#allocation5 + $0x1798] sm:$0xff]
    %v934 = vld [vmem:[#allocation5 + $0x17a0] sm:$0xff]
    %v935 = vld [vmem:[#allocation5 + $0x17a8] sm:$0xff]
    %v936 = vld [vmem:[#allocation5 + $0x17b0] sm:$0xff]
    %v937 = vld [vmem:[#allocation5 + $0x17b8] sm:$0xff]
    %v938 = vld [vmem:[#allocation5 + $0x17c0] sm:$0xff]
    %v939 = vld [vmem:[#allocation5 + $0x17c8] sm:$0xff]
    %v940 = vld [vmem:[#allocation5 + $0x17d0] sm:$0xff]
    %v941 = vld [vmem:[#allocation5 + $0x17d8] sm:$0xff]
    %v942 = vld [vmem:[#allocation5 + $0x17e0] sm:$0xff]
    %v943 = vld [vmem:[#allocation5 + $0x17e8] sm:$0xff]
    %v944 = vld [vmem:[#allocation5 + $0x17f0] sm:$0xff]
    %v945 = vld [vmem:[#allocation5 + $0x17f8] sm:$0xff]
    %v946 = vld [vmem:[#allocation5 + $0x1800] sm:$0xff]
    %v947 = vld [vmem:[#allocation5 + $0x1808] sm:$0xff]
    %v948 = vld [vmem:[#allocation5 + $0x1810] sm:$0xff]
    %v949 = vld [vmem:[#allocation5 + $0x1818] sm:$0xff]
    %v950 = vld [vmem:[#allocation5 + $0x1820] sm:$0xff]
    %v951 = vld [vmem:[#allocation5 + $0x1828] sm:$0xff]
    %v952 = vld [vmem:[#allocation5 + $0x1830] sm:$0xff]
    %v953 = vld [vmem:[#allocation5 + $0x1838] sm:$0xff]
    %v954 = vld [vmem:[#allocation5 + $0x1840] sm:$0xff]
    %v955 = vld [vmem:[#allocation5 + $0x1848] sm:$0xff]
    %v956 = vld [vmem:[#allocation5 + $0x1850] sm:$0xff]
    %v957 = vld [vmem:[#allocation5 + $0x1858] sm:$0xff]
    %v958 = vld [vmem:[#allocation5 + $0x1860] sm:$0xff]
    %v959 = vld [vmem:[#allocation5 + $0x1868] sm:$0xff]
    %v960 = vld [vmem:[#allocation5 + $0x1870] sm:$0xff]
    %v961 = vld [vmem:[#allocation5 + $0x1878] sm:$0xff]
    %v962 = vld [vmem:[#allocation5 + $0x1880] sm:$0xff]
    %v963 = vld [vmem:[#allocation5 + $0x1888] sm:$0xff]
    %v964 = vld [vmem:[#allocation5 + $0x1890] sm:$0xff]
    %v965 = vld [vmem:[#allocation5 + $0x1898] sm:$0xff]
    %v966 = vld [vmem:[#allocation5 + $0x18a0] sm:$0xff]
    %v967 = vld [vmem:[#allocation5 + $0x18a8] sm:$0xff]
    %v968 = vld [vmem:[#allocation5 + $0x18b0] sm:$0xff]
    %v969 = vld [vmem:[#allocation5 + $0x18b8] sm:$0xff]
    %v970 = vld [vmem:[#allocation5 + $0x18c0] sm:$0xff]
    %v971 = vld [vmem:[#allocation5 + $0x18c8] sm:$0xff]
    %v972 = vld [vmem:[#allocation5 + $0x18d0] sm:$0xff]
    %v973 = vld [vmem:[#allocation5 + $0x18d8] sm:$0xff]
    %v974 = vld [vmem:[#allocation5 + $0x18e0] sm:$0xff]
    %v975 = vld [vmem:[#allocation5 + $0x18e8] sm:$0xff]
    %v976 = vld [vmem:[#allocation5 + $0x18f0] sm:$0xff]
    %v977 = vld [vmem:[#allocation5 + $0x18f8] sm:$0xff]
    %v978 = vld [vmem:[#allocation5 + $0x1900] sm:$0xff]
    %v979 = vld [vmem:[#allocation5 + $0x1908] sm:$0xff]
    %v980 = vld [vmem:[#allocation5 + $0x1910] sm:$0xff]
    %v981 = vld [vmem:[#allocation5 + $0x1918] sm:$0xff]
    %v982 = vld [vmem:[#allocation5 + $0x1920] sm:$0xff]
    %v983 = vld [vmem:[#allocation5 + $0x1928] sm:$0xff]
    %v984 = vld [vmem:[#allocation5 + $0x1930] sm:$0xff]
    %v985 = vld [vmem:[#allocation5 + $0x1938] sm:$0xff]
    %v986 = vld [vmem:[#allocation5 + $0x1940] sm:$0xff]
    %v987 = vld [vmem:[#allocation5 + $0x1948] sm:$0xff]
    %v988 = vld [vmem:[#allocation5 + $0x1950] sm:$0xff]
    %v989 = vld [vmem:[#allocation5 + $0x1958] sm:$0xff]
    %v990 = vld [vmem:[#allocation5 + $0x1960] sm:$0xff]
    %v991 = vld [vmem:[#allocation5 + $0x1968] sm:$0xff]
    %v992 = vld [vmem:[#allocation5 + $0x1970] sm:$0xff]
    %v993 = vld [vmem:[#allocation5 + $0x1978] sm:$0xff]
    %v994 = vld [vmem:[#allocation5 + $0x1980] sm:$0xff]
    %v995 = vld [vmem:[#allocation5 + $0x1988] sm:$0xff]
    %v996 = vld [vmem:[#allocation5 + $0x1990] sm:$0xff]
    %v997 = vld [vmem:[#allocation5 + $0x1998] sm:$0xff]
    %v998 = vld [vmem:[#allocation5 + $0x19a0] sm:$0xff]
    %v999 = vld [vmem:[#allocation5 + $0x19a8] sm:$0xff]
    %v1000 = vld [vmem:[#allocation5 + $0x19b0] sm:$0xff]
    %v1001 = vld [vmem:[#allocation5 + $0x19b8] sm:$0xff]
    %v1002 = vld [vmem:[#allocation5 + $0x19c0] sm:$0xff]
    %v1003 = vld [vmem:[#allocation5 + $0x19c8] sm:$0xff]
    %v1004 = vld [vmem:[#allocation5 + $0x19d0] sm:$0xff]
    %v1005 = vld [vmem:[#allocation5 + $0x19d8] sm:$0xff]
    %v1006 = vld [vmem:[#allocation5 + $0x19e0] sm:$0xff]
    %v1007 = vld [vmem:[#allocation5 + $0x19e8] sm:$0xff]
    %v1008 = vld [vmem:[#allocation5 + $0x19f0] sm:$0xff]
    %v1009 = vld [vmem:[#allocation5 + $0x19f8] sm:$0xff]
    %v1010 = vld [vmem:[#allocation5 + $0x1a00] sm:$0xff]
    %v1011 = vld [vmem:[#allocation5 + $0x1a08] sm:$0xff]
    %v1012 = vld [vmem:[#allocation5 + $0x1a10] sm:$0xff]
    %v1013 = vld [vmem:[#allocation5 + $0x1a18] sm:$0xff]
    %v1014 = vld [vmem:[#allocation5 + $0x1a20] sm:$0xff]
    %v1015 = vld [vmem:[#allocation5 + $0x1a28] sm:$0xff]
    %v1016 = vld [vmem:[#allocation5 + $0x1a30] sm:$0xff]
    %v1017 = vld [vmem:[#allocation5 + $0x1a38] sm:$0xff]
    %v1018 = vld [vmem:[#allocation5 + $0x1a40] sm:$0xff]
    %v1019 = vld [vmem:[#allocation5 + $0x1a48] sm:$0xff]
    %v1020 = vld [vmem:[#allocation5 + $0x1a50] sm:$0xff]
    %v1021 = vld [vmem:[#allocation5 + $0x1a58] sm:$0xff]
    %v1022 = vld [vmem:[#allocation5 + $0x1a60] sm:$0xff]
    %v1023 = vld [vmem:[#allocation5 + $0x1a68] sm:$0xff]
    %v1024 = vld [vmem:[#allocation5 + $0x1a70] sm:$0xff]
    %v1025 = vld [vmem:[#allocation5 + $0x1a78] sm:$0xff]
    %v1026 = vld [vmem:[#allocation5 + $0x1a80] sm:$0xff]
    %v1027 = vld [vmem:[#allocation5 + $0x1a88] sm:$0xff]
    %v1028 = vld [vmem:[#allocation5 + $0x1a90] sm:$0xff]
    %v1029 = vld [vmem:[#allocation5 + $0x1a98] sm:$0xff]
    %v1030 = vld [vmem:[#allocation5 + $0x1aa0] sm:$0xff]
    %v1031 = vld [vmem:[#allocation5 + $0x1aa8] sm:$0xff]
    %v1032 = vld [vmem:[#allocation5 + $0x1ab0] sm:$0xff]
    %v1033 = vld [vmem:[#allocation5 + $0x1ab8] sm:$0xff]
    %v1034 = vld [vmem:[#allocation5 + $0x1ac0] sm:$0xff]
    %v1035 = vld [vmem:[#allocation5 + $0x1ac8] sm:$0xff]
    %v1036 = vld [vmem:[#allocation5 + $0x1ad0] sm:$0xff]
    %v1037 = vld [vmem:[#allocation5 + $0x1ad8] sm:$0xff]
    %v1038 = vld [vmem:[#allocation5 + $0x1ae0] sm:$0xff]
    %v1039 = vld [vmem:[#allocation5 + $0x1ae8] sm:$0xff]
    %v1040 = vld [vmem:[#allocation5 + $0x1af0] sm:$0xff]
    %v1041 = vld [vmem:[#allocation5 + $0x1af8] sm:$0xff]
    %v1042 = vld [vmem:[#allocation5 + $0x1b00] sm:$0xff]
    %v1043 = vld [vmem:[#allocation5 + $0x1b08] sm:$0xff]
    %v1044 = vld [vmem:[#allocation5 + $0x1b10] sm:$0xff]
    %v1045 = vld [vmem:[#allocation5 + $0x1b18] sm:$0xff]
    %v1046 = vld [vmem:[#allocation5 + $0x1b20] sm:$0xff]
    %v1047 = vld [vmem:[#allocation5 + $0x1b28] sm:$0xff]
    %v1048 = vld [vmem:[#allocation5 + $0x1b30] sm:$0xff]
    %v1049 = vld [vmem:[#allocation5 + $0x1b38] sm:$0xff]
    %v1050 = vld [vmem:[#allocation5 + $0x1b40] sm:$0xff]
    %v1051 = vld [vmem:[#allocation5 + $0x1b48] sm:$0xff]
    %v1052 = vld [vmem:[#allocation5 + $0x1b50] sm:$0xff]
    %v1053 = vld [vmem:[#allocation5 + $0x1b58] sm:$0xff]
    %v1054 = vld [vmem:[#allocation5 + $0x1b60] sm:$0xff]
    %v1055 = vld [vmem:[#allocation5 + $0x1b68] sm:$0xff]
    %v1056 = vld [vmem:[#allocation5 + $0x1b70] sm:$0xff]
    %v1057 = vld [vmem:[#allocation5 + $0x1b78] sm:$0xff]
    %v1058 = vld [vmem:[#allocation5 + $0x1b80] sm:$0xff]
    %v1059 = vld [vmem:[#allocation5 + $0x1b88] sm:$0xff]
    %v1060 = vld [vmem:[#allocation5 + $0x1b90] sm:$0xff]
    %v1061 = vld [vmem:[#allocation5 + $0x1b98] sm:$0xff]
    %v1062 = vld [vmem:[#allocation5 + $0x1ba0] sm:$0xff]
    %v1063 = vld [vmem:[#allocation5 + $0x1ba8] sm:$0xff]
    %v1064 = vld [vmem:[#allocation5 + $0x1bb0] sm:$0xff]
    %v1065 = vld [vmem:[#allocation5 + $0x1bb8] sm:$0xff]
    %v1066 = vld [vmem:[#allocation5 + $0x1bc0] sm:$0xff]
    %v1067 = vld [vmem:[#allocation5 + $0x1bc8] sm:$0xff]
    %v1068 = vld [vmem:[#allocation5 + $0x1bd0] sm:$0xff]
    %v1069 = vld [vmem:[#allocation5 + $0x1bd8] sm:$0xff]
    %v1070 = vld [vmem:[#allocation5 + $0x1be0] sm:$0xff]
    %v1071 = vld [vmem:[#allocation5 + $0x1be8] sm:$0xff]
    %v1072 = vld [vmem:[#allocation5 + $0x1bf0] sm:$0xff]
    %v1073 = vld [vmem:[#allocation5 + $0x1bf8] sm:$0xff]
    %v1074 = vld [vmem:[#allocation5 + $0x1c00] sm:$0xff]
    %v1075 = vld [vmem:[#allocation5 + $0x1c08] sm:$0xff]
    %v1076 = vld [vmem:[#allocation5 + $0x1c10] sm:$0xff]
    %v1077 = vld [vmem:[#allocation5 + $0x1c18] sm:$0xff]
    %v1078 = vld [vmem:[#allocation5 + $0x1c20] sm:$0xff]
    %v1079 = vld [vmem:[#allocation5 + $0x1c28] sm:$0xff]
    %v1080 = vld [vmem:[#allocation5 + $0x1c30] sm:$0xff]
    %v1081 = vld [vmem:[#allocation5 + $0x1c38] sm:$0xff]
    %v1082 = vld [vmem:[#allocation5 + $0x1c40] sm:$0xff]
    %v1083 = vld [vmem:[#allocation5 + $0x1c48] sm:$0xff]
    %v1084 = vld [vmem:[#allocation5 + $0x1c50] sm:$0xff]
    %v1085 = vld [vmem:[#allocation5 + $0x1c58] sm:$0xff]
    %v1086 = vld [vmem:[#allocation5 + $0x1c60] sm:$0xff]
    %v1087 = vld [vmem:[#allocation5 + $0x1c68] sm:$0xff]
    %v1088 = vld [vmem:[#allocation5 + $0x1c70] sm:$0xff]
    %v1089 = vld [vmem:[#allocation5 + $0x1c78] sm:$0xff]
    %v1090 = vld [vmem:[#allocation5 + $0x1c80] sm:$0xff]
    %v1091 = vld [vmem:[#allocation5 + $0x1c88] sm:$0xff]
    %v1092 = vld [vmem:[#allocation5 + $0x1c90] sm:$0xff]
    %v1093 = vld [vmem:[#allocation5 + $0x1c98] sm:$0xff]
    %v1094 = vld [vmem:[#allocation5 + $0x1ca0] sm:$0xff]
    %v1095 = vld [vmem:[#allocation5 + $0x1ca8] sm:$0xff]
    %v1096 = vld [vmem:[#allocation5 + $0x1cb0] sm:$0xff]
    %v1097 = vld [vmem:[#allocation5 + $0x1cb8] sm:$0xff]
    %v1098 = vld [vmem:[#allocation5 + $0x1cc0] sm:$0xff]
    %v1099 = vld [vmem:[#allocation5 + $0x1cc8] sm:$0xff]
    %v1100 = vld [vmem:[#allocation5 + $0x1cd0] sm:$0xff]
    %v1101 = vld [vmem:[#allocation5 + $0x1cd8] sm:$0xff]
    %v1102 = vld [vmem:[#allocation5 + $0x1ce0] sm:$0xff]
    %v1103 = vld [vmem:[#allocation5 + $0x1ce8] sm:$0xff]
    %v1104 = vld [vmem:[#allocation5 + $0x1cf0] sm:$0xff]
    %v1105 = vld [vmem:[#allocation5 + $0x1cf8] sm:$0xff]
    %v1106 = vld [vmem:[#allocation5 + $0x1d00] sm:$0xff]
    %v1107 = vld [vmem:[#allocation5 + $0x1d08] sm:$0xff]
    %v1108 = vld [vmem:[#allocation5 + $0x1d10] sm:$0xff]
    %v1109 = vld [vmem:[#allocation5 + $0x1d18] sm:$0xff]
    %v1110 = vld [vmem:[#allocation5 + $0x1d20] sm:$0xff]
    %v1111 = vld [vmem:[#allocation5 + $0x1d28] sm:$0xff]
    %v1112 = vld [vmem:[#allocation5 + $0x1d30] sm:$0xff]
    %v1113 = vld [vmem:[#allocation5 + $0x1d38] sm:$0xff]
    %v1114 = vld [vmem:[#allocation5 + $0x1d40] sm:$0xff]
    %v1115 = vld [vmem:[#allocation5 + $0x1d48] sm:$0xff]
    %v1116 = vld [vmem:[#allocation5 + $0x1d50] sm:$0xff]
    %v1117 = vld [vmem:[#allocation5 + $0x1d58] sm:$0xff]
    %v1118 = vld [vmem:[#allocation5 + $0x1d60] sm:$0xff]
    %v1119 = vld [vmem:[#allocation5 + $0x1d68] sm:$0xff]
    %v1120 = vld [vmem:[#allocation5 + $0x1d70] sm:$0xff]
    %v1121 = vld [vmem:[#allocation5 + $0x1d78] sm:$0xff]
    %v1122 = vld [vmem:[#allocation5 + $0x1d80] sm:$0xff]
    %v1123 = vld [vmem:[#allocation5 + $0x1d88] sm:$0xff]
    %v1124 = vld [vmem:[#allocation5 + $0x1d90] sm:$0xff]
    %v1125 = vld [vmem:[#allocation5 + $0x1d98] sm:$0xff]
    %v1126 = vld [vmem:[#allocation5 + $0x1da0] sm:$0xff]
    %v1127 = vld [vmem:[#allocation5 + $0x1da8] sm:$0xff]
    %v1128 = vld [vmem:[#allocation5 + $0x1db0] sm:$0xff]
    %v1129 = vld [vmem:[#allocation5 + $0x1db8] sm:$0xff]
    %v1130 = vld [vmem:[#allocation5 + $0x1dc0] sm:$0xff]
    %v1131 = vld [vmem:[#allocation5 + $0x1dc8] sm:$0xff]
    %v1132 = vld [vmem:[#allocation5 + $0x1dd0] sm:$0xff]
    %v1133 = vld [vmem:[#allocation5 + $0x1dd8] sm:$0xff]
    %v1134 = vld [vmem:[#allocation5 + $0x1de0] sm:$0xff]
    %v1135 = vld [vmem:[#allocation5 + $0x1de8] sm:$0xff]
    %v1136 = vld [vmem:[#allocation5 + $0x1df0] sm:$0xff]
    %v1137 = vld [vmem:[#allocation5 + $0x1df8] sm:$0xff]
    %v1138 = vld [vmem:[#allocation5 + $0x1e00] sm:$0xff]
    %v1139 = vld [vmem:[#allocation5 + $0x1e08] sm:$0xff]
    %v1140 = vld [vmem:[#allocation5 + $0x1e10] sm:$0xff]
    %v1141 = vld [vmem:[#allocation5 + $0x1e18] sm:$0xff]
    %v1142 = vld [vmem:[#allocation5 + $0x1e20] sm:$0xff]
    %v1143 = vld [vmem:[#allocation5 + $0x1e28] sm:$0xff]
    %v1144 = vld [vmem:[#allocation5 + $0x1e30] sm:$0xff]
    %v1145 = vld [vmem:[#allocation5 + $0x1e38] sm:$0xff]
    %v1146 = vld [vmem:[#allocation5 + $0x1e40] sm:$0xff]
    %v1147 = vld [vmem:[#allocation5 + $0x1e48] sm:$0xff]
    %v1148 = vld [vmem:[#allocation5 + $0x1e50] sm:$0xff]
    %v1149 = vld [vmem:[#allocation5 + $0x1e58] sm:$0xff]
    %v1150 = vld [vmem:[#allocation5 + $0x1e60] sm:$0xff]
    %v1151 = vld [vmem:[#allocation5 + $0x1e68] sm:$0xff]
    %v1152 = vld [vmem:[#allocation5 + $0x1e70] sm:$0xff]
    %v1153 = vld [vmem:[#allocation5 + $0x1e78] sm:$0xff]
    %v1154 = vld [vmem:[#allocation5 + $0x1e80] sm:$0xff]
    %v1155 = vld [vmem:[#allocation5 + $0x1e88] sm:$0xff]
    %v1156 = vld [vmem:[#allocation5 + $0x1e90] sm:$0xff]
    %v1157 = vld [vmem:[#allocation5 + $0x1e98] sm:$0xff]
    %v1158 = vld [vmem:[#allocation5 + $0x1ea0] sm:$0xff]
    %v1159 = vld [vmem:[#allocation5 + $0x1ea8] sm:$0xff]
    %v1160 = vld [vmem:[#allocation5 + $0x1eb0] sm:$0xff]
    %v1161 = vld [vmem:[#allocation5 + $0x1eb8] sm:$0xff]
    %v1162 = vld [vmem:[#allocation5 + $0x1ec0] sm:$0xff]
    %v1163 = vld [vmem:[#allocation5 + $0x1ec8] sm:$0xff]
    %v1164 = vld [vmem:[#allocation5 + $0x1ed0] sm:$0xff]
    %v1165 = vld [vmem:[#allocation5 + $0x1ed8] sm:$0xff]
    %v1166 = vld [vmem:[#allocation5 + $0x1ee0] sm:$0xff]
    %v1167 = vld [vmem:[#allocation5 + $0x1ee8] sm:$0xff]
    %v1168 = vld [vmem:[#allocation5 + $0x1ef0] sm:$0xff]
    %v1169 = vld [vmem:[#allocation5 + $0x1ef8] sm:$0xff]
    %v1170 = vld [vmem:[#allocation5 + $0x1f00] sm:$0xff]
    %v1171 = vld [vmem:[#allocation5 + $0x1f08] sm:$0xff]
    %v1172 = vld [vmem:[#allocation5 + $0x1f10] sm:$0xff]
    %v1173 = vld [vmem:[#allocation5 + $0x1f18] sm:$0xff]
    %v1174 = vld [vmem:[#allocation5 + $0x1f20] sm:$0xff]
    %v1175 = vld [vmem:[#allocation5 + $0x1f28] sm:$0xff]
    %v1176 = vld [vmem:[#allocation5 + $0x1f30] sm:$0xff]
    %v1177 = vld [vmem:[#allocation5 + $0x1f38] sm:$0xff]
    %v1178 = vld [vmem:[#allocation5 + $0x1f40] sm:$0xff]
    %v1179 = vld [vmem:[#allocation5 + $0x1f48] sm:$0xff]
    %v1180 = vld [vmem:[#allocation5 + $0x1f50] sm:$0xff]
    %v1181 = vld [vmem:[#allocation5 + $0x1f58] sm:$0xff]
    %v1182 = vld [vmem:[#allocation5 + $0x1f60] sm:$0xff]
    %v1183 = vld [vmem:[#allocation5 + $0x1f68] sm:$0xff]
    %v1184 = vld [vmem:[#allocation5 + $0x1f70] sm:$0xff]
    %v1185 = vld [vmem:[#allocation5 + $0x1f78] sm:$0xff]
    %v1186 = vld [vmem:[#allocation5 + $0x1f80] sm:$0xff]
    %v1187 = vld [vmem:[#allocation5 + $0x1f88] sm:$0xff]
    %v1188 = vld [vmem:[#allocation5 + $0x1f90] sm:$0xff]
    %v1189 = vld [vmem:[#allocation5 + $0x1f98] sm:$0xff]
    %v1190 = vld [vmem:[#allocation5 + $0x1fa0] sm:$0xff]
    %v1191 = vld [vmem:[#allocation5 + $0x1fa8] sm:$0xff]
    %v1192 = vld [vmem:[#allocation5 + $0x1fb0] sm:$0xff]
    %v1193 = vld [vmem:[#allocation5 + $0x1fb8] sm:$0xff]
    %v1194 = vld [vmem:[#allocation5 + $0x1fc0] sm:$0xff]
    %v1195 = vld [vmem:[#allocation5 + $0x1fc8] sm:$0xff]
    %v1196 = vld [vmem:[#allocation5 + $0x1fd0] sm:$0xff]
    %v1197 = vld [vmem:[#allocation5 + $0x1fd8] sm:$0xff]
    %v1198 = vld [vmem:[#allocation5 + $0x1fe0] sm:$0xff]
    %v1199 = vld [vmem:[#allocation5 + $0x1fe8] sm:$0xff]
    %v1200 = vld [vmem:[#allocation5 + $0x1ff0] sm:$0xff]
    %v1201 = vld [vmem:[#allocation5 + $0x1ff8] sm:$0xff]
    %v1202 = vld [vmem:[#allocation5 + $0x2000] sm:$0xff]
    %v1203 = vld [vmem:[#allocation5 + $0x2008] sm:$0xff]
    %v1204 = vld [vmem:[#allocation5 + $0x2010] sm:$0xff]
    %v1205 = vld [vmem:[#allocation5 + $0x2018] sm:$0xff]
    %v1206 = vld [vmem:[#allocation5 + $0x2020] sm:$0xff]
    %v1207 = vld [vmem:[#allocation5 + $0x2028] sm:$0xff]
    %v1208 = vld [vmem:[#allocation5 + $0x2030] sm:$0xff]
    %v1209 = vld [vmem:[#allocation5 + $0x2038] sm:$0xff]
    %v1210 = vld [vmem:[#allocation5 + $0x2040] sm:$0xff]
    %v1211 = vld [vmem:[#allocation5 + $0x2048] sm:$0xff]
    %v1212 = vld [vmem:[#allocation5 + $0x2050] sm:$0xff]
    %v1213 = vld [vmem:[#allocation5 + $0x2058] sm:$0xff]
    %v1214 = vld [vmem:[#allocation5 + $0x2060] sm:$0xff]
    %v1215 = vld [vmem:[#allocation5 + $0x2068] sm:$0xff]
    %v1216 = vld [vmem:[#allocation5 + $0x2070] sm:$0xff]
    %v1217 = vld [vmem:[#allocation5 + $0x2078] sm:$0xff]
    %v1218 = vld [vmem:[#allocation5 + $0x2080] sm:$0xff]
    %v1219 = vld [vmem:[#allocation5 + $0x2088] sm:$0xff]
    %v1220 = vld [vmem:[#allocation5 + $0x2090] sm:$0xff]
    %v1221 = vld [vmem:[#allocation5 + $0x2098] sm:$0xff]
    %v1222 = vld [vmem:[#allocation5 + $0x20a0] sm:$0xff]
    %v1223 = vld [vmem:[#allocation5 + $0x20a8] sm:$0xff]
    %v1224 = vld [vmem:[#allocation5 + $0x20b0] sm:$0xff]
    %v1225 = vld [vmem:[#allocation5 + $0x20b8] sm:$0xff]
    %v1226 = vld [vmem:[#allocation5 + $0x20c0] sm:$0xff]
    %v1227 = vld [vmem:[#allocation5 + $0x20c8] sm:$0xff]
    %v1228 = vld [vmem:[#allocation5 + $0x20d0] sm:$0xff]
    %v1229 = vld [vmem:[#allocation5 + $0x20d8] sm:$0xff]
    %v1230 = vld [vmem:[#allocation5 + $0x20e0] sm:$0xff]
    %v1231 = vld [vmem:[#allocation5 + $0x20e8] sm:$0xff]
    %v1232 = vld [vmem:[#allocation5 + $0x20f0] sm:$0xff]
    %v1233 = vld [vmem:[#allocation5 + $0x20f8] sm:$0xff]
    %v1234 = vld [vmem:[#allocation5 + $0x2100] sm:$0xff]
    %v1235 = vld [vmem:[#allocation5 + $0x2108] sm:$0xff]
    %v1236 = vld [vmem:[#allocation5 + $0x2110] sm:$0xff]
    %v1237 = vld [vmem:[#allocation5 + $0x2118] sm:$0xff]
    %v1238 = vld [vmem:[#allocation5 + $0x2120] sm:$0xff]
    %v1239 = vld [vmem:[#allocation5 + $0x2128] sm:$0xff]
    %v1240 = vld [vmem:[#allocation5 + $0x2130] sm:$0xff]
    %v1241 = vld [vmem:[#allocation5 + $0x2138] sm:$0xff]
    %v1242 = vld [vmem:[#allocation5 + $0x2140] sm:$0xff]
    %v1243 = vld [vmem:[#allocation5 + $0x2148] sm:$0xff]
    %v1244 = vld [vmem:[#allocation5 + $0x2150] sm:$0xff]
    %v1245 = vld [vmem:[#allocation5 + $0x2158] sm:$0xff]
    %v1246 = vld [vmem:[#allocation5 + $0x2160] sm:$0xff]
    %v1247 = vld [vmem:[#allocation5 + $0x2168] sm:$0xff]
    %v1248 = vld [vmem:[#allocation5 + $0x2170] sm:$0xff]
    %v1249 = vld [vmem:[#allocation5 + $0x2178] sm:$0xff]
    %v1250 = vld [vmem:[#allocation5 + $0x2180] sm:$0xff]
    %v1251 = vld [vmem:[#allocation5 + $0x2188] sm:$0xff]
    %v1252 = vld [vmem:[#allocation5 + $0x2190] sm:$0xff]
    %v1253 = vld [vmem:[#allocation5 + $0x2198] sm:$0xff]
    %v1254 = vld [vmem:[#allocation5 + $0x21a0] sm:$0xff]
    %v1255 = vld [vmem:[#allocation5 + $0x21a8] sm:$0xff]
    %v1256 = vld [vmem:[#allocation5 + $0x21b0] sm:$0xff]
    %v1257 = vld [vmem:[#allocation5 + $0x21b8] sm:$0xff]
    %v1258 = vld [vmem:[#allocation5 + $0x21c0] sm:$0xff]
    %v1259 = vld [vmem:[#allocation5 + $0x21c8] sm:$0xff]
    %v1260 = vld [vmem:[#allocation5 + $0x21d0] sm:$0xff]
    %v1261 = vld [vmem:[#allocation5 + $0x21d8] sm:$0xff]
    %v1262 = vld [vmem:[#allocation5 + $0x21e0] sm:$0xff]
    %v1263 = vld [vmem:[#allocation5 + $0x21e8] sm:$0xff]
    %v1264 = vld [vmem:[#allocation5 + $0x21f0] sm:$0xff]
    %v1265 = vld [vmem:[#allocation5 + $0x21f8] sm:$0xff]
    %v1266 = vld [vmem:[#allocation5 + $0x2200] sm:$0xff]
    %v1267 = vld [vmem:[#allocation5 + $0x2208] sm:$0xff]
    %v1268 = vld [vmem:[#allocation5 + $0x2210] sm:$0xff]
    %v1269 = vld [vmem:[#allocation5 + $0x2218] sm:$0xff]
    %v1270 = vld [vmem:[#allocation5 + $0x2220] sm:$0xff]
    %v1271 = vld [vmem:[#allocation5 + $0x2228] sm:$0xff]
    %v1272 = vld [vmem:[#allocation5 + $0x2230] sm:$0xff]
    %v1273 = vld [vmem:[#allocation5 + $0x2238] sm:$0xff]
    %v1274 = vld [vmem:[#allocation5 + $0x2240] sm:$0xff]
    %v1275 = vld [vmem:[#allocation5 + $0x2248] sm:$0xff]
    %v1276 = vld [vmem:[#allocation5 + $0x2250] sm:$0xff]
    %v1277 = vld [vmem:[#allocation5 + $0x2258] sm:$0xff]
    %v1278 = vld [vmem:[#allocation5 + $0x2260] sm:$0xff]
    %v1279 = vld [vmem:[#allocation5 + $0x2268] sm:$0xff]
    %v1280 = vld [vmem:[#allocation5 + $0x2270] sm:$0xff]
    %v1281 = vld [vmem:[#allocation5 + $0x2278] sm:$0xff]
    %v1282 = vld [vmem:[#allocation5 + $0x2280] sm:$0xff]
    %v1283 = vld [vmem:[#allocation5 + $0x2288] sm:$0xff]
    %v1284 = vld [vmem:[#allocation5 + $0x2290] sm:$0xff]
    %v1285 = vld [vmem:[#allocation5 + $0x2298] sm:$0xff]
    %v1286 = vld [vmem:[#allocation5 + $0x22a0] sm:$0xff]
    %v1287 = vld [vmem:[#allocation5 + $0x22a8] sm:$0xff]
    %v1288 = vld [vmem:[#allocation5 + $0x22b0] sm:$0xff]
    %v1289 = vld [vmem:[#allocation5 + $0x22b8] sm:$0xff]
    %v1290 = vld [vmem:[#allocation5 + $0x22c0] sm:$0xff]
    %v1291 = vld [vmem:[#allocation5 + $0x22c8] sm:$0xff]
    %v1292 = vld [vmem:[#allocation5 + $0x22d0] sm:$0xff]
    %v1293 = vld [vmem:[#allocation5 + $0x22d8] sm:$0xff]
    %v1294 = vld [vmem:[#allocation5 + $0x22e0] sm:$0xff]
    %v1295 = vld [vmem:[#allocation5 + $0x22e8] sm:$0xff]
    %v1296 = vld [vmem:[#allocation5 + $0x22f0] sm:$0xff]
    %v1297 = vld [vmem:[#allocation5 + $0x22f8] sm:$0xff]
    %v1298 = vld [vmem:[#allocation5 + $0x2300] sm:$0xff]
    %v1299 = vld [vmem:[#allocation5 + $0x2308] sm:$0xff]
    %v1300 = vld [vmem:[#allocation5 + $0x2310] sm:$0xff]
    %v1301 = vld [vmem:[#allocation5 + $0x2318] sm:$0xff]
    %v1302 = vld [vmem:[#allocation5 + $0x2320] sm:$0xff]
    %v1303 = vld [vmem:[#allocation5 + $0x2328] sm:$0xff]
    %v1304 = vld [vmem:[#allocation5 + $0x2330] sm:$0xff]
    %v1305 = vld [vmem:[#allocation5 + $0x2338] sm:$0xff]
    %v1306 = vld [vmem:[#allocation5 + $0x2340] sm:$0xff]
    %v1307 = vld [vmem:[#allocation5 + $0x2348] sm:$0xff]
    %v1308 = vld [vmem:[#allocation5 + $0x2350] sm:$0xff]
    %v1309 = vld [vmem:[#allocation5 + $0x2358] sm:$0xff]
    %v1310 = vld [vmem:[#allocation5 + $0x2360] sm:$0xff]
    %v1311 = vld [vmem:[#allocation5 + $0x2368] sm:$0xff]
    %v1312 = vld [vmem:[#allocation5 + $0x2370] sm:$0xff]
    %v1313 = vld [vmem:[#allocation5 + $0x2378] sm:$0xff]
    %v1314 = vld [vmem:[#allocation5 + $0x2380] sm:$0xff]
    %v1315 = vld [vmem:[#allocation5 + $0x2388] sm:$0xff]
    %v1316 = vld [vmem:[#allocation5 + $0x2390] sm:$0xff]
    %v1317 = vld [vmem:[#allocation5 + $0x2398] sm:$0xff]
    %v1318 = vld [vmem:[#allocation5 + $0x23a0] sm:$0xff]
    %v1319 = vld [vmem:[#allocation5 + $0x23a8] sm:$0xff]
    %v1320 = vld [vmem:[#allocation5 + $0x23b0] sm:$0xff]
    %v1321 = vld [vmem:[#allocation5 + $0x23b8] sm:$0xff]
    %v1322 = vld [vmem:[#allocation5 + $0x23c0] sm:$0xff]
    %v1323 = vld [vmem:[#allocation5 + $0x23c8] sm:$0xff]
    %v1324 = vld [vmem:[#allocation5 + $0x23d0] sm:$0xff]
    %v1325 = vld [vmem:[#allocation5 + $0x23d8] sm:$0xff]
    %v1326 = vld [vmem:[#allocation5 + $0x23e0] sm:$0xff]
    %v1327 = vld [vmem:[#allocation5 + $0x23e8] sm:$0xff]
    %v1328 = vld [vmem:[#allocation5 + $0x23f0] sm:$0xff]
    %v1329 = vld [vmem:[#allocation5 + $0x23f8] sm:$0xff]
    %v1330 = vld [vmem:[#allocation5 + $0x2400] sm:$0xff]
    %v1331 = vld [vmem:[#allocation5 + $0x2408] sm:$0xff]
    %v1332 = vld [vmem:[#allocation5 + $0x2410] sm:$0xff]
    %v1333 = vld [vmem:[#allocation5 + $0x2418] sm:$0xff]
    %v1334 = vld [vmem:[#allocation5 + $0x2420] sm:$0xff]
    %v1335 = vld [vmem:[#allocation5 + $0x2428] sm:$0xff]
    %v1336 = vld [vmem:[#allocation5 + $0x2430] sm:$0xff]
    %v1337 = vld [vmem:[#allocation5 + $0x2438] sm:$0xff]
    %v1338 = vld [vmem:[#allocation5 + $0x2440] sm:$0xff]
    %v1339 = vld [vmem:[#allocation5 + $0x2448] sm:$0xff]
    %v1340 = vld [vmem:[#allocation5 + $0x2450] sm:$0xff]
    %v1341 = vld [vmem:[#allocation5 + $0x2458] sm:$0xff]
    %v1342 = vld [vmem:[#allocation5 + $0x2460] sm:$0xff]
    %v1343 = vld [vmem:[#allocation5 + $0x2468] sm:$0xff]
    %v1344 = vld [vmem:[#allocation5 + $0x2470] sm:$0xff]
    %v1345 = vld [vmem:[#allocation5 + $0x2478] sm:$0xff]
    %v1346 = vld [vmem:[#allocation5 + $0x2480] sm:$0xff]
    %v1347 = vld [vmem:[#allocation5 + $0x2488] sm:$0xff]
    %v1348 = vld [vmem:[#allocation5 + $0x2490] sm:$0xff]
    %v1349 = vld [vmem:[#allocation5 + $0x2498] sm:$0xff]
    %v1350 = vld [vmem:[#allocation5 + $0x24a0] sm:$0xff]
    %v1351 = vld [vmem:[#allocation5 + $0x24a8] sm:$0xff]
    %v1352 = vld [vmem:[#allocation5 + $0x24b0] sm:$0xff]
    %v1353 = vld [vmem:[#allocation5 + $0x24b8] sm:$0xff]
    %v1354 = vld [vmem:[#allocation5 + $0x24c0] sm:$0xff]
    %v1355 = vld [vmem:[#allocation5 + $0x24c8] sm:$0xff]
    %v1356 = vld [vmem:[#allocation5 + $0x24d0] sm:$0xff]
    %v1357 = vld [vmem:[#allocation5 + $0x24d8] sm:$0xff]
    %v1358 = vld [vmem:[#allocation5 + $0x24e0] sm:$0xff]
    %v1359 = vld [vmem:[#allocation5 + $0x24e8] sm:$0xff]
    %v1360 = vld [vmem:[#allocation5 + $0x24f0] sm:$0xff]
    %v1361 = vld [vmem:[#allocation5 + $0x24f8] sm:$0xff]
    %v1362 = vld [vmem:[#allocation5 + $0x2500] sm:$0xff]
    %v1363 = vld [vmem:[#allocation5 + $0x2508] sm:$0xff]
    %v1364 = vld [vmem:[#allocation5 + $0x2510] sm:$0xff]
    %v1365 = vld [vmem:[#allocation5 + $0x2518] sm:$0xff]
    %v1366 = vld [vmem:[#allocation5 + $0x2520] sm:$0xff]
    %v1367 = vld [vmem:[#allocation5 + $0x2528] sm:$0xff]
    %v1368 = vld [vmem:[#allocation5 + $0x2530] sm:$0xff]
    %v1369 = vld [vmem:[#allocation5 + $0x2538] sm:$0xff]
    %v1370 = vld [vmem:[#allocation5 + $0x2540] sm:$0xff]
    %v1371 = vld [vmem:[#allocation5 + $0x2548] sm:$0xff]
    %v1372 = vld [vmem:[#allocation5 + $0x2550] sm:$0xff]
    %v1373 = vld [vmem:[#allocation5 + $0x2558] sm:$0xff]
    %v1374 = vld [vmem:[#allocation5 + $0x2560] sm:$0xff]
    %v1375 = vld [vmem:[#allocation5 + $0x2568] sm:$0xff]
    %v1376 = vld [vmem:[#allocation5 + $0x2570] sm:$0xff]
    %v1377 = vld [vmem:[#allocation5 + $0x2578] sm:$0xff]
    %v1378 = vld [vmem:[#allocation5 + $0x2580] sm:$0xff]
    %v1379 = vld [vmem:[#allocation5 + $0x2588] sm:$0xff]
    %v1380 = vld [vmem:[#allocation5 + $0x2590] sm:$0xff]
    %v1381 = vld [vmem:[#allocation5 + $0x2598] sm:$0xff]
    %v1382 = vld [vmem:[#allocation5 + $0x25a0] sm:$0xff]
    %v1383 = vld [vmem:[#allocation5 + $0x25a8] sm:$0xff]
    %v1384 = vld [vmem:[#allocation5 + $0x25b0] sm:$0xff]
    %v1385 = vld [vmem:[#allocation5 + $0x25b8] sm:$0xff]
    %v1386 = vld [vmem:[#allocation5 + $0x25c0] sm:$0xff]
    %v1387 = vld [vmem:[#allocation5 + $0x25c8] sm:$0xff]
    %v1388 = vld [vmem:[#allocation5 + $0x25d0] sm:$0xff]
    %v1389 = vld [vmem:[#allocation5 + $0x25d8] sm:$0xff]
    %v1390 = vld [vmem:[#allocation5 + $0x25e0] sm:$0xff]
    %v1391 = vld [vmem:[#allocation5 + $0x25e8] sm:$0xff]
    %v1392 = vld [vmem:[#allocation5 + $0x25f0] sm:$0xff]
    %v1393 = vld [vmem:[#allocation5 + $0x25f8] sm:$0xff]
    %v1394 = vld [vmem:[#allocation5 + $0x2600] sm:$0xff]
    %v1395 = vld [vmem:[#allocation5 + $0x2608] sm:$0xff]
    %v1396 = vld [vmem:[#allocation5 + $0x2610] sm:$0xff]
    %v1397 = vld [vmem:[#allocation5 + $0x2618] sm:$0xff]
    %v1398 = vld [vmem:[#allocation5 + $0x2620] sm:$0xff]
    %v1399 = vld [vmem:[#allocation5 + $0x2628] sm:$0xff]
    %v1400 = vld [vmem:[#allocation5 + $0x2630] sm:$0xff]
    %v1401 = vld [vmem:[#allocation5 + $0x2638] sm:$0xff]
    %v1402 = vld [vmem:[#allocation5 + $0x2640] sm:$0xff]
    %v1403 = vld [vmem:[#allocation5 + $0x2648] sm:$0xff]
    %v1404 = vld [vmem:[#allocation5 + $0x2650] sm:$0xff]
    %v1405 = vld [vmem:[#allocation5 + $0x2658] sm:$0xff]
    %v1406 = vld [vmem:[#allocation5 + $0x2660] sm:$0xff]
    %v1407 = vld [vmem:[#allocation5 + $0x2668] sm:$0xff]
    %v1408 = vld [vmem:[#allocation5 + $0x2670] sm:$0xff]
    %v1409 = vld [vmem:[#allocation5 + $0x2678] sm:$0xff]
    %v1410 = vld [vmem:[#allocation5 + $0x2680] sm:$0xff]
    %v1411 = vld [vmem:[#allocation5 + $0x2688] sm:$0xff]
    %v1412 = vld [vmem:[#allocation5 + $0x2690] sm:$0xff]
    %v1413 = vld [vmem:[#allocation5 + $0x2698] sm:$0xff]
    %v1414 = vld [vmem:[#allocation5 + $0x26a0] sm:$0xff]
    %v1415 = vld [vmem:[#allocation5 + $0x26a8] sm:$0xff]
    %v1416 = vld [vmem:[#allocation5 + $0x26b0] sm:$0xff]
    %v1417 = vld [vmem:[#allocation5 + $0x26b8] sm:$0xff]
    %v1418 = vld [vmem:[#allocation5 + $0x26c0] sm:$0xff]
    %v1419 = vld [vmem:[#allocation5 + $0x26c8] sm:$0xff]
    %v1420 = vld [vmem:[#allocation5 + $0x26d0] sm:$0xff]
    %v1421 = vld [vmem:[#allocation5 + $0x26d8] sm:$0xff]
    %v1422 = vld [vmem:[#allocation5 + $0x26e0] sm:$0xff]
    %v1423 = vld [vmem:[#allocation5 + $0x26e8] sm:$0xff]
    %v1424 = vld [vmem:[#allocation5 + $0x26f0] sm:$0xff]
    %v1425 = vld [vmem:[#allocation5 + $0x26f8] sm:$0xff]
    %v1426 = vld [vmem:[#allocation5 + $0x2700] sm:$0xff]
    %v1427 = vld [vmem:[#allocation5 + $0x2708] sm:$0xff]
    %v1428 = vld [vmem:[#allocation5 + $0x2710] sm:$0xff]
    %v1429 = vld [vmem:[#allocation5 + $0x2718] sm:$0xff]
    %v1430 = vld [vmem:[#allocation5 + $0x2720] sm:$0xff]
    %v1431 = vld [vmem:[#allocation5 + $0x2728] sm:$0xff]
    %v1432 = vld [vmem:[#allocation5 + $0x2730] sm:$0xff]
    %v1433 = vld [vmem:[#allocation5 + $0x2738] sm:$0xff]
    %v1434 = vld [vmem:[#allocation5 + $0x2740] sm:$0xff]
    %v1435 = vld [vmem:[#allocation5 + $0x2748] sm:$0xff]
    %v1436 = vld [vmem:[#allocation5 + $0x2750] sm:$0xff]
    %v1437 = vld [vmem:[#allocation5 + $0x2758] sm:$0xff]
    %v1438 = vld [vmem:[#allocation5 + $0x2760] sm:$0xff]
    %v1439 = vld [vmem:[#allocation5 + $0x2768] sm:$0xff]
    %v1440 = vld [vmem:[#allocation5 + $0x2770] sm:$0xff]
    %v1441 = vld [vmem:[#allocation5 + $0x2778] sm:$0xff]
    %v1442 = vld [vmem:[#allocation5 + $0x2780] sm:$0xff]
    %v1443 = vld [vmem:[#allocation5 + $0x2788] sm:$0xff]
    %v1444 = vld [vmem:[#allocation5 + $0x2790] sm:$0xff]
    %v1445 = vld [vmem:[#allocation5 + $0x2798] sm:$0xff]
    %v1446 = vld [vmem:[#allocation5 + $0x27a0] sm:$0xff]
    %v1447 = vld [vmem:[#allocation5 + $0x27a8] sm:$0xff]
    %v1448 = vld [vmem:[#allocation5 + $0x27b0] sm:$0xff]
    %v1449 = vld [vmem:[#allocation5 + $0x27b8] sm:$0xff]
    %v1450 = vld [vmem:[#allocation5 + $0x27c0] sm:$0xff]
    %v1451 = vld [vmem:[#allocation5 + $0x27c8] sm:$0xff]
    %v1452 = vld [vmem:[#allocation5 + $0x27d0] sm:$0xff]
    %v1453 = vld [vmem:[#allocation5 + $0x27d8] sm:$0xff]
    %v1454 = vld [vmem:[#allocation5 + $0x27e0] sm:$0xff]
    %v1455 = vld [vmem:[#allocation5 + $0x27e8] sm:$0xff]
    %v1456 = vld [vmem:[#allocation5 + $0x27f0] sm:$0xff]
    %v1457 = vld [vmem:[#allocation5 + $0x27f8] sm:$0xff]
    %v1458 = vld [vmem:[#allocation7] sm:$0xff]
    %v2739 = vunpack.c.l.b16 %v178
    %v2740 = vunpack.c.h.b16 %v178
    %v2741 = vunpack.c.l.b16 %v179
    %v2742 = vunpack.c.h.b16 %v179
    %v2743 = vunpack.c.l.b16 %v180
    %v2744 = vunpack.c.h.b16 %v180
    %v2745 = vunpack.c.l.b16 %v181
    %v2746 = vunpack.c.h.b16 %v181
    %v2747 = vunpack.c.l.b16 %v182
    %v2748 = vunpack.c.h.b16 %v182
    %v2749 = vunpack.c.l.b16 %v183
    %v2750 = vunpack.c.h.b16 %v183
    %v2751 = vunpack.c.l.b16 %v184
    %v2752 = vunpack.c.h.b16 %v184
    %v2753 = vunpack.c.l.b16 %v185
    %v2754 = vunpack.c.h.b16 %v185
    %v2755 = vunpack.c.l.b16 %v186
    %v2756 = vunpack.c.h.b16 %v186
    %v2757 = vunpack.c.l.b16 %v187
    %v2758 = vunpack.c.h.b16 %v187
    %v2759 = vunpack.c.l.b16 %v188
    %v2760 = vunpack.c.h.b16 %v188
    %v2761 = vunpack.c.l.b16 %v189
    %v2762 = vunpack.c.h.b16 %v189
    %v2763 = vunpack.c.l.b16 %v190
    %v2764 = vunpack.c.h.b16 %v190
    %v2765 = vunpack.c.l.b16 %v191
    %v2766 = vunpack.c.h.b16 %v191
    %v2767 = vunpack.c.l.b16 %v192
    %v2768 = vunpack.c.h.b16 %v192
    %v2769 = vunpack.c.l.b16 %v193
    %v2770 = vunpack.c.h.b16 %v193
    %v2771 = vunpack.c.l.b16 %v194
    %v2772 = vunpack.c.h.b16 %v194
    %v2773 = vunpack.c.l.b16 %v195
    %v2774 = vunpack.c.h.b16 %v195
    %v2775 = vunpack.c.l.b16 %v196
    %v2776 = vunpack.c.h.b16 %v196
    %v2777 = vunpack.c.l.b16 %v197
    %v2778 = vunpack.c.h.b16 %v197
    %v2779 = vunpack.c.l.b16 %v198
    %v2780 = vunpack.c.h.b16 %v198
    %v2781 = vunpack.c.l.b16 %v199
    %v2782 = vunpack.c.h.b16 %v199
    %v2783 = vunpack.c.l.b16 %v200
    %v2784 = vunpack.c.h.b16 %v200
    %v2785 = vunpack.c.l.b16 %v201
    %v2786 = vunpack.c.h.b16 %v201
    %v2787 = vunpack.c.l.b16 %v202
    %v2788 = vunpack.c.h.b16 %v202
    %v2789 = vunpack.c.l.b16 %v203
    %v2790 = vunpack.c.h.b16 %v203
    %v2791 = vunpack.c.l.b16 %v204
    %v2792 = vunpack.c.h.b16 %v204
    %v2793 = vunpack.c.l.b16 %v205
    %v2794 = vunpack.c.h.b16 %v205
    %v2795 = vunpack.c.l.b16 %v206
    %v2796 = vunpack.c.h.b16 %v206
    %v2797 = vunpack.c.l.b16 %v207
    %v2798 = vunpack.c.h.b16 %v207
    %v2799 = vunpack.c.l.b16 %v208
    %v2800 = vunpack.c.h.b16 %v208
    %v2801 = vunpack.c.l.b16 %v209
    %v2802 = vunpack.c.h.b16 %v209
    %v2803 = vunpack.c.l.b16 %v210
    %v2804 = vunpack.c.h.b16 %v210
    %v2805 = vunpack.c.l.b16 %v211
    %v2806 = vunpack.c.h.b16 %v211
    %v2807 = vunpack.c.l.b16 %v212
    %v2808 = vunpack.c.h.b16 %v212
    %v2809 = vunpack.c.l.b16 %v213
    %v2810 = vunpack.c.h.b16 %v213
    %v2811 = vunpack.c.l.b16 %v214
    %v2812 = vunpack.c.h.b16 %v214
    %v2813 = vunpack.c.l.b16 %v215
    %v2814 = vunpack.c.h.b16 %v215
    %v2815 = vunpack.c.l.b16 %v216
    %v2816 = vunpack.c.h.b16 %v216
    %v2817 = vunpack.c.l.b16 %v217
    %v2818 = vunpack.c.h.b16 %v217
    %v2819 = vunpack.c.l.b16 %v218
    %v2820 = vunpack.c.h.b16 %v218
    %v2821 = vunpack.c.l.b16 %v219
    %v2822 = vunpack.c.h.b16 %v219
    %v2823 = vunpack.c.l.b16 %v220
    %v2824 = vunpack.c.h.b16 %v220
    %v2825 = vunpack.c.l.b16 %v221
    %v2826 = vunpack.c.h.b16 %v221
    %v2827 = vunpack.c.l.b16 %v222
    %v2828 = vunpack.c.h.b16 %v222
    %v2829 = vunpack.c.l.b16 %v223
    %v2830 = vunpack.c.h.b16 %v223
    %v2831 = vunpack.c.l.b16 %v224
    %v2832 = vunpack.c.h.b16 %v224
    %v2833 = vunpack.c.l.b16 %v225
    %v2834 = vunpack.c.h.b16 %v225
    %v2835 = vunpack.c.l.b16 %v226
    %v2836 = vunpack.c.h.b16 %v226
    %v2837 = vunpack.c.l.b16 %v227
    %v2838 = vunpack.c.h.b16 %v227
    %v2839 = vunpack.c.l.b16 %v228
    %v2840 = vunpack.c.h.b16 %v228
    %v2841 = vunpack.c.l.b16 %v229
    %v2842 = vunpack.c.h.b16 %v229
    %v2843 = vunpack.c.l.b16 %v230
    %v2844 = vunpack.c.h.b16 %v230
    %v2845 = vunpack.c.l.b16 %v231
    %v2846 = vunpack.c.h.b16 %v231
    %v2847 = vunpack.c.l.b16 %v232
    %v2848 = vunpack.c.h.b16 %v232
    %v2849 = vunpack.c.l.b16 %v233
    %v2850 = vunpack.c.h.b16 %v233
    %v2851 = vunpack.c.l.b16 %v234
    %v2852 = vunpack.c.h.b16 %v234
    %v2853 = vunpack.c.l.b16 %v235
    %v2854 = vunpack.c.h.b16 %v235
    %v2855 = vunpack.c.l.b16 %v236
    %v2856 = vunpack.c.h.b16 %v236
    %v2857 = vunpack.c.l.b16 %v237
    %v2858 = vunpack.c.h.b16 %v237
    %v2859 = vunpack.c.l.b16 %v238
    %v2860 = vunpack.c.h.b16 %v238
    %v2861 = vunpack.c.l.b16 %v239
    %v2862 = vunpack.c.h.b16 %v239
    %v2863 = vunpack.c.l.b16 %v240
    %v2864 = vunpack.c.h.b16 %v240
    %v2865 = vunpack.c.l.b16 %v241
    %v2866 = vunpack.c.h.b16 %v241
    %v2867 = vunpack.c.l.b16 %v242
    %v2868 = vunpack.c.h.b16 %v242
    %v2869 = vunpack.c.l.b16 %v243
    %v2870 = vunpack.c.h.b16 %v243
    %v2871 = vunpack.c.l.b16 %v244
    %v2872 = vunpack.c.h.b16 %v244
    %v2873 = vunpack.c.l.b16 %v245
    %v2874 = vunpack.c.h.b16 %v245
    %v2875 = vunpack.c.l.b16 %v246
    %v2876 = vunpack.c.h.b16 %v246
    %v2877 = vunpack.c.l.b16 %v247
    %v2878 = vunpack.c.h.b16 %v247
    %v2879 = vunpack.c.l.b16 %v248
    %v2880 = vunpack.c.h.b16 %v248
    %v2881 = vunpack.c.l.b16 %v249
    %v2882 = vunpack.c.h.b16 %v249
    %v2883 = vunpack.c.l.b16 %v250
    %v2884 = vunpack.c.h.b16 %v250
    %v2885 = vunpack.c.l.b16 %v251
    %v2886 = vunpack.c.h.b16 %v251
    %v2887 = vunpack.c.l.b16 %v252
    %v2888 = vunpack.c.h.b16 %v252
    %v2889 = vunpack.c.l.b16 %v253
    %v2890 = vunpack.c.h.b16 %v253
    %v2891 = vunpack.c.l.b16 %v254
    %v2892 = vunpack.c.h.b16 %v254
    %v2893 = vunpack.c.l.b16 %v255
    %v2894 = vunpack.c.h.b16 %v255
    %v2895 = vunpack.c.l.b16 %v256
    %v2896 = vunpack.c.h.b16 %v256
    %v2897 = vunpack.c.l.b16 %v257
    %v2898 = vunpack.c.h.b16 %v257
    %v2899 = vunpack.c.l.b16 %v258
    %v2900 = vunpack.c.h.b16 %v258
    %v2901 = vunpack.c.l.b16 %v259
    %v2902 = vunpack.c.h.b16 %v259
    %v2903 = vunpack.c.l.b16 %v260
    %v2904 = vunpack.c.h.b16 %v260
    %v2905 = vunpack.c.l.b16 %v261
    %v2906 = vunpack.c.h.b16 %v261
    %v2907 = vunpack.c.l.b16 %v262
    %v2908 = vunpack.c.h.b16 %v262
    %v2909 = vunpack.c.l.b16 %v263
    %v2910 = vunpack.c.h.b16 %v263
    %v2911 = vunpack.c.l.b16 %v264
    %v2912 = vunpack.c.h.b16 %v264
    %v2913 = vunpack.c.l.b16 %v265
    %v2914 = vunpack.c.h.b16 %v265
    %v2915 = vunpack.c.l.b16 %v266
    %v2916 = vunpack.c.h.b16 %v266
    %v2917 = vunpack.c.l.b16 %v267
    %v2918 = vunpack.c.h.b16 %v267
    %v2919 = vunpack.c.l.b16 %v268
    %v2920 = vunpack.c.h.b16 %v268
    %v2921 = vunpack.c.l.b16 %v269
    %v2922 = vunpack.c.h.b16 %v269
    %v2923 = vunpack.c.l.b16 %v270
    %v2924 = vunpack.c.h.b16 %v270
    %v2925 = vunpack.c.l.b16 %v271
    %v2926 = vunpack.c.h.b16 %v271
    %v2927 = vunpack.c.l.b16 %v272
    %v2928 = vunpack.c.h.b16 %v272
    %v2929 = vunpack.c.l.b16 %v273
    %v2930 = vunpack.c.h.b16 %v273
    %v2931 = vunpack.c.l.b16 %v274
    %v2932 = vunpack.c.h.b16 %v274
    %v2933 = vunpack.c.l.b16 %v275
    %v2934 = vunpack.c.h.b16 %v275
    %v2935 = vunpack.c.l.b16 %v276
    %v2936 = vunpack.c.h.b16 %v276
    %v2937 = vunpack.c.l.b16 %v277
    %v2938 = vunpack.c.h.b16 %v277
    %v2939 = vunpack.c.l.b16 %v278
    %v2940 = vunpack.c.h.b16 %v278
    %v2941 = vunpack.c.l.b16 %v279
    %v2942 = vunpack.c.h.b16 %v279
    %v2943 = vunpack.c.l.b16 %v280
    %v2944 = vunpack.c.h.b16 %v280
    %v2945 = vunpack.c.l.b16 %v281
    %v2946 = vunpack.c.h.b16 %v281
    %v2947 = vunpack.c.l.b16 %v282
    %v2948 = vunpack.c.h.b16 %v282
    %v2949 = vunpack.c.l.b16 %v283
    %v2950 = vunpack.c.h.b16 %v283
    %v2951 = vunpack.c.l.b16 %v284
    %v2952 = vunpack.c.h.b16 %v284
    %v2953 = vunpack.c.l.b16 %v285
    %v2954 = vunpack.c.h.b16 %v285
    %v2955 = vunpack.c.l.b16 %v286
    %v2956 = vunpack.c.h.b16 %v286
    %v2957 = vunpack.c.l.b16 %v287
    %v2958 = vunpack.c.h.b16 %v287
    %v2959 = vunpack.c.l.b16 %v288
    %v2960 = vunpack.c.h.b16 %v288
    %v2961 = vunpack.c.l.b16 %v289
    %v2962 = vunpack.c.h.b16 %v289
    %v2963 = vunpack.c.l.b16 %v290
    %v2964 = vunpack.c.h.b16 %v290
    %v2965 = vunpack.c.l.b16 %v291
    %v2966 = vunpack.c.h.b16 %v291
    %v2967 = vunpack.c.l.b16 %v292
    %v2968 = vunpack.c.h.b16 %v292
    %v2969 = vunpack.c.l.b16 %v293
    %v2970 = vunpack.c.h.b16 %v293
    %v2971 = vunpack.c.l.b16 %v294
    %v2972 = vunpack.c.h.b16 %v294
    %v2973 = vunpack.c.l.b16 %v295
    %v2974 = vunpack.c.h.b16 %v295
    %v2975 = vunpack.c.l.b16 %v296
    %v2976 = vunpack.c.h.b16 %v296
    %v2977 = vunpack.c.l.b16 %v297
    %v2978 = vunpack.c.h.b16 %v297
    %v2979 = vunpack.c.l.b16 %v298
    %v2980 = vunpack.c.h.b16 %v298
    %v2981 = vunpack.c.l.b16 %v299
    %v2982 = vunpack.c.h.b16 %v299
    %v2983 = vunpack.c.l.b16 %v300
    %v2984 = vunpack.c.h.b16 %v300
    %v2985 = vunpack.c.l.b16 %v301
    %v2986 = vunpack.c.h.b16 %v301
    %v2987 = vunpack.c.l.b16 %v302
    %v2988 = vunpack.c.h.b16 %v302
    %v2989 = vunpack.c.l.b16 %v303
    %v2990 = vunpack.c.h.b16 %v303
    %v2991 = vunpack.c.l.b16 %v304
    %v2992 = vunpack.c.h.b16 %v304
    %v2993 = vunpack.c.l.b16 %v305
    %v2994 = vunpack.c.h.b16 %v305
    %v2995 = vunpack.c.l.b16 %v306
    %v2996 = vunpack.c.h.b16 %v306
    %v2997 = vunpack.c.l.b16 %v307
    %v2998 = vunpack.c.h.b16 %v307
    %v2999 = vunpack.c.l.b16 %v308
    %v3000 = vunpack.c.h.b16 %v308
    %v3001 = vunpack.c.l.b16 %v309
    %v3002 = vunpack.c.h.b16 %v309
    %v3003 = vunpack.c.l.b16 %v310
    %v3004 = vunpack.c.h.b16 %v310
    %v3005 = vunpack.c.l.b16 %v311
    %v3006 = vunpack.c.h.b16 %v311
    %v3007 = vunpack.c.l.b16 %v312
    %v3008 = vunpack.c.h.b16 %v312
    %v3009 = vunpack.c.l.b16 %v313
    %v3010 = vunpack.c.h.b16 %v313
    %v3011 = vunpack.c.l.b16 %v314
    %v3012 = vunpack.c.h.b16 %v314
    %v3013 = vunpack.c.l.b16 %v315
    %v3014 = vunpack.c.h.b16 %v315
    %v3015 = vunpack.c.l.b16 %v316
    %v3016 = vunpack.c.h.b16 %v316
    %v3017 = vunpack.c.l.b16 %v317
    %v3018 = vunpack.c.h.b16 %v317
    %v3019 = vunpack.c.l.b16 %v318
    %v3020 = vunpack.c.h.b16 %v318
    %v3021 = vunpack.c.l.b16 %v319
    %v3022 = vunpack.c.h.b16 %v319
    %v3023 = vunpack.c.l.b16 %v320
    %v3024 = vunpack.c.h.b16 %v320
    %v3025 = vunpack.c.l.b16 %v321
    %v3026 = vunpack.c.h.b16 %v321
    %v3027 = vunpack.c.l.b16 %v322
    %v3028 = vunpack.c.h.b16 %v322
    %v3029 = vunpack.c.l.b16 %v323
    %v3030 = vunpack.c.h.b16 %v323
    %v3031 = vunpack.c.l.b16 %v324
    %v3032 = vunpack.c.h.b16 %v324
    %v3033 = vunpack.c.l.b16 %v325
    %v3034 = vunpack.c.h.b16 %v325
    %v3035 = vunpack.c.l.b16 %v326
    %v3036 = vunpack.c.h.b16 %v326
    %v3037 = vunpack.c.l.b16 %v327
    %v3038 = vunpack.c.h.b16 %v327
    %v3039 = vunpack.c.l.b16 %v328
    %v3040 = vunpack.c.h.b16 %v328
    %v3041 = vunpack.c.l.b16 %v329
    %v3042 = vunpack.c.h.b16 %v329
    %v3043 = vunpack.c.l.b16 %v330
    %v3044 = vunpack.c.h.b16 %v330
    %v3045 = vunpack.c.l.b16 %v331
    %v3046 = vunpack.c.h.b16 %v331
    %v3047 = vunpack.c.l.b16 %v332
    %v3048 = vunpack.c.h.b16 %v332
    %v3049 = vunpack.c.l.b16 %v333
    %v3050 = vunpack.c.h.b16 %v333
    %v3051 = vunpack.c.l.b16 %v334
    %v3052 = vunpack.c.h.b16 %v334
    %v3053 = vunpack.c.l.b16 %v335
    %v3054 = vunpack.c.h.b16 %v335
    %v3055 = vunpack.c.l.b16 %v336
    %v3056 = vunpack.c.h.b16 %v336
    %v3057 = vunpack.c.l.b16 %v337
    %v3058 = vunpack.c.h.b16 %v337
    %v3059 = vunpack.c.l.b16 %v338
    %v3060 = vunpack.c.h.b16 %v338
    %v3061 = vunpack.c.l.b16 %v339
    %v3062 = vunpack.c.h.b16 %v339
    %v3063 = vunpack.c.l.b16 %v340
    %v3064 = vunpack.c.h.b16 %v340
    %v3065 = vunpack.c.l.b16 %v341
    %v3066 = vunpack.c.h.b16 %v341
    %v3067 = vunpack.c.l.b16 %v342
    %v3068 = vunpack.c.h.b16 %v342
    %v3069 = vunpack.c.l.b16 %v343
    %v3070 = vunpack.c.h.b16 %v343
    %v3071 = vunpack.c.l.b16 %v344
    %v3072 = vunpack.c.h.b16 %v344
    %v3073 = vunpack.c.l.b16 %v345
    %v3074 = vunpack.c.h.b16 %v345
    %v3075 = vunpack.c.l.b16 %v346
    %v3076 = vunpack.c.h.b16 %v346
    %v3077 = vunpack.c.l.b16 %v347
    %v3078 = vunpack.c.h.b16 %v347
    %v3079 = vunpack.c.l.b16 %v348
    %v3080 = vunpack.c.h.b16 %v348
    %v3081 = vunpack.c.l.b16 %v349
    %v3082 = vunpack.c.h.b16 %v349
    %v3083 = vunpack.c.l.b16 %v350
    %v3084 = vunpack.c.h.b16 %v350
    %v3085 = vunpack.c.l.b16 %v351
    %v3086 = vunpack.c.h.b16 %v351
    %v3087 = vunpack.c.l.b16 %v352
    %v3088 = vunpack.c.h.b16 %v352
    %v3089 = vunpack.c.l.b16 %v353
    %v3090 = vunpack.c.h.b16 %v353
    %v3091 = vunpack.c.l.b16 %v354
    %v3092 = vunpack.c.h.b16 %v354
    %v3093 = vunpack.c.l.b16 %v355
    %v3094 = vunpack.c.h.b16 %v355
    %v3095 = vunpack.c.l.b16 %v356
    %v3096 = vunpack.c.h.b16 %v356
    %v3097 = vunpack.c.l.b16 %v357
    %v3098 = vunpack.c.h.b16 %v357
    %v3099 = vunpack.c.l.b16 %v358
    %v3100 = vunpack.c.h.b16 %v358
    %v3101 = vunpack.c.l.b16 %v359
    %v3102 = vunpack.c.h.b16 %v359
    %v3103 = vunpack.c.l.b16 %v360
    %v3104 = vunpack.c.h.b16 %v360
    %v3105 = vunpack.c.l.b16 %v361
    %v3106 = vunpack.c.h.b16 %v361
    %v3107 = vunpack.c.l.b16 %v362
    %v3108 = vunpack.c.h.b16 %v362
    %v3109 = vunpack.c.l.b16 %v363
    %v3110 = vunpack.c.h.b16 %v363
    %v3111 = vunpack.c.l.b16 %v364
    %v3112 = vunpack.c.h.b16 %v364
    %v3113 = vunpack.c.l.b16 %v365
    %v3114 = vunpack.c.h.b16 %v365
    %v3115 = vunpack.c.l.b16 %v366
    %v3116 = vunpack.c.h.b16 %v366
    %v3117 = vunpack.c.l.b16 %v367
    %v3118 = vunpack.c.h.b16 %v367
    %v3119 = vunpack.c.l.b16 %v368
    %v3120 = vunpack.c.h.b16 %v368
    %v3121 = vunpack.c.l.b16 %v369
    %v3122 = vunpack.c.h.b16 %v369
    %v3123 = vunpack.c.l.b16 %v370
    %v3124 = vunpack.c.h.b16 %v370
    %v3125 = vunpack.c.l.b16 %v371
    %v3126 = vunpack.c.h.b16 %v371
    %v3127 = vunpack.c.l.b16 %v372
    %v3128 = vunpack.c.h.b16 %v372
    %v3129 = vunpack.c.l.b16 %v373
    %v3130 = vunpack.c.h.b16 %v373
    %v3131 = vunpack.c.l.b16 %v374
    %v3132 = vunpack.c.h.b16 %v374
    %v3133 = vunpack.c.l.b16 %v375
    %v3134 = vunpack.c.h.b16 %v375
    %v3135 = vunpack.c.l.b16 %v376
    %v3136 = vunpack.c.h.b16 %v376
    %v3137 = vunpack.c.l.b16 %v377
    %v3138 = vunpack.c.h.b16 %v377
    %v3139 = vunpack.c.l.b16 %v378
    %v3140 = vunpack.c.h.b16 %v378
    %v3141 = vunpack.c.l.b16 %v379
    %v3142 = vunpack.c.h.b16 %v379
    %v3143 = vunpack.c.l.b16 %v380
    %v3144 = vunpack.c.h.b16 %v380
    %v3145 = vunpack.c.l.b16 %v381
    %v3146 = vunpack.c.h.b16 %v381
    %v3147 = vunpack.c.l.b16 %v382
    %v3148 = vunpack.c.h.b16 %v382
    %v3149 = vunpack.c.l.b16 %v383
    %v3150 = vunpack.c.h.b16 %v383
    %v3151 = vunpack.c.l.b16 %v384
    %v3152 = vunpack.c.h.b16 %v384
    %v3153 = vunpack.c.l.b16 %v385
    %v3154 = vunpack.c.h.b16 %v385
    %v3155 = vunpack.c.l.b16 %v386
    %v3156 = vunpack.c.h.b16 %v386
    %v3157 = vunpack.c.l.b16 %v387
    %v3158 = vunpack.c.h.b16 %v387
    %v3159 = vunpack.c.l.b16 %v388
    %v3160 = vunpack.c.h.b16 %v388
    %v3161 = vunpack.c.l.b16 %v389
    %v3162 = vunpack.c.h.b16 %v389
    %v3163 = vunpack.c.l.b16 %v390
    %v3164 = vunpack.c.h.b16 %v390
    %v3165 = vunpack.c.l.b16 %v391
    %v3166 = vunpack.c.h.b16 %v391
    %v3167 = vunpack.c.l.b16 %v392
    %v3168 = vunpack.c.h.b16 %v392
    %v3169 = vunpack.c.l.b16 %v393
    %v3170 = vunpack.c.h.b16 %v393
    %v3171 = vunpack.c.l.b16 %v394
    %v3172 = vunpack.c.h.b16 %v394
    %v3173 = vunpack.c.l.b16 %v395
    %v3174 = vunpack.c.h.b16 %v395
    %v3175 = vunpack.c.l.b16 %v396
    %v3176 = vunpack.c.h.b16 %v396
    %v3177 = vunpack.c.l.b16 %v397
    %v3178 = vunpack.c.h.b16 %v397
    %v3179 = vunpack.c.l.b16 %v398
    %v3180 = vunpack.c.h.b16 %v398
    %v3181 = vunpack.c.l.b16 %v399
    %v3182 = vunpack.c.h.b16 %v399
    %v3183 = vunpack.c.l.b16 %v400
    %v3184 = vunpack.c.h.b16 %v400
    %v3185 = vunpack.c.l.b16 %v401
    %v3186 = vunpack.c.h.b16 %v401
    %v3187 = vunpack.c.l.b16 %v402
    %v3188 = vunpack.c.h.b16 %v402
    %v3189 = vunpack.c.l.b16 %v403
    %v3190 = vunpack.c.h.b16 %v403
    %v3191 = vunpack.c.l.b16 %v404
    %v3192 = vunpack.c.h.b16 %v404
    %v3193 = vunpack.c.l.b16 %v405
    %v3194 = vunpack.c.h.b16 %v405
    %v3195 = vunpack.c.l.b16 %v406
    %v3196 = vunpack.c.h.b16 %v406
    %v3197 = vunpack.c.l.b16 %v407
    %v3198 = vunpack.c.h.b16 %v407
    %v3199 = vunpack.c.l.b16 %v408
    %v3200 = vunpack.c.h.b16 %v408
    %v3201 = vunpack.c.l.b16 %v409
    %v3202 = vunpack.c.h.b16 %v409
    %v3203 = vunpack.c.l.b16 %v410
    %v3204 = vunpack.c.h.b16 %v410
    %v3205 = vunpack.c.l.b16 %v411
    %v3206 = vunpack.c.h.b16 %v411
    %v3207 = vunpack.c.l.b16 %v412
    %v3208 = vunpack.c.h.b16 %v412
    %v3209 = vunpack.c.l.b16 %v413
    %v3210 = vunpack.c.h.b16 %v413
    %v3211 = vunpack.c.l.b16 %v414
    %v3212 = vunpack.c.h.b16 %v414
    %v3213 = vunpack.c.l.b16 %v415
    %v3214 = vunpack.c.h.b16 %v415
    %v3215 = vunpack.c.l.b16 %v416
    %v3216 = vunpack.c.h.b16 %v416
    %v3217 = vunpack.c.l.b16 %v417
    %v3218 = vunpack.c.h.b16 %v417
    %v3219 = vunpack.c.l.b16 %v418
    %v3220 = vunpack.c.h.b16 %v418
    %v3221 = vunpack.c.l.b16 %v419
    %v3222 = vunpack.c.h.b16 %v419
    %v3223 = vunpack.c.l.b16 %v420
    %v3224 = vunpack.c.h.b16 %v420
    %v3225 = vunpack.c.l.b16 %v421
    %v3226 = vunpack.c.h.b16 %v421
    %v3227 = vunpack.c.l.b16 %v422
    %v3228 = vunpack.c.h.b16 %v422
    %v3229 = vunpack.c.l.b16 %v423
    %v3230 = vunpack.c.h.b16 %v423
    %v3231 = vunpack.c.l.b16 %v424
    %v3232 = vunpack.c.h.b16 %v424
    %v3233 = vunpack.c.l.b16 %v425
    %v3234 = vunpack.c.h.b16 %v425
    %v3235 = vunpack.c.l.b16 %v426
    %v3236 = vunpack.c.h.b16 %v426
    %v3237 = vunpack.c.l.b16 %v427
    %v3238 = vunpack.c.h.b16 %v427
    %v3239 = vunpack.c.l.b16 %v428
    %v3240 = vunpack.c.h.b16 %v428
    %v3241 = vunpack.c.l.b16 %v429
    %v3242 = vunpack.c.h.b16 %v429
    %v3243 = vunpack.c.l.b16 %v430
    %v3244 = vunpack.c.h.b16 %v430
    %v3245 = vunpack.c.l.b16 %v431
    %v3246 = vunpack.c.h.b16 %v431
    %v3247 = vunpack.c.l.b16 %v432
    %v3248 = vunpack.c.h.b16 %v432
    %v3249 = vunpack.c.l.b16 %v433
    %v3250 = vunpack.c.h.b16 %v433
    %v3251 = vunpack.c.l.b16 %v434
    %v3252 = vunpack.c.h.b16 %v434
    %v3253 = vunpack.c.l.b16 %v435
    %v3254 = vunpack.c.h.b16 %v435
    %v3255 = vunpack.c.l.b16 %v436
    %v3256 = vunpack.c.h.b16 %v436
    %v3257 = vunpack.c.l.b16 %v437
    %v3258 = vunpack.c.h.b16 %v437
    %v3259 = vunpack.c.l.b16 %v438
    %v3260 = vunpack.c.h.b16 %v438
    %v3261 = vunpack.c.l.b16 %v439
    %v3262 = vunpack.c.h.b16 %v439
    %v3263 = vunpack.c.l.b16 %v440
    %v3264 = vunpack.c.h.b16 %v440
    %v3265 = vunpack.c.l.b16 %v441
    %v3266 = vunpack.c.h.b16 %v441
    %v3267 = vunpack.c.l.b16 %v442
    %v3268 = vunpack.c.h.b16 %v442
    %v3269 = vunpack.c.l.b16 %v443
    %v3270 = vunpack.c.h.b16 %v443
    %v3271 = vunpack.c.l.b16 %v444
    %v3272 = vunpack.c.h.b16 %v444
    %v3273 = vunpack.c.l.b16 %v445
    %v3274 = vunpack.c.h.b16 %v445
    %v3275 = vunpack.c.l.b16 %v446
    %v3276 = vunpack.c.h.b16 %v446
    %v3277 = vunpack.c.l.b16 %v447
    %v3278 = vunpack.c.h.b16 %v447
    %v3279 = vunpack.c.l.b16 %v448
    %v3280 = vunpack.c.h.b16 %v448
    %v3281 = vunpack.c.l.b16 %v449
    %v3282 = vunpack.c.h.b16 %v449
    %v3283 = vunpack.c.l.b16 %v450
    %v3284 = vunpack.c.h.b16 %v450
    %v3285 = vunpack.c.l.b16 %v451
    %v3286 = vunpack.c.h.b16 %v451
    %v3287 = vunpack.c.l.b16 %v452
    %v3288 = vunpack.c.h.b16 %v452
    %v3289 = vunpack.c.l.b16 %v453
    %v3290 = vunpack.c.h.b16 %v453
    %v3291 = vunpack.c.l.b16 %v454
    %v3292 = vunpack.c.h.b16 %v454
    %v3293 = vunpack.c.l.b16 %v455
    %v3294 = vunpack.c.h.b16 %v455
    %v3295 = vunpack.c.l.b16 %v456
    %v3296 = vunpack.c.h.b16 %v456
    %v3297 = vunpack.c.l.b16 %v457
    %v3298 = vunpack.c.h.b16 %v457
    %v3299 = vunpack.c.l.b16 %v458
    %v3300 = vunpack.c.h.b16 %v458
    %v3301 = vunpack.c.l.b16 %v459
    %v3302 = vunpack.c.h.b16 %v459
    %v3303 = vunpack.c.l.b16 %v460
    %v3304 = vunpack.c.h.b16 %v460
    %v3305 = vunpack.c.l.b16 %v461
    %v3306 = vunpack.c.h.b16 %v461
    %v3307 = vunpack.c.l.b16 %v462
    %v3308 = vunpack.c.h.b16 %v462
    %v3309 = vunpack.c.l.b16 %v463
    %v3310 = vunpack.c.h.b16 %v463
    %v3311 = vunpack.c.l.b16 %v464
    %v3312 = vunpack.c.h.b16 %v464
    %v3313 = vunpack.c.l.b16 %v465
    %v3314 = vunpack.c.h.b16 %v465
    %v3315 = vunpack.c.l.b16 %v466
    %v3316 = vunpack.c.h.b16 %v466
    %v3317 = vunpack.c.l.b16 %v467
    %v3318 = vunpack.c.h.b16 %v467
    %v3319 = vunpack.c.l.b16 %v468
    %v3320 = vunpack.c.h.b16 %v468
    %v3321 = vunpack.c.l.b16 %v469
    %v3322 = vunpack.c.h.b16 %v469
    %v3323 = vunpack.c.l.b16 %v470
    %v3324 = vunpack.c.h.b16 %v470
    %v3325 = vunpack.c.l.b16 %v471
    %v3326 = vunpack.c.h.b16 %v471
    %v3327 = vunpack.c.l.b16 %v472
    %v3328 = vunpack.c.h.b16 %v472
    %v3329 = vunpack.c.l.b16 %v473
    %v3330 = vunpack.c.h.b16 %v473
    %v3331 = vunpack.c.l.b16 %v474
    %v3332 = vunpack.c.h.b16 %v474
    %v3333 = vunpack.c.l.b16 %v475
    %v3334 = vunpack.c.h.b16 %v475
    %v3335 = vunpack.c.l.b16 %v476
    %v3336 = vunpack.c.h.b16 %v476
    %v3337 = vunpack.c.l.b16 %v477
    %v3338 = vunpack.c.h.b16 %v477
    %v3339 = vunpack.c.l.b16 %v478
    %v3340 = vunpack.c.h.b16 %v478
    %v3341 = vunpack.c.l.b16 %v479
    %v3342 = vunpack.c.h.b16 %v479
    %v3343 = vunpack.c.l.b16 %v480
    %v3344 = vunpack.c.h.b16 %v480
    %v3345 = vunpack.c.l.b16 %v481
    %v3346 = vunpack.c.h.b16 %v481
    %v3347 = vunpack.c.l.b16 %v482
    %v3348 = vunpack.c.h.b16 %v482
    %v3349 = vunpack.c.l.b16 %v483
    %v3350 = vunpack.c.h.b16 %v483
    %v3351 = vunpack.c.l.b16 %v484
    %v3352 = vunpack.c.h.b16 %v484
    %v3353 = vunpack.c.l.b16 %v485
    %v3354 = vunpack.c.h.b16 %v485
    %v3355 = vunpack.c.l.b16 %v486
    %v3356 = vunpack.c.h.b16 %v486
    %v3357 = vunpack.c.l.b16 %v487
    %v3358 = vunpack.c.h.b16 %v487
    %v3359 = vunpack.c.l.b16 %v488
    %v3360 = vunpack.c.h.b16 %v488
    %v3361 = vunpack.c.l.b16 %v489
    %v3362 = vunpack.c.h.b16 %v489
    %v3363 = vunpack.c.l.b16 %v490
    %v3364 = vunpack.c.h.b16 %v490
    %v3365 = vunpack.c.l.b16 %v491
    %v3366 = vunpack.c.h.b16 %v491
    %v3367 = vunpack.c.l.b16 %v492
    %v3368 = vunpack.c.h.b16 %v492
    %v3369 = vunpack.c.l.b16 %v493
    %v3370 = vunpack.c.h.b16 %v493
    %v3371 = vunpack.c.l.b16 %v494
    %v3372 = vunpack.c.h.b16 %v494
    %v3373 = vunpack.c.l.b16 %v495
    %v3374 = vunpack.c.h.b16 %v495
    %v3375 = vunpack.c.l.b16 %v496
    %v3376 = vunpack.c.h.b16 %v496
    %v3377 = vunpack.c.l.b16 %v497
    %v3378 = vunpack.c.h.b16 %v497
    %v3379 = vunpack.c.l.b16 %v498
    %v3380 = vunpack.c.h.b16 %v498
    %v3381 = vunpack.c.l.b16 %v499
    %v3382 = vunpack.c.h.b16 %v499
    %v3383 = vunpack.c.l.b16 %v500
    %v3384 = vunpack.c.h.b16 %v500
    %v3385 = vunpack.c.l.b16 %v501
    %v3386 = vunpack.c.h.b16 %v501
    %v3387 = vunpack.c.l.b16 %v502
    %v3388 = vunpack.c.h.b16 %v502
    %v3389 = vunpack.c.l.b16 %v503
    %v3390 = vunpack.c.h.b16 %v503
    %v3391 = vunpack.c.l.b16 %v504
    %v3392 = vunpack.c.h.b16 %v504
    %v3393 = vunpack.c.l.b16 %v505
    %v3394 = vunpack.c.h.b16 %v505
    %v3395 = vunpack.c.l.b16 %v506
    %v3396 = vunpack.c.h.b16 %v506
    %v3397 = vunpack.c.l.b16 %v507
    %v3398 = vunpack.c.h.b16 %v507
    %v3399 = vunpack.c.l.b16 %v508
    %v3400 = vunpack.c.h.b16 %v508
    %v3401 = vunpack.c.l.b16 %v509
    %v3402 = vunpack.c.h.b16 %v509
    %v3403 = vunpack.c.l.b16 %v510
    %v3404 = vunpack.c.h.b16 %v510
    %v3405 = vunpack.c.l.b16 %v511
    %v3406 = vunpack.c.h.b16 %v511
    %v3407 = vunpack.c.l.b16 %v512
    %v3408 = vunpack.c.h.b16 %v512
    %v3409 = vunpack.c.l.b16 %v513
    %v3410 = vunpack.c.h.b16 %v513
    %v3411 = vunpack.c.l.b16 %v514
    %v3412 = vunpack.c.h.b16 %v514
    %v3413 = vunpack.c.l.b16 %v515
    %v3414 = vunpack.c.h.b16 %v515
    %v3415 = vunpack.c.l.b16 %v516
    %v3416 = vunpack.c.h.b16 %v516
    %v3417 = vunpack.c.l.b16 %v517
    %v3418 = vunpack.c.h.b16 %v517
    %v3419 = vunpack.c.l.b16 %v518
    %v3420 = vunpack.c.h.b16 %v518
    %v3421 = vunpack.c.l.b16 %v519
    %v3422 = vunpack.c.h.b16 %v519
    %v3423 = vunpack.c.l.b16 %v520
    %v3424 = vunpack.c.h.b16 %v520
    %v3425 = vunpack.c.l.b16 %v521
    %v3426 = vunpack.c.h.b16 %v521
    %v3427 = vunpack.c.l.b16 %v522
    %v3428 = vunpack.c.h.b16 %v522
    %v3429 = vunpack.c.l.b16 %v523
    %v3430 = vunpack.c.h.b16 %v523
    %v3431 = vunpack.c.l.b16 %v524
    %v3432 = vunpack.c.h.b16 %v524
    %v3433 = vunpack.c.l.b16 %v525
    %v3434 = vunpack.c.h.b16 %v525
    %v3435 = vunpack.c.l.b16 %v526
    %v3436 = vunpack.c.h.b16 %v526
    %v3437 = vunpack.c.l.b16 %v527
    %v3438 = vunpack.c.h.b16 %v527
    %v3439 = vunpack.c.l.b16 %v528
    %v3440 = vunpack.c.h.b16 %v528
    %v3441 = vunpack.c.l.b16 %v529
    %v3442 = vunpack.c.h.b16 %v529
    %v3443 = vunpack.c.l.b16 %v530
    %v3444 = vunpack.c.h.b16 %v530
    %v3445 = vunpack.c.l.b16 %v531
    %v3446 = vunpack.c.h.b16 %v531
    %v3447 = vunpack.c.l.b16 %v532
    %v3448 = vunpack.c.h.b16 %v532
    %v3449 = vunpack.c.l.b16 %v533
    %v3450 = vunpack.c.h.b16 %v533
    %v3451 = vunpack.c.l.b16 %v534
    %v3452 = vunpack.c.h.b16 %v534
    %v3453 = vunpack.c.l.b16 %v535
    %v3454 = vunpack.c.h.b16 %v535
    %v3455 = vunpack.c.l.b16 %v536
    %v3456 = vunpack.c.h.b16 %v536
    %v3457 = vunpack.c.l.b16 %v537
    %v3458 = vunpack.c.h.b16 %v537
    %v3459 = vunpack.c.l.b16 %v538
    %v3460 = vunpack.c.h.b16 %v538
    %v3461 = vunpack.c.l.b16 %v539
    %v3462 = vunpack.c.h.b16 %v539
    %v3463 = vunpack.c.l.b16 %v540
    %v3464 = vunpack.c.h.b16 %v540
    %v3465 = vunpack.c.l.b16 %v541
    %v3466 = vunpack.c.h.b16 %v541
    %v3467 = vunpack.c.l.b16 %v542
    %v3468 = vunpack.c.h.b16 %v542
    %v3469 = vunpack.c.l.b16 %v543
    %v3470 = vunpack.c.h.b16 %v543
    %v3471 = vunpack.c.l.b16 %v544
    %v3472 = vunpack.c.h.b16 %v544
    %v3473 = vunpack.c.l.b16 %v545
    %v3474 = vunpack.c.h.b16 %v545
    %v3475 = vunpack.c.l.b16 %v546
    %v3476 = vunpack.c.h.b16 %v546
    %v3477 = vunpack.c.l.b16 %v547
    %v3478 = vunpack.c.h.b16 %v547
    %v3479 = vunpack.c.l.b16 %v548
    %v3480 = vunpack.c.h.b16 %v548
    %v3481 = vunpack.c.l.b16 %v549
    %v3482 = vunpack.c.h.b16 %v549
    %v3483 = vunpack.c.l.b16 %v550
    %v3484 = vunpack.c.h.b16 %v550
    %v3485 = vunpack.c.l.b16 %v551
    %v3486 = vunpack.c.h.b16 %v551
    %v3487 = vunpack.c.l.b16 %v552
    %v3488 = vunpack.c.h.b16 %v552
    %v3489 = vunpack.c.l.b16 %v553
    %v3490 = vunpack.c.h.b16 %v553
    %v3491 = vunpack.c.l.b16 %v554
    %v3492 = vunpack.c.h.b16 %v554
    %v3493 = vunpack.c.l.b16 %v555
    %v3494 = vunpack.c.h.b16 %v555
    %v3495 = vunpack.c.l.b16 %v556
    %v3496 = vunpack.c.h.b16 %v556
    %v3497 = vunpack.c.l.b16 %v557
    %v3498 = vunpack.c.h.b16 %v557
    %v3499 = vunpack.c.l.b16 %v558
    %v3500 = vunpack.c.h.b16 %v558
    %v3501 = vunpack.c.l.b16 %v559
    %v3502 = vunpack.c.h.b16 %v559
    %v3503 = vunpack.c.l.b16 %v560
    %v3504 = vunpack.c.h.b16 %v560
    %v3505 = vunpack.c.l.b16 %v561
    %v3506 = vunpack.c.h.b16 %v561
    %v3507 = vunpack.c.l.b16 %v562
    %v3508 = vunpack.c.h.b16 %v562
    %v3509 = vunpack.c.l.b16 %v563
    %v3510 = vunpack.c.h.b16 %v563
    %v3511 = vunpack.c.l.b16 %v564
    %v3512 = vunpack.c.h.b16 %v564
    %v3513 = vunpack.c.l.b16 %v565
    %v3514 = vunpack.c.h.b16 %v565
    %v3515 = vunpack.c.l.b16 %v566
    %v3516 = vunpack.c.h.b16 %v566
    %v3517 = vunpack.c.l.b16 %v567
    %v3518 = vunpack.c.h.b16 %v567
    %v3519 = vunpack.c.l.b16 %v568
    %v3520 = vunpack.c.h.b16 %v568
    %v3521 = vunpack.c.l.b16 %v569
    %v3522 = vunpack.c.h.b16 %v569
    %v3523 = vunpack.c.l.b16 %v570
    %v3524 = vunpack.c.h.b16 %v570
    %v3525 = vunpack.c.l.b16 %v571
    %v3526 = vunpack.c.h.b16 %v571
    %v3527 = vunpack.c.l.b16 %v572
    %v3528 = vunpack.c.h.b16 %v572
    %v3529 = vunpack.c.l.b16 %v573
    %v3530 = vunpack.c.h.b16 %v573
    %v3531 = vunpack.c.l.b16 %v574
    %v3532 = vunpack.c.h.b16 %v574
    %v3533 = vunpack.c.l.b16 %v575
    %v3534 = vunpack.c.h.b16 %v575
    %v3535 = vunpack.c.l.b16 %v576
    %v3536 = vunpack.c.h.b16 %v576
    %v3537 = vunpack.c.l.b16 %v577
    %v3538 = vunpack.c.h.b16 %v577
    %v3539 = vunpack.c.l.b16 %v578
    %v3540 = vunpack.c.h.b16 %v578
    %v3541 = vunpack.c.l.b16 %v579
    %v3542 = vunpack.c.h.b16 %v579
    %v3543 = vunpack.c.l.b16 %v580
    %v3544 = vunpack.c.h.b16 %v580
    %v3545 = vunpack.c.l.b16 %v581
    %v3546 = vunpack.c.h.b16 %v581
    %v3547 = vunpack.c.l.b16 %v582
    %v3548 = vunpack.c.h.b16 %v582
    %v3549 = vunpack.c.l.b16 %v583
    %v3550 = vunpack.c.h.b16 %v583
    %v3551 = vunpack.c.l.b16 %v584
    %v3552 = vunpack.c.h.b16 %v584
    %v3553 = vunpack.c.l.b16 %v585
    %v3554 = vunpack.c.h.b16 %v585
    %v3555 = vunpack.c.l.b16 %v586
    %v3556 = vunpack.c.h.b16 %v586
    %v3557 = vunpack.c.l.b16 %v587
    %v3558 = vunpack.c.h.b16 %v587
    %v3559 = vunpack.c.l.b16 %v588
    %v3560 = vunpack.c.h.b16 %v588
    %v3561 = vunpack.c.l.b16 %v589
    %v3562 = vunpack.c.h.b16 %v589
    %v3563 = vunpack.c.l.b16 %v590
    %v3564 = vunpack.c.h.b16 %v590
    %v3565 = vunpack.c.l.b16 %v591
    %v3566 = vunpack.c.h.b16 %v591
    %v3567 = vunpack.c.l.b16 %v592
    %v3568 = vunpack.c.h.b16 %v592
    %v3569 = vunpack.c.l.b16 %v593
    %v3570 = vunpack.c.h.b16 %v593
    %v3571 = vunpack.c.l.b16 %v594
    %v3572 = vunpack.c.h.b16 %v594
    %v3573 = vunpack.c.l.b16 %v595
    %v3574 = vunpack.c.h.b16 %v595
    %v3575 = vunpack.c.l.b16 %v596
    %v3576 = vunpack.c.h.b16 %v596
    %v3577 = vunpack.c.l.b16 %v597
    %v3578 = vunpack.c.h.b16 %v597
    %v3579 = vunpack.c.l.b16 %v598
    %v3580 = vunpack.c.h.b16 %v598
    %v3581 = vunpack.c.l.b16 %v599
    %v3582 = vunpack.c.h.b16 %v599
    %v3583 = vunpack.c.l.b16 %v600
    %v3584 = vunpack.c.h.b16 %v600
    %v3585 = vunpack.c.l.b16 %v601
    %v3586 = vunpack.c.h.b16 %v601
    %v3587 = vunpack.c.l.b16 %v602
    %v3588 = vunpack.c.h.b16 %v602
    %v3589 = vunpack.c.l.b16 %v603
    %v3590 = vunpack.c.h.b16 %v603
    %v3591 = vunpack.c.l.b16 %v604
    %v3592 = vunpack.c.h.b16 %v604
    %v3593 = vunpack.c.l.b16 %v605
    %v3594 = vunpack.c.h.b16 %v605
    %v3595 = vunpack.c.l.b16 %v606
    %v3596 = vunpack.c.h.b16 %v606
    %v3597 = vunpack.c.l.b16 %v607
    %v3598 = vunpack.c.h.b16 %v607
    %v3599 = vunpack.c.l.b16 %v608
    %v3600 = vunpack.c.h.b16 %v608
    %v3601 = vunpack.c.l.b16 %v609
    %v3602 = vunpack.c.h.b16 %v609
    %v3603 = vunpack.c.l.b16 %v610
    %v3604 = vunpack.c.h.b16 %v610
    %v3605 = vunpack.c.l.b16 %v611
    %v3606 = vunpack.c.h.b16 %v611
    %v3607 = vunpack.c.l.b16 %v612
    %v3608 = vunpack.c.h.b16 %v612
    %v3609 = vunpack.c.l.b16 %v613
    %v3610 = vunpack.c.h.b16 %v613
    %v3611 = vunpack.c.l.b16 %v614
    %v3612 = vunpack.c.h.b16 %v614
    %v3613 = vunpack.c.l.b16 %v615
    %v3614 = vunpack.c.h.b16 %v615
    %v3615 = vunpack.c.l.b16 %v616
    %v3616 = vunpack.c.h.b16 %v616
    %v3617 = vunpack.c.l.b16 %v617
    %v3618 = vunpack.c.h.b16 %v617
    %v3619 = vunpack.c.l.b16 %v618
    %v3620 = vunpack.c.h.b16 %v618
    %v3621 = vunpack.c.l.b16 %v619
    %v3622 = vunpack.c.h.b16 %v619
    %v3623 = vunpack.c.l.b16 %v620
    %v3624 = vunpack.c.h.b16 %v620
    %v3625 = vunpack.c.l.b16 %v621
    %v3626 = vunpack.c.h.b16 %v621
    %v3627 = vunpack.c.l.b16 %v622
    %v3628 = vunpack.c.h.b16 %v622
    %v3629 = vunpack.c.l.b16 %v623
    %v3630 = vunpack.c.h.b16 %v623
    %v3631 = vunpack.c.l.b16 %v624
    %v3632 = vunpack.c.h.b16 %v624
    %v3633 = vunpack.c.l.b16 %v625
    %v3634 = vunpack.c.h.b16 %v625
    %v3635 = vunpack.c.l.b16 %v626
    %v3636 = vunpack.c.h.b16 %v626
    %v3637 = vunpack.c.l.b16 %v627
    %v3638 = vunpack.c.h.b16 %v627
    %v3639 = vunpack.c.l.b16 %v628
    %v3640 = vunpack.c.h.b16 %v628
    %v3641 = vunpack.c.l.b16 %v629
    %v3642 = vunpack.c.h.b16 %v629
    %v3643 = vunpack.c.l.b16 %v630
    %v3644 = vunpack.c.h.b16 %v630
    %v3645 = vunpack.c.l.b16 %v631
    %v3646 = vunpack.c.h.b16 %v631
    %v3647 = vunpack.c.l.b16 %v632
    %v3648 = vunpack.c.h.b16 %v632
    %v3649 = vunpack.c.l.b16 %v633
    %v3650 = vunpack.c.h.b16 %v633
    %v3651 = vunpack.c.l.b16 %v634
    %v3652 = vunpack.c.h.b16 %v634
    %v3653 = vunpack.c.l.b16 %v635
    %v3654 = vunpack.c.h.b16 %v635
    %v3655 = vunpack.c.l.b16 %v636
    %v3656 = vunpack.c.h.b16 %v636
    %v3657 = vunpack.c.l.b16 %v637
    %v3658 = vunpack.c.h.b16 %v637
    %v3659 = vunpack.c.l.b16 %v638
    %v3660 = vunpack.c.h.b16 %v638
    %v3661 = vunpack.c.l.b16 %v639
    %v3662 = vunpack.c.h.b16 %v639
    %v3663 = vunpack.c.l.b16 %v640
    %v3664 = vunpack.c.h.b16 %v640
    %v3665 = vunpack.c.l.b16 %v641
    %v3666 = vunpack.c.h.b16 %v641
    %v3667 = vunpack.c.l.b16 %v642
    %v3668 = vunpack.c.h.b16 %v642
    %v3669 = vunpack.c.l.b16 %v643
    %v3670 = vunpack.c.h.b16 %v643
    %v3671 = vunpack.c.l.b16 %v644
    %v3672 = vunpack.c.h.b16 %v644
    %v3673 = vunpack.c.l.b16 %v645
    %v3674 = vunpack.c.h.b16 %v645
    %v3675 = vunpack.c.l.b16 %v646
    %v3676 = vunpack.c.h.b16 %v646
    %v3677 = vunpack.c.l.b16 %v647
    %v3678 = vunpack.c.h.b16 %v647
    %v3679 = vunpack.c.l.b16 %v648
    %v3680 = vunpack.c.h.b16 %v648
    %v3681 = vunpack.c.l.b16 %v649
    %v3682 = vunpack.c.h.b16 %v649
    %v3683 = vunpack.c.l.b16 %v650
    %v3684 = vunpack.c.h.b16 %v650
    %v3685 = vunpack.c.l.b16 %v651
    %v3686 = vunpack.c.h.b16 %v651
    %v3687 = vunpack.c.l.b16 %v652
    %v3688 = vunpack.c.h.b16 %v652
    %v3689 = vunpack.c.l.b16 %v653
    %v3690 = vunpack.c.h.b16 %v653
    %v3691 = vunpack.c.l.b16 %v654
    %v3692 = vunpack.c.h.b16 %v654
    %v3693 = vunpack.c.l.b16 %v655
    %v3694 = vunpack.c.h.b16 %v655
    %v3695 = vunpack.c.l.b16 %v656
    %v3696 = vunpack.c.h.b16 %v656
    %v3697 = vunpack.c.l.b16 %v657
    %v3698 = vunpack.c.h.b16 %v657
    %v3699 = vunpack.c.l.b16 %v658
    %v3700 = vunpack.c.h.b16 %v658
    %v3701 = vunpack.c.l.b16 %v659
    %v3702 = vunpack.c.h.b16 %v659
    %v3703 = vunpack.c.l.b16 %v660
    %v3704 = vunpack.c.h.b16 %v660
    %v3705 = vunpack.c.l.b16 %v661
    %v3706 = vunpack.c.h.b16 %v661
    %v3707 = vunpack.c.l.b16 %v662
    %v3708 = vunpack.c.h.b16 %v662
    %v3709 = vunpack.c.l.b16 %v663
    %v3710 = vunpack.c.h.b16 %v663
    %v3711 = vunpack.c.l.b16 %v664
    %v3712 = vunpack.c.h.b16 %v664
    %v3713 = vunpack.c.l.b16 %v665
    %v3714 = vunpack.c.h.b16 %v665
    %v3715 = vunpack.c.l.b16 %v666
    %v3716 = vunpack.c.h.b16 %v666
    %v3717 = vunpack.c.l.b16 %v667
    %v3718 = vunpack.c.h.b16 %v667
    %v3719 = vunpack.c.l.b16 %v668
    %v3720 = vunpack.c.h.b16 %v668
    %v3721 = vunpack.c.l.b16 %v669
    %v3722 = vunpack.c.h.b16 %v669
    %v3723 = vunpack.c.l.b16 %v670
    %v3724 = vunpack.c.h.b16 %v670
    %v3725 = vunpack.c.l.b16 %v671
    %v3726 = vunpack.c.h.b16 %v671
    %v3727 = vunpack.c.l.b16 %v672
    %v3728 = vunpack.c.h.b16 %v672
    %v3729 = vunpack.c.l.b16 %v673
    %v3730 = vunpack.c.h.b16 %v673
    %v3731 = vunpack.c.l.b16 %v674
    %v3732 = vunpack.c.h.b16 %v674
    %v3733 = vunpack.c.l.b16 %v675
    %v3734 = vunpack.c.h.b16 %v675
    %v3735 = vunpack.c.l.b16 %v676
    %v3736 = vunpack.c.h.b16 %v676
    %v3737 = vunpack.c.l.b16 %v677
    %v3738 = vunpack.c.h.b16 %v677
    %v3739 = vunpack.c.l.b16 %v678
    %v3740 = vunpack.c.h.b16 %v678
    %v3741 = vunpack.c.l.b16 %v679
    %v3742 = vunpack.c.h.b16 %v679
    %v3743 = vunpack.c.l.b16 %v680
    %v3744 = vunpack.c.h.b16 %v680
    %v3745 = vunpack.c.l.b16 %v681
    %v3746 = vunpack.c.h.b16 %v681
    %v3747 = vunpack.c.l.b16 %v682
    %v3748 = vunpack.c.h.b16 %v682
    %v3749 = vunpack.c.l.b16 %v683
    %v3750 = vunpack.c.h.b16 %v683
    %v3751 = vunpack.c.l.b16 %v684
    %v3752 = vunpack.c.h.b16 %v684
    %v3753 = vunpack.c.l.b16 %v685
    %v3754 = vunpack.c.h.b16 %v685
    %v3755 = vunpack.c.l.b16 %v686
    %v3756 = vunpack.c.h.b16 %v686
    %v3757 = vunpack.c.l.b16 %v687
    %v3758 = vunpack.c.h.b16 %v687
    %v3759 = vunpack.c.l.b16 %v688
    %v3760 = vunpack.c.h.b16 %v688
    %v3761 = vunpack.c.l.b16 %v689
    %v3762 = vunpack.c.h.b16 %v689
    %v3763 = vunpack.c.l.b16 %v690
    %v3764 = vunpack.c.h.b16 %v690
    %v3765 = vunpack.c.l.b16 %v691
    %v3766 = vunpack.c.h.b16 %v691
    %v3767 = vunpack.c.l.b16 %v692
    %v3768 = vunpack.c.h.b16 %v692
    %v3769 = vunpack.c.l.b16 %v693
    %v3770 = vunpack.c.h.b16 %v693
    %v3771 = vunpack.c.l.b16 %v694
    %v3772 = vunpack.c.h.b16 %v694
    %v3773 = vunpack.c.l.b16 %v695
    %v3774 = vunpack.c.h.b16 %v695
    %v3775 = vunpack.c.l.b16 %v696
    %v3776 = vunpack.c.h.b16 %v696
    %v3777 = vunpack.c.l.b16 %v697
    %v3778 = vunpack.c.h.b16 %v697
    %v3779 = vunpack.c.l.b16 %v698
    %v3780 = vunpack.c.h.b16 %v698
    %v3781 = vunpack.c.l.b16 %v699
    %v3782 = vunpack.c.h.b16 %v699
    %v3783 = vunpack.c.l.b16 %v700
    %v3784 = vunpack.c.h.b16 %v700
    %v3785 = vunpack.c.l.b16 %v701
    %v3786 = vunpack.c.h.b16 %v701
    %v3787 = vunpack.c.l.b16 %v702
    %v3788 = vunpack.c.h.b16 %v702
    %v3789 = vunpack.c.l.b16 %v703
    %v3790 = vunpack.c.h.b16 %v703
    %v3791 = vunpack.c.l.b16 %v704
    %v3792 = vunpack.c.h.b16 %v704
    %v3793 = vunpack.c.l.b16 %v705
    %v3794 = vunpack.c.h.b16 %v705
    %v3795 = vunpack.c.l.b16 %v706
    %v3796 = vunpack.c.h.b16 %v706
    %v3797 = vunpack.c.l.b16 %v707
    %v3798 = vunpack.c.h.b16 %v707
    %v3799 = vunpack.c.l.b16 %v708
    %v3800 = vunpack.c.h.b16 %v708
    %v3801 = vunpack.c.l.b16 %v709
    %v3802 = vunpack.c.h.b16 %v709
    %v3803 = vunpack.c.l.b16 %v710
    %v3804 = vunpack.c.h.b16 %v710
    %v3805 = vunpack.c.l.b16 %v711
    %v3806 = vunpack.c.h.b16 %v711
    %v3807 = vunpack.c.l.b16 %v712
    %v3808 = vunpack.c.h.b16 %v712
    %v3809 = vunpack.c.l.b16 %v713
    %v3810 = vunpack.c.h.b16 %v713
    %v3811 = vunpack.c.l.b16 %v714
    %v3812 = vunpack.c.h.b16 %v714
    %v3813 = vunpack.c.l.b16 %v715
    %v3814 = vunpack.c.h.b16 %v715
    %v3815 = vunpack.c.l.b16 %v716
    %v3816 = vunpack.c.h.b16 %v716
    %v3817 = vunpack.c.l.b16 %v717
    %v3818 = vunpack.c.h.b16 %v717
    %v3819 = vunpack.c.l.b16 %v718
    %v3820 = vunpack.c.h.b16 %v718
    %v3821 = vunpack.c.l.b16 %v719
    %v3822 = vunpack.c.h.b16 %v719
    %v3823 = vunpack.c.l.b16 %v720
    %v3824 = vunpack.c.h.b16 %v720
    %v3825 = vunpack.c.l.b16 %v721
    %v3826 = vunpack.c.h.b16 %v721
    %v3827 = vunpack.c.l.b16 %v722
    %v3828 = vunpack.c.h.b16 %v722
    %v3829 = vunpack.c.l.b16 %v723
    %v3830 = vunpack.c.h.b16 %v723
    %v3831 = vunpack.c.l.b16 %v724
    %v3832 = vunpack.c.h.b16 %v724
    %v3833 = vunpack.c.l.b16 %v725
    %v3834 = vunpack.c.h.b16 %v725
    %v3835 = vunpack.c.l.b16 %v726
    %v3836 = vunpack.c.h.b16 %v726
    %v3837 = vunpack.c.l.b16 %v727
    %v3838 = vunpack.c.h.b16 %v727
    %v3839 = vunpack.c.l.b16 %v728
    %v3840 = vunpack.c.h.b16 %v728
    %v3841 = vunpack.c.l.b16 %v729
    %v3842 = vunpack.c.h.b16 %v729
    %v3843 = vunpack.c.l.b16 %v730
    %v3844 = vunpack.c.h.b16 %v730
    %v3845 = vunpack.c.l.b16 %v731
    %v3846 = vunpack.c.h.b16 %v731
    %v3847 = vunpack.c.l.b16 %v732
    %v3848 = vunpack.c.h.b16 %v732
    %v3849 = vunpack.c.l.b16 %v733
    %v3850 = vunpack.c.h.b16 %v733
    %v3851 = vunpack.c.l.b16 %v734
    %v3852 = vunpack.c.h.b16 %v734
    %v3853 = vunpack.c.l.b16 %v735
    %v3854 = vunpack.c.h.b16 %v735
    %v3855 = vunpack.c.l.b16 %v736
    %v3856 = vunpack.c.h.b16 %v736
    %v3857 = vunpack.c.l.b16 %v737
    %v3858 = vunpack.c.h.b16 %v737
    %v3859 = vunpack.c.l.b16 %v738
    %v3860 = vunpack.c.h.b16 %v738
    %v3861 = vunpack.c.l.b16 %v739
    %v3862 = vunpack.c.h.b16 %v739
    %v3863 = vunpack.c.l.b16 %v740
    %v3864 = vunpack.c.h.b16 %v740
    %v3865 = vunpack.c.l.b16 %v741
    %v3866 = vunpack.c.h.b16 %v741
    %v3867 = vunpack.c.l.b16 %v742
    %v3868 = vunpack.c.h.b16 %v742
    %v3869 = vunpack.c.l.b16 %v743
    %v3870 = vunpack.c.h.b16 %v743
    %v3871 = vunpack.c.l.b16 %v744
    %v3872 = vunpack.c.h.b16 %v744
    %v3873 = vunpack.c.l.b16 %v745
    %v3874 = vunpack.c.h.b16 %v745
    %v3875 = vunpack.c.l.b16 %v746
    %v3876 = vunpack.c.h.b16 %v746
    %v3877 = vunpack.c.l.b16 %v747
    %v3878 = vunpack.c.h.b16 %v747
    %v3879 = vunpack.c.l.b16 %v748
    %v3880 = vunpack.c.h.b16 %v748
    %v3881 = vunpack.c.l.b16 %v749
    %v3882 = vunpack.c.h.b16 %v749
    %v3883 = vunpack.c.l.b16 %v750
    %v3884 = vunpack.c.h.b16 %v750
    %v3885 = vunpack.c.l.b16 %v751
    %v3886 = vunpack.c.h.b16 %v751
    %v3887 = vunpack.c.l.b16 %v752
    %v3888 = vunpack.c.h.b16 %v752
    %v3889 = vunpack.c.l.b16 %v753
    %v3890 = vunpack.c.h.b16 %v753
    %v3891 = vunpack.c.l.b16 %v754
    %v3892 = vunpack.c.h.b16 %v754
    %v3893 = vunpack.c.l.b16 %v755
    %v3894 = vunpack.c.h.b16 %v755
    %v3895 = vunpack.c.l.b16 %v756
    %v3896 = vunpack.c.h.b16 %v756
    %v3897 = vunpack.c.l.b16 %v757
    %v3898 = vunpack.c.h.b16 %v757
    %v3899 = vunpack.c.l.b16 %v758
    %v3900 = vunpack.c.h.b16 %v758
    %v3901 = vunpack.c.l.b16 %v759
    %v3902 = vunpack.c.h.b16 %v759
    %v3903 = vunpack.c.l.b16 %v760
    %v3904 = vunpack.c.h.b16 %v760
    %v3905 = vunpack.c.l.b16 %v761
    %v3906 = vunpack.c.h.b16 %v761
    %v3907 = vunpack.c.l.b16 %v762
    %v3908 = vunpack.c.h.b16 %v762
    %v3909 = vunpack.c.l.b16 %v763
    %v3910 = vunpack.c.h.b16 %v763
    %v3911 = vunpack.c.l.b16 %v764
    %v3912 = vunpack.c.h.b16 %v764
    %v3913 = vunpack.c.l.b16 %v765
    %v3914 = vunpack.c.h.b16 %v765
    %v3915 = vunpack.c.l.b16 %v766
    %v3916 = vunpack.c.h.b16 %v766
    %v3917 = vunpack.c.l.b16 %v767
    %v3918 = vunpack.c.h.b16 %v767
    %v3919 = vunpack.c.l.b16 %v768
    %v3920 = vunpack.c.h.b16 %v768
    %v3921 = vunpack.c.l.b16 %v769
    %v3922 = vunpack.c.h.b16 %v769
    %v3923 = vunpack.c.l.b16 %v770
    %v3924 = vunpack.c.h.b16 %v770
    %v3925 = vunpack.c.l.b16 %v771
    %v3926 = vunpack.c.h.b16 %v771
    %v3927 = vunpack.c.l.b16 %v772
    %v3928 = vunpack.c.h.b16 %v772
    %v3929 = vunpack.c.l.b16 %v773
    %v3930 = vunpack.c.h.b16 %v773
    %v3931 = vunpack.c.l.b16 %v774
    %v3932 = vunpack.c.h.b16 %v774
    %v3933 = vunpack.c.l.b16 %v775
    %v3934 = vunpack.c.h.b16 %v775
    %v3935 = vunpack.c.l.b16 %v776
    %v3936 = vunpack.c.h.b16 %v776
    %v3937 = vunpack.c.l.b16 %v777
    %v3938 = vunpack.c.h.b16 %v777
    %v3939 = vunpack.c.l.b16 %v778
    %v3940 = vunpack.c.h.b16 %v778
    %v3941 = vunpack.c.l.b16 %v779
    %v3942 = vunpack.c.h.b16 %v779
    %v3943 = vunpack.c.l.b16 %v780
    %v3944 = vunpack.c.h.b16 %v780
    %v3945 = vunpack.c.l.b16 %v781
    %v3946 = vunpack.c.h.b16 %v781
    %v3947 = vunpack.c.l.b16 %v782
    %v3948 = vunpack.c.h.b16 %v782
    %v3949 = vunpack.c.l.b16 %v783
    %v3950 = vunpack.c.h.b16 %v783
    %v3951 = vunpack.c.l.b16 %v784
    %v3952 = vunpack.c.h.b16 %v784
    %v3953 = vunpack.c.l.b16 %v785
    %v3954 = vunpack.c.h.b16 %v785
    %v3955 = vunpack.c.l.b16 %v786
    %v3956 = vunpack.c.h.b16 %v786
    %v3957 = vunpack.c.l.b16 %v787
    %v3958 = vunpack.c.h.b16 %v787
    %v3959 = vunpack.c.l.b16 %v788
    %v3960 = vunpack.c.h.b16 %v788
    %v3961 = vunpack.c.l.b16 %v789
    %v3962 = vunpack.c.h.b16 %v789
    %v3963 = vunpack.c.l.b16 %v790
    %v3964 = vunpack.c.h.b16 %v790
    %v3965 = vunpack.c.l.b16 %v791
    %v3966 = vunpack.c.h.b16 %v791
    %v3967 = vunpack.c.l.b16 %v792
    %v3968 = vunpack.c.h.b16 %v792
    %v3969 = vunpack.c.l.b16 %v793
    %v3970 = vunpack.c.h.b16 %v793
    %v3971 = vunpack.c.l.b16 %v794
    %v3972 = vunpack.c.h.b16 %v794
    %v3973 = vunpack.c.l.b16 %v795
    %v3974 = vunpack.c.h.b16 %v795
    %v3975 = vunpack.c.l.b16 %v796
    %v3976 = vunpack.c.h.b16 %v796
    %v3977 = vunpack.c.l.b16 %v797
    %v3978 = vunpack.c.h.b16 %v797
    %v3979 = vunpack.c.l.b16 %v798
    %v3980 = vunpack.c.h.b16 %v798
    %v3981 = vunpack.c.l.b16 %v799
    %v3982 = vunpack.c.h.b16 %v799
    %v3983 = vunpack.c.l.b16 %v800
    %v3984 = vunpack.c.h.b16 %v800
    %v3985 = vunpack.c.l.b16 %v801
    %v3986 = vunpack.c.h.b16 %v801
    %v3987 = vunpack.c.l.b16 %v802
    %v3988 = vunpack.c.h.b16 %v802
    %v3989 = vunpack.c.l.b16 %v803
    %v3990 = vunpack.c.h.b16 %v803
    %v3991 = vunpack.c.l.b16 %v804
    %v3992 = vunpack.c.h.b16 %v804
    %v3993 = vunpack.c.l.b16 %v805
    %v3994 = vunpack.c.h.b16 %v805
    %v3995 = vunpack.c.l.b16 %v806
    %v3996 = vunpack.c.h.b16 %v806
    %v3997 = vunpack.c.l.b16 %v807
    %v3998 = vunpack.c.h.b16 %v807
    %v3999 = vunpack.c.l.b16 %v808
    %v4000 = vunpack.c.h.b16 %v808
    %v4001 = vunpack.c.l.b16 %v809
    %v4002 = vunpack.c.h.b16 %v809
    %v4003 = vunpack.c.l.b16 %v810
    %v4004 = vunpack.c.h.b16 %v810
    %v4005 = vunpack.c.l.b16 %v811
    %v4006 = vunpack.c.h.b16 %v811
    %v4007 = vunpack.c.l.b16 %v812
    %v4008 = vunpack.c.h.b16 %v812
    %v4009 = vunpack.c.l.b16 %v813
    %v4010 = vunpack.c.h.b16 %v813
    %v4011 = vunpack.c.l.b16 %v814
    %v4012 = vunpack.c.h.b16 %v814
    %v4013 = vunpack.c.l.b16 %v815
    %v4014 = vunpack.c.h.b16 %v815
    %v4015 = vunpack.c.l.b16 %v816
    %v4016 = vunpack.c.h.b16 %v816
    %v4017 = vunpack.c.l.b16 %v817
    %v4018 = vunpack.c.h.b16 %v817
    %v4019 = vunpack.c.l.b16 %v818
    %v4020 = vunpack.c.h.b16 %v818
    %v4021 = vunpack.c.l.b16 %v819
    %v4022 = vunpack.c.h.b16 %v819
    %v4023 = vunpack.c.l.b16 %v820
    %v4024 = vunpack.c.h.b16 %v820
    %v4025 = vunpack.c.l.b16 %v821
    %v4026 = vunpack.c.h.b16 %v821
    %v4027 = vunpack.c.l.b16 %v822
    %v4028 = vunpack.c.h.b16 %v822
    %v4029 = vunpack.c.l.b16 %v823
    %v4030 = vunpack.c.h.b16 %v823
    %v4031 = vunpack.c.l.b16 %v824
    %v4032 = vunpack.c.h.b16 %v824
    %v4033 = vunpack.c.l.b16 %v825
    %v4034 = vunpack.c.h.b16 %v825
    %v4035 = vunpack.c.l.b16 %v826
    %v4036 = vunpack.c.h.b16 %v826
    %v4037 = vunpack.c.l.b16 %v827
    %v4038 = vunpack.c.h.b16 %v827
    %v4039 = vunpack.c.l.b16 %v828
    %v4040 = vunpack.c.h.b16 %v828
    %v4041 = vunpack.c.l.b16 %v829
    %v4042 = vunpack.c.h.b16 %v829
    %v4043 = vunpack.c.l.b16 %v830
    %v4044 = vunpack.c.h.b16 %v830
    %v4045 = vunpack.c.l.b16 %v831
    %v4046 = vunpack.c.h.b16 %v831
    %v4047 = vunpack.c.l.b16 %v832
    %v4048 = vunpack.c.h.b16 %v832
    %v4049 = vunpack.c.l.b16 %v833
    %v4050 = vunpack.c.h.b16 %v833
    %v4051 = vunpack.c.l.b16 %v834
    %v4052 = vunpack.c.h.b16 %v834
    %v4053 = vunpack.c.l.b16 %v835
    %v4054 = vunpack.c.h.b16 %v835
    %v4055 = vunpack.c.l.b16 %v836
    %v4056 = vunpack.c.h.b16 %v836
    %v4057 = vunpack.c.l.b16 %v837
    %v4058 = vunpack.c.h.b16 %v837
    %v4059 = vunpack.c.l.b16 %v838
    %v4060 = vunpack.c.h.b16 %v838
    %v4061 = vunpack.c.l.b16 %v839
    %v4062 = vunpack.c.h.b16 %v839
    %v4063 = vunpack.c.l.b16 %v840
    %v4064 = vunpack.c.h.b16 %v840
    %v4065 = vunpack.c.l.b16 %v841
    %v4066 = vunpack.c.h.b16 %v841
    %v4067 = vunpack.c.l.b16 %v842
    %v4068 = vunpack.c.h.b16 %v842
    %v4069 = vunpack.c.l.b16 %v843
    %v4070 = vunpack.c.h.b16 %v843
    %v4071 = vunpack.c.l.b16 %v844
    %v4072 = vunpack.c.h.b16 %v844
    %v4073 = vunpack.c.l.b16 %v845
    %v4074 = vunpack.c.h.b16 %v845
    %v4075 = vunpack.c.l.b16 %v846
    %v4076 = vunpack.c.h.b16 %v846
    %v4077 = vunpack.c.l.b16 %v847
    %v4078 = vunpack.c.h.b16 %v847
    %v4079 = vunpack.c.l.b16 %v848
    %v4080 = vunpack.c.h.b16 %v848
    %v4081 = vunpack.c.l.b16 %v849
    %v4082 = vunpack.c.h.b16 %v849
    %v4083 = vunpack.c.l.b16 %v850
    %v4084 = vunpack.c.h.b16 %v850
    %v4085 = vunpack.c.l.b16 %v851
    %v4086 = vunpack.c.h.b16 %v851
    %v4087 = vunpack.c.l.b16 %v852
    %v4088 = vunpack.c.h.b16 %v852
    %v4089 = vunpack.c.l.b16 %v853
    %v4090 = vunpack.c.h.b16 %v853
    %v4091 = vunpack.c.l.b16 %v854
    %v4092 = vunpack.c.h.b16 %v854
    %v4093 = vunpack.c.l.b16 %v855
    %v4094 = vunpack.c.h.b16 %v855
    %v4095 = vunpack.c.l.b16 %v856
    %v4096 = vunpack.c.h.b16 %v856
    %v4097 = vunpack.c.l.b16 %v857
    %v4098 = vunpack.c.h.b16 %v857
    %v4099 = vunpack.c.l.b16 %v858
    %v4100 = vunpack.c.h.b16 %v858
    %v4101 = vunpack.c.l.b16 %v859
    %v4102 = vunpack.c.h.b16 %v859
    %v4103 = vunpack.c.l.b16 %v860
    %v4104 = vunpack.c.h.b16 %v860
    %v4105 = vunpack.c.l.b16 %v861
    %v4106 = vunpack.c.h.b16 %v861
    %v4107 = vunpack.c.l.b16 %v862
    %v4108 = vunpack.c.h.b16 %v862
    %v4109 = vunpack.c.l.b16 %v863
    %v4110 = vunpack.c.h.b16 %v863
    %v4111 = vunpack.c.l.b16 %v864
    %v4112 = vunpack.c.h.b16 %v864
    %v4113 = vunpack.c.l.b16 %v865
    %v4114 = vunpack.c.h.b16 %v865
    %v4115 = vunpack.c.l.b16 %v866
    %v4116 = vunpack.c.h.b16 %v866
    %v4117 = vunpack.c.l.b16 %v867
    %v4118 = vunpack.c.h.b16 %v867
    %v4119 = vunpack.c.l.b16 %v868
    %v4120 = vunpack.c.h.b16 %v868
    %v4121 = vunpack.c.l.b16 %v869
    %v4122 = vunpack.c.h.b16 %v869
    %v4123 = vunpack.c.l.b16 %v870
    %v4124 = vunpack.c.h.b16 %v870
    %v4125 = vunpack.c.l.b16 %v871
    %v4126 = vunpack.c.h.b16 %v871
    %v4127 = vunpack.c.l.b16 %v872
    %v4128 = vunpack.c.h.b16 %v872
    %v4129 = vunpack.c.l.b16 %v873
    %v4130 = vunpack.c.h.b16 %v873
    %v4131 = vunpack.c.l.b16 %v874
    %v4132 = vunpack.c.h.b16 %v874
    %v4133 = vunpack.c.l.b16 %v875
    %v4134 = vunpack.c.h.b16 %v875
    %v4135 = vunpack.c.l.b16 %v876
    %v4136 = vunpack.c.h.b16 %v876
    %v4137 = vunpack.c.l.b16 %v877
    %v4138 = vunpack.c.h.b16 %v877
    %v4139 = vunpack.c.l.b16 %v878
    %v4140 = vunpack.c.h.b16 %v878
    %v4141 = vunpack.c.l.b16 %v879
    %v4142 = vunpack.c.h.b16 %v879
    %v4143 = vunpack.c.l.b16 %v880
    %v4144 = vunpack.c.h.b16 %v880
    %v4145 = vunpack.c.l.b16 %v881
    %v4146 = vunpack.c.h.b16 %v881
    %v4147 = vunpack.c.l.b16 %v882
    %v4148 = vunpack.c.h.b16 %v882
    %v4149 = vunpack.c.l.b16 %v883
    %v4150 = vunpack.c.h.b16 %v883
    %v4151 = vunpack.c.l.b16 %v884
    %v4152 = vunpack.c.h.b16 %v884
    %v4153 = vunpack.c.l.b16 %v885
    %v4154 = vunpack.c.h.b16 %v885
    %v4155 = vunpack.c.l.b16 %v886
    %v4156 = vunpack.c.h.b16 %v886
    %v4157 = vunpack.c.l.b16 %v887
    %v4158 = vunpack.c.h.b16 %v887
    %v4159 = vunpack.c.l.b16 %v888
    %v4160 = vunpack.c.h.b16 %v888
    %v4161 = vunpack.c.l.b16 %v889
    %v4162 = vunpack.c.h.b16 %v889
    %v4163 = vunpack.c.l.b16 %v890
    %v4164 = vunpack.c.h.b16 %v890
    %v4165 = vunpack.c.l.b16 %v891
    %v4166 = vunpack.c.h.b16 %v891
    %v4167 = vunpack.c.l.b16 %v892
    %v4168 = vunpack.c.h.b16 %v892
    %v4169 = vunpack.c.l.b16 %v893
    %v4170 = vunpack.c.h.b16 %v893
    %v4171 = vunpack.c.l.b16 %v894
    %v4172 = vunpack.c.h.b16 %v894
    %v4173 = vunpack.c.l.b16 %v895
    %v4174 = vunpack.c.h.b16 %v895
    %v4175 = vunpack.c.l.b16 %v896
    %v4176 = vunpack.c.h.b16 %v896
    %v4177 = vunpack.c.l.b16 %v897
    %v4178 = vunpack.c.h.b16 %v897
    %v4179 = vunpack.c.l.b16 %v898
    %v4180 = vunpack.c.h.b16 %v898
    %v4181 = vunpack.c.l.b16 %v899
    %v4182 = vunpack.c.h.b16 %v899
    %v4183 = vunpack.c.l.b16 %v900
    %v4184 = vunpack.c.h.b16 %v900
    %v4185 = vunpack.c.l.b16 %v901
    %v4186 = vunpack.c.h.b16 %v901
    %v4187 = vunpack.c.l.b16 %v902
    %v4188 = vunpack.c.h.b16 %v902
    %v4189 = vunpack.c.l.b16 %v903
    %v4190 = vunpack.c.h.b16 %v903
    %v4191 = vunpack.c.l.b16 %v904
    %v4192 = vunpack.c.h.b16 %v904
    %v4193 = vunpack.c.l.b16 %v905
    %v4194 = vunpack.c.h.b16 %v905
    %v4195 = vunpack.c.l.b16 %v906
    %v4196 = vunpack.c.h.b16 %v906
    %v4197 = vunpack.c.l.b16 %v907
    %v4198 = vunpack.c.h.b16 %v907
    %v4199 = vunpack.c.l.b16 %v908
    %v4200 = vunpack.c.h.b16 %v908
    %v4201 = vunpack.c.l.b16 %v909
    %v4202 = vunpack.c.h.b16 %v909
    %v4203 = vunpack.c.l.b16 %v910
    %v4204 = vunpack.c.h.b16 %v910
    %v4205 = vunpack.c.l.b16 %v911
    %v4206 = vunpack.c.h.b16 %v911
    %v4207 = vunpack.c.l.b16 %v912
    %v4208 = vunpack.c.h.b16 %v912
    %v4209 = vunpack.c.l.b16 %v913
    %v4210 = vunpack.c.h.b16 %v913
    %v4211 = vunpack.c.l.b16 %v914
    %v4212 = vunpack.c.h.b16 %v914
    %v4213 = vunpack.c.l.b16 %v915
    %v4214 = vunpack.c.h.b16 %v915
    %v4215 = vunpack.c.l.b16 %v916
    %v4216 = vunpack.c.h.b16 %v916
    %v4217 = vunpack.c.l.b16 %v917
    %v4218 = vunpack.c.h.b16 %v917
    %v4219 = vunpack.c.l.b16 %v918
    %v4220 = vunpack.c.h.b16 %v918
    %v4221 = vunpack.c.l.b16 %v919
    %v4222 = vunpack.c.h.b16 %v919
    %v4223 = vunpack.c.l.b16 %v920
    %v4224 = vunpack.c.h.b16 %v920
    %v4225 = vunpack.c.l.b16 %v921
    %v4226 = vunpack.c.h.b16 %v921
    %v4227 = vunpack.c.l.b16 %v922
    %v4228 = vunpack.c.h.b16 %v922
    %v4229 = vunpack.c.l.b16 %v923
    %v4230 = vunpack.c.h.b16 %v923
    %v4231 = vunpack.c.l.b16 %v924
    %v4232 = vunpack.c.h.b16 %v924
    %v4233 = vunpack.c.l.b16 %v925
    %v4234 = vunpack.c.h.b16 %v925
    %v4235 = vunpack.c.l.b16 %v926
    %v4236 = vunpack.c.h.b16 %v926
    %v4237 = vunpack.c.l.b16 %v927
    %v4238 = vunpack.c.h.b16 %v927
    %v4239 = vunpack.c.l.b16 %v928
    %v4240 = vunpack.c.h.b16 %v928
    %v4241 = vunpack.c.l.b16 %v929
    %v4242 = vunpack.c.h.b16 %v929
    %v4243 = vunpack.c.l.b16 %v930
    %v4244 = vunpack.c.h.b16 %v930
    %v4245 = vunpack.c.l.b16 %v931
    %v4246 = vunpack.c.h.b16 %v931
    %v4247 = vunpack.c.l.b16 %v932
    %v4248 = vunpack.c.h.b16 %v932
    %v4249 = vunpack.c.l.b16 %v933
    %v4250 = vunpack.c.h.b16 %v933
    %v4251 = vunpack.c.l.b16 %v934
    %v4252 = vunpack.c.h.b16 %v934
    %v4253 = vunpack.c.l.b16 %v935
    %v4254 = vunpack.c.h.b16 %v935
    %v4255 = vunpack.c.l.b16 %v936
    %v4256 = vunpack.c.h.b16 %v936
    %v4257 = vunpack.c.l.b16 %v937
    %v4258 = vunpack.c.h.b16 %v937
    %v4259 = vunpack.c.l.b16 %v938
    %v4260 = vunpack.c.h.b16 %v938
    %v4261 = vunpack.c.l.b16 %v939
    %v4262 = vunpack.c.h.b16 %v939
    %v4263 = vunpack.c.l.b16 %v940
    %v4264 = vunpack.c.h.b16 %v940
    %v4265 = vunpack.c.l.b16 %v941
    %v4266 = vunpack.c.h.b16 %v941
    %v4267 = vunpack.c.l.b16 %v942
    %v4268 = vunpack.c.h.b16 %v942
    %v4269 = vunpack.c.l.b16 %v943
    %v4270 = vunpack.c.h.b16 %v943
    %v4271 = vunpack.c.l.b16 %v944
    %v4272 = vunpack.c.h.b16 %v944
    %v4273 = vunpack.c.l.b16 %v945
    %v4274 = vunpack.c.h.b16 %v945
    %v4275 = vunpack.c.l.b16 %v946
    %v4276 = vunpack.c.h.b16 %v946
    %v4277 = vunpack.c.l.b16 %v947
    %v4278 = vunpack.c.h.b16 %v947
    %v4279 = vunpack.c.l.b16 %v948
    %v4280 = vunpack.c.h.b16 %v948
    %v4281 = vunpack.c.l.b16 %v949
    %v4282 = vunpack.c.h.b16 %v949
    %v4283 = vunpack.c.l.b16 %v950
    %v4284 = vunpack.c.h.b16 %v950
    %v4285 = vunpack.c.l.b16 %v951
    %v4286 = vunpack.c.h.b16 %v951
    %v4287 = vunpack.c.l.b16 %v952
    %v4288 = vunpack.c.h.b16 %v952
    %v4289 = vunpack.c.l.b16 %v953
    %v4290 = vunpack.c.h.b16 %v953
    %v4291 = vunpack.c.l.b16 %v954
    %v4292 = vunpack.c.h.b16 %v954
    %v4293 = vunpack.c.l.b16 %v955
    %v4294 = vunpack.c.h.b16 %v955
    %v4295 = vunpack.c.l.b16 %v956
    %v4296 = vunpack.c.h.b16 %v956
    %v4297 = vunpack.c.l.b16 %v957
    %v4298 = vunpack.c.h.b16 %v957
    %v4299 = vunpack.c.l.b16 %v958
    %v4300 = vunpack.c.h.b16 %v958
    %v4301 = vunpack.c.l.b16 %v959
    %v4302 = vunpack.c.h.b16 %v959
    %v4303 = vunpack.c.l.b16 %v960
    %v4304 = vunpack.c.h.b16 %v960
    %v4305 = vunpack.c.l.b16 %v961
    %v4306 = vunpack.c.h.b16 %v961
    %v4307 = vunpack.c.l.b16 %v962
    %v4308 = vunpack.c.h.b16 %v962
    %v4309 = vunpack.c.l.b16 %v963
    %v4310 = vunpack.c.h.b16 %v963
    %v4311 = vunpack.c.l.b16 %v964
    %v4312 = vunpack.c.h.b16 %v964
    %v4313 = vunpack.c.l.b16 %v965
    %v4314 = vunpack.c.h.b16 %v965
    %v4315 = vunpack.c.l.b16 %v966
    %v4316 = vunpack.c.h.b16 %v966
    %v4317 = vunpack.c.l.b16 %v967
    %v4318 = vunpack.c.h.b16 %v967
    %v4319 = vunpack.c.l.b16 %v968
    %v4320 = vunpack.c.h.b16 %v968
    %v4321 = vunpack.c.l.b16 %v969
    %v4322 = vunpack.c.h.b16 %v969
    %v4323 = vunpack.c.l.b16 %v970
    %v4324 = vunpack.c.h.b16 %v970
    %v4325 = vunpack.c.l.b16 %v971
    %v4326 = vunpack.c.h.b16 %v971
    %v4327 = vunpack.c.l.b16 %v972
    %v4328 = vunpack.c.h.b16 %v972
    %v4329 = vunpack.c.l.b16 %v973
    %v4330 = vunpack.c.h.b16 %v973
    %v4331 = vunpack.c.l.b16 %v974
    %v4332 = vunpack.c.h.b16 %v974
    %v4333 = vunpack.c.l.b16 %v975
    %v4334 = vunpack.c.h.b16 %v975
    %v4335 = vunpack.c.l.b16 %v976
    %v4336 = vunpack.c.h.b16 %v976
    %v4337 = vunpack.c.l.b16 %v977
    %v4338 = vunpack.c.h.b16 %v977
    %v4339 = vunpack.c.l.b16 %v978
    %v4340 = vunpack.c.h.b16 %v978
    %v4341 = vunpack.c.l.b16 %v979
    %v4342 = vunpack.c.h.b16 %v979
    %v4343 = vunpack.c.l.b16 %v980
    %v4344 = vunpack.c.h.b16 %v980
    %v4345 = vunpack.c.l.b16 %v981
    %v4346 = vunpack.c.h.b16 %v981
    %v4347 = vunpack.c.l.b16 %v982
    %v4348 = vunpack.c.h.b16 %v982
    %v4349 = vunpack.c.l.b16 %v983
    %v4350 = vunpack.c.h.b16 %v983
    %v4351 = vunpack.c.l.b16 %v984
    %v4352 = vunpack.c.h.b16 %v984
    %v4353 = vunpack.c.l.b16 %v985
    %v4354 = vunpack.c.h.b16 %v985
    %v4355 = vunpack.c.l.b16 %v986
    %v4356 = vunpack.c.h.b16 %v986
    %v4357 = vunpack.c.l.b16 %v987
    %v4358 = vunpack.c.h.b16 %v987
    %v4359 = vunpack.c.l.b16 %v988
    %v4360 = vunpack.c.h.b16 %v988
    %v4361 = vunpack.c.l.b16 %v989
    %v4362 = vunpack.c.h.b16 %v989
    %v4363 = vunpack.c.l.b16 %v990
    %v4364 = vunpack.c.h.b16 %v990
    %v4365 = vunpack.c.l.b16 %v991
    %v4366 = vunpack.c.h.b16 %v991
    %v4367 = vunpack.c.l.b16 %v992
    %v4368 = vunpack.c.h.b16 %v992
    %v4369 = vunpack.c.l.b16 %v993
    %v4370 = vunpack.c.h.b16 %v993
    %v4371 = vunpack.c.l.b16 %v994
    %v4372 = vunpack.c.h.b16 %v994
    %v4373 = vunpack.c.l.b16 %v995
    %v4374 = vunpack.c.h.b16 %v995
    %v4375 = vunpack.c.l.b16 %v996
    %v4376 = vunpack.c.h.b16 %v996
    %v4377 = vunpack.c.l.b16 %v997
    %v4378 = vunpack.c.h.b16 %v997
    %v4379 = vunpack.c.l.b16 %v998
    %v4380 = vunpack.c.h.b16 %v998
    %v4381 = vunpack.c.l.b16 %v999
    %v4382 = vunpack.c.h.b16 %v999
    %v4383 = vunpack.c.l.b16 %v1000
    %v4384 = vunpack.c.h.b16 %v1000
    %v4385 = vunpack.c.l.b16 %v1001
    %v4386 = vunpack.c.h.b16 %v1001
    %v4387 = vunpack.c.l.b16 %v1002
    %v4388 = vunpack.c.h.b16 %v1002
    %v4389 = vunpack.c.l.b16 %v1003
    %v4390 = vunpack.c.h.b16 %v1003
    %v4391 = vunpack.c.l.b16 %v1004
    %v4392 = vunpack.c.h.b16 %v1004
    %v4393 = vunpack.c.l.b16 %v1005
    %v4394 = vunpack.c.h.b16 %v1005
    %v4395 = vunpack.c.l.b16 %v1006
    %v4396 = vunpack.c.h.b16 %v1006
    %v4397 = vunpack.c.l.b16 %v1007
    %v4398 = vunpack.c.h.b16 %v1007
    %v4399 = vunpack.c.l.b16 %v1008
    %v4400 = vunpack.c.h.b16 %v1008
    %v4401 = vunpack.c.l.b16 %v1009
    %v4402 = vunpack.c.h.b16 %v1009
    %v4403 = vunpack.c.l.b16 %v1010
    %v4404 = vunpack.c.h.b16 %v1010
    %v4405 = vunpack.c.l.b16 %v1011
    %v4406 = vunpack.c.h.b16 %v1011
    %v4407 = vunpack.c.l.b16 %v1012
    %v4408 = vunpack.c.h.b16 %v1012
    %v4409 = vunpack.c.l.b16 %v1013
    %v4410 = vunpack.c.h.b16 %v1013
    %v4411 = vunpack.c.l.b16 %v1014
    %v4412 = vunpack.c.h.b16 %v1014
    %v4413 = vunpack.c.l.b16 %v1015
    %v4414 = vunpack.c.h.b16 %v1015
    %v4415 = vunpack.c.l.b16 %v1016
    %v4416 = vunpack.c.h.b16 %v1016
    %v4417 = vunpack.c.l.b16 %v1017
    %v4418 = vunpack.c.h.b16 %v1017
    %v4419 = vunpack.c.l.b16 %v1018
    %v4420 = vunpack.c.h.b16 %v1018
    %v4421 = vunpack.c.l.b16 %v1019
    %v4422 = vunpack.c.h.b16 %v1019
    %v4423 = vunpack.c.l.b16 %v1020
    %v4424 = vunpack.c.h.b16 %v1020
    %v4425 = vunpack.c.l.b16 %v1021
    %v4426 = vunpack.c.h.b16 %v1021
    %v4427 = vunpack.c.l.b16 %v1022
    %v4428 = vunpack.c.h.b16 %v1022
    %v4429 = vunpack.c.l.b16 %v1023
    %v4430 = vunpack.c.h.b16 %v1023
    %v4431 = vunpack.c.l.b16 %v1024
    %v4432 = vunpack.c.h.b16 %v1024
    %v4433 = vunpack.c.l.b16 %v1025
    %v4434 = vunpack.c.h.b16 %v1025
    %v4435 = vunpack.c.l.b16 %v1026
    %v4436 = vunpack.c.h.b16 %v1026
    %v4437 = vunpack.c.l.b16 %v1027
    %v4438 = vunpack.c.h.b16 %v1027
    %v4439 = vunpack.c.l.b16 %v1028
    %v4440 = vunpack.c.h.b16 %v1028
    %v4441 = vunpack.c.l.b16 %v1029
    %v4442 = vunpack.c.h.b16 %v1029
    %v4443 = vunpack.c.l.b16 %v1030
    %v4444 = vunpack.c.h.b16 %v1030
    %v4445 = vunpack.c.l.b16 %v1031
    %v4446 = vunpack.c.h.b16 %v1031
    %v4447 = vunpack.c.l.b16 %v1032
    %v4448 = vunpack.c.h.b16 %v1032
    %v4449 = vunpack.c.l.b16 %v1033
    %v4450 = vunpack.c.h.b16 %v1033
    %v4451 = vunpack.c.l.b16 %v1034
    %v4452 = vunpack.c.h.b16 %v1034
    %v4453 = vunpack.c.l.b16 %v1035
    %v4454 = vunpack.c.h.b16 %v1035
    %v4455 = vunpack.c.l.b16 %v1036
    %v4456 = vunpack.c.h.b16 %v1036
    %v4457 = vunpack.c.l.b16 %v1037
    %v4458 = vunpack.c.h.b16 %v1037
    %v4459 = vunpack.c.l.b16 %v1038
    %v4460 = vunpack.c.h.b16 %v1038
    %v4461 = vunpack.c.l.b16 %v1039
    %v4462 = vunpack.c.h.b16 %v1039
    %v4463 = vunpack.c.l.b16 %v1040
    %v4464 = vunpack.c.h.b16 %v1040
    %v4465 = vunpack.c.l.b16 %v1041
    %v4466 = vunpack.c.h.b16 %v1041
    %v4467 = vunpack.c.l.b16 %v1042
    %v4468 = vunpack.c.h.b16 %v1042
    %v4469 = vunpack.c.l.b16 %v1043
    %v4470 = vunpack.c.h.b16 %v1043
    %v4471 = vunpack.c.l.b16 %v1044
    %v4472 = vunpack.c.h.b16 %v1044
    %v4473 = vunpack.c.l.b16 %v1045
    %v4474 = vunpack.c.h.b16 %v1045
    %v4475 = vunpack.c.l.b16 %v1046
    %v4476 = vunpack.c.h.b16 %v1046
    %v4477 = vunpack.c.l.b16 %v1047
    %v4478 = vunpack.c.h.b16 %v1047
    %v4479 = vunpack.c.l.b16 %v1048
    %v4480 = vunpack.c.h.b16 %v1048
    %v4481 = vunpack.c.l.b16 %v1049
    %v4482 = vunpack.c.h.b16 %v1049
    %v4483 = vunpack.c.l.b16 %v1050
    %v4484 = vunpack.c.h.b16 %v1050
    %v4485 = vunpack.c.l.b16 %v1051
    %v4486 = vunpack.c.h.b16 %v1051
    %v4487 = vunpack.c.l.b16 %v1052
    %v4488 = vunpack.c.h.b16 %v1052
    %v4489 = vunpack.c.l.b16 %v1053
    %v4490 = vunpack.c.h.b16 %v1053
    %v4491 = vunpack.c.l.b16 %v1054
    %v4492 = vunpack.c.h.b16 %v1054
    %v4493 = vunpack.c.l.b16 %v1055
    %v4494 = vunpack.c.h.b16 %v1055
    %v4495 = vunpack.c.l.b16 %v1056
    %v4496 = vunpack.c.h.b16 %v1056
    %v4497 = vunpack.c.l.b16 %v1057
    %v4498 = vunpack.c.h.b16 %v1057
    %v4499 = vunpack.c.l.b16 %v1058
    %v4500 = vunpack.c.h.b16 %v1058
    %v4501 = vunpack.c.l.b16 %v1059
    %v4502 = vunpack.c.h.b16 %v1059
    %v4503 = vunpack.c.l.b16 %v1060
    %v4504 = vunpack.c.h.b16 %v1060
    %v4505 = vunpack.c.l.b16 %v1061
    %v4506 = vunpack.c.h.b16 %v1061
    %v4507 = vunpack.c.l.b16 %v1062
    %v4508 = vunpack.c.h.b16 %v1062
    %v4509 = vunpack.c.l.b16 %v1063
    %v4510 = vunpack.c.h.b16 %v1063
    %v4511 = vunpack.c.l.b16 %v1064
    %v4512 = vunpack.c.h.b16 %v1064
    %v4513 = vunpack.c.l.b16 %v1065
    %v4514 = vunpack.c.h.b16 %v1065
    %v4515 = vunpack.c.l.b16 %v1066
    %v4516 = vunpack.c.h.b16 %v1066
    %v4517 = vunpack.c.l.b16 %v1067
    %v4518 = vunpack.c.h.b16 %v1067
    %v4519 = vunpack.c.l.b16 %v1068
    %v4520 = vunpack.c.h.b16 %v1068
    %v4521 = vunpack.c.l.b16 %v1069
    %v4522 = vunpack.c.h.b16 %v1069
    %v4523 = vunpack.c.l.b16 %v1070
    %v4524 = vunpack.c.h.b16 %v1070
    %v4525 = vunpack.c.l.b16 %v1071
    %v4526 = vunpack.c.h.b16 %v1071
    %v4527 = vunpack.c.l.b16 %v1072
    %v4528 = vunpack.c.h.b16 %v1072
    %v4529 = vunpack.c.l.b16 %v1073
    %v4530 = vunpack.c.h.b16 %v1073
    %v4531 = vunpack.c.l.b16 %v1074
    %v4532 = vunpack.c.h.b16 %v1074
    %v4533 = vunpack.c.l.b16 %v1075
    %v4534 = vunpack.c.h.b16 %v1075
    %v4535 = vunpack.c.l.b16 %v1076
    %v4536 = vunpack.c.h.b16 %v1076
    %v4537 = vunpack.c.l.b16 %v1077
    %v4538 = vunpack.c.h.b16 %v1077
    %v4539 = vunpack.c.l.b16 %v1078
    %v4540 = vunpack.c.h.b16 %v1078
    %v4541 = vunpack.c.l.b16 %v1079
    %v4542 = vunpack.c.h.b16 %v1079
    %v4543 = vunpack.c.l.b16 %v1080
    %v4544 = vunpack.c.h.b16 %v1080
    %v4545 = vunpack.c.l.b16 %v1081
    %v4546 = vunpack.c.h.b16 %v1081
    %v4547 = vunpack.c.l.b16 %v1082
    %v4548 = vunpack.c.h.b16 %v1082
    %v4549 = vunpack.c.l.b16 %v1083
    %v4550 = vunpack.c.h.b16 %v1083
    %v4551 = vunpack.c.l.b16 %v1084
    %v4552 = vunpack.c.h.b16 %v1084
    %v4553 = vunpack.c.l.b16 %v1085
    %v4554 = vunpack.c.h.b16 %v1085
    %v4555 = vunpack.c.l.b16 %v1086
    %v4556 = vunpack.c.h.b16 %v1086
    %v4557 = vunpack.c.l.b16 %v1087
    %v4558 = vunpack.c.h.b16 %v1087
    %v4559 = vunpack.c.l.b16 %v1088
    %v4560 = vunpack.c.h.b16 %v1088
    %v4561 = vunpack.c.l.b16 %v1089
    %v4562 = vunpack.c.h.b16 %v1089
    %v4563 = vunpack.c.l.b16 %v1090
    %v4564 = vunpack.c.h.b16 %v1090
    %v4565 = vunpack.c.l.b16 %v1091
    %v4566 = vunpack.c.h.b16 %v1091
    %v4567 = vunpack.c.l.b16 %v1092
    %v4568 = vunpack.c.h.b16 %v1092
    %v4569 = vunpack.c.l.b16 %v1093
    %v4570 = vunpack.c.h.b16 %v1093
    %v4571 = vunpack.c.l.b16 %v1094
    %v4572 = vunpack.c.h.b16 %v1094
    %v4573 = vunpack.c.l.b16 %v1095
    %v4574 = vunpack.c.h.b16 %v1095
    %v4575 = vunpack.c.l.b16 %v1096
    %v4576 = vunpack.c.h.b16 %v1096
    %v4577 = vunpack.c.l.b16 %v1097
    %v4578 = vunpack.c.h.b16 %v1097
    %v4579 = vunpack.c.l.b16 %v1098
    %v4580 = vunpack.c.h.b16 %v1098
    %v4581 = vunpack.c.l.b16 %v1099
    %v4582 = vunpack.c.h.b16 %v1099
    %v4583 = vunpack.c.l.b16 %v1100
    %v4584 = vunpack.c.h.b16 %v1100
    %v4585 = vunpack.c.l.b16 %v1101
    %v4586 = vunpack.c.h.b16 %v1101
    %v4587 = vunpack.c.l.b16 %v1102
    %v4588 = vunpack.c.h.b16 %v1102
    %v4589 = vunpack.c.l.b16 %v1103
    %v4590 = vunpack.c.h.b16 %v1103
    %v4591 = vunpack.c.l.b16 %v1104
    %v4592 = vunpack.c.h.b16 %v1104
    %v4593 = vunpack.c.l.b16 %v1105
    %v4594 = vunpack.c.h.b16 %v1105
    %v4595 = vunpack.c.l.b16 %v1106
    %v4596 = vunpack.c.h.b16 %v1106
    %v4597 = vunpack.c.l.b16 %v1107
    %v4598 = vunpack.c.h.b16 %v1107
    %v4599 = vunpack.c.l.b16 %v1108
    %v4600 = vunpack.c.h.b16 %v1108
    %v4601 = vunpack.c.l.b16 %v1109
    %v4602 = vunpack.c.h.b16 %v1109
    %v4603 = vunpack.c.l.b16 %v1110
    %v4604 = vunpack.c.h.b16 %v1110
    %v4605 = vunpack.c.l.b16 %v1111
    %v4606 = vunpack.c.h.b16 %v1111
    %v4607 = vunpack.c.l.b16 %v1112
    %v4608 = vunpack.c.h.b16 %v1112
    %v4609 = vunpack.c.l.b16 %v1113
    %v4610 = vunpack.c.h.b16 %v1113
    %v4611 = vunpack.c.l.b16 %v1114
    %v4612 = vunpack.c.h.b16 %v1114
    %v4613 = vunpack.c.l.b16 %v1115
    %v4614 = vunpack.c.h.b16 %v1115
    %v4615 = vunpack.c.l.b16 %v1116
    %v4616 = vunpack.c.h.b16 %v1116
    %v4617 = vunpack.c.l.b16 %v1117
    %v4618 = vunpack.c.h.b16 %v1117
    %v4619 = vunpack.c.l.b16 %v1118
    %v4620 = vunpack.c.h.b16 %v1118
    %v4621 = vunpack.c.l.b16 %v1119
    %v4622 = vunpack.c.h.b16 %v1119
    %v4623 = vunpack.c.l.b16 %v1120
    %v4624 = vunpack.c.h.b16 %v1120
    %v4625 = vunpack.c.l.b16 %v1121
    %v4626 = vunpack.c.h.b16 %v1121
    %v4627 = vunpack.c.l.b16 %v1122
    %v4628 = vunpack.c.h.b16 %v1122
    %v4629 = vunpack.c.l.b16 %v1123
    %v4630 = vunpack.c.h.b16 %v1123
    %v4631 = vunpack.c.l.b16 %v1124
    %v4632 = vunpack.c.h.b16 %v1124
    %v4633 = vunpack.c.l.b16 %v1125
    %v4634 = vunpack.c.h.b16 %v1125
    %v4635 = vunpack.c.l.b16 %v1126
    %v4636 = vunpack.c.h.b16 %v1126
    %v4637 = vunpack.c.l.b16 %v1127
    %v4638 = vunpack.c.h.b16 %v1127
    %v4639 = vunpack.c.l.b16 %v1128
    %v4640 = vunpack.c.h.b16 %v1128
    %v4641 = vunpack.c.l.b16 %v1129
    %v4642 = vunpack.c.h.b16 %v1129
    %v4643 = vunpack.c.l.b16 %v1130
    %v4644 = vunpack.c.h.b16 %v1130
    %v4645 = vunpack.c.l.b16 %v1131
    %v4646 = vunpack.c.h.b16 %v1131
    %v4647 = vunpack.c.l.b16 %v1132
    %v4648 = vunpack.c.h.b16 %v1132
    %v4649 = vunpack.c.l.b16 %v1133
    %v4650 = vunpack.c.h.b16 %v1133
    %v4651 = vunpack.c.l.b16 %v1134
    %v4652 = vunpack.c.h.b16 %v1134
    %v4653 = vunpack.c.l.b16 %v1135
    %v4654 = vunpack.c.h.b16 %v1135
    %v4655 = vunpack.c.l.b16 %v1136
    %v4656 = vunpack.c.h.b16 %v1136
    %v4657 = vunpack.c.l.b16 %v1137
    %v4658 = vunpack.c.h.b16 %v1137
    %v4659 = vunpack.c.l.b16 %v1138
    %v4660 = vunpack.c.h.b16 %v1138
    %v4661 = vunpack.c.l.b16 %v1139
    %v4662 = vunpack.c.h.b16 %v1139
    %v4663 = vunpack.c.l.b16 %v1140
    %v4664 = vunpack.c.h.b16 %v1140
    %v4665 = vunpack.c.l.b16 %v1141
    %v4666 = vunpack.c.h.b16 %v1141
    %v4667 = vunpack.c.l.b16 %v1142
    %v4668 = vunpack.c.h.b16 %v1142
    %v4669 = vunpack.c.l.b16 %v1143
    %v4670 = vunpack.c.h.b16 %v1143
    %v4671 = vunpack.c.l.b16 %v1144
    %v4672 = vunpack.c.h.b16 %v1144
    %v4673 = vunpack.c.l.b16 %v1145
    %v4674 = vunpack.c.h.b16 %v1145
    %v4675 = vunpack.c.l.b16 %v1146
    %v4676 = vunpack.c.h.b16 %v1146
    %v4677 = vunpack.c.l.b16 %v1147
    %v4678 = vunpack.c.h.b16 %v1147
    %v4679 = vunpack.c.l.b16 %v1148
    %v4680 = vunpack.c.h.b16 %v1148
    %v4681 = vunpack.c.l.b16 %v1149
    %v4682 = vunpack.c.h.b16 %v1149
    %v4683 = vunpack.c.l.b16 %v1150
    %v4684 = vunpack.c.h.b16 %v1150
    %v4685 = vunpack.c.l.b16 %v1151
    %v4686 = vunpack.c.h.b16 %v1151
    %v4687 = vunpack.c.l.b16 %v1152
    %v4688 = vunpack.c.h.b16 %v1152
    %v4689 = vunpack.c.l.b16 %v1153
    %v4690 = vunpack.c.h.b16 %v1153
    %v4691 = vunpack.c.l.b16 %v1154
    %v4692 = vunpack.c.h.b16 %v1154
    %v4693 = vunpack.c.l.b16 %v1155
    %v4694 = vunpack.c.h.b16 %v1155
    %v4695 = vunpack.c.l.b16 %v1156
    %v4696 = vunpack.c.h.b16 %v1156
    %v4697 = vunpack.c.l.b16 %v1157
    %v4698 = vunpack.c.h.b16 %v1157
    %v4699 = vunpack.c.l.b16 %v1158
    %v4700 = vunpack.c.h.b16 %v1158
    %v4701 = vunpack.c.l.b16 %v1159
    %v4702 = vunpack.c.h.b16 %v1159
    %v4703 = vunpack.c.l.b16 %v1160
    %v4704 = vunpack.c.h.b16 %v1160
    %v4705 = vunpack.c.l.b16 %v1161
    %v4706 = vunpack.c.h.b16 %v1161
    %v4707 = vunpack.c.l.b16 %v1162
    %v4708 = vunpack.c.h.b16 %v1162
    %v4709 = vunpack.c.l.b16 %v1163
    %v4710 = vunpack.c.h.b16 %v1163
    %v4711 = vunpack.c.l.b16 %v1164
    %v4712 = vunpack.c.h.b16 %v1164
    %v4713 = vunpack.c.l.b16 %v1165
    %v4714 = vunpack.c.h.b16 %v1165
    %v4715 = vunpack.c.l.b16 %v1166
    %v4716 = vunpack.c.h.b16 %v1166
    %v4717 = vunpack.c.l.b16 %v1167
    %v4718 = vunpack.c.h.b16 %v1167
    %v4719 = vunpack.c.l.b16 %v1168
    %v4720 = vunpack.c.h.b16 %v1168
    %v4721 = vunpack.c.l.b16 %v1169
    %v4722 = vunpack.c.h.b16 %v1169
    %v4723 = vunpack.c.l.b16 %v1170
    %v4724 = vunpack.c.h.b16 %v1170
    %v4725 = vunpack.c.l.b16 %v1171
    %v4726 = vunpack.c.h.b16 %v1171
    %v4727 = vunpack.c.l.b16 %v1172
    %v4728 = vunpack.c.h.b16 %v1172
    %v4729 = vunpack.c.l.b16 %v1173
    %v4730 = vunpack.c.h.b16 %v1173
    %v4731 = vunpack.c.l.b16 %v1174
    %v4732 = vunpack.c.h.b16 %v1174
    %v4733 = vunpack.c.l.b16 %v1175
    %v4734 = vunpack.c.h.b16 %v1175
    %v4735 = vunpack.c.l.b16 %v1176
    %v4736 = vunpack.c.h.b16 %v1176
    %v4737 = vunpack.c.l.b16 %v1177
    %v4738 = vunpack.c.h.b16 %v1177
    %v4739 = vunpack.c.l.b16 %v1178
    %v4740 = vunpack.c.h.b16 %v1178
    %v4741 = vunpack.c.l.b16 %v1179
    %v4742 = vunpack.c.h.b16 %v1179
    %v4743 = vunpack.c.l.b16 %v1180
    %v4744 = vunpack.c.h.b16 %v1180
    %v4745 = vunpack.c.l.b16 %v1181
    %v4746 = vunpack.c.h.b16 %v1181
    %v4747 = vunpack.c.l.b16 %v1182
    %v4748 = vunpack.c.h.b16 %v1182
    %v4749 = vunpack.c.l.b16 %v1183
    %v4750 = vunpack.c.h.b16 %v1183
    %v4751 = vunpack.c.l.b16 %v1184
    %v4752 = vunpack.c.h.b16 %v1184
    %v4753 = vunpack.c.l.b16 %v1185
    %v4754 = vunpack.c.h.b16 %v1185
    %v4755 = vunpack.c.l.b16 %v1186
    %v4756 = vunpack.c.h.b16 %v1186
    %v4757 = vunpack.c.l.b16 %v1187
    %v4758 = vunpack.c.h.b16 %v1187
    %v4759 = vunpack.c.l.b16 %v1188
    %v4760 = vunpack.c.h.b16 %v1188
    %v4761 = vunpack.c.l.b16 %v1189
    %v4762 = vunpack.c.h.b16 %v1189
    %v4763 = vunpack.c.l.b16 %v1190
    %v4764 = vunpack.c.h.b16 %v1190
    %v4765 = vunpack.c.l.b16 %v1191
    %v4766 = vunpack.c.h.b16 %v1191
    %v4767 = vunpack.c.l.b16 %v1192
    %v4768 = vunpack.c.h.b16 %v1192
    %v4769 = vunpack.c.l.b16 %v1193
    %v4770 = vunpack.c.h.b16 %v1193
    %v4771 = vunpack.c.l.b16 %v1194
    %v4772 = vunpack.c.h.b16 %v1194
    %v4773 = vunpack.c.l.b16 %v1195
    %v4774 = vunpack.c.h.b16 %v1195
    %v4775 = vunpack.c.l.b16 %v1196
    %v4776 = vunpack.c.h.b16 %v1196
    %v4777 = vunpack.c.l.b16 %v1197
    %v4778 = vunpack.c.h.b16 %v1197
    %v4779 = vunpack.c.l.b16 %v1198
    %v4780 = vunpack.c.h.b16 %v1198
    %v4781 = vunpack.c.l.b16 %v1199
    %v4782 = vunpack.c.h.b16 %v1199
    %v4783 = vunpack.c.l.b16 %v1200
    %v4784 = vunpack.c.h.b16 %v1200
    %v4785 = vunpack.c.l.b16 %v1201
    %v4786 = vunpack.c.h.b16 %v1201
    %v4787 = vunpack.c.l.b16 %v1202
    %v4788 = vunpack.c.h.b16 %v1202
    %v4789 = vunpack.c.l.b16 %v1203
    %v4790 = vunpack.c.h.b16 %v1203
    %v4791 = vunpack.c.l.b16 %v1204
    %v4792 = vunpack.c.h.b16 %v1204
    %v4793 = vunpack.c.l.b16 %v1205
    %v4794 = vunpack.c.h.b16 %v1205
    %v4795 = vunpack.c.l.b16 %v1206
    %v4796 = vunpack.c.h.b16 %v1206
    %v4797 = vunpack.c.l.b16 %v1207
    %v4798 = vunpack.c.h.b16 %v1207
    %v4799 = vunpack.c.l.b16 %v1208
    %v4800 = vunpack.c.h.b16 %v1208
    %v4801 = vunpack.c.l.b16 %v1209
    %v4802 = vunpack.c.h.b16 %v1209
    %v4803 = vunpack.c.l.b16 %v1210
    %v4804 = vunpack.c.h.b16 %v1210
    %v4805 = vunpack.c.l.b16 %v1211
    %v4806 = vunpack.c.h.b16 %v1211
    %v4807 = vunpack.c.l.b16 %v1212
    %v4808 = vunpack.c.h.b16 %v1212
    %v4809 = vunpack.c.l.b16 %v1213
    %v4810 = vunpack.c.h.b16 %v1213
    %v4811 = vunpack.c.l.b16 %v1214
    %v4812 = vunpack.c.h.b16 %v1214
    %v4813 = vunpack.c.l.b16 %v1215
    %v4814 = vunpack.c.h.b16 %v1215
    %v4815 = vunpack.c.l.b16 %v1216
    %v4816 = vunpack.c.h.b16 %v1216
    %v4817 = vunpack.c.l.b16 %v1217
    %v4818 = vunpack.c.h.b16 %v1217
    %v4819 = vunpack.c.l.b16 %v1218
    %v4820 = vunpack.c.h.b16 %v1218
    %v4821 = vunpack.c.l.b16 %v1219
    %v4822 = vunpack.c.h.b16 %v1219
    %v4823 = vunpack.c.l.b16 %v1220
    %v4824 = vunpack.c.h.b16 %v1220
    %v4825 = vunpack.c.l.b16 %v1221
    %v4826 = vunpack.c.h.b16 %v1221
    %v4827 = vunpack.c.l.b16 %v1222
    %v4828 = vunpack.c.h.b16 %v1222
    %v4829 = vunpack.c.l.b16 %v1223
    %v4830 = vunpack.c.h.b16 %v1223
    %v4831 = vunpack.c.l.b16 %v1224
    %v4832 = vunpack.c.h.b16 %v1224
    %v4833 = vunpack.c.l.b16 %v1225
    %v4834 = vunpack.c.h.b16 %v1225
    %v4835 = vunpack.c.l.b16 %v1226
    %v4836 = vunpack.c.h.b16 %v1226
    %v4837 = vunpack.c.l.b16 %v1227
    %v4838 = vunpack.c.h.b16 %v1227
    %v4839 = vunpack.c.l.b16 %v1228
    %v4840 = vunpack.c.h.b16 %v1228
    %v4841 = vunpack.c.l.b16 %v1229
    %v4842 = vunpack.c.h.b16 %v1229
    %v4843 = vunpack.c.l.b16 %v1230
    %v4844 = vunpack.c.h.b16 %v1230
    %v4845 = vunpack.c.l.b16 %v1231
    %v4846 = vunpack.c.h.b16 %v1231
    %v4847 = vunpack.c.l.b16 %v1232
    %v4848 = vunpack.c.h.b16 %v1232
    %v4849 = vunpack.c.l.b16 %v1233
    %v4850 = vunpack.c.h.b16 %v1233
    %v4851 = vunpack.c.l.b16 %v1234
    %v4852 = vunpack.c.h.b16 %v1234
    %v4853 = vunpack.c.l.b16 %v1235
    %v4854 = vunpack.c.h.b16 %v1235
    %v4855 = vunpack.c.l.b16 %v1236
    %v4856 = vunpack.c.h.b16 %v1236
    %v4857 = vunpack.c.l.b16 %v1237
    %v4858 = vunpack.c.h.b16 %v1237
    %v4859 = vunpack.c.l.b16 %v1238
    %v4860 = vunpack.c.h.b16 %v1238
    %v4861 = vunpack.c.l.b16 %v1239
    %v4862 = vunpack.c.h.b16 %v1239
    %v4863 = vunpack.c.l.b16 %v1240
    %v4864 = vunpack.c.h.b16 %v1240
    %v4865 = vunpack.c.l.b16 %v1241
    %v4866 = vunpack.c.h.b16 %v1241
    %v4867 = vunpack.c.l.b16 %v1242
    %v4868 = vunpack.c.h.b16 %v1242
    %v4869 = vunpack.c.l.b16 %v1243
    %v4870 = vunpack.c.h.b16 %v1243
    %v4871 = vunpack.c.l.b16 %v1244
    %v4872 = vunpack.c.h.b16 %v1244
    %v4873 = vunpack.c.l.b16 %v1245
    %v4874 = vunpack.c.h.b16 %v1245
    %v4875 = vunpack.c.l.b16 %v1246
    %v4876 = vunpack.c.h.b16 %v1246
    %v4877 = vunpack.c.l.b16 %v1247
    %v4878 = vunpack.c.h.b16 %v1247
    %v4879 = vunpack.c.l.b16 %v1248
    %v4880 = vunpack.c.h.b16 %v1248
    %v4881 = vunpack.c.l.b16 %v1249
    %v4882 = vunpack.c.h.b16 %v1249
    %v4883 = vunpack.c.l.b16 %v1250
    %v4884 = vunpack.c.h.b16 %v1250
    %v4885 = vunpack.c.l.b16 %v1251
    %v4886 = vunpack.c.h.b16 %v1251
    %v4887 = vunpack.c.l.b16 %v1252
    %v4888 = vunpack.c.h.b16 %v1252
    %v4889 = vunpack.c.l.b16 %v1253
    %v4890 = vunpack.c.h.b16 %v1253
    %v4891 = vunpack.c.l.b16 %v1254
    %v4892 = vunpack.c.h.b16 %v1254
    %v4893 = vunpack.c.l.b16 %v1255
    %v4894 = vunpack.c.h.b16 %v1255
    %v4895 = vunpack.c.l.b16 %v1256
    %v4896 = vunpack.c.h.b16 %v1256
    %v4897 = vunpack.c.l.b16 %v1257
    %v4898 = vunpack.c.h.b16 %v1257
    %v4899 = vunpack.c.l.b16 %v1258
    %v4900 = vunpack.c.h.b16 %v1258
    %v4901 = vunpack.c.l.b16 %v1259
    %v4902 = vunpack.c.h.b16 %v1259
    %v4903 = vunpack.c.l.b16 %v1260
    %v4904 = vunpack.c.h.b16 %v1260
    %v4905 = vunpack.c.l.b16 %v1261
    %v4906 = vunpack.c.h.b16 %v1261
    %v4907 = vunpack.c.l.b16 %v1262
    %v4908 = vunpack.c.h.b16 %v1262
    %v4909 = vunpack.c.l.b16 %v1263
    %v4910 = vunpack.c.h.b16 %v1263
    %v4911 = vunpack.c.l.b16 %v1264
    %v4912 = vunpack.c.h.b16 %v1264
    %v4913 = vunpack.c.l.b16 %v1265
    %v4914 = vunpack.c.h.b16 %v1265
    %v4915 = vunpack.c.l.b16 %v1266
    %v4916 = vunpack.c.h.b16 %v1266
    %v4917 = vunpack.c.l.b16 %v1267
    %v4918 = vunpack.c.h.b16 %v1267
    %v4919 = vunpack.c.l.b16 %v1268
    %v4920 = vunpack.c.h.b16 %v1268
    %v4921 = vunpack.c.l.b16 %v1269
    %v4922 = vunpack.c.h.b16 %v1269
    %v4923 = vunpack.c.l.b16 %v1270
    %v4924 = vunpack.c.h.b16 %v1270
    %v4925 = vunpack.c.l.b16 %v1271
    %v4926 = vunpack.c.h.b16 %v1271
    %v4927 = vunpack.c.l.b16 %v1272
    %v4928 = vunpack.c.h.b16 %v1272
    %v4929 = vunpack.c.l.b16 %v1273
    %v4930 = vunpack.c.h.b16 %v1273
    %v4931 = vunpack.c.l.b16 %v1274
    %v4932 = vunpack.c.h.b16 %v1274
    %v4933 = vunpack.c.l.b16 %v1275
    %v4934 = vunpack.c.h.b16 %v1275
    %v4935 = vunpack.c.l.b16 %v1276
    %v4936 = vunpack.c.h.b16 %v1276
    %v4937 = vunpack.c.l.b16 %v1277
    %v4938 = vunpack.c.h.b16 %v1277
    %v4939 = vunpack.c.l.b16 %v1278
    %v4940 = vunpack.c.h.b16 %v1278
    %v4941 = vunpack.c.l.b16 %v1279
    %v4942 = vunpack.c.h.b16 %v1279
    %v4943 = vunpack.c.l.b16 %v1280
    %v4944 = vunpack.c.h.b16 %v1280
    %v4945 = vunpack.c.l.b16 %v1281
    %v4946 = vunpack.c.h.b16 %v1281
    %v4947 = vunpack.c.l.b16 %v1282
    %v4948 = vunpack.c.h.b16 %v1282
    %v4949 = vunpack.c.l.b16 %v1283
    %v4950 = vunpack.c.h.b16 %v1283
    %v4951 = vunpack.c.l.b16 %v1284
    %v4952 = vunpack.c.h.b16 %v1284
    %v4953 = vunpack.c.l.b16 %v1285
    %v4954 = vunpack.c.h.b16 %v1285
    %v4955 = vunpack.c.l.b16 %v1286
    %v4956 = vunpack.c.h.b16 %v1286
    %v4957 = vunpack.c.l.b16 %v1287
    %v4958 = vunpack.c.h.b16 %v1287
    %v4959 = vunpack.c.l.b16 %v1288
    %v4960 = vunpack.c.h.b16 %v1288
    %v4961 = vunpack.c.l.b16 %v1289
    %v4962 = vunpack.c.h.b16 %v1289
    %v4963 = vunpack.c.l.b16 %v1290
    %v4964 = vunpack.c.h.b16 %v1290
    %v4965 = vunpack.c.l.b16 %v1291
    %v4966 = vunpack.c.h.b16 %v1291
    %v4967 = vunpack.c.l.b16 %v1292
    %v4968 = vunpack.c.h.b16 %v1292
    %v4969 = vunpack.c.l.b16 %v1293
    %v4970 = vunpack.c.h.b16 %v1293
    %v4971 = vunpack.c.l.b16 %v1294
    %v4972 = vunpack.c.h.b16 %v1294
    %v4973 = vunpack.c.l.b16 %v1295
    %v4974 = vunpack.c.h.b16 %v1295
    %v4975 = vunpack.c.l.b16 %v1296
    %v4976 = vunpack.c.h.b16 %v1296
    %v4977 = vunpack.c.l.b16 %v1297
    %v4978 = vunpack.c.h.b16 %v1297
    %v4979 = vunpack.c.l.b16 %v1298
    %v4980 = vunpack.c.h.b16 %v1298
    %v4981 = vunpack.c.l.b16 %v1299
    %v4982 = vunpack.c.h.b16 %v1299
    %v4983 = vunpack.c.l.b16 %v1300
    %v4984 = vunpack.c.h.b16 %v1300
    %v4985 = vunpack.c.l.b16 %v1301
    %v4986 = vunpack.c.h.b16 %v1301
    %v4987 = vunpack.c.l.b16 %v1302
    %v4988 = vunpack.c.h.b16 %v1302
    %v4989 = vunpack.c.l.b16 %v1303
    %v4990 = vunpack.c.h.b16 %v1303
    %v4991 = vunpack.c.l.b16 %v1304
    %v4992 = vunpack.c.h.b16 %v1304
    %v4993 = vunpack.c.l.b16 %v1305
    %v4994 = vunpack.c.h.b16 %v1305
    %v4995 = vunpack.c.l.b16 %v1306
    %v4996 = vunpack.c.h.b16 %v1306
    %v4997 = vunpack.c.l.b16 %v1307
    %v4998 = vunpack.c.h.b16 %v1307
    %v4999 = vunpack.c.l.b16 %v1308
    %v5000 = vunpack.c.h.b16 %v1308
    %v5001 = vunpack.c.l.b16 %v1309
    %v5002 = vunpack.c.h.b16 %v1309
    %v5003 = vunpack.c.l.b16 %v1310
    %v5004 = vunpack.c.h.b16 %v1310
    %v5005 = vunpack.c.l.b16 %v1311
    %v5006 = vunpack.c.h.b16 %v1311
    %v5007 = vunpack.c.l.b16 %v1312
    %v5008 = vunpack.c.h.b16 %v1312
    %v5009 = vunpack.c.l.b16 %v1313
    %v5010 = vunpack.c.h.b16 %v1313
    %v5011 = vunpack.c.l.b16 %v1314
    %v5012 = vunpack.c.h.b16 %v1314
    %v5013 = vunpack.c.l.b16 %v1315
    %v5014 = vunpack.c.h.b16 %v1315
    %v5015 = vunpack.c.l.b16 %v1316
    %v5016 = vunpack.c.h.b16 %v1316
    %v5017 = vunpack.c.l.b16 %v1317
    %v5018 = vunpack.c.h.b16 %v1317
    %v5019 = vunpack.c.l.b16 %v1318
    %v5020 = vunpack.c.h.b16 %v1318
    %v5021 = vunpack.c.l.b16 %v1319
    %v5022 = vunpack.c.h.b16 %v1319
    %v5023 = vunpack.c.l.b16 %v1320
    %v5024 = vunpack.c.h.b16 %v1320
    %v5025 = vunpack.c.l.b16 %v1321
    %v5026 = vunpack.c.h.b16 %v1321
    %v5027 = vunpack.c.l.b16 %v1322
    %v5028 = vunpack.c.h.b16 %v1322
    %v5029 = vunpack.c.l.b16 %v1323
    %v5030 = vunpack.c.h.b16 %v1323
    %v5031 = vunpack.c.l.b16 %v1324
    %v5032 = vunpack.c.h.b16 %v1324
    %v5033 = vunpack.c.l.b16 %v1325
    %v5034 = vunpack.c.h.b16 %v1325
    %v5035 = vunpack.c.l.b16 %v1326
    %v5036 = vunpack.c.h.b16 %v1326
    %v5037 = vunpack.c.l.b16 %v1327
    %v5038 = vunpack.c.h.b16 %v1327
    %v5039 = vunpack.c.l.b16 %v1328
    %v5040 = vunpack.c.h.b16 %v1328
    %v5041 = vunpack.c.l.b16 %v1329
    %v5042 = vunpack.c.h.b16 %v1329
    %v5043 = vunpack.c.l.b16 %v1330
    %v5044 = vunpack.c.h.b16 %v1330
    %v5045 = vunpack.c.l.b16 %v1331
    %v5046 = vunpack.c.h.b16 %v1331
    %v5047 = vunpack.c.l.b16 %v1332
    %v5048 = vunpack.c.h.b16 %v1332
    %v5049 = vunpack.c.l.b16 %v1333
    %v5050 = vunpack.c.h.b16 %v1333
    %v5051 = vunpack.c.l.b16 %v1334
    %v5052 = vunpack.c.h.b16 %v1334
    %v5053 = vunpack.c.l.b16 %v1335
    %v5054 = vunpack.c.h.b16 %v1335
    %v5055 = vunpack.c.l.b16 %v1336
    %v5056 = vunpack.c.h.b16 %v1336
    %v5057 = vunpack.c.l.b16 %v1337
    %v5058 = vunpack.c.h.b16 %v1337
    %v5059 = vunpack.c.l.b16 %v1338
    %v5060 = vunpack.c.h.b16 %v1338
    %v5061 = vunpack.c.l.b16 %v1339
    %v5062 = vunpack.c.h.b16 %v1339
    %v5063 = vunpack.c.l.b16 %v1340
    %v5064 = vunpack.c.h.b16 %v1340
    %v5065 = vunpack.c.l.b16 %v1341
    %v5066 = vunpack.c.h.b16 %v1341
    %v5067 = vunpack.c.l.b16 %v1342
    %v5068 = vunpack.c.h.b16 %v1342
    %v5069 = vunpack.c.l.b16 %v1343
    %v5070 = vunpack.c.h.b16 %v1343
    %v5071 = vunpack.c.l.b16 %v1344
    %v5072 = vunpack.c.h.b16 %v1344
    %v5073 = vunpack.c.l.b16 %v1345
    %v5074 = vunpack.c.h.b16 %v1345
    %v5075 = vunpack.c.l.b16 %v1346
    %v5076 = vunpack.c.h.b16 %v1346
    %v5077 = vunpack.c.l.b16 %v1347
    %v5078 = vunpack.c.h.b16 %v1347
    %v5079 = vunpack.c.l.b16 %v1348
    %v5080 = vunpack.c.h.b16 %v1348
    %v5081 = vunpack.c.l.b16 %v1349
    %v5082 = vunpack.c.h.b16 %v1349
    %v5083 = vunpack.c.l.b16 %v1350
    %v5084 = vunpack.c.h.b16 %v1350
    %v5085 = vunpack.c.l.b16 %v1351
    %v5086 = vunpack.c.h.b16 %v1351
    %v5087 = vunpack.c.l.b16 %v1352
    %v5088 = vunpack.c.h.b16 %v1352
    %v5089 = vunpack.c.l.b16 %v1353
    %v5090 = vunpack.c.h.b16 %v1353
    %v5091 = vunpack.c.l.b16 %v1354
    %v5092 = vunpack.c.h.b16 %v1354
    %v5093 = vunpack.c.l.b16 %v1355
    %v5094 = vunpack.c.h.b16 %v1355
    %v5095 = vunpack.c.l.b16 %v1356
    %v5096 = vunpack.c.h.b16 %v1356
    %v5097 = vunpack.c.l.b16 %v1357
    %v5098 = vunpack.c.h.b16 %v1357
    %v5099 = vunpack.c.l.b16 %v1358
    %v5100 = vunpack.c.h.b16 %v1358
    %v5101 = vunpack.c.l.b16 %v1359
    %v5102 = vunpack.c.h.b16 %v1359
    %v5103 = vunpack.c.l.b16 %v1360
    %v5104 = vunpack.c.h.b16 %v1360
    %v5105 = vunpack.c.l.b16 %v1361
    %v5106 = vunpack.c.h.b16 %v1361
    %v5107 = vunpack.c.l.b16 %v1362
    %v5108 = vunpack.c.h.b16 %v1362
    %v5109 = vunpack.c.l.b16 %v1363
    %v5110 = vunpack.c.h.b16 %v1363
    %v5111 = vunpack.c.l.b16 %v1364
    %v5112 = vunpack.c.h.b16 %v1364
    %v5113 = vunpack.c.l.b16 %v1365
    %v5114 = vunpack.c.h.b16 %v1365
    %v5115 = vunpack.c.l.b16 %v1366
    %v5116 = vunpack.c.h.b16 %v1366
    %v5117 = vunpack.c.l.b16 %v1367
    %v5118 = vunpack.c.h.b16 %v1367
    %v5119 = vunpack.c.l.b16 %v1368
    %v5120 = vunpack.c.h.b16 %v1368
    %v5121 = vunpack.c.l.b16 %v1369
    %v5122 = vunpack.c.h.b16 %v1369
    %v5123 = vunpack.c.l.b16 %v1370
    %v5124 = vunpack.c.h.b16 %v1370
    %v5125 = vunpack.c.l.b16 %v1371
    %v5126 = vunpack.c.h.b16 %v1371
    %v5127 = vunpack.c.l.b16 %v1372
    %v5128 = vunpack.c.h.b16 %v1372
    %v5129 = vunpack.c.l.b16 %v1373
    %v5130 = vunpack.c.h.b16 %v1373
    %v5131 = vunpack.c.l.b16 %v1374
    %v5132 = vunpack.c.h.b16 %v1374
    %v5133 = vunpack.c.l.b16 %v1375
    %v5134 = vunpack.c.h.b16 %v1375
    %v5135 = vunpack.c.l.b16 %v1376
    %v5136 = vunpack.c.h.b16 %v1376
    %v5137 = vunpack.c.l.b16 %v1377
    %v5138 = vunpack.c.h.b16 %v1377
    %v5139 = vunpack.c.l.b16 %v1378
    %v5140 = vunpack.c.h.b16 %v1378
    %v5141 = vunpack.c.l.b16 %v1379
    %v5142 = vunpack.c.h.b16 %v1379
    %v5143 = vunpack.c.l.b16 %v1380
    %v5144 = vunpack.c.h.b16 %v1380
    %v5145 = vunpack.c.l.b16 %v1381
    %v5146 = vunpack.c.h.b16 %v1381
    %v5147 = vunpack.c.l.b16 %v1382
    %v5148 = vunpack.c.h.b16 %v1382
    %v5149 = vunpack.c.l.b16 %v1383
    %v5150 = vunpack.c.h.b16 %v1383
    %v5151 = vunpack.c.l.b16 %v1384
    %v5152 = vunpack.c.h.b16 %v1384
    %v5153 = vunpack.c.l.b16 %v1385
    %v5154 = vunpack.c.h.b16 %v1385
    %v5155 = vunpack.c.l.b16 %v1386
    %v5156 = vunpack.c.h.b16 %v1386
    %v5157 = vunpack.c.l.b16 %v1387
    %v5158 = vunpack.c.h.b16 %v1387
    %v5159 = vunpack.c.l.b16 %v1388
    %v5160 = vunpack.c.h.b16 %v1388
    %v5161 = vunpack.c.l.b16 %v1389
    %v5162 = vunpack.c.h.b16 %v1389
    %v5163 = vunpack.c.l.b16 %v1390
    %v5164 = vunpack.c.h.b16 %v1390
    %v5165 = vunpack.c.l.b16 %v1391
    %v5166 = vunpack.c.h.b16 %v1391
    %v5167 = vunpack.c.l.b16 %v1392
    %v5168 = vunpack.c.h.b16 %v1392
    %v5169 = vunpack.c.l.b16 %v1393
    %v5170 = vunpack.c.h.b16 %v1393
    %v5171 = vunpack.c.l.b16 %v1394
    %v5172 = vunpack.c.h.b16 %v1394
    %v5173 = vunpack.c.l.b16 %v1395
    %v5174 = vunpack.c.h.b16 %v1395
    %v5175 = vunpack.c.l.b16 %v1396
    %v5176 = vunpack.c.h.b16 %v1396
    %v5177 = vunpack.c.l.b16 %v1397
    %v5178 = vunpack.c.h.b16 %v1397
    %v5179 = vunpack.c.l.b16 %v1398
    %v5180 = vunpack.c.h.b16 %v1398
    %v5181 = vunpack.c.l.b16 %v1399
    %v5182 = vunpack.c.h.b16 %v1399
    %v5183 = vunpack.c.l.b16 %v1400
    %v5184 = vunpack.c.h.b16 %v1400
    %v5185 = vunpack.c.l.b16 %v1401
    %v5186 = vunpack.c.h.b16 %v1401
    %v5187 = vunpack.c.l.b16 %v1402
    %v5188 = vunpack.c.h.b16 %v1402
    %v5189 = vunpack.c.l.b16 %v1403
    %v5190 = vunpack.c.h.b16 %v1403
    %v5191 = vunpack.c.l.b16 %v1404
    %v5192 = vunpack.c.h.b16 %v1404
    %v5193 = vunpack.c.l.b16 %v1405
    %v5194 = vunpack.c.h.b16 %v1405
    %v5195 = vunpack.c.l.b16 %v1406
    %v5196 = vunpack.c.h.b16 %v1406
    %v5197 = vunpack.c.l.b16 %v1407
    %v5198 = vunpack.c.h.b16 %v1407
    %v5199 = vunpack.c.l.b16 %v1408
    %v5200 = vunpack.c.h.b16 %v1408
    %v5201 = vunpack.c.l.b16 %v1409
    %v5202 = vunpack.c.h.b16 %v1409
    %v5203 = vunpack.c.l.b16 %v1410
    %v5204 = vunpack.c.h.b16 %v1410
    %v5205 = vunpack.c.l.b16 %v1411
    %v5206 = vunpack.c.h.b16 %v1411
    %v5207 = vunpack.c.l.b16 %v1412
    %v5208 = vunpack.c.h.b16 %v1412
    %v5209 = vunpack.c.l.b16 %v1413
    %v5210 = vunpack.c.h.b16 %v1413
    %v5211 = vunpack.c.l.b16 %v1414
    %v5212 = vunpack.c.h.b16 %v1414
    %v5213 = vunpack.c.l.b16 %v1415
    %v5214 = vunpack.c.h.b16 %v1415
    %v5215 = vunpack.c.l.b16 %v1416
    %v5216 = vunpack.c.h.b16 %v1416
    %v5217 = vunpack.c.l.b16 %v1417
    %v5218 = vunpack.c.h.b16 %v1417
    %v5219 = vunpack.c.l.b16 %v1418
    %v5220 = vunpack.c.h.b16 %v1418
    %v5221 = vunpack.c.l.b16 %v1419
    %v5222 = vunpack.c.h.b16 %v1419
    %v5223 = vunpack.c.l.b16 %v1420
    %v5224 = vunpack.c.h.b16 %v1420
    %v5225 = vunpack.c.l.b16 %v1421
    %v5226 = vunpack.c.h.b16 %v1421
    %v5227 = vunpack.c.l.b16 %v1422
    %v5228 = vunpack.c.h.b16 %v1422
    %v5229 = vunpack.c.l.b16 %v1423
    %v5230 = vunpack.c.h.b16 %v1423
    %v5231 = vunpack.c.l.b16 %v1424
    %v5232 = vunpack.c.h.b16 %v1424
    %v5233 = vunpack.c.l.b16 %v1425
    %v5234 = vunpack.c.h.b16 %v1425
    %v5235 = vunpack.c.l.b16 %v1426
    %v5236 = vunpack.c.h.b16 %v1426
    %v5237 = vunpack.c.l.b16 %v1427
    %v5238 = vunpack.c.h.b16 %v1427
    %v5239 = vunpack.c.l.b16 %v1428
    %v5240 = vunpack.c.h.b16 %v1428
    %v5241 = vunpack.c.l.b16 %v1429
    %v5242 = vunpack.c.h.b16 %v1429
    %v5243 = vunpack.c.l.b16 %v1430
    %v5244 = vunpack.c.h.b16 %v1430
    %v5245 = vunpack.c.l.b16 %v1431
    %v5246 = vunpack.c.h.b16 %v1431
    %v5247 = vunpack.c.l.b16 %v1432
    %v5248 = vunpack.c.h.b16 %v1432
    %v5249 = vunpack.c.l.b16 %v1433
    %v5250 = vunpack.c.h.b16 %v1433
    %v5251 = vunpack.c.l.b16 %v1434
    %v5252 = vunpack.c.h.b16 %v1434
    %v5253 = vunpack.c.l.b16 %v1435
    %v5254 = vunpack.c.h.b16 %v1435
    %v5255 = vunpack.c.l.b16 %v1436
    %v5256 = vunpack.c.h.b16 %v1436
    %v5257 = vunpack.c.l.b16 %v1437
    %v5258 = vunpack.c.h.b16 %v1437
    %v5259 = vunpack.c.l.b16 %v1438
    %v5260 = vunpack.c.h.b16 %v1438
    %v5261 = vunpack.c.l.b16 %v1439
    %v5262 = vunpack.c.h.b16 %v1439
    %v5263 = vunpack.c.l.b16 %v1440
    %v5264 = vunpack.c.h.b16 %v1440
    %v5265 = vunpack.c.l.b16 %v1441
    %v5266 = vunpack.c.h.b16 %v1441
    %v5267 = vunpack.c.l.b16 %v1442
    %v5268 = vunpack.c.h.b16 %v1442
    %v5269 = vunpack.c.l.b16 %v1443
    %v5270 = vunpack.c.h.b16 %v1443
    %v5271 = vunpack.c.l.b16 %v1444
    %v5272 = vunpack.c.h.b16 %v1444
    %v5273 = vunpack.c.l.b16 %v1445
    %v5274 = vunpack.c.h.b16 %v1445
    %v5275 = vunpack.c.l.b16 %v1446
    %v5276 = vunpack.c.h.b16 %v1446
    %v5277 = vunpack.c.l.b16 %v1447
    %v5278 = vunpack.c.h.b16 %v1447
    %v5279 = vunpack.c.l.b16 %v1448
    %v5280 = vunpack.c.h.b16 %v1448
    %v5281 = vunpack.c.l.b16 %v1449
    %v5282 = vunpack.c.h.b16 %v1449
    %v5283 = vunpack.c.l.b16 %v1450
    %v5284 = vunpack.c.h.b16 %v1450
    %v5285 = vunpack.c.l.b16 %v1451
    %v5286 = vunpack.c.h.b16 %v1451
    %v5287 = vunpack.c.l.b16 %v1452
    %v5288 = vunpack.c.h.b16 %v1452
    %v5289 = vunpack.c.l.b16 %v1453
    %v5290 = vunpack.c.h.b16 %v1453
    %v5291 = vunpack.c.l.b16 %v1454
    %v5292 = vunpack.c.h.b16 %v1454
    %v5293 = vunpack.c.l.b16 %v1455
    %v5294 = vunpack.c.h.b16 %v1455
    %v5295 = vunpack.c.l.b16 %v1456
    %v5296 = vunpack.c.h.b16 %v1456
    %v5297 = vunpack.c.l.b16 %v1457
    %v5298 = vunpack.c.h.b16 %v1457
    %v5299 = vpack.c.b16 %v2747, %v2739
    %v5300 = vpack.c.b16 %v2748, %v2740
    %v5301 = vpack.c.b16 %v2749, %v2741
    %v5302 = vpack.c.b16 %v2750, %v2742
    %v5303 = vpack.c.b16 %v2751, %v2743
    %v5304 = vpack.c.b16 %v2752, %v2744
    %v5305 = vpack.c.b16 %v2753, %v2745
    %v5306 = vpack.c.b16 %v2754, %v2746
    %v5307 = vpack.c.b16 %v2763, %v2755
    %v5308 = vpack.c.b16 %v2764, %v2756
    %v5309 = vpack.c.b16 %v2765, %v2757
    %v5310 = vpack.c.b16 %v2766, %v2758
    %v5311 = vpack.c.b16 %v2767, %v2759
    %v5312 = vpack.c.b16 %v2768, %v2760
    %v5313 = vpack.c.b16 %v2769, %v2761
    %v5314 = vpack.c.b16 %v2770, %v2762
    %v5315 = vpack.c.b16 %v2779, %v2771
    %v5316 = vpack.c.b16 %v2780, %v2772
    %v5317 = vpack.c.b16 %v2781, %v2773
    %v5318 = vpack.c.b16 %v2782, %v2774
    %v5319 = vpack.c.b16 %v2783, %v2775
    %v5320 = vpack.c.b16 %v2784, %v2776
    %v5321 = vpack.c.b16 %v2785, %v2777
    %v5322 = vpack.c.b16 %v2786, %v2778
    %v5323 = vpack.c.b16 %v2795, %v2787
    %v5324 = vpack.c.b16 %v2796, %v2788
    %v5325 = vpack.c.b16 %v2797, %v2789
    %v5326 = vpack.c.b16 %v2798, %v2790
    %v5327 = vpack.c.b16 %v2799, %v2791
    %v5328 = vpack.c.b16 %v2800, %v2792
    %v5329 = vpack.c.b16 %v2801, %v2793
    %v5330 = vpack.c.b16 %v2802, %v2794
    %v5331 = vpack.c.b16 %v2811, %v2803
    %v5332 = vpack.c.b16 %v2812, %v2804
    %v5333 = vpack.c.b16 %v2813, %v2805
    %v5334 = vpack.c.b16 %v2814, %v2806
    %v5335 = vpack.c.b16 %v2815, %v2807
    %v5336 = vpack.c.b16 %v2816, %v2808
    %v5337 = vpack.c.b16 %v2817, %v2809
    %v5338 = vpack.c.b16 %v2818, %v2810
    %v5339 = vpack.c.b16 %v2827, %v2819
    %v5340 = vpack.c.b16 %v2828, %v2820
    %v5341 = vpack.c.b16 %v2829, %v2821
    %v5342 = vpack.c.b16 %v2830, %v2822
    %v5343 = vpack.c.b16 %v2831, %v2823
    %v5344 = vpack.c.b16 %v2832, %v2824
    %v5345 = vpack.c.b16 %v2833, %v2825
    %v5346 = vpack.c.b16 %v2834, %v2826
    %v5347 = vpack.c.b16 %v2843, %v2835
    %v5348 = vpack.c.b16 %v2844, %v2836
    %v5349 = vpack.c.b16 %v2845, %v2837
    %v5350 = vpack.c.b16 %v2846, %v2838
    %v5351 = vpack.c.b16 %v2847, %v2839
    %v5352 = vpack.c.b16 %v2848, %v2840
    %v5353 = vpack.c.b16 %v2849, %v2841
    %v5354 = vpack.c.b16 %v2850, %v2842
    %v5355 = vpack.c.b16 %v2859, %v2851
    %v5356 = vpack.c.b16 %v2860, %v2852
    %v5357 = vpack.c.b16 %v2861, %v2853
    %v5358 = vpack.c.b16 %v2862, %v2854
    %v5359 = vpack.c.b16 %v2863, %v2855
    %v5360 = vpack.c.b16 %v2864, %v2856
    %v5361 = vpack.c.b16 %v2865, %v2857
    %v5362 = vpack.c.b16 %v2866, %v2858
    %v5363 = vpack.c.b16 %v2875, %v2867
    %v5364 = vpack.c.b16 %v2876, %v2868
    %v5365 = vpack.c.b16 %v2877, %v2869
    %v5366 = vpack.c.b16 %v2878, %v2870
    %v5367 = vpack.c.b16 %v2879, %v2871
    %v5368 = vpack.c.b16 %v2880, %v2872
    %v5369 = vpack.c.b16 %v2881, %v2873
    %v5370 = vpack.c.b16 %v2882, %v2874
    %v5371 = vpack.c.b16 %v2891, %v2883
    %v5372 = vpack.c.b16 %v2892, %v2884
    %v5373 = vpack.c.b16 %v2893, %v2885
    %v5374 = vpack.c.b16 %v2894, %v2886
    %v5375 = vpack.c.b16 %v2895, %v2887
    %v5376 = vpack.c.b16 %v2896, %v2888
    %v5377 = vpack.c.b16 %v2897, %v2889
    %v5378 = vpack.c.b16 %v2898, %v2890
    %v5379 = vpack.c.b16 %v2907, %v2899
    %v5380 = vpack.c.b16 %v2908, %v2900
    %v5381 = vpack.c.b16 %v2909, %v2901
    %v5382 = vpack.c.b16 %v2910, %v2902
    %v5383 = vpack.c.b16 %v2911, %v2903
    %v5384 = vpack.c.b16 %v2912, %v2904
    %v5385 = vpack.c.b16 %v2913, %v2905
    %v5386 = vpack.c.b16 %v2914, %v2906
    %v5387 = vpack.c.b16 %v2923, %v2915
    %v5388 = vpack.c.b16 %v2924, %v2916
    %v5389 = vpack.c.b16 %v2925, %v2917
    %v5390 = vpack.c.b16 %v2926, %v2918
    %v5391 = vpack.c.b16 %v2927, %v2919
    %v5392 = vpack.c.b16 %v2928, %v2920
    %v5393 = vpack.c.b16 %v2929, %v2921
    %v5394 = vpack.c.b16 %v2930, %v2922
    %v5395 = vpack.c.b16 %v2939, %v2931
    %v5396 = vpack.c.b16 %v2940, %v2932
    %v5397 = vpack.c.b16 %v2941, %v2933
    %v5398 = vpack.c.b16 %v2942, %v2934
    %v5399 = vpack.c.b16 %v2943, %v2935
    %v5400 = vpack.c.b16 %v2944, %v2936
    %v5401 = vpack.c.b16 %v2945, %v2937
    %v5402 = vpack.c.b16 %v2946, %v2938
    %v5403 = vpack.c.b16 %v2955, %v2947
    %v5404 = vpack.c.b16 %v2956, %v2948
    %v5405 = vpack.c.b16 %v2957, %v2949
    %v5406 = vpack.c.b16 %v2958, %v2950
    %v5407 = vpack.c.b16 %v2959, %v2951
    %v5408 = vpack.c.b16 %v2960, %v2952
    %v5409 = vpack.c.b16 %v2961, %v2953
    %v5410 = vpack.c.b16 %v2962, %v2954
    %v5411 = vpack.c.b16 %v2971, %v2963
    %v5412 = vpack.c.b16 %v2972, %v2964
    %v5413 = vpack.c.b16 %v2973, %v2965
    %v5414 = vpack.c.b16 %v2974, %v2966
    %v5415 = vpack.c.b16 %v2975, %v2967
    %v5416 = vpack.c.b16 %v2976, %v2968
    %v5417 = vpack.c.b16 %v2977, %v2969
    %v5418 = vpack.c.b16 %v2978, %v2970
    %v5419 = vpack.c.b16 %v2987, %v2979
    %v5420 = vpack.c.b16 %v2988, %v2980
    %v5421 = vpack.c.b16 %v2989, %v2981
    %v5422 = vpack.c.b16 %v2990, %v2982
    %v5423 = vpack.c.b16 %v2991, %v2983
    %v5424 = vpack.c.b16 %v2992, %v2984
    %v5425 = vpack.c.b16 %v2993, %v2985
    %v5426 = vpack.c.b16 %v2994, %v2986
    %v5427 = vpack.c.b16 %v3003, %v2995
    %v5428 = vpack.c.b16 %v3004, %v2996
    %v5429 = vpack.c.b16 %v3005, %v2997
    %v5430 = vpack.c.b16 %v3006, %v2998
    %v5431 = vpack.c.b16 %v3007, %v2999
    %v5432 = vpack.c.b16 %v3008, %v3000
    %v5433 = vpack.c.b16 %v3009, %v3001
    %v5434 = vpack.c.b16 %v3010, %v3002
    %v5435 = vpack.c.b16 %v3019, %v3011
    %v5436 = vpack.c.b16 %v3020, %v3012
    %v5437 = vpack.c.b16 %v3021, %v3013
    %v5438 = vpack.c.b16 %v3022, %v3014
    %v5439 = vpack.c.b16 %v3023, %v3015
    %v5440 = vpack.c.b16 %v3024, %v3016
    %v5441 = vpack.c.b16 %v3025, %v3017
    %v5442 = vpack.c.b16 %v3026, %v3018
    %v5443 = vpack.c.b16 %v3035, %v3027
    %v5444 = vpack.c.b16 %v3036, %v3028
    %v5445 = vpack.c.b16 %v3037, %v3029
    %v5446 = vpack.c.b16 %v3038, %v3030
    %v5447 = vpack.c.b16 %v3039, %v3031
    %v5448 = vpack.c.b16 %v3040, %v3032
    %v5449 = vpack.c.b16 %v3041, %v3033
    %v5450 = vpack.c.b16 %v3042, %v3034
    %v5451 = vpack.c.b16 %v3051, %v3043
    %v5452 = vpack.c.b16 %v3052, %v3044
    %v5453 = vpack.c.b16 %v3053, %v3045
    %v5454 = vpack.c.b16 %v3054, %v3046
    %v5455 = vpack.c.b16 %v3055, %v3047
    %v5456 = vpack.c.b16 %v3056, %v3048
    %v5457 = vpack.c.b16 %v3057, %v3049
    %v5458 = vpack.c.b16 %v3058, %v3050
    %v5459 = vpack.c.b16 %v3067, %v3059
    %v5460 = vpack.c.b16 %v3068, %v3060
    %v5461 = vpack.c.b16 %v3069, %v3061
    %v5462 = vpack.c.b16 %v3070, %v3062
    %v5463 = vpack.c.b16 %v3071, %v3063
    %v5464 = vpack.c.b16 %v3072, %v3064
    %v5465 = vpack.c.b16 %v3073, %v3065
    %v5466 = vpack.c.b16 %v3074, %v3066
    %v5467 = vpack.c.b16 %v3083, %v3075
    %v5468 = vpack.c.b16 %v3084, %v3076
    %v5469 = vpack.c.b16 %v3085, %v3077
    %v5470 = vpack.c.b16 %v3086, %v3078
    %v5471 = vpack.c.b16 %v3087, %v3079
    %v5472 = vpack.c.b16 %v3088, %v3080
    %v5473 = vpack.c.b16 %v3089, %v3081
    %v5474 = vpack.c.b16 %v3090, %v3082
    %v5475 = vpack.c.b16 %v3099, %v3091
    %v5476 = vpack.c.b16 %v3100, %v3092
    %v5477 = vpack.c.b16 %v3101, %v3093
    %v5478 = vpack.c.b16 %v3102, %v3094
    %v5479 = vpack.c.b16 %v3103, %v3095
    %v5480 = vpack.c.b16 %v3104, %v3096
    %v5481 = vpack.c.b16 %v3105, %v3097
    %v5482 = vpack.c.b16 %v3106, %v3098
    %v5483 = vpack.c.b16 %v3115, %v3107
    %v5484 = vpack.c.b16 %v3116, %v3108
    %v5485 = vpack.c.b16 %v3117, %v3109
    %v5486 = vpack.c.b16 %v3118, %v3110
    %v5487 = vpack.c.b16 %v3119, %v3111
    %v5488 = vpack.c.b16 %v3120, %v3112
    %v5489 = vpack.c.b16 %v3121, %v3113
    %v5490 = vpack.c.b16 %v3122, %v3114
    %v5491 = vpack.c.b16 %v3131, %v3123
    %v5492 = vpack.c.b16 %v3132, %v3124
    %v5493 = vpack.c.b16 %v3133, %v3125
    %v5494 = vpack.c.b16 %v3134, %v3126
    %v5495 = vpack.c.b16 %v3135, %v3127
    %v5496 = vpack.c.b16 %v3136, %v3128
    %v5497 = vpack.c.b16 %v3137, %v3129
    %v5498 = vpack.c.b16 %v3138, %v3130
    %v5499 = vpack.c.b16 %v3147, %v3139
    %v5500 = vpack.c.b16 %v3148, %v3140
    %v5501 = vpack.c.b16 %v3149, %v3141
    %v5502 = vpack.c.b16 %v3150, %v3142
    %v5503 = vpack.c.b16 %v3151, %v3143
    %v5504 = vpack.c.b16 %v3152, %v3144
    %v5505 = vpack.c.b16 %v3153, %v3145
    %v5506 = vpack.c.b16 %v3154, %v3146
    %v5507 = vpack.c.b16 %v3163, %v3155
    %v5508 = vpack.c.b16 %v3164, %v3156
    %v5509 = vpack.c.b16 %v3165, %v3157
    %v5510 = vpack.c.b16 %v3166, %v3158
    %v5511 = vpack.c.b16 %v3167, %v3159
    %v5512 = vpack.c.b16 %v3168, %v3160
    %v5513 = vpack.c.b16 %v3169, %v3161
    %v5514 = vpack.c.b16 %v3170, %v3162
    %v5515 = vpack.c.b16 %v3179, %v3171
    %v5516 = vpack.c.b16 %v3180, %v3172
    %v5517 = vpack.c.b16 %v3181, %v3173
    %v5518 = vpack.c.b16 %v3182, %v3174
    %v5519 = vpack.c.b16 %v3183, %v3175
    %v5520 = vpack.c.b16 %v3184, %v3176
    %v5521 = vpack.c.b16 %v3185, %v3177
    %v5522 = vpack.c.b16 %v3186, %v3178
    %v5523 = vpack.c.b16 %v3195, %v3187
    %v5524 = vpack.c.b16 %v3196, %v3188
    %v5525 = vpack.c.b16 %v3197, %v3189
    %v5526 = vpack.c.b16 %v3198, %v3190
    %v5527 = vpack.c.b16 %v3199, %v3191
    %v5528 = vpack.c.b16 %v3200, %v3192
    %v5529 = vpack.c.b16 %v3201, %v3193
    %v5530 = vpack.c.b16 %v3202, %v3194
    %v5531 = vpack.c.b16 %v3211, %v3203
    %v5532 = vpack.c.b16 %v3212, %v3204
    %v5533 = vpack.c.b16 %v3213, %v3205
    %v5534 = vpack.c.b16 %v3214, %v3206
    %v5535 = vpack.c.b16 %v3215, %v3207
    %v5536 = vpack.c.b16 %v3216, %v3208
    %v5537 = vpack.c.b16 %v3217, %v3209
    %v5538 = vpack.c.b16 %v3218, %v3210
    %v5539 = vpack.c.b16 %v3227, %v3219
    %v5540 = vpack.c.b16 %v3228, %v3220
    %v5541 = vpack.c.b16 %v3229, %v3221
    %v5542 = vpack.c.b16 %v3230, %v3222
    %v5543 = vpack.c.b16 %v3231, %v3223
    %v5544 = vpack.c.b16 %v3232, %v3224
    %v5545 = vpack.c.b16 %v3233, %v3225
    %v5546 = vpack.c.b16 %v3234, %v3226
    %v5547 = vpack.c.b16 %v3243, %v3235
    %v5548 = vpack.c.b16 %v3244, %v3236
    %v5549 = vpack.c.b16 %v3245, %v3237
    %v5550 = vpack.c.b16 %v3246, %v3238
    %v5551 = vpack.c.b16 %v3247, %v3239
    %v5552 = vpack.c.b16 %v3248, %v3240
    %v5553 = vpack.c.b16 %v3249, %v3241
    %v5554 = vpack.c.b16 %v3250, %v3242
    %v5555 = vpack.c.b16 %v3259, %v3251
    %v5556 = vpack.c.b16 %v3260, %v3252
    %v5557 = vpack.c.b16 %v3261, %v3253
    %v5558 = vpack.c.b16 %v3262, %v3254
    %v5559 = vpack.c.b16 %v3263, %v3255
    %v5560 = vpack.c.b16 %v3264, %v3256
    %v5561 = vpack.c.b16 %v3265, %v3257
    %v5562 = vpack.c.b16 %v3266, %v3258
    %v5563 = vpack.c.b16 %v3275, %v3267
    %v5564 = vpack.c.b16 %v3276, %v3268
    %v5565 = vpack.c.b16 %v3277, %v3269
    %v5566 = vpack.c.b16 %v3278, %v3270
    %v5567 = vpack.c.b16 %v3279, %v3271
    %v5568 = vpack.c.b16 %v3280, %v3272
    %v5569 = vpack.c.b16 %v3281, %v3273
    %v5570 = vpack.c.b16 %v3282, %v3274
    %v5571 = vpack.c.b16 %v3291, %v3283
    %v5572 = vpack.c.b16 %v3292, %v3284
    %v5573 = vpack.c.b16 %v3293, %v3285
    %v5574 = vpack.c.b16 %v3294, %v3286
    %v5575 = vpack.c.b16 %v3295, %v3287
    %v5576 = vpack.c.b16 %v3296, %v3288
    %v5577 = vpack.c.b16 %v3297, %v3289
    %v5578 = vpack.c.b16 %v3298, %v3290
    %v5579 = vpack.c.b16 %v3307, %v3299
    %v5580 = vpack.c.b16 %v3308, %v3300
    %v5581 = vpack.c.b16 %v3309, %v3301
    %v5582 = vpack.c.b16 %v3310, %v3302
    %v5583 = vpack.c.b16 %v3311, %v3303
    %v5584 = vpack.c.b16 %v3312, %v3304
    %v5585 = vpack.c.b16 %v3313, %v3305
    %v5586 = vpack.c.b16 %v3314, %v3306
    %v5587 = vpack.c.b16 %v3323, %v3315
    %v5588 = vpack.c.b16 %v3324, %v3316
    %v5589 = vpack.c.b16 %v3325, %v3317
    %v5590 = vpack.c.b16 %v3326, %v3318
    %v5591 = vpack.c.b16 %v3327, %v3319
    %v5592 = vpack.c.b16 %v3328, %v3320
    %v5593 = vpack.c.b16 %v3329, %v3321
    %v5594 = vpack.c.b16 %v3330, %v3322
    %v5595 = vpack.c.b16 %v3339, %v3331
    %v5596 = vpack.c.b16 %v3340, %v3332
    %v5597 = vpack.c.b16 %v3341, %v3333
    %v5598 = vpack.c.b16 %v3342, %v3334
    %v5599 = vpack.c.b16 %v3343, %v3335
    %v5600 = vpack.c.b16 %v3344, %v3336
    %v5601 = vpack.c.b16 %v3345, %v3337
    %v5602 = vpack.c.b16 %v3346, %v3338
    %v5603 = vpack.c.b16 %v3355, %v3347
    %v5604 = vpack.c.b16 %v3356, %v3348
    %v5605 = vpack.c.b16 %v3357, %v3349
    %v5606 = vpack.c.b16 %v3358, %v3350
    %v5607 = vpack.c.b16 %v3359, %v3351
    %v5608 = vpack.c.b16 %v3360, %v3352
    %v5609 = vpack.c.b16 %v3361, %v3353
    %v5610 = vpack.c.b16 %v3362, %v3354
    %v5611 = vpack.c.b16 %v3371, %v3363
    %v5612 = vpack.c.b16 %v3372, %v3364
    %v5613 = vpack.c.b16 %v3373, %v3365
    %v5614 = vpack.c.b16 %v3374, %v3366
    %v5615 = vpack.c.b16 %v3375, %v3367
    %v5616 = vpack.c.b16 %v3376, %v3368
    %v5617 = vpack.c.b16 %v3377, %v3369
    %v5618 = vpack.c.b16 %v3378, %v3370
    %v5619 = vpack.c.b16 %v3387, %v3379
    %v5620 = vpack.c.b16 %v3388, %v3380
    %v5621 = vpack.c.b16 %v3389, %v3381
    %v5622 = vpack.c.b16 %v3390, %v3382
    %v5623 = vpack.c.b16 %v3391, %v3383
    %v5624 = vpack.c.b16 %v3392, %v3384
    %v5625 = vpack.c.b16 %v3393, %v3385
    %v5626 = vpack.c.b16 %v3394, %v3386
    %v5627 = vpack.c.b16 %v3403, %v3395
    %v5628 = vpack.c.b16 %v3404, %v3396
    %v5629 = vpack.c.b16 %v3405, %v3397
    %v5630 = vpack.c.b16 %v3406, %v3398
    %v5631 = vpack.c.b16 %v3407, %v3399
    %v5632 = vpack.c.b16 %v3408, %v3400
    %v5633 = vpack.c.b16 %v3409, %v3401
    %v5634 = vpack.c.b16 %v3410, %v3402
    %v5635 = vpack.c.b16 %v3419, %v3411
    %v5636 = vpack.c.b16 %v3420, %v3412
    %v5637 = vpack.c.b16 %v3421, %v3413
    %v5638 = vpack.c.b16 %v3422, %v3414
    %v5639 = vpack.c.b16 %v3423, %v3415
    %v5640 = vpack.c.b16 %v3424, %v3416
    %v5641 = vpack.c.b16 %v3425, %v3417
    %v5642 = vpack.c.b16 %v3426, %v3418
    %v5643 = vpack.c.b16 %v3435, %v3427
    %v5644 = vpack.c.b16 %v3436, %v3428
    %v5645 = vpack.c.b16 %v3437, %v3429
    %v5646 = vpack.c.b16 %v3438, %v3430
    %v5647 = vpack.c.b16 %v3439, %v3431
    %v5648 = vpack.c.b16 %v3440, %v3432
    %v5649 = vpack.c.b16 %v3441, %v3433
    %v5650 = vpack.c.b16 %v3442, %v3434
    %v5651 = vpack.c.b16 %v3451, %v3443
    %v5652 = vpack.c.b16 %v3452, %v3444
    %v5653 = vpack.c.b16 %v3453, %v3445
    %v5654 = vpack.c.b16 %v3454, %v3446
    %v5655 = vpack.c.b16 %v3455, %v3447
    %v5656 = vpack.c.b16 %v3456, %v3448
    %v5657 = vpack.c.b16 %v3457, %v3449
    %v5658 = vpack.c.b16 %v3458, %v3450
    %v5659 = vpack.c.b16 %v3467, %v3459
    %v5660 = vpack.c.b16 %v3468, %v3460
    %v5661 = vpack.c.b16 %v3469, %v3461
    %v5662 = vpack.c.b16 %v3470, %v3462
    %v5663 = vpack.c.b16 %v3471, %v3463
    %v5664 = vpack.c.b16 %v3472, %v3464
    %v5665 = vpack.c.b16 %v3473, %v3465
    %v5666 = vpack.c.b16 %v3474, %v3466
    %v5667 = vpack.c.b16 %v3483, %v3475
    %v5668 = vpack.c.b16 %v3484, %v3476
    %v5669 = vpack.c.b16 %v3485, %v3477
    %v5670 = vpack.c.b16 %v3486, %v3478
    %v5671 = vpack.c.b16 %v3487, %v3479
    %v5672 = vpack.c.b16 %v3488, %v3480
    %v5673 = vpack.c.b16 %v3489, %v3481
    %v5674 = vpack.c.b16 %v3490, %v3482
    %v5675 = vpack.c.b16 %v3499, %v3491
    %v5676 = vpack.c.b16 %v3500, %v3492
    %v5677 = vpack.c.b16 %v3501, %v3493
    %v5678 = vpack.c.b16 %v3502, %v3494
    %v5679 = vpack.c.b16 %v3503, %v3495
    %v5680 = vpack.c.b16 %v3504, %v3496
    %v5681 = vpack.c.b16 %v3505, %v3497
    %v5682 = vpack.c.b16 %v3506, %v3498
    %v5683 = vpack.c.b16 %v3515, %v3507
    %v5684 = vpack.c.b16 %v3516, %v3508
    %v5685 = vpack.c.b16 %v3517, %v3509
    %v5686 = vpack.c.b16 %v3518, %v3510
    %v5687 = vpack.c.b16 %v3519, %v3511
    %v5688 = vpack.c.b16 %v3520, %v3512
    %v5689 = vpack.c.b16 %v3521, %v3513
    %v5690 = vpack.c.b16 %v3522, %v3514
    %v5691 = vpack.c.b16 %v3531, %v3523
    %v5692 = vpack.c.b16 %v3532, %v3524
    %v5693 = vpack.c.b16 %v3533, %v3525
    %v5694 = vpack.c.b16 %v3534, %v3526
    %v5695 = vpack.c.b16 %v3535, %v3527
    %v5696 = vpack.c.b16 %v3536, %v3528
    %v5697 = vpack.c.b16 %v3537, %v3529
    %v5698 = vpack.c.b16 %v3538, %v3530
    %v5699 = vpack.c.b16 %v3547, %v3539
    %v5700 = vpack.c.b16 %v3548, %v3540
    %v5701 = vpack.c.b16 %v3549, %v3541
    %v5702 = vpack.c.b16 %v3550, %v3542
    %v5703 = vpack.c.b16 %v3551, %v3543
    %v5704 = vpack.c.b16 %v3552, %v3544
    %v5705 = vpack.c.b16 %v3553, %v3545
    %v5706 = vpack.c.b16 %v3554, %v3546
    %v5707 = vpack.c.b16 %v3563, %v3555
    %v5708 = vpack.c.b16 %v3564, %v3556
    %v5709 = vpack.c.b16 %v3565, %v3557
    %v5710 = vpack.c.b16 %v3566, %v3558
    %v5711 = vpack.c.b16 %v3567, %v3559
    %v5712 = vpack.c.b16 %v3568, %v3560
    %v5713 = vpack.c.b16 %v3569, %v3561
    %v5714 = vpack.c.b16 %v3570, %v3562
    %v5715 = vpack.c.b16 %v3579, %v3571
    %v5716 = vpack.c.b16 %v3580, %v3572
    %v5717 = vpack.c.b16 %v3581, %v3573
    %v5718 = vpack.c.b16 %v3582, %v3574
    %v5719 = vpack.c.b16 %v3583, %v3575
    %v5720 = vpack.c.b16 %v3584, %v3576
    %v5721 = vpack.c.b16 %v3585, %v3577
    %v5722 = vpack.c.b16 %v3586, %v3578
    %v5723 = vpack.c.b16 %v3595, %v3587
    %v5724 = vpack.c.b16 %v3596, %v3588
    %v5725 = vpack.c.b16 %v3597, %v3589
    %v5726 = vpack.c.b16 %v3598, %v3590
    %v5727 = vpack.c.b16 %v3599, %v3591
    %v5728 = vpack.c.b16 %v3600, %v3592
    %v5729 = vpack.c.b16 %v3601, %v3593
    %v5730 = vpack.c.b16 %v3602, %v3594
    %v5731 = vpack.c.b16 %v3611, %v3603
    %v5732 = vpack.c.b16 %v3612, %v3604
    %v5733 = vpack.c.b16 %v3613, %v3605
    %v5734 = vpack.c.b16 %v3614, %v3606
    %v5735 = vpack.c.b16 %v3615, %v3607
    %v5736 = vpack.c.b16 %v3616, %v3608
    %v5737 = vpack.c.b16 %v3617, %v3609
    %v5738 = vpack.c.b16 %v3618, %v3610
    %v5739 = vpack.c.b16 %v3627, %v3619
    %v5740 = vpack.c.b16 %v3628, %v3620
    %v5741 = vpack.c.b16 %v3629, %v3621
    %v5742 = vpack.c.b16 %v3630, %v3622
    %v5743 = vpack.c.b16 %v3631, %v3623
    %v5744 = vpack.c.b16 %v3632, %v3624
    %v5745 = vpack.c.b16 %v3633, %v3625
    %v5746 = vpack.c.b16 %v3634, %v3626
    %v5747 = vpack.c.b16 %v3643, %v3635
    %v5748 = vpack.c.b16 %v3644, %v3636
    %v5749 = vpack.c.b16 %v3645, %v3637
    %v5750 = vpack.c.b16 %v3646, %v3638
    %v5751 = vpack.c.b16 %v3647, %v3639
    %v5752 = vpack.c.b16 %v3648, %v3640
    %v5753 = vpack.c.b16 %v3649, %v3641
    %v5754 = vpack.c.b16 %v3650, %v3642
    %v5755 = vpack.c.b16 %v3659, %v3651
    %v5756 = vpack.c.b16 %v3660, %v3652
    %v5757 = vpack.c.b16 %v3661, %v3653
    %v5758 = vpack.c.b16 %v3662, %v3654
    %v5759 = vpack.c.b16 %v3663, %v3655
    %v5760 = vpack.c.b16 %v3664, %v3656
    %v5761 = vpack.c.b16 %v3665, %v3657
    %v5762 = vpack.c.b16 %v3666, %v3658
    %v5763 = vpack.c.b16 %v3675, %v3667
    %v5764 = vpack.c.b16 %v3676, %v3668
    %v5765 = vpack.c.b16 %v3677, %v3669
    %v5766 = vpack.c.b16 %v3678, %v3670
    %v5767 = vpack.c.b16 %v3679, %v3671
    %v5768 = vpack.c.b16 %v3680, %v3672
    %v5769 = vpack.c.b16 %v3681, %v3673
    %v5770 = vpack.c.b16 %v3682, %v3674
    %v5771 = vpack.c.b16 %v3691, %v3683
    %v5772 = vpack.c.b16 %v3692, %v3684
    %v5773 = vpack.c.b16 %v3693, %v3685
    %v5774 = vpack.c.b16 %v3694, %v3686
    %v5775 = vpack.c.b16 %v3695, %v3687
    %v5776 = vpack.c.b16 %v3696, %v3688
    %v5777 = vpack.c.b16 %v3697, %v3689
    %v5778 = vpack.c.b16 %v3698, %v3690
    %v5779 = vpack.c.b16 %v3707, %v3699
    %v5780 = vpack.c.b16 %v3708, %v3700
    %v5781 = vpack.c.b16 %v3709, %v3701
    %v5782 = vpack.c.b16 %v3710, %v3702
    %v5783 = vpack.c.b16 %v3711, %v3703
    %v5784 = vpack.c.b16 %v3712, %v3704
    %v5785 = vpack.c.b16 %v3713, %v3705
    %v5786 = vpack.c.b16 %v3714, %v3706
    %v5787 = vpack.c.b16 %v3723, %v3715
    %v5788 = vpack.c.b16 %v3724, %v3716
    %v5789 = vpack.c.b16 %v3725, %v3717
    %v5790 = vpack.c.b16 %v3726, %v3718
    %v5791 = vpack.c.b16 %v3727, %v3719
    %v5792 = vpack.c.b16 %v3728, %v3720
    %v5793 = vpack.c.b16 %v3729, %v3721
    %v5794 = vpack.c.b16 %v3730, %v3722
    %v5795 = vpack.c.b16 %v3739, %v3731
    %v5796 = vpack.c.b16 %v3740, %v3732
    %v5797 = vpack.c.b16 %v3741, %v3733
    %v5798 = vpack.c.b16 %v3742, %v3734
    %v5799 = vpack.c.b16 %v3743, %v3735
    %v5800 = vpack.c.b16 %v3744, %v3736
    %v5801 = vpack.c.b16 %v3745, %v3737
    %v5802 = vpack.c.b16 %v3746, %v3738
    %v5803 = vpack.c.b16 %v3755, %v3747
    %v5804 = vpack.c.b16 %v3756, %v3748
    %v5805 = vpack.c.b16 %v3757, %v3749
    %v5806 = vpack.c.b16 %v3758, %v3750
    %v5807 = vpack.c.b16 %v3759, %v3751
    %v5808 = vpack.c.b16 %v3760, %v3752
    %v5809 = vpack.c.b16 %v3761, %v3753
    %v5810 = vpack.c.b16 %v3762, %v3754
    %v5811 = vpack.c.b16 %v3771, %v3763
    %v5812 = vpack.c.b16 %v3772, %v3764
    %v5813 = vpack.c.b16 %v3773, %v3765
    %v5814 = vpack.c.b16 %v3774, %v3766
    %v5815 = vpack.c.b16 %v3775, %v3767
    %v5816 = vpack.c.b16 %v3776, %v3768
    %v5817 = vpack.c.b16 %v3777, %v3769
    %v5818 = vpack.c.b16 %v3778, %v3770
    %v5819 = vpack.c.b16 %v3787, %v3779
    %v5820 = vpack.c.b16 %v3788, %v3780
    %v5821 = vpack.c.b16 %v3789, %v3781
    %v5822 = vpack.c.b16 %v3790, %v3782
    %v5823 = vpack.c.b16 %v3791, %v3783
    %v5824 = vpack.c.b16 %v3792, %v3784
    %v5825 = vpack.c.b16 %v3793, %v3785
    %v5826 = vpack.c.b16 %v3794, %v3786
    %v5827 = vpack.c.b16 %v3803, %v3795
    %v5828 = vpack.c.b16 %v3804, %v3796
    %v5829 = vpack.c.b16 %v3805, %v3797
    %v5830 = vpack.c.b16 %v3806, %v3798
    %v5831 = vpack.c.b16 %v3807, %v3799
    %v5832 = vpack.c.b16 %v3808, %v3800
    %v5833 = vpack.c.b16 %v3809, %v3801
    %v5834 = vpack.c.b16 %v3810, %v3802
    %v5835 = vpack.c.b16 %v3819, %v3811
    %v5836 = vpack.c.b16 %v3820, %v3812
    %v5837 = vpack.c.b16 %v3821, %v3813
    %v5838 = vpack.c.b16 %v3822, %v3814
    %v5839 = vpack.c.b16 %v3823, %v3815
    %v5840 = vpack.c.b16 %v3824, %v3816
    %v5841 = vpack.c.b16 %v3825, %v3817
    %v5842 = vpack.c.b16 %v3826, %v3818
    %v5843 = vpack.c.b16 %v3835, %v3827
    %v5844 = vpack.c.b16 %v3836, %v3828
    %v5845 = vpack.c.b16 %v3837, %v3829
    %v5846 = vpack.c.b16 %v3838, %v3830
    %v5847 = vpack.c.b16 %v3839, %v3831
    %v5848 = vpack.c.b16 %v3840, %v3832
    %v5849 = vpack.c.b16 %v3841, %v3833
    %v5850 = vpack.c.b16 %v3842, %v3834
    %v5851 = vpack.c.b16 %v3851, %v3843
    %v5852 = vpack.c.b16 %v3852, %v3844
    %v5853 = vpack.c.b16 %v3853, %v3845
    %v5854 = vpack.c.b16 %v3854, %v3846
    %v5855 = vpack.c.b16 %v3855, %v3847
    %v5856 = vpack.c.b16 %v3856, %v3848
    %v5857 = vpack.c.b16 %v3857, %v3849
    %v5858 = vpack.c.b16 %v3858, %v3850
    %v5859 = vpack.c.b16 %v3867, %v3859
    %v5860 = vpack.c.b16 %v3868, %v3860
    %v5861 = vpack.c.b16 %v3869, %v3861
    %v5862 = vpack.c.b16 %v3870, %v3862
    %v5863 = vpack.c.b16 %v3871, %v3863
    %v5864 = vpack.c.b16 %v3872, %v3864
    %v5865 = vpack.c.b16 %v3873, %v3865
    %v5866 = vpack.c.b16 %v3874, %v3866
    %v5867 = vpack.c.b16 %v3883, %v3875
    %v5868 = vpack.c.b16 %v3884, %v3876
    %v5869 = vpack.c.b16 %v3885, %v3877
    %v5870 = vpack.c.b16 %v3886, %v3878
    %v5871 = vpack.c.b16 %v3887, %v3879
    %v5872 = vpack.c.b16 %v3888, %v3880
    %v5873 = vpack.c.b16 %v3889, %v3881
    %v5874 = vpack.c.b16 %v3890, %v3882
    %v5875 = vpack.c.b16 %v3899, %v3891
    %v5876 = vpack.c.b16 %v3900, %v3892
    %v5877 = vpack.c.b16 %v3901, %v3893
    %v5878 = vpack.c.b16 %v3902, %v3894
    %v5879 = vpack.c.b16 %v3903, %v3895
    %v5880 = vpack.c.b16 %v3904, %v3896
    %v5881 = vpack.c.b16 %v3905, %v3897
    %v5882 = vpack.c.b16 %v3906, %v3898
    %v5883 = vpack.c.b16 %v3915, %v3907
    %v5884 = vpack.c.b16 %v3916, %v3908
    %v5885 = vpack.c.b16 %v3917, %v3909
    %v5886 = vpack.c.b16 %v3918, %v3910
    %v5887 = vpack.c.b16 %v3919, %v3911
    %v5888 = vpack.c.b16 %v3920, %v3912
    %v5889 = vpack.c.b16 %v3921, %v3913
    %v5890 = vpack.c.b16 %v3922, %v3914
    %v5891 = vpack.c.b16 %v3931, %v3923
    %v5892 = vpack.c.b16 %v3932, %v3924
    %v5893 = vpack.c.b16 %v3933, %v3925
    %v5894 = vpack.c.b16 %v3934, %v3926
    %v5895 = vpack.c.b16 %v3935, %v3927
    %v5896 = vpack.c.b16 %v3936, %v3928
    %v5897 = vpack.c.b16 %v3937, %v3929
    %v5898 = vpack.c.b16 %v3938, %v3930
    %v5899 = vpack.c.b16 %v3947, %v3939
    %v5900 = vpack.c.b16 %v3948, %v3940
    %v5901 = vpack.c.b16 %v3949, %v3941
    %v5902 = vpack.c.b16 %v3950, %v3942
    %v5903 = vpack.c.b16 %v3951, %v3943
    %v5904 = vpack.c.b16 %v3952, %v3944
    %v5905 = vpack.c.b16 %v3953, %v3945
    %v5906 = vpack.c.b16 %v3954, %v3946
    %v5907 = vpack.c.b16 %v3963, %v3955
    %v5908 = vpack.c.b16 %v3964, %v3956
    %v5909 = vpack.c.b16 %v3965, %v3957
    %v5910 = vpack.c.b16 %v3966, %v3958
    %v5911 = vpack.c.b16 %v3967, %v3959
    %v5912 = vpack.c.b16 %v3968, %v3960
    %v5913 = vpack.c.b16 %v3969, %v3961
    %v5914 = vpack.c.b16 %v3970, %v3962
    %v5915 = vpack.c.b16 %v3979, %v3971
    %v5916 = vpack.c.b16 %v3980, %v3972
    %v5917 = vpack.c.b16 %v3981, %v3973
    %v5918 = vpack.c.b16 %v3982, %v3974
    %v5919 = vpack.c.b16 %v3983, %v3975
    %v5920 = vpack.c.b16 %v3984, %v3976
    %v5921 = vpack.c.b16 %v3985, %v3977
    %v5922 = vpack.c.b16 %v3986, %v3978
    %v5923 = vpack.c.b16 %v3995, %v3987
    %v5924 = vpack.c.b16 %v3996, %v3988
    %v5925 = vpack.c.b16 %v3997, %v3989
    %v5926 = vpack.c.b16 %v3998, %v3990
    %v5927 = vpack.c.b16 %v3999, %v3991
    %v5928 = vpack.c.b16 %v4000, %v3992
    %v5929 = vpack.c.b16 %v4001, %v3993
    %v5930 = vpack.c.b16 %v4002, %v3994
    %v5931 = vpack.c.b16 %v4011, %v4003
    %v5932 = vpack.c.b16 %v4012, %v4004
    %v5933 = vpack.c.b16 %v4013, %v4005
    %v5934 = vpack.c.b16 %v4014, %v4006
    %v5935 = vpack.c.b16 %v4015, %v4007
    %v5936 = vpack.c.b16 %v4016, %v4008
    %v5937 = vpack.c.b16 %v4017, %v4009
    %v5938 = vpack.c.b16 %v4018, %v4010
    %v5939 = vpack.c.b16 %v4027, %v4019
    %v5940 = vpack.c.b16 %v4028, %v4020
    %v5941 = vpack.c.b16 %v4029, %v4021
    %v5942 = vpack.c.b16 %v4030, %v4022
    %v5943 = vpack.c.b16 %v4031, %v4023
    %v5944 = vpack.c.b16 %v4032, %v4024
    %v5945 = vpack.c.b16 %v4033, %v4025
    %v5946 = vpack.c.b16 %v4034, %v4026
    %v5947 = vpack.c.b16 %v4043, %v4035
    %v5948 = vpack.c.b16 %v4044, %v4036
    %v5949 = vpack.c.b16 %v4045, %v4037
    %v5950 = vpack.c.b16 %v4046, %v4038
    %v5951 = vpack.c.b16 %v4047, %v4039
    %v5952 = vpack.c.b16 %v4048, %v4040
    %v5953 = vpack.c.b16 %v4049, %v4041
    %v5954 = vpack.c.b16 %v4050, %v4042
    %v5955 = vpack.c.b16 %v4059, %v4051
    %v5956 = vpack.c.b16 %v4060, %v4052
    %v5957 = vpack.c.b16 %v4061, %v4053
    %v5958 = vpack.c.b16 %v4062, %v4054
    %v5959 = vpack.c.b16 %v4063, %v4055
    %v5960 = vpack.c.b16 %v4064, %v4056
    %v5961 = vpack.c.b16 %v4065, %v4057
    %v5962 = vpack.c.b16 %v4066, %v4058
    %v5963 = vpack.c.b16 %v4075, %v4067
    %v5964 = vpack.c.b16 %v4076, %v4068
    %v5965 = vpack.c.b16 %v4077, %v4069
    %v5966 = vpack.c.b16 %v4078, %v4070
    %v5967 = vpack.c.b16 %v4079, %v4071
    %v5968 = vpack.c.b16 %v4080, %v4072
    %v5969 = vpack.c.b16 %v4081, %v4073
    %v5970 = vpack.c.b16 %v4082, %v4074
    %v5971 = vpack.c.b16 %v4091, %v4083
    %v5972 = vpack.c.b16 %v4092, %v4084
    %v5973 = vpack.c.b16 %v4093, %v4085
    %v5974 = vpack.c.b16 %v4094, %v4086
    %v5975 = vpack.c.b16 %v4095, %v4087
    %v5976 = vpack.c.b16 %v4096, %v4088
    %v5977 = vpack.c.b16 %v4097, %v4089
    %v5978 = vpack.c.b16 %v4098, %v4090
    %v5979 = vpack.c.b16 %v4107, %v4099
    %v5980 = vpack.c.b16 %v4108, %v4100
    %v5981 = vpack.c.b16 %v4109, %v4101
    %v5982 = vpack.c.b16 %v4110, %v4102
    %v5983 = vpack.c.b16 %v4111, %v4103
    %v5984 = vpack.c.b16 %v4112, %v4104
    %v5985 = vpack.c.b16 %v4113, %v4105
    %v5986 = vpack.c.b16 %v4114, %v4106
    %v5987 = vpack.c.b16 %v4123, %v4115
    %v5988 = vpack.c.b16 %v4124, %v4116
    %v5989 = vpack.c.b16 %v4125, %v4117
    %v5990 = vpack.c.b16 %v4126, %v4118
    %v5991 = vpack.c.b16 %v4127, %v4119
    %v5992 = vpack.c.b16 %v4128, %v4120
    %v5993 = vpack.c.b16 %v4129, %v4121
    %v5994 = vpack.c.b16 %v4130, %v4122
    %v5995 = vpack.c.b16 %v4139, %v4131
    %v5996 = vpack.c.b16 %v4140, %v4132
    %v5997 = vpack.c.b16 %v4141, %v4133
    %v5998 = vpack.c.b16 %v4142, %v4134
    %v5999 = vpack.c.b16 %v4143, %v4135
    %v6000 = vpack.c.b16 %v4144, %v4136
    %v6001 = vpack.c.b16 %v4145, %v4137
    %v6002 = vpack.c.b16 %v4146, %v4138
    %v6003 = vpack.c.b16 %v4155, %v4147
    %v6004 = vpack.c.b16 %v4156, %v4148
    %v6005 = vpack.c.b16 %v4157, %v4149
    %v6006 = vpack.c.b16 %v4158, %v4150
    %v6007 = vpack.c.b16 %v4159, %v4151
    %v6008 = vpack.c.b16 %v4160, %v4152
    %v6009 = vpack.c.b16 %v4161, %v4153
    %v6010 = vpack.c.b16 %v4162, %v4154
    %v6011 = vpack.c.b16 %v4171, %v4163
    %v6012 = vpack.c.b16 %v4172, %v4164
    %v6013 = vpack.c.b16 %v4173, %v4165
    %v6014 = vpack.c.b16 %v4174, %v4166
    %v6015 = vpack.c.b16 %v4175, %v4167
    %v6016 = vpack.c.b16 %v4176, %v4168
    %v6017 = vpack.c.b16 %v4177, %v4169
    %v6018 = vpack.c.b16 %v4178, %v4170
    %v6019 = vpack.c.b16 %v4187, %v4179
    %v6020 = vpack.c.b16 %v4188, %v4180
    %v6021 = vpack.c.b16 %v4189, %v4181
    %v6022 = vpack.c.b16 %v4190, %v4182
    %v6023 = vpack.c.b16 %v4191, %v4183
    %v6024 = vpack.c.b16 %v4192, %v4184
    %v6025 = vpack.c.b16 %v4193, %v4185
    %v6026 = vpack.c.b16 %v4194, %v4186
    %v6027 = vpack.c.b16 %v4203, %v4195
    %v6028 = vpack.c.b16 %v4204, %v4196
    %v6029 = vpack.c.b16 %v4205, %v4197
    %v6030 = vpack.c.b16 %v4206, %v4198
    %v6031 = vpack.c.b16 %v4207, %v4199
    %v6032 = vpack.c.b16 %v4208, %v4200
    %v6033 = vpack.c.b16 %v4209, %v4201
    %v6034 = vpack.c.b16 %v4210, %v4202
    %v6035 = vpack.c.b16 %v4219, %v4211
    %v6036 = vpack.c.b16 %v4220, %v4212
    %v6037 = vpack.c.b16 %v4221, %v4213
    %v6038 = vpack.c.b16 %v4222, %v4214
    %v6039 = vpack.c.b16 %v4223, %v4215
    %v6040 = vpack.c.b16 %v4224, %v4216
    %v6041 = vpack.c.b16 %v4225, %v4217
    %v6042 = vpack.c.b16 %v4226, %v4218
    %v6043 = vpack.c.b16 %v4235, %v4227
    %v6044 = vpack.c.b16 %v4236, %v4228
    %v6045 = vpack.c.b16 %v4237, %v4229
    %v6046 = vpack.c.b16 %v4238, %v4230
    %v6047 = vpack.c.b16 %v4239, %v4231
    %v6048 = vpack.c.b16 %v4240, %v4232
    %v6049 = vpack.c.b16 %v4241, %v4233
    %v6050 = vpack.c.b16 %v4242, %v4234
    %v6051 = vpack.c.b16 %v4251, %v4243
    %v6052 = vpack.c.b16 %v4252, %v4244
    %v6053 = vpack.c.b16 %v4253, %v4245
    %v6054 = vpack.c.b16 %v4254, %v4246
    %v6055 = vpack.c.b16 %v4255, %v4247
    %v6056 = vpack.c.b16 %v4256, %v4248
    %v6057 = vpack.c.b16 %v4257, %v4249
    %v6058 = vpack.c.b16 %v4258, %v4250
    %v6059 = vpack.c.b16 %v4267, %v4259
    %v6060 = vpack.c.b16 %v4268, %v4260
    %v6061 = vpack.c.b16 %v4269, %v4261
    %v6062 = vpack.c.b16 %v4270, %v4262
    %v6063 = vpack.c.b16 %v4271, %v4263
    %v6064 = vpack.c.b16 %v4272, %v4264
    %v6065 = vpack.c.b16 %v4273, %v4265
    %v6066 = vpack.c.b16 %v4274, %v4266
    %v6067 = vpack.c.b16 %v4283, %v4275
    %v6068 = vpack.c.b16 %v4284, %v4276
    %v6069 = vpack.c.b16 %v4285, %v4277
    %v6070 = vpack.c.b16 %v4286, %v4278
    %v6071 = vpack.c.b16 %v4287, %v4279
    %v6072 = vpack.c.b16 %v4288, %v4280
    %v6073 = vpack.c.b16 %v4289, %v4281
    %v6074 = vpack.c.b16 %v4290, %v4282
    %v6075 = vpack.c.b16 %v4299, %v4291
    %v6076 = vpack.c.b16 %v4300, %v4292
    %v6077 = vpack.c.b16 %v4301, %v4293
    %v6078 = vpack.c.b16 %v4302, %v4294
    %v6079 = vpack.c.b16 %v4303, %v4295
    %v6080 = vpack.c.b16 %v4304, %v4296
    %v6081 = vpack.c.b16 %v4305, %v4297
    %v6082 = vpack.c.b16 %v4306, %v4298
    %v6083 = vpack.c.b16 %v4315, %v4307
    %v6084 = vpack.c.b16 %v4316, %v4308
    %v6085 = vpack.c.b16 %v4317, %v4309
    %v6086 = vpack.c.b16 %v4318, %v4310
    %v6087 = vpack.c.b16 %v4319, %v4311
    %v6088 = vpack.c.b16 %v4320, %v4312
    %v6089 = vpack.c.b16 %v4321, %v4313
    %v6090 = vpack.c.b16 %v4322, %v4314
    %v6091 = vpack.c.b16 %v4331, %v4323
    %v6092 = vpack.c.b16 %v4332, %v4324
    %v6093 = vpack.c.b16 %v4333, %v4325
    %v6094 = vpack.c.b16 %v4334, %v4326
    %v6095 = vpack.c.b16 %v4335, %v4327
    %v6096 = vpack.c.b16 %v4336, %v4328
    %v6097 = vpack.c.b16 %v4337, %v4329
    %v6098 = vpack.c.b16 %v4338, %v4330
    %v6099 = vpack.c.b16 %v4347, %v4339
    %v6100 = vpack.c.b16 %v4348, %v4340
    %v6101 = vpack.c.b16 %v4349, %v4341
    %v6102 = vpack.c.b16 %v4350, %v4342
    %v6103 = vpack.c.b16 %v4351, %v4343
    %v6104 = vpack.c.b16 %v4352, %v4344
    %v6105 = vpack.c.b16 %v4353, %v4345
    %v6106 = vpack.c.b16 %v4354, %v4346
    %v6107 = vpack.c.b16 %v4363, %v4355
    %v6108 = vpack.c.b16 %v4364, %v4356
    %v6109 = vpack.c.b16 %v4365, %v4357
    %v6110 = vpack.c.b16 %v4366, %v4358
    %v6111 = vpack.c.b16 %v4367, %v4359
    %v6112 = vpack.c.b16 %v4368, %v4360
    %v6113 = vpack.c.b16 %v4369, %v4361
    %v6114 = vpack.c.b16 %v4370, %v4362
    %v6115 = vpack.c.b16 %v4379, %v4371
    %v6116 = vpack.c.b16 %v4380, %v4372
    %v6117 = vpack.c.b16 %v4381, %v4373
    %v6118 = vpack.c.b16 %v4382, %v4374
    %v6119 = vpack.c.b16 %v4383, %v4375
    %v6120 = vpack.c.b16 %v4384, %v4376
    %v6121 = vpack.c.b16 %v4385, %v4377
    %v6122 = vpack.c.b16 %v4386, %v4378
    %v6123 = vpack.c.b16 %v4395, %v4387
    %v6124 = vpack.c.b16 %v4396, %v4388
    %v6125 = vpack.c.b16 %v4397, %v4389
    %v6126 = vpack.c.b16 %v4398, %v4390
    %v6127 = vpack.c.b16 %v4399, %v4391
    %v6128 = vpack.c.b16 %v4400, %v4392
    %v6129 = vpack.c.b16 %v4401, %v4393
    %v6130 = vpack.c.b16 %v4402, %v4394
    %v6131 = vpack.c.b16 %v4411, %v4403
    %v6132 = vpack.c.b16 %v4412, %v4404
    %v6133 = vpack.c.b16 %v4413, %v4405
    %v6134 = vpack.c.b16 %v4414, %v4406
    %v6135 = vpack.c.b16 %v4415, %v4407
    %v6136 = vpack.c.b16 %v4416, %v4408
    %v6137 = vpack.c.b16 %v4417, %v4409
    %v6138 = vpack.c.b16 %v4418, %v4410
    %v6139 = vpack.c.b16 %v4427, %v4419
    %v6140 = vpack.c.b16 %v4428, %v4420
    %v6141 = vpack.c.b16 %v4429, %v4421
    %v6142 = vpack.c.b16 %v4430, %v4422
    %v6143 = vpack.c.b16 %v4431, %v4423
    %v6144 = vpack.c.b16 %v4432, %v4424
    %v6145 = vpack.c.b16 %v4433, %v4425
    %v6146 = vpack.c.b16 %v4434, %v4426
    %v6147 = vpack.c.b16 %v4443, %v4435
    %v6148 = vpack.c.b16 %v4444, %v4436
    %v6149 = vpack.c.b16 %v4445, %v4437
    %v6150 = vpack.c.b16 %v4446, %v4438
    %v6151 = vpack.c.b16 %v4447, %v4439
    %v6152 = vpack.c.b16 %v4448, %v4440
    %v6153 = vpack.c.b16 %v4449, %v4441
    %v6154 = vpack.c.b16 %v4450, %v4442
    %v6155 = vpack.c.b16 %v4459, %v4451
    %v6156 = vpack.c.b16 %v4460, %v4452
    %v6157 = vpack.c.b16 %v4461, %v4453
    %v6158 = vpack.c.b16 %v4462, %v4454
    %v6159 = vpack.c.b16 %v4463, %v4455
    %v6160 = vpack.c.b16 %v4464, %v4456
    %v6161 = vpack.c.b16 %v4465, %v4457
    %v6162 = vpack.c.b16 %v4466, %v4458
    %v6163 = vpack.c.b16 %v4475, %v4467
    %v6164 = vpack.c.b16 %v4476, %v4468
    %v6165 = vpack.c.b16 %v4477, %v4469
    %v6166 = vpack.c.b16 %v4478, %v4470
    %v6167 = vpack.c.b16 %v4479, %v4471
    %v6168 = vpack.c.b16 %v4480, %v4472
    %v6169 = vpack.c.b16 %v4481, %v4473
    %v6170 = vpack.c.b16 %v4482, %v4474
    %v6171 = vpack.c.b16 %v4491, %v4483
    %v6172 = vpack.c.b16 %v4492, %v4484
    %v6173 = vpack.c.b16 %v4493, %v4485
    %v6174 = vpack.c.b16 %v4494, %v4486
    %v6175 = vpack.c.b16 %v4495, %v4487
    %v6176 = vpack.c.b16 %v4496, %v4488
    %v6177 = vpack.c.b16 %v4497, %v4489
    %v6178 = vpack.c.b16 %v4498, %v4490
    %v6179 = vpack.c.b16 %v4507, %v4499
    %v6180 = vpack.c.b16 %v4508, %v4500
    %v6181 = vpack.c.b16 %v4509, %v4501
    %v6182 = vpack.c.b16 %v4510, %v4502
    %v6183 = vpack.c.b16 %v4511, %v4503
    %v6184 = vpack.c.b16 %v4512, %v4504
    %v6185 = vpack.c.b16 %v4513, %v4505
    %v6186 = vpack.c.b16 %v4514, %v4506
    %v6187 = vpack.c.b16 %v4523, %v4515
    %v6188 = vpack.c.b16 %v4524, %v4516
    %v6189 = vpack.c.b16 %v4525, %v4517
    %v6190 = vpack.c.b16 %v4526, %v4518
    %v6191 = vpack.c.b16 %v4527, %v4519
    %v6192 = vpack.c.b16 %v4528, %v4520
    %v6193 = vpack.c.b16 %v4529, %v4521
    %v6194 = vpack.c.b16 %v4530, %v4522
    %v6195 = vpack.c.b16 %v4539, %v4531
    %v6196 = vpack.c.b16 %v4540, %v4532
    %v6197 = vpack.c.b16 %v4541, %v4533
    %v6198 = vpack.c.b16 %v4542, %v4534
    %v6199 = vpack.c.b16 %v4543, %v4535
    %v6200 = vpack.c.b16 %v4544, %v4536
    %v6201 = vpack.c.b16 %v4545, %v4537
    %v6202 = vpack.c.b16 %v4546, %v4538
    %v6203 = vpack.c.b16 %v4555, %v4547
    %v6204 = vpack.c.b16 %v4556, %v4548
    %v6205 = vpack.c.b16 %v4557, %v4549
    %v6206 = vpack.c.b16 %v4558, %v4550
    %v6207 = vpack.c.b16 %v4559, %v4551
    %v6208 = vpack.c.b16 %v4560, %v4552
    %v6209 = vpack.c.b16 %v4561, %v4553
    %v6210 = vpack.c.b16 %v4562, %v4554
    %v6211 = vpack.c.b16 %v4571, %v4563
    %v6212 = vpack.c.b16 %v4572, %v4564
    %v6213 = vpack.c.b16 %v4573, %v4565
    %v6214 = vpack.c.b16 %v4574, %v4566
    %v6215 = vpack.c.b16 %v4575, %v4567
    %v6216 = vpack.c.b16 %v4576, %v4568
    %v6217 = vpack.c.b16 %v4577, %v4569
    %v6218 = vpack.c.b16 %v4578, %v4570
    %v6219 = vpack.c.b16 %v4587, %v4579
    %v6220 = vpack.c.b16 %v4588, %v4580
    %v6221 = vpack.c.b16 %v4589, %v4581
    %v6222 = vpack.c.b16 %v4590, %v4582
    %v6223 = vpack.c.b16 %v4591, %v4583
    %v6224 = vpack.c.b16 %v4592, %v4584
    %v6225 = vpack.c.b16 %v4593, %v4585
    %v6226 = vpack.c.b16 %v4594, %v4586
    %v6227 = vpack.c.b16 %v4603, %v4595
    %v6228 = vpack.c.b16 %v4604, %v4596
    %v6229 = vpack.c.b16 %v4605, %v4597
    %v6230 = vpack.c.b16 %v4606, %v4598
    %v6231 = vpack.c.b16 %v4607, %v4599
    %v6232 = vpack.c.b16 %v4608, %v4600
    %v6233 = vpack.c.b16 %v4609, %v4601
    %v6234 = vpack.c.b16 %v4610, %v4602
    %v6235 = vpack.c.b16 %v4619, %v4611
    %v6236 = vpack.c.b16 %v4620, %v4612
    %v6237 = vpack.c.b16 %v4621, %v4613
    %v6238 = vpack.c.b16 %v4622, %v4614
    %v6239 = vpack.c.b16 %v4623, %v4615
    %v6240 = vpack.c.b16 %v4624, %v4616
    %v6241 = vpack.c.b16 %v4625, %v4617
    %v6242 = vpack.c.b16 %v4626, %v4618
    %v6243 = vpack.c.b16 %v4635, %v4627
    %v6244 = vpack.c.b16 %v4636, %v4628
    %v6245 = vpack.c.b16 %v4637, %v4629
    %v6246 = vpack.c.b16 %v4638, %v4630
    %v6247 = vpack.c.b16 %v4639, %v4631
    %v6248 = vpack.c.b16 %v4640, %v4632
    %v6249 = vpack.c.b16 %v4641, %v4633
    %v6250 = vpack.c.b16 %v4642, %v4634
    %v6251 = vpack.c.b16 %v4651, %v4643
    %v6252 = vpack.c.b16 %v4652, %v4644
    %v6253 = vpack.c.b16 %v4653, %v4645
    %v6254 = vpack.c.b16 %v4654, %v4646
    %v6255 = vpack.c.b16 %v4655, %v4647
    %v6256 = vpack.c.b16 %v4656, %v4648
    %v6257 = vpack.c.b16 %v4657, %v4649
    %v6258 = vpack.c.b16 %v4658, %v4650
    %v6259 = vpack.c.b16 %v4667, %v4659
    %v6260 = vpack.c.b16 %v4668, %v4660
    %v6261 = vpack.c.b16 %v4669, %v4661
    %v6262 = vpack.c.b16 %v4670, %v4662
    %v6263 = vpack.c.b16 %v4671, %v4663
    %v6264 = vpack.c.b16 %v4672, %v4664
    %v6265 = vpack.c.b16 %v4673, %v4665
    %v6266 = vpack.c.b16 %v4674, %v4666
    %v6267 = vpack.c.b16 %v4683, %v4675
    %v6268 = vpack.c.b16 %v4684, %v4676
    %v6269 = vpack.c.b16 %v4685, %v4677
    %v6270 = vpack.c.b16 %v4686, %v4678
    %v6271 = vpack.c.b16 %v4687, %v4679
    %v6272 = vpack.c.b16 %v4688, %v4680
    %v6273 = vpack.c.b16 %v4689, %v4681
    %v6274 = vpack.c.b16 %v4690, %v4682
    %v6275 = vpack.c.b16 %v4699, %v4691
    %v6276 = vpack.c.b16 %v4700, %v4692
    %v6277 = vpack.c.b16 %v4701, %v4693
    %v6278 = vpack.c.b16 %v4702, %v4694
    %v6279 = vpack.c.b16 %v4703, %v4695
    %v6280 = vpack.c.b16 %v4704, %v4696
    %v6281 = vpack.c.b16 %v4705, %v4697
    %v6282 = vpack.c.b16 %v4706, %v4698
    %v6283 = vpack.c.b16 %v4715, %v4707
    %v6284 = vpack.c.b16 %v4716, %v4708
    %v6285 = vpack.c.b16 %v4717, %v4709
    %v6286 = vpack.c.b16 %v4718, %v4710
    %v6287 = vpack.c.b16 %v4719, %v4711
    %v6288 = vpack.c.b16 %v4720, %v4712
    %v6289 = vpack.c.b16 %v4721, %v4713
    %v6290 = vpack.c.b16 %v4722, %v4714
    %v6291 = vpack.c.b16 %v4731, %v4723
    %v6292 = vpack.c.b16 %v4732, %v4724
    %v6293 = vpack.c.b16 %v4733, %v4725
    %v6294 = vpack.c.b16 %v4734, %v4726
    %v6295 = vpack.c.b16 %v4735, %v4727
    %v6296 = vpack.c.b16 %v4736, %v4728
    %v6297 = vpack.c.b16 %v4737, %v4729
    %v6298 = vpack.c.b16 %v4738, %v4730
    %v6299 = vpack.c.b16 %v4747, %v4739
    %v6300 = vpack.c.b16 %v4748, %v4740
    %v6301 = vpack.c.b16 %v4749, %v4741
    %v6302 = vpack.c.b16 %v4750, %v4742
    %v6303 = vpack.c.b16 %v4751, %v4743
    %v6304 = vpack.c.b16 %v4752, %v4744
    %v6305 = vpack.c.b16 %v4753, %v4745
    %v6306 = vpack.c.b16 %v4754, %v4746
    %v6307 = vpack.c.b16 %v4763, %v4755
    %v6308 = vpack.c.b16 %v4764, %v4756
    %v6309 = vpack.c.b16 %v4765, %v4757
    %v6310 = vpack.c.b16 %v4766, %v4758
    %v6311 = vpack.c.b16 %v4767, %v4759
    %v6312 = vpack.c.b16 %v4768, %v4760
    %v6313 = vpack.c.b16 %v4769, %v4761
    %v6314 = vpack.c.b16 %v4770, %v4762
    %v6315 = vpack.c.b16 %v4779, %v4771
    %v6316 = vpack.c.b16 %v4780, %v4772
    %v6317 = vpack.c.b16 %v4781, %v4773
    %v6318 = vpack.c.b16 %v4782, %v4774
    %v6319 = vpack.c.b16 %v4783, %v4775
    %v6320 = vpack.c.b16 %v4784, %v4776
    %v6321 = vpack.c.b16 %v4785, %v4777
    %v6322 = vpack.c.b16 %v4786, %v4778
    %v6323 = vpack.c.b16 %v4795, %v4787
    %v6324 = vpack.c.b16 %v4796, %v4788
    %v6325 = vpack.c.b16 %v4797, %v4789
    %v6326 = vpack.c.b16 %v4798, %v4790
    %v6327 = vpack.c.b16 %v4799, %v4791
    %v6328 = vpack.c.b16 %v4800, %v4792
    %v6329 = vpack.c.b16 %v4801, %v4793
    %v6330 = vpack.c.b16 %v4802, %v4794
    %v6331 = vpack.c.b16 %v4811, %v4803
    %v6332 = vpack.c.b16 %v4812, %v4804
    %v6333 = vpack.c.b16 %v4813, %v4805
    %v6334 = vpack.c.b16 %v4814, %v4806
    %v6335 = vpack.c.b16 %v4815, %v4807
    %v6336 = vpack.c.b16 %v4816, %v4808
    %v6337 = vpack.c.b16 %v4817, %v4809
    %v6338 = vpack.c.b16 %v4818, %v4810
    %v6339 = vpack.c.b16 %v4827, %v4819
    %v6340 = vpack.c.b16 %v4828, %v4820
    %v6341 = vpack.c.b16 %v4829, %v4821
    %v6342 = vpack.c.b16 %v4830, %v4822
    %v6343 = vpack.c.b16 %v4831, %v4823
    %v6344 = vpack.c.b16 %v4832, %v4824
    %v6345 = vpack.c.b16 %v4833, %v4825
    %v6346 = vpack.c.b16 %v4834, %v4826
    %v6347 = vpack.c.b16 %v4843, %v4835
    %v6348 = vpack.c.b16 %v4844, %v4836
    %v6349 = vpack.c.b16 %v4845, %v4837
    %v6350 = vpack.c.b16 %v4846, %v4838
    %v6351 = vpack.c.b16 %v4847, %v4839
    %v6352 = vpack.c.b16 %v4848, %v4840
    %v6353 = vpack.c.b16 %v4849, %v4841
    %v6354 = vpack.c.b16 %v4850, %v4842
    %v6355 = vpack.c.b16 %v4859, %v4851
    %v6356 = vpack.c.b16 %v4860, %v4852
    %v6357 = vpack.c.b16 %v4861, %v4853
    %v6358 = vpack.c.b16 %v4862, %v4854
    %v6359 = vpack.c.b16 %v4863, %v4855
    %v6360 = vpack.c.b16 %v4864, %v4856
    %v6361 = vpack.c.b16 %v4865, %v4857
    %v6362 = vpack.c.b16 %v4866, %v4858
    %v6363 = vpack.c.b16 %v4875, %v4867
    %v6364 = vpack.c.b16 %v4876, %v4868
    %v6365 = vpack.c.b16 %v4877, %v4869
    %v6366 = vpack.c.b16 %v4878, %v4870
    %v6367 = vpack.c.b16 %v4879, %v4871
    %v6368 = vpack.c.b16 %v4880, %v4872
    %v6369 = vpack.c.b16 %v4881, %v4873
    %v6370 = vpack.c.b16 %v4882, %v4874
    %v6371 = vpack.c.b16 %v4891, %v4883
    %v6372 = vpack.c.b16 %v4892, %v4884
    %v6373 = vpack.c.b16 %v4893, %v4885
    %v6374 = vpack.c.b16 %v4894, %v4886
    %v6375 = vpack.c.b16 %v4895, %v4887
    %v6376 = vpack.c.b16 %v4896, %v4888
    %v6377 = vpack.c.b16 %v4897, %v4889
    %v6378 = vpack.c.b16 %v4898, %v4890
    %v6379 = vpack.c.b16 %v4907, %v4899
    %v6380 = vpack.c.b16 %v4908, %v4900
    %v6381 = vpack.c.b16 %v4909, %v4901
    %v6382 = vpack.c.b16 %v4910, %v4902
    %v6383 = vpack.c.b16 %v4911, %v4903
    %v6384 = vpack.c.b16 %v4912, %v4904
    %v6385 = vpack.c.b16 %v4913, %v4905
    %v6386 = vpack.c.b16 %v4914, %v4906
    %v6387 = vpack.c.b16 %v4923, %v4915
    %v6388 = vpack.c.b16 %v4924, %v4916
    %v6389 = vpack.c.b16 %v4925, %v4917
    %v6390 = vpack.c.b16 %v4926, %v4918
    %v6391 = vpack.c.b16 %v4927, %v4919
    %v6392 = vpack.c.b16 %v4928, %v4920
    %v6393 = vpack.c.b16 %v4929, %v4921
    %v6394 = vpack.c.b16 %v4930, %v4922
    %v6395 = vpack.c.b16 %v4939, %v4931
    %v6396 = vpack.c.b16 %v4940, %v4932
    %v6397 = vpack.c.b16 %v4941, %v4933
    %v6398 = vpack.c.b16 %v4942, %v4934
    %v6399 = vpack.c.b16 %v4943, %v4935
    %v6400 = vpack.c.b16 %v4944, %v4936
    %v6401 = vpack.c.b16 %v4945, %v4937
    %v6402 = vpack.c.b16 %v4946, %v4938
    %v6403 = vpack.c.b16 %v4955, %v4947
    %v6404 = vpack.c.b16 %v4956, %v4948
    %v6405 = vpack.c.b16 %v4957, %v4949
    %v6406 = vpack.c.b16 %v4958, %v4950
    %v6407 = vpack.c.b16 %v4959, %v4951
    %v6408 = vpack.c.b16 %v4960, %v4952
    %v6409 = vpack.c.b16 %v4961, %v4953
    %v6410 = vpack.c.b16 %v4962, %v4954
    %v6411 = vpack.c.b16 %v4971, %v4963
    %v6412 = vpack.c.b16 %v4972, %v4964
    %v6413 = vpack.c.b16 %v4973, %v4965
    %v6414 = vpack.c.b16 %v4974, %v4966
    %v6415 = vpack.c.b16 %v4975, %v4967
    %v6416 = vpack.c.b16 %v4976, %v4968
    %v6417 = vpack.c.b16 %v4977, %v4969
    %v6418 = vpack.c.b16 %v4978, %v4970
    %v6419 = vpack.c.b16 %v4987, %v4979
    %v6420 = vpack.c.b16 %v4988, %v4980
    %v6421 = vpack.c.b16 %v4989, %v4981
    %v6422 = vpack.c.b16 %v4990, %v4982
    %v6423 = vpack.c.b16 %v4991, %v4983
    %v6424 = vpack.c.b16 %v4992, %v4984
    %v6425 = vpack.c.b16 %v4993, %v4985
    %v6426 = vpack.c.b16 %v4994, %v4986
    %v6427 = vpack.c.b16 %v5003, %v4995
    %v6428 = vpack.c.b16 %v5004, %v4996
    %v6429 = vpack.c.b16 %v5005, %v4997
    %v6430 = vpack.c.b16 %v5006, %v4998
    %v6431 = vpack.c.b16 %v5007, %v4999
    %v6432 = vpack.c.b16 %v5008, %v5000
    %v6433 = vpack.c.b16 %v5009, %v5001
    %v6434 = vpack.c.b16 %v5010, %v5002
    %v6435 = vpack.c.b16 %v5019, %v5011
    %v6436 = vpack.c.b16 %v5020, %v5012
    %v6437 = vpack.c.b16 %v5021, %v5013
    %v6438 = vpack.c.b16 %v5022, %v5014
    %v6439 = vpack.c.b16 %v5023, %v5015
    %v6440 = vpack.c.b16 %v5024, %v5016
    %v6441 = vpack.c.b16 %v5025, %v5017
    %v6442 = vpack.c.b16 %v5026, %v5018
    %v6443 = vpack.c.b16 %v5035, %v5027
    %v6444 = vpack.c.b16 %v5036, %v5028
    %v6445 = vpack.c.b16 %v5037, %v5029
    %v6446 = vpack.c.b16 %v5038, %v5030
    %v6447 = vpack.c.b16 %v5039, %v5031
    %v6448 = vpack.c.b16 %v5040, %v5032
    %v6449 = vpack.c.b16 %v5041, %v5033
    %v6450 = vpack.c.b16 %v5042, %v5034
    %v6451 = vpack.c.b16 %v5051, %v5043
    %v6452 = vpack.c.b16 %v5052, %v5044
    %v6453 = vpack.c.b16 %v5053, %v5045
    %v6454 = vpack.c.b16 %v5054, %v5046
    %v6455 = vpack.c.b16 %v5055, %v5047
    %v6456 = vpack.c.b16 %v5056, %v5048
    %v6457 = vpack.c.b16 %v5057, %v5049
    %v6458 = vpack.c.b16 %v5058, %v5050
    %v6459 = vpack.c.b16 %v5067, %v5059
    %v6460 = vpack.c.b16 %v5068, %v5060
    %v6461 = vpack.c.b16 %v5069, %v5061
    %v6462 = vpack.c.b16 %v5070, %v5062
    %v6463 = vpack.c.b16 %v5071, %v5063
    %v6464 = vpack.c.b16 %v5072, %v5064
    %v6465 = vpack.c.b16 %v5073, %v5065
    %v6466 = vpack.c.b16 %v5074, %v5066
    %v6467 = vpack.c.b16 %v5083, %v5075
    %v6468 = vpack.c.b16 %v5084, %v5076
    %v6469 = vpack.c.b16 %v5085, %v5077
    %v6470 = vpack.c.b16 %v5086, %v5078
    %v6471 = vpack.c.b16 %v5087, %v5079
    %v6472 = vpack.c.b16 %v5088, %v5080
    %v6473 = vpack.c.b16 %v5089, %v5081
    %v6474 = vpack.c.b16 %v5090, %v5082
    %v6475 = vpack.c.b16 %v5099, %v5091
    %v6476 = vpack.c.b16 %v5100, %v5092
    %v6477 = vpack.c.b16 %v5101, %v5093
    %v6478 = vpack.c.b16 %v5102, %v5094
    %v6479 = vpack.c.b16 %v5103, %v5095
    %v6480 = vpack.c.b16 %v5104, %v5096
    %v6481 = vpack.c.b16 %v5105, %v5097
    %v6482 = vpack.c.b16 %v5106, %v5098
    %v6483 = vpack.c.b16 %v5115, %v5107
    %v6484 = vpack.c.b16 %v5116, %v5108
    %v6485 = vpack.c.b16 %v5117, %v5109
    %v6486 = vpack.c.b16 %v5118, %v5110
    %v6487 = vpack.c.b16 %v5119, %v5111
    %v6488 = vpack.c.b16 %v5120, %v5112
    %v6489 = vpack.c.b16 %v5121, %v5113
    %v6490 = vpack.c.b16 %v5122, %v5114
    %v6491 = vpack.c.b16 %v5131, %v5123
    %v6492 = vpack.c.b16 %v5132, %v5124
    %v6493 = vpack.c.b16 %v5133, %v5125
    %v6494 = vpack.c.b16 %v5134, %v5126
    %v6495 = vpack.c.b16 %v5135, %v5127
    %v6496 = vpack.c.b16 %v5136, %v5128
    %v6497 = vpack.c.b16 %v5137, %v5129
    %v6498 = vpack.c.b16 %v5138, %v5130
    %v6499 = vpack.c.b16 %v5147, %v5139
    %v6500 = vpack.c.b16 %v5148, %v5140
    %v6501 = vpack.c.b16 %v5149, %v5141
    %v6502 = vpack.c.b16 %v5150, %v5142
    %v6503 = vpack.c.b16 %v5151, %v5143
    %v6504 = vpack.c.b16 %v5152, %v5144
    %v6505 = vpack.c.b16 %v5153, %v5145
    %v6506 = vpack.c.b16 %v5154, %v5146
    %v6507 = vpack.c.b16 %v5163, %v5155
    %v6508 = vpack.c.b16 %v5164, %v5156
    %v6509 = vpack.c.b16 %v5165, %v5157
    %v6510 = vpack.c.b16 %v5166, %v5158
    %v6511 = vpack.c.b16 %v5167, %v5159
    %v6512 = vpack.c.b16 %v5168, %v5160
    %v6513 = vpack.c.b16 %v5169, %v5161
    %v6514 = vpack.c.b16 %v5170, %v5162
    %v6515 = vpack.c.b16 %v5179, %v5171
    %v6516 = vpack.c.b16 %v5180, %v5172
    %v6517 = vpack.c.b16 %v5181, %v5173
    %v6518 = vpack.c.b16 %v5182, %v5174
    %v6519 = vpack.c.b16 %v5183, %v5175
    %v6520 = vpack.c.b16 %v5184, %v5176
    %v6521 = vpack.c.b16 %v5185, %v5177
    %v6522 = vpack.c.b16 %v5186, %v5178
    %v6523 = vpack.c.b16 %v5195, %v5187
    %v6524 = vpack.c.b16 %v5196, %v5188
    %v6525 = vpack.c.b16 %v5197, %v5189
    %v6526 = vpack.c.b16 %v5198, %v5190
    %v6527 = vpack.c.b16 %v5199, %v5191
    %v6528 = vpack.c.b16 %v5200, %v5192
    %v6529 = vpack.c.b16 %v5201, %v5193
    %v6530 = vpack.c.b16 %v5202, %v5194
    %v6531 = vpack.c.b16 %v5211, %v5203
    %v6532 = vpack.c.b16 %v5212, %v5204
    %v6533 = vpack.c.b16 %v5213, %v5205
    %v6534 = vpack.c.b16 %v5214, %v5206
    %v6535 = vpack.c.b16 %v5215, %v5207
    %v6536 = vpack.c.b16 %v5216, %v5208
    %v6537 = vpack.c.b16 %v5217, %v5209
    %v6538 = vpack.c.b16 %v5218, %v5210
    %v6539 = vpack.c.b16 %v5227, %v5219
    %v6540 = vpack.c.b16 %v5228, %v5220
    %v6541 = vpack.c.b16 %v5229, %v5221
    %v6542 = vpack.c.b16 %v5230, %v5222
    %v6543 = vpack.c.b16 %v5231, %v5223
    %v6544 = vpack.c.b16 %v5232, %v5224
    %v6545 = vpack.c.b16 %v5233, %v5225
    %v6546 = vpack.c.b16 %v5234, %v5226
    %v6547 = vpack.c.b16 %v5243, %v5235
    %v6548 = vpack.c.b16 %v5244, %v5236
    %v6549 = vpack.c.b16 %v5245, %v5237
    %v6550 = vpack.c.b16 %v5246, %v5238
    %v6551 = vpack.c.b16 %v5247, %v5239
    %v6552 = vpack.c.b16 %v5248, %v5240
    %v6553 = vpack.c.b16 %v5249, %v5241
    %v6554 = vpack.c.b16 %v5250, %v5242
    %v6555 = vpack.c.b16 %v5259, %v5251
    %v6556 = vpack.c.b16 %v5260, %v5252
    %v6557 = vpack.c.b16 %v5261, %v5253
    %v6558 = vpack.c.b16 %v5262, %v5254
    %v6559 = vpack.c.b16 %v5263, %v5255
    %v6560 = vpack.c.b16 %v5264, %v5256
    %v6561 = vpack.c.b16 %v5265, %v5257
    %v6562 = vpack.c.b16 %v5266, %v5258
    %v6563 = vpack.c.b16 %v5275, %v5267
    %v6564 = vpack.c.b16 %v5276, %v5268
    %v6565 = vpack.c.b16 %v5277, %v5269
    %v6566 = vpack.c.b16 %v5278, %v5270
    %v6567 = vpack.c.b16 %v5279, %v5271
    %v6568 = vpack.c.b16 %v5280, %v5272
    %v6569 = vpack.c.b16 %v5281, %v5273
    %v6570 = vpack.c.b16 %v5282, %v5274
    %v6571 = vpack.c.b16 %v5291, %v5283
    %v6572 = vpack.c.b16 %v5292, %v5284
    %v6573 = vpack.c.b16 %v5293, %v5285
    %v6574 = vpack.c.b16 %v5294, %v5286
    %v6575 = vpack.c.b16 %v5295, %v5287
    %v6576 = vpack.c.b16 %v5296, %v5288
    %v6577 = vpack.c.b16 %v5297, %v5289
    %v6578 = vpack.c.b16 %v5298, %v5290
    %v7860 = vlaneseq
    %v7861 = vshrl.u32 %v7860, 7
    %v7862 = vsub.s32 0, %v7861
    %v7863 = vrot.slane %v1458, %v7862
    %v7864 = vlaneseq
    %v7865 = vshrl.u32 %v7864, 7
    %v7866 = vsub.s32 1, %v7865
    %v7867 = vrot.slane %v1458, %v7866
    %v7868 = vlaneseq
    %v7869 = vshrl.u32 %v7868, 7
    %v7870 = vsub.s32 2, %v7869
    %v7871 = vrot.slane %v1458, %v7870
    %v7872 = vlaneseq
    %v7873 = vshrl.u32 %v7872, 7
    %v7874 = vsub.s32 3, %v7873
    %v7875 = vrot.slane %v1458, %v7874
    %v7876 = vlaneseq
    %v7877 = vshrl.u32 %v7876, 7
    %v7878 = vsub.s32 4, %v7877
    %v7879 = vrot.slane %v1458, %v7878
    %v7880 = vlaneseq
    %v7881 = vshrl.u32 %v7880, 7
    %v7882 = vsub.s32 5, %v7881
    %v7883 = vrot.slane %v1458, %v7882
    %v7884 = vlaneseq
    %v7885 = vshrl.u32 %v7884, 7
    %v7886 = vsub.s32 6, %v7885
    %v7887 = vrot.slane %v1458, %v7886
    %v7888 = vlaneseq
    %v7889 = vshrl.u32 %v7888, 7
    %v7890 = vsub.s32 7, %v7889
    %v7891 = vrot.slane %v1458, %v7890
    %7900 = vmatprep.subr.bf16.mxu0 %v5300
    %7901 = vmatpush1.bf16.msra.mxu0 %v5299
    %7902 = vmatprep.subr.bf16.mxu0 %v5308
    %7903 = vmatpush1.bf16.msra.mxu0 %v5307
    %7904 = vmatprep.subr.bf16.mxu0 %v5316
    %7905 = vmatpush1.bf16.msra.mxu0 %v5315
    %7906 = vmatprep.subr.bf16.mxu0 %v5324
    %7907 = vmatpush1.bf16.msra.mxu0 %v5323
    %7908 = vmatprep.subr.bf16.mxu0 %v5332
    %7909 = vmatpush1.bf16.msra.mxu0 %v5331
    %7910 = vmatprep.subr.bf16.mxu0 %v5340
    %7911 = vmatpush1.bf16.msra.mxu0 %v5339
    %7912 = vmatprep.subr.bf16.mxu0 %v5348
    %7913 = vmatpush1.bf16.msra.mxu0 %v5347
    %7914 = vmatprep.subr.bf16.mxu0 %v5356
    %7915 = vmatpush1.bf16.msra.mxu0 %v5355
    %7916 = vmatprep.subr.bf16.mxu0 %v5364
    %7917 = vmatpush1.bf16.msra.mxu0 %v5363
    %7918 = vmatprep.subr.bf16.mxu0 %v5372
    %7919 = vmatpush1.bf16.msra.mxu0 %v5371
    %7920 = vmatprep.subr.bf16.mxu0 %v5380
    %7921 = vmatpush1.bf16.msra.mxu0 %v5379
    %7922 = vmatprep.subr.bf16.mxu0 %v5388
    %7923 = vmatpush1.bf16.msra.mxu0 %v5387
    %7924 = vmatprep.subr.bf16.mxu0 %v5396
    %7925 = vmatpush1.bf16.msra.mxu0 %v5395
    %7926 = vmatprep.subr.bf16.mxu0 %v5404
    %7927 = vmatpush1.bf16.msra.mxu0 %v5403
    %7928 = vmatprep.subr.bf16.mxu0 %v5412
    %7929 = vmatpush1.bf16.msra.mxu0 %v5411
    %7930 = vmatprep.subr.bf16.mxu0 %v5420
    %7931 = vmatpush1.bf16.msra.mxu0 %v5419
    %7932 = vmatprep.mubr.bf16.mxu0 %v159
    %7933 = vmatmul.mubr.bf16.gmra.mrb[0].mxu0 %v158
    %v7934 = vpop.f32.mrb[0].mxu0
    %v7935 = vadd.f32 %v7863, %v7934
    %v7936 = vpop.f32.mrb[0].mxu0
    %v7937 = vadd.f32 %v7867, %v7936
    %v7938 = vpop.f32.mrb[0].mxu0
    %v7939 = vpop.f32.mrb[0].mxu0
    %7940 = vdwg.mxu0
    %7941 = vmatprep.subr.bf16.mxu0 %v5428
    %7942 = vmatpush1.bf16.msra.mxu0 %v5427
    %7943 = vmatprep.subr.bf16.mxu0 %v5436
    %7944 = vmatpush1.bf16.msra.mxu0 %v5435
    %7945 = vmatprep.subr.bf16.mxu0 %v5444
    %7946 = vmatpush1.bf16.msra.mxu0 %v5443
    %7947 = vmatprep.subr.bf16.mxu0 %v5452
    %7948 = vmatpush1.bf16.msra.mxu0 %v5451
    %7949 = vmatprep.subr.bf16.mxu0 %v5460
    %7950 = vmatpush1.bf16.msra.mxu0 %v5459
    %7951 = vmatprep.subr.bf16.mxu0 %v5468
    %7952 = vmatpush1.bf16.msra.mxu0 %v5467
    %7953 = vmatprep.subr.bf16.mxu0 %v5476
    %7954 = vmatpush1.bf16.msra.mxu0 %v5475
    %7955 = vmatprep.subr.bf16.mxu0 %v5484
    %7956 = vmatpush1.bf16.msra.mxu0 %v5483
    %7957 = vmatprep.subr.bf16.mxu0 %v5492
    %7958 = vmatpush1.bf16.msra.mxu0 %v5491
    %7959 = vmatprep.subr.bf16.mxu0 %v5500
    %7960 = vmatpush1.bf16.msra.mxu0 %v5499
    %7961 = vmatprep.subr.bf16.mxu0 %v5508
    %7962 = vmatpush1.bf16.msra.mxu0 %v5507
    %7963 = vmatprep.subr.bf16.mxu0 %v5516
    %7964 = vmatpush1.bf16.msra.mxu0 %v5515
    %7965 = vmatprep.subr.bf16.mxu0 %v5524
    %7966 = vmatpush1.bf16.msra.mxu0 %v5523
    %7967 = vmatprep.subr.bf16.mxu0 %v5532
    %7968 = vmatpush1.bf16.msra.mxu0 %v5531
    %7969 = vmatprep.subr.bf16.mxu0 %v5540
    %7970 = vmatpush1.bf16.msra.mxu0 %v5539
    %7971 = vmatprep.subr.bf16.mxu0 %v5548
    %7972 = vmatpush1.bf16.msra.mxu0 %v5547
    %7973 = vmatprep.mubr.bf16.mxu0 %v161
    %7974 = vmatmul.mubr.bf16.gmra.mrb[0].mxu0 %v160
    %v7975 = vpop.f32.mrb[0].mxu0
    %v7976 = vadd.f32 %v7935, %v7975
    %v7977 = vpop.f32.mrb[0].mxu0
    %v7978 = vadd.f32 %v7937, %v7977
    %v7979 = vpop.f32.mrb[0].mxu0
    %v7980 = vpop.f32.mrb[0].mxu0
    %7981 = vdwg.mxu0
    %7982 = vmatprep.subr.bf16.mxu0 %v5556
    %7983 = vmatpush1.bf16.msra.mxu0 %v5555
    %7984 = vmatprep.subr.bf16.mxu0 %v5564
    %7985 = vmatpush1.bf16.msra.mxu0 %v5563
    %7986 = vmatprep.subr.bf16.mxu0 %v5572
    %7987 = vmatpush1.bf16.msra.mxu0 %v5571
    %7988 = vmatprep.subr.bf16.mxu0 %v5580
    %7989 = vmatpush1.bf16.msra.mxu0 %v5579
    %7990 = vmatprep.subr.bf16.mxu0 %v5588
    %7991 = vmatpush1.bf16.msra.mxu0 %v5587
    %7992 = vmatprep.subr.bf16.mxu0 %v5596
    %7993 = vmatpush1.bf16.msra.mxu0 %v5595
    %7994 = vmatprep.subr.bf16.mxu0 %v5604
    %7995 = vmatpush1.bf16.msra.mxu0 %v5603
    %7996 = vmatprep.subr.bf16.mxu0 %v5612
    %7997 = vmatpush1.bf16.msra.mxu0 %v5611
    %7998 = vmatprep.subr.bf16.mxu0 %v5620
    %7999 = vmatpush1.bf16.msra.mxu0 %v5619
    %8000 = vmatprep.subr.bf16.mxu0 %v5628
    %8001 = vmatpush1.bf16.msra.mxu0 %v5627
    %8002 = vmatprep.subr.bf16.mxu0 %v5636
    %8003 = vmatpush1.bf16.msra.mxu0 %v5635
    %8004 = vmatprep.subr.bf16.mxu0 %v5644
    %8005 = vmatpush1.bf16.msra.mxu0 %v5643
    %8006 = vmatprep.subr.bf16.mxu0 %v5652
    %8007 = vmatpush1.bf16.msra.mxu0 %v5651
    %8008 = vmatprep.subr.bf16.mxu0 %v5660
    %8009 = vmatpush1.bf16.msra.mxu0 %v5659
    %8010 = vmatprep.subr.bf16.mxu0 %v5668
    %8011 = vmatpush1.bf16.msra.mxu0 %v5667
    %8012 = vmatprep.subr.bf16.mxu0 %v5676
    %8013 = vmatpush1.bf16.msra.mxu0 %v5675
    %8014 = vmatprep.mubr.bf16.mxu0 %v163
    %8015 = vmatmul.mubr.bf16.gmra.mrb[0].mxu0 %v162
    %v8016 = vpop.f32.mrb[0].mxu0
    %v8017 = vadd.f32 %v7976, %v8016
    %v8018 = vpop.f32.mrb[0].mxu0
    %v8019 = vadd.f32 %v7978, %v8018
    %v8020 = vpop.f32.mrb[0].mxu0
    %v8021 = vpop.f32.mrb[0].mxu0
    %8022 = vdwg.mxu0
    %8023 = vmatprep.subr.bf16.mxu0 %v5684
    %8024 = vmatpush1.bf16.msra.mxu0 %v5683
    %8025 = vmatprep.subr.bf16.mxu0 %v5692
    %8026 = vmatpush1.bf16.msra.mxu0 %v5691
    %8027 = vmatprep.subr.bf16.mxu0 %v5700
    %8028 = vmatpush1.bf16.msra.mxu0 %v5699
    %8029 = vmatprep.subr.bf16.mxu0 %v5708
    %8030 = vmatpush1.bf16.msra.mxu0 %v5707
    %8031 = vmatprep.subr.bf16.mxu0 %v5716
    %8032 = vmatpush1.bf16.msra.mxu0 %v5715
    %8033 = vmatprep.subr.bf16.mxu0 %v5724
    %8034 = vmatpush1.bf16.msra.mxu0 %v5723
    %8035 = vmatprep.subr.bf16.mxu0 %v5732
    %8036 = vmatpush1.bf16.msra.mxu0 %v5731
    %8037 = vmatprep.subr.bf16.mxu0 %v5740
    %8038 = vmatpush1.bf16.msra.mxu0 %v5739
    %8039 = vmatprep.subr.bf16.mxu0 %v5748
    %8040 = vmatpush1.bf16.msra.mxu0 %v5747
    %8041 = vmatprep.subr.bf16.mxu0 %v5756
    %8042 = vmatpush1.bf16.msra.mxu0 %v5755
    %8043 = vmatprep.subr.bf16.mxu0 %v5764
    %8044 = vmatpush1.bf16.msra.mxu0 %v5763
    %8045 = vmatprep.subr.bf16.mxu0 %v5772
    %8046 = vmatpush1.bf16.msra.mxu0 %v5771
    %8047 = vmatprep.subr.bf16.mxu0 %v5780
    %8048 = vmatpush1.bf16.msra.mxu0 %v5779
    %8049 = vmatprep.subr.bf16.mxu0 %v5788
    %8050 = vmatpush1.bf16.msra.mxu0 %v5787
    %8051 = vmatprep.subr.bf16.mxu0 %v5796
    %8052 = vmatpush1.bf16.msra.mxu0 %v5795
    %8053 = vmatprep.subr.bf16.mxu0 %v5804
    %8054 = vmatpush1.bf16.msra.mxu0 %v5803
    %8055 = vmatprep.mubr.bf16.mxu0 %v165
    %8056 = vmatmul.mubr.bf16.gmra.mrb[0].mxu0 %v164
    %v8057 = vpop.f32.mrb[0].mxu0
    %v8058 = vadd.f32 %v8017, %v8057
    %v8059 = vpop.f32.mrb[0].mxu0
    %v8060 = vadd.f32 %v8019, %v8059
    %v8061 = vpop.f32.mrb[0].mxu0
    %v8062 = vpop.f32.mrb[0].mxu0
    %8063 = vdwg.mxu0
    %8064 = vmatprep.subr.bf16.mxu0 %v5812
    %8065 = vmatpush1.bf16.msra.mxu0 %v5811
    %8066 = vmatprep.subr.bf16.mxu0 %v5820
    %8067 = vmatpush1.bf16.msra.mxu0 %v5819
    %8068 = vmatprep.subr.bf16.mxu0 %v5828
    %8069 = vmatpush1.bf16.msra.mxu0 %v5827
    %8070 = vmatprep.subr.bf16.mxu0 %v5836
    %8071 = vmatpush1.bf16.msra.mxu0 %v5835
    %8072 = vmatprep.subr.bf16.mxu0 %v5844
    %8073 = vmatpush1.bf16.msra.mxu0 %v5843
    %8074 = vmatprep.subr.bf16.mxu0 %v5852
    %8075 = vmatpush1.bf16.msra.mxu0 %v5851
    %8076 = vmatprep.subr.bf16.mxu0 %v5860
    %8077 = vmatpush1.bf16.msra.mxu0 %v5859
    %8078 = vmatprep.subr.bf16.mxu0 %v5868
    %8079 = vmatpush1.bf16.msra.mxu0 %v5867
    %8080 = vmatprep.subr.bf16.mxu0 %v5876
    %8081 = vmatpush1.bf16.msra.mxu0 %v5875
    %8082 = vmatprep.subr.bf16.mxu0 %v5884
    %8083 = vmatpush1.bf16.msra.mxu0 %v5883
    %8084 = vmatprep.subr.bf16.mxu0 %v5892
    %8085 = vmatpush1.bf16.msra.mxu0 %v5891
    %8086 = vmatprep.subr.bf16.mxu0 %v5900
    %8087 = vmatpush1.bf16.msra.mxu0 %v5899
    %8088 = vmatprep.subr.bf16.mxu0 %v5908
    %8089 = vmatpush1.bf16.msra.mxu0 %v5907
    %8090 = vmatprep.subr.bf16.mxu0 %v5916
    %8091 = vmatpush1.bf16.msra.mxu0 %v5915
    %8092 = vmatprep.subr.bf16.mxu0 %v5924
    %8093 = vmatpush1.bf16.msra.mxu0 %v5923
    %8094 = vmatprep.subr.bf16.mxu0 %v5932
    %8095 = vmatpush1.bf16.msra.mxu0 %v5931
    %8096 = vmatprep.mubr.bf16.mxu0 %v167
    %8097 = vmatmul.mubr.bf16.gmra.mrb[0].mxu0 %v166
    %v8098 = vpop.f32.mrb[0].mxu0
    %v8099 = vadd.f32 %v8058, %v8098
    %v8100 = vpop.f32.mrb[0].mxu0
    %v8101 = vadd.f32 %v8060, %v8100
    %v8102 = vpop.f32.mrb[0].mxu0
    %v8103 = vpop.f32.mrb[0].mxu0
    %8104 = vdwg.mxu0
    %8105 = vmatprep.subr.bf16.mxu0 %v5940
    %8106 = vmatpush1.bf16.msra.mxu0 %v5939
    %8107 = vmatprep.subr.bf16.mxu0 %v5948
    %8108 = vmatpush1.bf16.msra.mxu0 %v5947
    %8109 = vmatprep.subr.bf16.mxu0 %v5956
    %8110 = vmatpush1.bf16.msra.mxu0 %v5955
    %8111 = vmatprep.subr.bf16.mxu0 %v5964
    %8112 = vmatpush1.bf16.msra.mxu0 %v5963
    %8113 = vmatprep.subr.bf16.mxu0 %v5972
    %8114 = vmatpush1.bf16.msra.mxu0 %v5971
    %8115 = vmatprep.subr.bf16.mxu0 %v5980
    %8116 = vmatpush1.bf16.msra.mxu0 %v5979
    %8117 = vmatprep.subr.bf16.mxu0 %v5988
    %8118 = vmatpush1.bf16.msra.mxu0 %v5987
    %8119 = vmatprep.subr.bf16.mxu0 %v5996
    %8120 = vmatpush1.bf16.msra.mxu0 %v5995
    %8121 = vmatprep.subr.bf16.mxu0 %v6004
    %8122 = vmatpush1.bf16.msra.mxu0 %v6003
    %8123 = vmatprep.subr.bf16.mxu0 %v6012
    %8124 = vmatpush1.bf16.msra.mxu0 %v6011
    %8125 = vmatprep.subr.bf16.mxu0 %v6020
    %8126 = vmatpush1.bf16.msra.mxu0 %v6019
    %8127 = vmatprep.subr.bf16.mxu0 %v6028
    %8128 = vmatpush1.bf16.msra.mxu0 %v6027
    %8129 = vmatprep.subr.bf16.mxu0 %v6036
    %8130 = vmatpush1.bf16.msra.mxu0 %v6035
    %8131 = vmatprep.subr.bf16.mxu0 %v6044
    %8132 = vmatpush1.bf16.msra.mxu0 %v6043
    %8133 = vmatprep.subr.bf16.mxu0 %v6052
    %8134 = vmatpush1.bf16.msra.mxu0 %v6051
    %8135 = vmatprep.subr.bf16.mxu0 %v6060
    %8136 = vmatpush1.bf16.msra.mxu0 %v6059
    %8137 = vmatprep.mubr.bf16.mxu0 %v169
    %8138 = vmatmul.mubr.bf16.gmra.mrb[0].mxu0 %v168
    %v8139 = vpop.f32.mrb[0].mxu0
    %v8140 = vadd.f32 %v8099, %v8139
    %v8141 = vpop.f32.mrb[0].mxu0
    %v8142 = vadd.f32 %v8101, %v8141
    %v8143 = vpop.f32.mrb[0].mxu0
    %v8144 = vpop.f32.mrb[0].mxu0
    %8145 = vdwg.mxu0
    %8146 = vmatprep.subr.bf16.mxu0 %v6068
    %8147 = vmatpush1.bf16.msra.mxu0 %v6067
    %8148 = vmatprep.subr.bf16.mxu0 %v6076
    %8149 = vmatpush1.bf16.msra.mxu0 %v6075
    %8150 = vmatprep.subr.bf16.mxu0 %v6084
    %8151 = vmatpush1.bf16.msra.mxu0 %v6083
    %8152 = vmatprep.subr.bf16.mxu0 %v6092
    %8153 = vmatpush1.bf16.msra.mxu0 %v6091
    %8154 = vmatprep.subr.bf16.mxu0 %v6100
    %8155 = vmatpush1.bf16.msra.mxu0 %v6099
    %8156 = vmatprep.subr.bf16.mxu0 %v6108
    %8157 = vmatpush1.bf16.msra.mxu0 %v6107
    %8158 = vmatprep.subr.bf16.mxu0 %v6116
    %8159 = vmatpush1.bf16.msra.mxu0 %v6115
    %8160 = vmatprep.subr.bf16.mxu0 %v6124
    %8161 = vmatpush1.bf16.msra.mxu0 %v6123
    %8162 = vmatprep.subr.bf16.mxu0 %v6132
    %8163 = vmatpush1.bf16.msra.mxu0 %v6131
    %8164 = vmatprep.subr.bf16.mxu0 %v6140
    %8165 = vmatpush1.bf16.msra.mxu0 %v6139
    %8166 = vmatprep.subr.bf16.mxu0 %v6148
    %8167 = vmatpush1.bf16.msra.mxu0 %v6147
    %8168 = vmatprep.subr.bf16.mxu0 %v6156
    %8169 = vmatpush1.bf16.msra.mxu0 %v6155
    %8170 = vmatprep.subr.bf16.mxu0 %v6164
    %8171 = vmatpush1.bf16.msra.mxu0 %v6163
    %8172 = vmatprep.subr.bf16.mxu0 %v6172
    %8173 = vmatpush1.bf16.msra.mxu0 %v6171
    %8174 = vmatprep.subr.bf16.mxu0 %v6180
    %8175 = vmatpush1.bf16.msra.mxu0 %v6179
    %8176 = vmatprep.subr.bf16.mxu0 %v6188
    %8177 = vmatpush1.bf16.msra.mxu0 %v6187
    %8178 = vmatprep.mubr.bf16.mxu0 %v171
    %8179 = vmatmul.mubr.bf16.gmra.mrb[0].mxu0 %v170
    %v8180 = vpop.f32.mrb[0].mxu0
    %v8181 = vadd.f32 %v8140, %v8180
    %v8182 = vpop.f32.mrb[0].mxu0
    %v8183 = vadd.f32 %v8142, %v8182
    %v8184 = vpop.f32.mrb[0].mxu0
    %v8185 = vpop.f32.mrb[0].mxu0
    %8186 = vdwg.mxu0
    %8187 = vmatprep.subr.bf16.mxu0 %v6196
    %8188 = vmatpush1.bf16.msra.mxu0 %v6195
    %8189 = vmatprep.subr.bf16.mxu0 %v6204
    %8190 = vmatpush1.bf16.msra.mxu0 %v6203
    %8191 = vmatprep.subr.bf16.mxu0 %v6212
    %8192 = vmatpush1.bf16.msra.mxu0 %v6211
    %8193 = vmatprep.subr.bf16.mxu0 %v6220
    %8194 = vmatpush1.bf16.msra.mxu0 %v6219
    %8195 = vmatprep.subr.bf16.mxu0 %v6228
    %8196 = vmatpush1.bf16.msra.mxu0 %v6227
    %8197 = vmatprep.subr.bf16.mxu0 %v6236
    %8198 = vmatpush1.bf16.msra.mxu0 %v6235
    %8199 = vmatprep.subr.bf16.mxu0 %v6244
    %8200 = vmatpush1.bf16.msra.mxu0 %v6243
    %8201 = vmatprep.subr.bf16.mxu0 %v6252
    %8202 = vmatpush1.bf16.msra.mxu0 %v6251
    %8203 = vmatprep.subr.bf16.mxu0 %v6260
    %8204 = vmatpush1.bf16.msra.mxu0 %v6259
    %8205 = vmatprep.subr.bf16.mxu0 %v6268
    %8206 = vmatpush1.bf16.msra.mxu0 %v6267
    %8207 = vmatprep.subr.bf16.mxu0 %v6276
    %8208 = vmatpush1.bf16.msra.mxu0 %v6275
    %8209 = vmatprep.subr.bf16.mxu0 %v6284
    %8210 = vmatpush1.bf16.msra.mxu0 %v6283
    %8211 = vmatprep.subr.bf16.mxu0 %v6292
    %8212 = vmatpush1.bf16.msra.mxu0 %v6291
    %8213 = vmatprep.subr.bf16.mxu0 %v6300
    %8214 = vmatpush1.bf16.msra.mxu0 %v6299
    %8215 = vmatprep.subr.bf16.mxu0 %v6308
    %8216 = vmatpush1.bf16.msra.mxu0 %v6307
    %8217 = vmatprep.subr.bf16.mxu0 %v6316
    %8218 = vmatpush1.bf16.msra.mxu0 %v6315
    %8219 = vmatprep.mubr.bf16.mxu0 %v173
    %8220 = vmatmul.mubr.bf16.gmra.mrb[0].mxu0 %v172
    %v8221 = vpop.f32.mrb[0].mxu0
    %v8222 = vadd.f32 %v8181, %v8221
    %v8223 = vpop.f32.mrb[0].mxu0
    %v8224 = vadd.f32 %v8183, %v8223
    %v8225 = vpop.f32.mrb[0].mxu0
    %v8226 = vpop.f32.mrb[0].mxu0
    %8227 = vdwg.mxu0
    %8228 = vmatprep.subr.bf16.mxu0 %v6324
    %8229 = vmatpush1.bf16.msra.mxu0 %v6323
    %8230 = vmatprep.subr.bf16.mxu0 %v6332
    %8231 = vmatpush1.bf16.msra.mxu0 %v6331
    %8232 = vmatprep.subr.bf16.mxu0 %v6340
    %8233 = vmatpush1.bf16.msra.mxu0 %v6339
    %8234 = vmatprep.subr.bf16.mxu0 %v6348
    %8235 = vmatpush1.bf16.msra.mxu0 %v6347
    %8236 = vmatprep.subr.bf16.mxu0 %v6356
    %8237 = vmatpush1.bf16.msra.mxu0 %v6355
    %8238 = vmatprep.subr.bf16.mxu0 %v6364
    %8239 = vmatpush1.bf16.msra.mxu0 %v6363
    %8240 = vmatprep.subr.bf16.mxu0 %v6372
    %8241 = vmatpush1.bf16.msra.mxu0 %v6371
    %8242 = vmatprep.subr.bf16.mxu0 %v6380
    %8243 = vmatpush1.bf16.msra.mxu0 %v6379
    %8244 = vmatprep.subr.bf16.mxu0 %v6388
    %8245 = vmatpush1.bf16.msra.mxu0 %v6387
    %8246 = vmatprep.subr.bf16.mxu0 %v6396
    %8247 = vmatpush1.bf16.msra.mxu0 %v6395
    %8248 = vmatprep.subr.bf16.mxu0 %v6404
    %8249 = vmatpush1.bf16.msra.mxu0 %v6403
    %8250 = vmatprep.subr.bf16.mxu0 %v6412
    %8251 = vmatpush1.bf16.msra.mxu0 %v6411
    %8252 = vmatprep.subr.bf16.mxu0 %v6420
    %8253 = vmatpush1.bf16.msra.mxu0 %v6419
    %8254 = vmatprep.subr.bf16.mxu0 %v6428
    %8255 = vmatpush1.bf16.msra.mxu0 %v6427
    %8256 = vmatprep.subr.bf16.mxu0 %v6436
    %8257 = vmatpush1.bf16.msra.mxu0 %v6435
    %8258 = vmatprep.subr.bf16.mxu0 %v6444
    %8259 = vmatpush1.bf16.msra.mxu0 %v6443
    %8260 = vmatprep.mubr.bf16.mxu0 %v175
    %8261 = vmatmul.mubr.bf16.gmra.mrb[0].mxu0 %v174
    %v8262 = vpop.f32.mrb[0].mxu0
    %v8263 = vadd.f32 %v8222, %v8262
    %v8264 = vpop.f32.mrb[0].mxu0
    %v8265 = vadd.f32 %v8224, %v8264
    %v8266 = vpop.f32.mrb[0].mxu0
    %v8267 = vpop.f32.mrb[0].mxu0
    %8268 = vdwg.mxu0
    %8269 = vmatprep.subr.bf16.mxu0 %v6452
    %8270 = vmatpush1.bf16.msra.mxu0 %v6451
    %8271 = vmatprep.subr.bf16.mxu0 %v6460
    %8272 = vmatpush1.bf16.msra.mxu0 %v6459
    %8273 = vmatprep.subr.bf16.mxu0 %v6468
    %8274 = vmatpush1.bf16.msra.mxu0 %v6467
    %8275 = vmatprep.subr.bf16.mxu0 %v6476
    %8276 = vmatpush1.bf16.msra.mxu0 %v6475
    %8277 = vmatprep.subr.bf16.mxu0 %v6484
    %8278 = vmatpush1.bf16.msra.mxu0 %v6483
    %8279 = vmatprep.subr.bf16.mxu0 %v6492
    %8280 = vmatpush1.bf16.msra.mxu0 %v6491
    %8281 = vmatprep.subr.bf16.mxu0 %v6500
    %8282 = vmatpush1.bf16.msra.mxu0 %v6499
    %8283 = vmatprep.subr.bf16.mxu0 %v6508
    %8284 = vmatpush1.bf16.msra.mxu0 %v6507
    %8285 = vmatprep.subr.bf16.mxu0 %v6516
    %8286 = vmatpush1.bf16.msra.mxu0 %v6515
    %8287 = vmatprep.subr.bf16.mxu0 %v6524
    %8288 = vmatpush1.bf16.msra.mxu0 %v6523
    %8289 = vmatprep.subr.bf16.mxu0 %v6532
    %8290 = vmatpush1.bf16.msra.mxu0 %v6531
    %8291 = vmatprep.subr.bf16.mxu0 %v6540
    %8292 = vmatpush1.bf16.msra.mxu0 %v6539
    %8293 = vmatprep.subr.bf16.mxu0 %v6548
    %8294 = vmatpush1.bf16.msra.mxu0 %v6547
    %8295 = vmatprep.subr.bf16.mxu0 %v6556
    %8296 = vmatpush1.bf16.msra.mxu0 %v6555
    %8297 = vmatprep.subr.bf16.mxu0 %v6564
    %8298 = vmatpush1.bf16.msra.mxu0 %v6563
    %8299 = vmatprep.subr.bf16.mxu0 %v6572
    %8300 = vmatpush1.bf16.msra.mxu0 %v6571
    %8301 = vmatprep.mubr.bf16.mxu0 %v177
    %8302 = vmatmul.mubr.bf16.gmra.mrb[0].mxu0 %v176
    %v8303 = vpop.f32.mrb[0].mxu0
    %v8304 = vadd.f32 %v8263, %v8303
    %v8305 = vpop.f32.mrb[0].mxu0
    %v8306 = vadd.f32 %v8265, %v8305
    %v8307 = vpop.f32.mrb[0].mxu0
    %v8308 = vpop.f32.mrb[0].mxu0
    %8309 = vdwg.mxu0
    %8310 = vmatprep.subr.bf16.mxu0 %v5302
    %8311 = vmatpush1.bf16.msra.mxu0 %v5301
    %8312 = vmatprep.subr.bf16.mxu0 %v5310
    %8313 = vmatpush1.bf16.msra.mxu0 %v5309
    %8314 = vmatprep.subr.bf16.mxu0 %v5318
    %8315 = vmatpush1.bf16.msra.mxu0 %v5317
    %8316 = vmatprep.subr.bf16.mxu0 %v5326
    %8317 = vmatpush1.bf16.msra.mxu0 %v5325
    %8318 = vmatprep.subr.bf16.mxu0 %v5334
    %8319 = vmatpush1.bf16.msra.mxu0 %v5333
    %8320 = vmatprep.subr.bf16.mxu0 %v5342
    %8321 = vmatpush1.bf16.msra.mxu0 %v5341
    %8322 = vmatprep.subr.bf16.mxu0 %v5350
    %8323 = vmatpush1.bf16.msra.mxu0 %v5349
    %8324 = vmatprep.subr.bf16.mxu0 %v5358
    %8325 = vmatpush1.bf16.msra.mxu0 %v5357
    %8326 = vmatprep.subr.bf16.mxu0 %v5366
    %8327 = vmatpush1.bf16.msra.mxu0 %v5365
    %8328 = vmatprep.subr.bf16.mxu0 %v5374
    %8329 = vmatpush1.bf16.msra.mxu0 %v5373
    %8330 = vmatprep.subr.bf16.mxu0 %v5382
    %8331 = vmatpush1.bf16.msra.mxu0 %v5381
    %8332 = vmatprep.subr.bf16.mxu0 %v5390
    %8333 = vmatpush1.bf16.msra.mxu0 %v5389
    %8334 = vmatprep.subr.bf16.mxu0 %v5398
    %8335 = vmatpush1.bf16.msra.mxu0 %v5397
    %8336 = vmatprep.subr.bf16.mxu0 %v5406
    %8337 = vmatpush1.bf16.msra.mxu0 %v5405
    %8338 = vmatprep.subr.bf16.mxu0 %v5414
    %8339 = vmatpush1.bf16.msra.mxu0 %v5413
    %8340 = vmatprep.subr.bf16.mxu0 %v5422
    %8341 = vmatpush1.bf16.msra.mxu0 %v5421
    %8342 = vmatprep.mubr.bf16.mxu0 %v159
    %8343 = vmatmul.mubr.bf16.gmra.mrb[0].mxu0 %v158
    %v8344 = vpop.f32.mrb[0].mxu0
    %v8345 = vadd.f32 %v7871, %v8344
    %v8346 = vpop.f32.mrb[0].mxu0
    %v8347 = vadd.f32 %v7875, %v8346
    %v8348 = vpop.f32.mrb[0].mxu0
    %v8349 = vpop.f32.mrb[0].mxu0
    %8350 = vdwg.mxu0
    %8351 = vmatprep.subr.bf16.mxu0 %v5430
    %8352 = vmatpush1.bf16.msra.mxu0 %v5429
    %8353 = vmatprep.subr.bf16.mxu0 %v5438
    %8354 = vmatpush1.bf16.msra.mxu0 %v5437
    %8355 = vmatprep.subr.bf16.mxu0 %v5446
    %8356 = vmatpush1.bf16.msra.mxu0 %v5445
    %8357 = vmatprep.subr.bf16.mxu0 %v5454
    %8358 = vmatpush1.bf16.msra.mxu0 %v5453
    %8359 = vmatprep.subr.bf16.mxu0 %v5462
    %8360 = vmatpush1.bf16.msra.mxu0 %v5461
    %8361 = vmatprep.subr.bf16.mxu0 %v5470
    %8362 = vmatpush1.bf16.msra.mxu0 %v5469
    %8363 = vmatprep.subr.bf16.mxu0 %v5478
    %8364 = vmatpush1.bf16.msra.mxu0 %v5477
    %8365 = vmatprep.subr.bf16.mxu0 %v5486
    %8366 = vmatpush1.bf16.msra.mxu0 %v5485
    %8367 = vmatprep.subr.bf16.mxu0 %v5494
    %8368 = vmatpush1.bf16.msra.mxu0 %v5493
    %8369 = vmatprep.subr.bf16.mxu0 %v5502
    %8370 = vmatpush1.bf16.msra.mxu0 %v5501
    %8371 = vmatprep.subr.bf16.mxu0 %v5510
    %8372 = vmatpush1.bf16.msra.mxu0 %v5509
    %8373 = vmatprep.subr.bf16.mxu0 %v5518
    %8374 = vmatpush1.bf16.msra.mxu0 %v5517
    %8375 = vmatprep.subr.bf16.mxu0 %v5526
    %8376 = vmatpush1.bf16.msra.mxu0 %v5525
    %8377 = vmatprep.subr.bf16.mxu0 %v5534
    %8378 = vmatpush1.bf16.msra.mxu0 %v5533
    %8379 = vmatprep.subr.bf16.mxu0 %v5542
    %8380 = vmatpush1.bf16.msra.mxu0 %v5541
    %8381 = vmatprep.subr.bf16.mxu0 %v5550
    %8382 = vmatpush1.bf16.msra.mxu0 %v5549
    %8383 = vmatprep.mubr.bf16.mxu0 %v161
    %8384 = vmatmul.mubr.bf16.gmra.mrb[0].mxu0 %v160
    %v8385 = vpop.f32.mrb[0].mxu0
    %v8386 = vadd.f32 %v8345, %v8385
    %v8387 = vpop.f32.mrb[0].mxu0
    %v8388 = vadd.f32 %v8347, %v8387
    %v8389 = vpop.f32.mrb[0].mxu0
    %v8390 = vpop.f32.mrb[0].mxu0
    %8391 = vdwg.mxu0
    %8392 = vmatprep.subr.bf16.mxu0 %v5558
    %8393 = vmatpush1.bf16.msra.mxu0 %v5557
    %8394 = vmatprep.subr.bf16.mxu0 %v5566
    %8395 = vmatpush1.bf16.msra.mxu0 %v5565
    %8396 = vmatprep.subr.bf16.mxu0 %v5574
    %8397 = vmatpush1.bf16.msra.mxu0 %v5573
    %8398 = vmatprep.subr.bf16.mxu0 %v5582
    %8399 = vmatpush1.bf16.msra.mxu0 %v5581
    %8400 = vmatprep.subr.bf16.mxu0 %v5590
    %8401 = vmatpush1.bf16.msra.mxu0 %v5589
    %8402 = vmatprep.subr.bf16.mxu0 %v5598
    %8403 = vmatpush1.bf16.msra.mxu0 %v5597
    %8404 = vmatprep.subr.bf16.mxu0 %v5606
    %8405 = vmatpush1.bf16.msra.mxu0 %v5605
    %8406 = vmatprep.subr.bf16.mxu0 %v5614
    %8407 = vmatpush1.bf16.msra.mxu0 %v5613
    %8408 = vmatprep.subr.bf16.mxu0 %v5622
    %8409 = vmatpush1.bf16.msra.mxu0 %v5621
    %8410 = vmatprep.subr.bf16.mxu0 %v5630
    %8411 = vmatpush1.bf16.msra.mxu0 %v5629
    %8412 = vmatprep.subr.bf16.mxu0 %v5638
    %8413 = vmatpush1.bf16.msra.mxu0 %v5637
    %8414 = vmatprep.subr.bf16.mxu0 %v5646
    %8415 = vmatpush1.bf16.msra.mxu0 %v5645
    %8416 = vmatprep.subr.bf16.mxu0 %v5654
    %8417 = vmatpush1.bf16.msra.mxu0 %v5653
    %8418 = vmatprep.subr.bf16.mxu0 %v5662
    %8419 = vmatpush1.bf16.msra.mxu0 %v5661
    %8420 = vmatprep.subr.bf16.mxu0 %v5670
    %8421 = vmatpush1.bf16.msra.mxu0 %v5669
    %8422 = vmatprep.subr.bf16.mxu0 %v5678
    %8423 = vmatpush1.bf16.msra.mxu0 %v5677
    %8424 = vmatprep.mubr.bf16.mxu0 %v163
    %8425 = vmatmul.mubr.bf16.gmra.mrb[0].mxu0 %v162
    %v8426 = vpop.f32.mrb[0].mxu0
    %v8427 = vadd.f32 %v8386, %v8426
    %v8428 = vpop.f32.mrb[0].mxu0
    %v8429 = vadd.f32 %v8388, %v8428
    %v8430 = vpop.f32.mrb[0].mxu0
    %v8431 = vpop.f32.mrb[0].mxu0
    %8432 = vdwg.mxu0
    %8433 = vmatprep.subr.bf16.mxu0 %v5686
    %8434 = vmatpush1.bf16.msra.mxu0 %v5685
    %8435 = vmatprep.subr.bf16.mxu0 %v5694
    %8436 = vmatpush1.bf16.msra.mxu0 %v5693
    %8437 = vmatprep.subr.bf16.mxu0 %v5702
    %8438 = vmatpush1.bf16.msra.mxu0 %v5701
    %8439 = vmatprep.subr.bf16.mxu0 %v5710
    %8440 = vmatpush1.bf16.msra.mxu0 %v5709
    %8441 = vmatprep.subr.bf16.mxu0 %v5718
    %8442 = vmatpush1.bf16.msra.mxu0 %v5717
    %8443 = vmatprep.subr.bf16.mxu0 %v5726
    %8444 = vmatpush1.bf16.msra.mxu0 %v5725
    %8445 = vmatprep.subr.bf16.mxu0 %v5734
    %8446 = vmatpush1.bf16.msra.mxu0 %v5733
    %8447 = vmatprep.subr.bf16.mxu0 %v5742
    %8448 = vmatpush1.bf16.msra.mxu0 %v5741
    %8449 = vmatprep.subr.bf16.mxu0 %v5750
    %8450 = vmatpush1.bf16.msra.mxu0 %v5749
    %8451 = vmatprep.subr.bf16.mxu0 %v5758
    %8452 = vmatpush1.bf16.msra.mxu0 %v5757
    %8453 = vmatprep.subr.bf16.mxu0 %v5766
    %8454 = vmatpush1.bf16.msra.mxu0 %v5765
    %8455 = vmatprep.subr.bf16.mxu0 %v5774
    %8456 = vmatpush1.bf16.msra.mxu0 %v5773
    %8457 = vmatprep.subr.bf16.mxu0 %v5782
    %8458 = vmatpush1.bf16.msra.mxu0 %v5781
    %8459 = vmatprep.subr.bf16.mxu0 %v5790
    %8460 = vmatpush1.bf16.msra.mxu0 %v5789
    %8461 = vmatprep.subr.bf16.mxu0 %v5798
    %8462 = vmatpush1.bf16.msra.mxu0 %v5797
    %8463 = vmatprep.subr.bf16.mxu0 %v5806
    %8464 = vmatpush1.bf16.msra.mxu0 %v5805
    %8465 = vmatprep.mubr.bf16.mxu0 %v165
    %8466 = vmatmul.mubr.bf16.gmra.mrb[0].mxu0 %v164
    %v8467 = vpop.f32.mrb[0].mxu0
    %v8468 = vadd.f32 %v8427, %v8467
    %v8469 = vpop.f32.mrb[0].mxu0
    %v8470 = vadd.f32 %v8429, %v8469
    %v8471 = vpop.f32.mrb[0].mxu0
    %v8472 = vpop.f32.mrb[0].mxu0
    %8473 = vdwg.mxu0
    %8474 = vmatprep.subr.bf16.mxu0 %v5814
    %8475 = vmatpush1.bf16.msra.mxu0 %v5813
    %8476 = vmatprep.subr.bf16.mxu0 %v5822
    %8477 = vmatpush1.bf16.msra.mxu0 %v5821
    %8478 = vmatprep.subr.bf16.mxu0 %v5830
    %8479 = vmatpush1.bf16.msra.mxu0 %v5829
    %8480 = vmatprep.subr.bf16.mxu0 %v5838
    %8481 = vmatpush1.bf16.msra.mxu0 %v5837
    %8482 = vmatprep.subr.bf16.mxu0 %v5846
    %8483 = vmatpush1.bf16.msra.mxu0 %v5845
    %8484 = vmatprep.subr.bf16.mxu0 %v5854
    %8485 = vmatpush1.bf16.msra.mxu0 %v5853
    %8486 = vmatprep.subr.bf16.mxu0 %v5862
    %8487 = vmatpush1.bf16.msra.mxu0 %v5861
    %8488 = vmatprep.subr.bf16.mxu0 %v5870
    %8489 = vmatpush1.bf16.msra.mxu0 %v5869
    %8490 = vmatprep.subr.bf16.mxu0 %v5878
    %8491 = vmatpush1.bf16.msra.mxu0 %v5877
    %8492 = vmatprep.subr.bf16.mxu0 %v5886
    %8493 = vmatpush1.bf16.msra.mxu0 %v5885
    %8494 = vmatprep.subr.bf16.mxu0 %v5894
    %8495 = vmatpush1.bf16.msra.mxu0 %v5893
    %8496 = vmatprep.subr.bf16.mxu0 %v5902
    %8497 = vmatpush1.bf16.msra.mxu0 %v5901
    %8498 = vmatprep.subr.bf16.mxu0 %v5910
    %8499 = vmatpush1.bf16.msra.mxu0 %v5909
    %8500 = vmatprep.subr.bf16.mxu0 %v5918
    %8501 = vmatpush1.bf16.msra.mxu0 %v5917
    %8502 = vmatprep.subr.bf16.mxu0 %v5926
    %8503 = vmatpush1.bf16.msra.mxu0 %v5925
    %8504 = vmatprep.subr.bf16.mxu0 %v5934
    %8505 = vmatpush1.bf16.msra.mxu0 %v5933
    %8506 = vmatprep.mubr.bf16.mxu0 %v167
    %8507 = vmatmul.mubr.bf16.gmra.mrb[0].mxu0 %v166
    %v8508 = vpop.f32.mrb[0].mxu0
    %v8509 = vadd.f32 %v8468, %v8508
    %v8510 = vpop.f32.mrb[0].mxu0
    %v8511 = vadd.f32 %v8470, %v8510
    %v8512 = vpop.f32.mrb[0].mxu0
    %v8513 = vpop.f32.mrb[0].mxu0
    %8514 = vdwg.mxu0
    %8515 = vmatprep.subr.bf16.mxu0 %v5942
    %8516 = vmatpush1.bf16.msra.mxu0 %v5941
    %8517 = vmatprep.subr.bf16.mxu0 %v5950
    %8518 = vmatpush1.bf16.msra.mxu0 %v5949
    %8519 = vmatprep.subr.bf16.mxu0 %v5958
    %8520 = vmatpush1.bf16.msra.mxu0 %v5957
    %8521 = vmatprep.subr.bf16.mxu0 %v5966
    %8522 = vmatpush1.bf16.msra.mxu0 %v5965
    %8523 = vmatprep.subr.bf16.mxu0 %v5974
    %8524 = vmatpush1.bf16.msra.mxu0 %v5973
    %8525 = vmatprep.subr.bf16.mxu0 %v5982
    %8526 = vmatpush1.bf16.msra.mxu0 %v5981
    %8527 = vmatprep.subr.bf16.mxu0 %v5990
    %8528 = vmatpush1.bf16.msra.mxu0 %v5989
    %8529 = vmatprep.subr.bf16.mxu0 %v5998
    %8530 = vmatpush1.bf16.msra.mxu0 %v5997
    %8531 = vmatprep.subr.bf16.mxu0 %v6006
    %8532 = vmatpush1.bf16.msra.mxu0 %v6005
    %8533 = vmatprep.subr.bf16.mxu0 %v6014
    %8534 = vmatpush1.bf16.msra.mxu0 %v6013
    %8535 = vmatprep.subr.bf16.mxu0 %v6022
    %8536 = vmatpush1.bf16.msra.mxu0 %v6021
    %8537 = vmatprep.subr.bf16.mxu0 %v6030
    %8538 = vmatpush1.bf16.msra.mxu0 %v6029
    %8539 = vmatprep.subr.bf16.mxu0 %v6038
    %8540 = vmatpush1.bf16.msra.mxu0 %v6037
    %8541 = vmatprep.subr.bf16.mxu0 %v6046
    %8542 = vmatpush1.bf16.msra.mxu0 %v6045
    %8543 = vmatprep.subr.bf16.mxu0 %v6054
    %8544 = vmatpush1.bf16.msra.mxu0 %v6053
    %8545 = vmatprep.subr.bf16.mxu0 %v6062
    %8546 = vmatpush1.bf16.msra.mxu0 %v6061
    %8547 = vmatprep.mubr.bf16.mxu0 %v169
    %8548 = vmatmul.mubr.bf16.gmra.mrb[0].mxu0 %v168
    %v8549 = vpop.f32.mrb[0].mxu0
    %v8550 = vadd.f32 %v8509, %v8549
    %v8551 = vpop.f32.mrb[0].mxu0
    %v8552 = vadd.f32 %v8511, %v8551
    %v8553 = vpop.f32.mrb[0].mxu0
    %v8554 = vpop.f32.mrb[0].mxu0
    %8555 = vdwg.mxu0
    %8556 = vmatprep.subr.bf16.mxu0 %v6070
    %8557 = vmatpush1.bf16.msra.mxu0 %v6069
    %8558 = vmatprep.subr.bf16.mxu0 %v6078
    %8559 = vmatpush1.bf16.msra.mxu0 %v6077
    %8560 = vmatprep.subr.bf16.mxu0 %v6086
    %8561 = vmatpush1.bf16.msra.mxu0 %v6085
    %8562 = vmatprep.subr.bf16.mxu0 %v6094
    %8563 = vmatpush1.bf16.msra.mxu0 %v6093
    %8564 = vmatprep.subr.bf16.mxu0 %v6102
    %8565 = vmatpush1.bf16.msra.mxu0 %v6101
    %8566 = vmatprep.subr.bf16.mxu0 %v6110
    %8567 = vmatpush1.bf16.msra.mxu0 %v6109
    %8568 = vmatprep.subr.bf16.mxu0 %v6118
    %8569 = vmatpush1.bf16.msra.mxu0 %v6117
    %8570 = vmatprep.subr.bf16.mxu0 %v6126
    %8571 = vmatpush1.bf16.msra.mxu0 %v6125
    %8572 = vmatprep.subr.bf16.mxu0 %v6134
    %8573 = vmatpush1.bf16.msra.mxu0 %v6133
    %8574 = vmatprep.subr.bf16.mxu0 %v6142
    %8575 = vmatpush1.bf16.msra.mxu0 %v6141
    %8576 = vmatprep.subr.bf16.mxu0 %v6150
    %8577 = vmatpush1.bf16.msra.mxu0 %v6149
    %8578 = vmatprep.subr.bf16.mxu0 %v6158
    %8579 = vmatpush1.bf16.msra.mxu0 %v6157
    %8580 = vmatprep.subr.bf16.mxu0 %v6166
    %8581 = vmatpush1.bf16.msra.mxu0 %v6165
    %8582 = vmatprep.subr.bf16.mxu0 %v6174
    %8583 = vmatpush1.bf16.msra.mxu0 %v6173
    %8584 = vmatprep.subr.bf16.mxu0 %v6182
    %8585 = vmatpush1.bf16.msra.mxu0 %v6181
    %8586 = vmatprep.subr.bf16.mxu0 %v6190
    %8587 = vmatpush1.bf16.msra.mxu0 %v6189
    %8588 = vmatprep.mubr.bf16.mxu0 %v171
    %8589 = vmatmul.mubr.bf16.gmra.mrb[0].mxu0 %v170
    %v8590 = vpop.f32.mrb[0].mxu0
    %v8591 = vadd.f32 %v8550, %v8590
    %v8592 = vpop.f32.mrb[0].mxu0
    %v8593 = vadd.f32 %v8552, %v8592
    %v8594 = vpop.f32.mrb[0].mxu0
    %v8595 = vpop.f32.mrb[0].mxu0
    %8596 = vdwg.mxu0
    %8597 = vmatprep.subr.bf16.mxu0 %v6198
    %8598 = vmatpush1.bf16.msra.mxu0 %v6197
    %8599 = vmatprep.subr.bf16.mxu0 %v6206
    %8600 = vmatpush1.bf16.msra.mxu0 %v6205
    %8601 = vmatprep.subr.bf16.mxu0 %v6214
    %8602 = vmatpush1.bf16.msra.mxu0 %v6213
    %8603 = vmatprep.subr.bf16.mxu0 %v6222
    %8604 = vmatpush1.bf16.msra.mxu0 %v6221
    %8605 = vmatprep.subr.bf16.mxu0 %v6230
    %8606 = vmatpush1.bf16.msra.mxu0 %v6229
    %8607 = vmatprep.subr.bf16.mxu0 %v6238
    %8608 = vmatpush1.bf16.msra.mxu0 %v6237
    %8609 = vmatprep.subr.bf16.mxu0 %v6246
    %8610 = vmatpush1.bf16.msra.mxu0 %v6245
    %8611 = vmatprep.subr.bf16.mxu0 %v6254
    %8612 = vmatpush1.bf16.msra.mxu0 %v6253
    %8613 = vmatprep.subr.bf16.mxu0 %v6262
    %8614 = vmatpush1.bf16.msra.mxu0 %v6261
    %8615 = vmatprep.subr.bf16.mxu0 %v6270
    %8616 = vmatpush1.bf16.msra.mxu0 %v6269
    %8617 = vmatprep.subr.bf16.mxu0 %v6278
    %8618 = vmatpush1.bf16.msra.mxu0 %v6277
    %8619 = vmatprep.subr.bf16.mxu0 %v6286
    %8620 = vmatpush1.bf16.msra.mxu0 %v6285
    %8621 = vmatprep.subr.bf16.mxu0 %v6294
    %8622 = vmatpush1.bf16.msra.mxu0 %v6293
    %8623 = vmatprep.subr.bf16.mxu0 %v6302
    %8624 = vmatpush1.bf16.msra.mxu0 %v6301
    %8625 = vmatprep.subr.bf16.mxu0 %v6310
    %8626 = vmatpush1.bf16.msra.mxu0 %v6309
    %8627 = vmatprep.subr.bf16.mxu0 %v6318
    %8628 = vmatpush1.bf16.msra.mxu0 %v6317
    %8629 = vmatprep.mubr.bf16.mxu0 %v173
    %8630 = vmatmul.mubr.bf16.gmra.mrb[0].mxu0 %v172
    %v8631 = vpop.f32.mrb[0].mxu0
    %v8632 = vadd.f32 %v8591, %v8631
    %v8633 = vpop.f32.mrb[0].mxu0
    %v8634 = vadd.f32 %v8593, %v8633
    %v8635 = vpop.f32.mrb[0].mxu0
    %v8636 = vpop.f32.mrb[0].mxu0
    %8637 = vdwg.mxu0
    %8638 = vmatprep.subr.bf16.mxu0 %v6326
    %8639 = vmatpush1.bf16.msra.mxu0 %v6325
    %8640 = vmatprep.subr.bf16.mxu0 %v6334
    %8641 = vmatpush1.bf16.msra.mxu0 %v6333
    %8642 = vmatprep.subr.bf16.mxu0 %v6342
    %8643 = vmatpush1.bf16.msra.mxu0 %v6341
    %8644 = vmatprep.subr.bf16.mxu0 %v6350
    %8645 = vmatpush1.bf16.msra.mxu0 %v6349
    %8646 = vmatprep.subr.bf16.mxu0 %v6358
    %8647 = vmatpush1.bf16.msra.mxu0 %v6357
    %8648 = vmatprep.subr.bf16.mxu0 %v6366
    %8649 = vmatpush1.bf16.msra.mxu0 %v6365
    %8650 = vmatprep.subr.bf16.mxu0 %v6374
    %8651 = vmatpush1.bf16.msra.mxu0 %v6373
    %8652 = vmatprep.subr.bf16.mxu0 %v6382
    %8653 = vmatpush1.bf16.msra.mxu0 %v6381
    %8654 = vmatprep.subr.bf16.mxu0 %v6390
    %8655 = vmatpush1.bf16.msra.mxu0 %v6389
    %8656 = vmatprep.subr.bf16.mxu0 %v6398
    %8657 = vmatpush1.bf16.msra.mxu0 %v6397
    %8658 = vmatprep.subr.bf16.mxu0 %v6406
    %8659 = vmatpush1.bf16.msra.mxu0 %v6405
    %8660 = vmatprep.subr.bf16.mxu0 %v6414
    %8661 = vmatpush1.bf16.msra.mxu0 %v6413
    %8662 = vmatprep.subr.bf16.mxu0 %v6422
    %8663 = vmatpush1.bf16.msra.mxu0 %v6421
    %8664 = vmatprep.subr.bf16.mxu0 %v6430
    %8665 = vmatpush1.bf16.msra.mxu0 %v6429
    %8666 = vmatprep.subr.bf16.mxu0 %v6438
    %8667 = vmatpush1.bf16.msra.mxu0 %v6437
    %8668 = vmatprep.subr.bf16.mxu0 %v6446
    %8669 = vmatpush1.bf16.msra.mxu0 %v6445
    %8670 = vmatprep.mubr.bf16.mxu0 %v175
    %8671 = vmatmul.mubr.bf16.gmra.mrb[0].mxu0 %v174
    %v8672 = vpop.f32.mrb[0].mxu0
    %v8673 = vadd.f32 %v8632, %v8672
    %v8674 = vpop.f32.mrb[0].mxu0
    %v8675 = vadd.f32 %v8634, %v8674
    %v8676 = vpop.f32.mrb[0].mxu0
    %v8677 = vpop.f32.mrb[0].mxu0
    %8678 = vdwg.mxu0
    %8679 = vmatprep.subr.bf16.mxu0 %v6454
    %8680 = vmatpush1.bf16.msra.mxu0 %v6453
    %8681 = vmatprep.subr.bf16.mxu0 %v6462
    %8682 = vmatpush1.bf16.msra.mxu0 %v6461
    %8683 = vmatprep.subr.bf16.mxu0 %v6470
    %8684 = vmatpush1.bf16.msra.mxu0 %v6469
    %8685 = vmatprep.subr.bf16.mxu0 %v6478
    %8686 = vmatpush1.bf16.msra.mxu0 %v6477
    %8687 = vmatprep.subr.bf16.mxu0 %v6486
    %8688 = vmatpush1.bf16.msra.mxu0 %v6485
    %8689 = vmatprep.subr.bf16.mxu0 %v6494
    %8690 = vmatpush1.bf16.msra.mxu0 %v6493
    %8691 = vmatprep.subr.bf16.mxu0 %v6502
    %8692 = vmatpush1.bf16.msra.mxu0 %v6501
    %8693 = vmatprep.subr.bf16.mxu0 %v6510
    %8694 = vmatpush1.bf16.msra.mxu0 %v6509
    %8695 = vmatprep.subr.bf16.mxu0 %v6518
    %8696 = vmatpush1.bf16.msra.mxu0 %v6517
    %8697 = vmatprep.subr.bf16.mxu0 %v6526
    %8698 = vmatpush1.bf16.msra.mxu0 %v6525
    %8699 = vmatprep.subr.bf16.mxu0 %v6534
    %8700 = vmatpush1.bf16.msra.mxu0 %v6533
    %8701 = vmatprep.subr.bf16.mxu0 %v6542
    %8702 = vmatpush1.bf16.msra.mxu0 %v6541
    %8703 = vmatprep.subr.bf16.mxu0 %v6550
    %8704 = vmatpush1.bf16.msra.mxu0 %v6549
    %8705 = vmatprep.subr.bf16.mxu0 %v6558
    %8706 = vmatpush1.bf16.msra.mxu0 %v6557
    %8707 = vmatprep.subr.bf16.mxu0 %v6566
    %8708 = vmatpush1.bf16.msra.mxu0 %v6565
    %8709 = vmatprep.subr.bf16.mxu0 %v6574
    %8710 = vmatpush1.bf16.msra.mxu0 %v6573
    %8711 = vmatprep.mubr.bf16.mxu0 %v177
    %8712 = vmatmul.mubr.bf16.gmra.mrb[0].mxu0 %v176
    %v8713 = vpop.f32.mrb[0].mxu0
    %v8714 = vadd.f32 %v8673, %v8713
    %v8715 = vpop.f32.mrb[0].mxu0
    %v8716 = vadd.f32 %v8675, %v8715
    %v8717 = vpop.f32.mrb[0].mxu0
    %v8718 = vpop.f32.mrb[0].mxu0
    %8719 = vdwg.mxu0
    %8720 = vmatprep.subr.bf16.mxu0 %v5304
    %8721 = vmatpush1.bf16.msra.mxu0 %v5303
    %8722 = vmatprep.subr.bf16.mxu0 %v5312
    %8723 = vmatpush1.bf16.msra.mxu0 %v5311
    %8724 = vmatprep.subr.bf16.mxu0 %v5320
    %8725 = vmatpush1.bf16.msra.mxu0 %v5319
    %8726 = vmatprep.subr.bf16.mxu0 %v5328
    %8727 = vmatpush1.bf16.msra.mxu0 %v5327
    %8728 = vmatprep.subr.bf16.mxu0 %v5336
    %8729 = vmatpush1.bf16.msra.mxu0 %v5335
    %8730 = vmatprep.subr.bf16.mxu0 %v5344
    %8731 = vmatpush1.bf16.msra.mxu0 %v5343
    %8732 = vmatprep.subr.bf16.mxu0 %v5352
    %8733 = vmatpush1.bf16.msra.mxu0 %v5351
    %8734 = vmatprep.subr.bf16.mxu0 %v5360
    %8735 = vmatpush1.bf16.msra.mxu0 %v5359
    %8736 = vmatprep.subr.bf16.mxu0 %v5368
    %8737 = vmatpush1.bf16.msra.mxu0 %v5367
    %8738 = vmatprep.subr.bf16.mxu0 %v5376
    %8739 = vmatpush1.bf16.msra.mxu0 %v5375
    %8740 = vmatprep.subr.bf16.mxu0 %v5384
    %8741 = vmatpush1.bf16.msra.mxu0 %v5383
    %8742 = vmatprep.subr.bf16.mxu0 %v5392
    %8743 = vmatpush1.bf16.msra.mxu0 %v5391
    %8744 = vmatprep.subr.bf16.mxu0 %v5400
    %8745 = vmatpush1.bf16.msra.mxu0 %v5399
    %8746 = vmatprep.subr.bf16.mxu0 %v5408
    %8747 = vmatpush1.bf16.msra.mxu0 %v5407
    %8748 = vmatprep.subr.bf16.mxu0 %v5416
    %8749 = vmatpush1.bf16.msra.mxu0 %v5415
    %8750 = vmatprep.subr.bf16.mxu0 %v5424
    %8751 = vmatpush1.bf16.msra.mxu0 %v5423
    %8752 = vmatprep.mubr.bf16.mxu0 %v159
    %8753 = vmatmul.mubr.bf16.gmra.mrb[0].mxu0 %v158
    %v8754 = vpop.f32.mrb[0].mxu0
    %v8755 = vadd.f32 %v7879, %v8754
    %v8756 = vpop.f32.mrb[0].mxu0
    %v8757 = vadd.f32 %v7883, %v8756
    %v8758 = vpop.f32.mrb[0].mxu0
    %v8759 = vpop.f32.mrb[0].mxu0
    %8760 = vdwg.mxu0
    %8761 = vmatprep.subr.bf16.mxu0 %v5432
    %8762 = vmatpush1.bf16.msra.mxu0 %v5431
    %8763 = vmatprep.subr.bf16.mxu0 %v5440
    %8764 = vmatpush1.bf16.msra.mxu0 %v5439
    %8765 = vmatprep.subr.bf16.mxu0 %v5448
    %8766 = vmatpush1.bf16.msra.mxu0 %v5447
    %8767 = vmatprep.subr.bf16.mxu0 %v5456
    %8768 = vmatpush1.bf16.msra.mxu0 %v5455
    %8769 = vmatprep.subr.bf16.mxu0 %v5464
    %8770 = vmatpush1.bf16.msra.mxu0 %v5463
    %8771 = vmatprep.subr.bf16.mxu0 %v5472
    %8772 = vmatpush1.bf16.msra.mxu0 %v5471
    %8773 = vmatprep.subr.bf16.mxu0 %v5480
    %8774 = vmatpush1.bf16.msra.mxu0 %v5479
    %8775 = vmatprep.subr.bf16.mxu0 %v5488
    %8776 = vmatpush1.bf16.msra.mxu0 %v5487
    %8777 = vmatprep.subr.bf16.mxu0 %v5496
    %8778 = vmatpush1.bf16.msra.mxu0 %v5495
    %8779 = vmatprep.subr.bf16.mxu0 %v5504
    %8780 = vmatpush1.bf16.msra.mxu0 %v5503
    %8781 = vmatprep.subr.bf16.mxu0 %v5512
    %8782 = vmatpush1.bf16.msra.mxu0 %v5511
    %8783 = vmatprep.subr.bf16.mxu0 %v5520
    %8784 = vmatpush1.bf16.msra.mxu0 %v5519
    %8785 = vmatprep.subr.bf16.mxu0 %v5528
    %8786 = vmatpush1.bf16.msra.mxu0 %v5527
    %8787 = vmatprep.subr.bf16.mxu0 %v5536
    %8788 = vmatpush1.bf16.msra.mxu0 %v5535
    %8789 = vmatprep.subr.bf16.mxu0 %v5544
    %8790 = vmatpush1.bf16.msra.mxu0 %v5543
    %8791 = vmatprep.subr.bf16.mxu0 %v5552
    %8792 = vmatpush1.bf16.msra.mxu0 %v5551
    %8793 = vmatprep.mubr.bf16.mxu0 %v161
    %8794 = vmatmul.mubr.bf16.gmra.mrb[0].mxu0 %v160
    %v8795 = vpop.f32.mrb[0].mxu0
    %v8796 = vadd.f32 %v8755, %v8795
    %v8797 = vpop.f32.mrb[0].mxu0
    %v8798 = vadd.f32 %v8757, %v8797
    %v8799 = vpop.f32.mrb[0].mxu0
    %v8800 = vpop.f32.mrb[0].mxu0
    %8801 = vdwg.mxu0
    %8802 = vmatprep.subr.bf16.mxu0 %v5560
    %8803 = vmatpush1.bf16.msra.mxu0 %v5559
    %8804 = vmatprep.subr.bf16.mxu0 %v5568
    %8805 = vmatpush1.bf16.msra.mxu0 %v5567
    %8806 = vmatprep.subr.bf16.mxu0 %v5576
    %8807 = vmatpush1.bf16.msra.mxu0 %v5575
    %8808 = vmatprep.subr.bf16.mxu0 %v5584
    %8809 = vmatpush1.bf16.msra.mxu0 %v5583
    %8810 = vmatprep.subr.bf16.mxu0 %v5592
    %8811 = vmatpush1.bf16.msra.mxu0 %v5591
    %8812 = vmatprep.subr.bf16.mxu0 %v5600
    %8813 = vmatpush1.bf16.msra.mxu0 %v5599
    %8814 = vmatprep.subr.bf16.mxu0 %v5608
    %8815 = vmatpush1.bf16.msra.mxu0 %v5607
    %8816 = vmatprep.subr.bf16.mxu0 %v5616
    %8817 = vmatpush1.bf16.msra.mxu0 %v5615
    %8818 = vmatprep.subr.bf16.mxu0 %v5624
    %8819 = vmatpush1.bf16.msra.mxu0 %v5623
    %8820 = vmatprep.subr.bf16.mxu0 %v5632
    %8821 = vmatpush1.bf16.msra.mxu0 %v5631
    %8822 = vmatprep.subr.bf16.mxu0 %v5640
    %8823 = vmatpush1.bf16.msra.mxu0 %v5639
    %8824 = vmatprep.subr.bf16.mxu0 %v5648
    %8825 = vmatpush1.bf16.msra.mxu0 %v5647
    %8826 = vmatprep.subr.bf16.mxu0 %v5656
    %8827 = vmatpush1.bf16.msra.mxu0 %v5655
    %8828 = vmatprep.subr.bf16.mxu0 %v5664
    %8829 = vmatpush1.bf16.msra.mxu0 %v5663
    %8830 = vmatprep.subr.bf16.mxu0 %v5672
    %8831 = vmatpush1.bf16.msra.mxu0 %v5671
    %8832 = vmatprep.subr.bf16.mxu0 %v5680
    %8833 = vmatpush1.bf16.msra.mxu0 %v5679
    %8834 = vmatprep.mubr.bf16.mxu0 %v163
    %8835 = vmatmul.mubr.bf16.gmra.mrb[0].mxu0 %v162
    %v8836 = vpop.f32.mrb[0].mxu0
    %v8837 = vadd.f32 %v8796, %v8836
    %v8838 = vpop.f32.mrb[0].mxu0
    %v8839 = vadd.f32 %v8798, %v8838
    %v8840 = vpop.f32.mrb[0].mxu0
    %v8841 = vpop.f32.mrb[0].mxu0
    %8842 = vdwg.mxu0
    %8843 = vmatprep.subr.bf16.mxu0 %v5688
    %8844 = vmatpush1.bf16.msra.mxu0 %v5687
    %8845 = vmatprep.subr.bf16.mxu0 %v5696
    %8846 = vmatpush1.bf16.msra.mxu0 %v5695
    %8847 = vmatprep.subr.bf16.mxu0 %v5704
    %8848 = vmatpush1.bf16.msra.mxu0 %v5703
    %8849 = vmatprep.subr.bf16.mxu0 %v5712
    %8850 = vmatpush1.bf16.msra.mxu0 %v5711
    %8851 = vmatprep.subr.bf16.mxu0 %v5720
    %8852 = vmatpush1.bf16.msra.mxu0 %v5719
    %8853 = vmatprep.subr.bf16.mxu0 %v5728
    %8854 = vmatpush1.bf16.msra.mxu0 %v5727
    %8855 = vmatprep.subr.bf16.mxu0 %v5736
    %8856 = vmatpush1.bf16.msra.mxu0 %v5735
    %8857 = vmatprep.subr.bf16.mxu0 %v5744
    %8858 = vmatpush1.bf16.msra.mxu0 %v5743
    %8859 = vmatprep.subr.bf16.mxu0 %v5752
    %8860 = vmatpush1.bf16.msra.mxu0 %v5751
    %8861 = vmatprep.subr.bf16.mxu0 %v5760
    %8862 = vmatpush1.bf16.msra.mxu0 %v5759
    %8863 = vmatprep.subr.bf16.mxu0 %v5768
    %8864 = vmatpush1.bf16.msra.mxu0 %v5767
    %8865 = vmatprep.subr.bf16.mxu0 %v5776
    %8866 = vmatpush1.bf16.msra.mxu0 %v5775
    %8867 = vmatprep.subr.bf16.mxu0 %v5784
    %8868 = vmatpush1.bf16.msra.mxu0 %v5783
    %8869 = vmatprep.subr.bf16.mxu0 %v5792
    %8870 = vmatpush1.bf16.msra.mxu0 %v5791
    %8871 = vmatprep.subr.bf16.mxu0 %v5800
    %8872 = vmatpush1.bf16.msra.mxu0 %v5799
    %8873 = vmatprep.subr.bf16.mxu0 %v5808
    %8874 = vmatpush1.bf16.msra.mxu0 %v5807
    %8875 = vmatprep.mubr.bf16.mxu0 %v165
    %8876 = vmatmul.mubr.bf16.gmra.mrb[0].mxu0 %v164
    %v8877 = vpop.f32.mrb[0].mxu0
    %v8878 = vadd.f32 %v8837, %v8877
    %v8879 = vpop.f32.mrb[0].mxu0
    %v8880 = vadd.f32 %v8839, %v8879
    %v8881 = vpop.f32.mrb[0].mxu0
    %v8882 = vpop.f32.mrb[0].mxu0
    %8883 = vdwg.mxu0
    %8884 = vmatprep.subr.bf16.mxu0 %v5816
    %8885 = vmatpush1.bf16.msra.mxu0 %v5815
    %8886 = vmatprep.subr.bf16.mxu0 %v5824
    %8887 = vmatpush1.bf16.msra.mxu0 %v5823
    %8888 = vmatprep.subr.bf16.mxu0 %v5832
    %8889 = vmatpush1.bf16.msra.mxu0 %v5831
    %8890 = vmatprep.subr.bf16.mxu0 %v5840
    %8891 = vmatpush1.bf16.msra.mxu0 %v5839
    %8892 = vmatprep.subr.bf16.mxu0 %v5848
    %8893 = vmatpush1.bf16.msra.mxu0 %v5847
    %8894 = vmatprep.subr.bf16.mxu0 %v5856
    %8895 = vmatpush1.bf16.msra.mxu0 %v5855
    %8896 = vmatprep.subr.bf16.mxu0 %v5864
    %8897 = vmatpush1.bf16.msra.mxu0 %v5863
    %8898 = vmatprep.subr.bf16.mxu0 %v5872
    %8899 = vmatpush1.bf16.msra.mxu0 %v5871
    %8900 = vmatprep.subr.bf16.mxu0 %v5880
    %8901 = vmatpush1.bf16.msra.mxu0 %v5879
    %8902 = vmatprep.subr.bf16.mxu0 %v5888
    %8903 = vmatpush1.bf16.msra.mxu0 %v5887
    %8904 = vmatprep.subr.bf16.mxu0 %v5896
    %8905 = vmatpush1.bf16.msra.mxu0 %v5895
    %8906 = vmatprep.subr.bf16.mxu0 %v5904
    %8907 = vmatpush1.bf16.msra.mxu0 %v5903
    %8908 = vmatprep.subr.bf16.mxu0 %v5912
    %8909 = vmatpush1.bf16.msra.mxu0 %v5911
    %8910 = vmatprep.subr.bf16.mxu0 %v5920
    %8911 = vmatpush1.bf16.msra.mxu0 %v5919
    %8912 = vmatprep.subr.bf16.mxu0 %v5928
    %8913 = vmatpush1.bf16.msra.mxu0 %v5927
    %8914 = vmatprep.subr.bf16.mxu0 %v5936
    %8915 = vmatpush1.bf16.msra.mxu0 %v5935
    %8916 = vmatprep.mubr.bf16.mxu0 %v167
    %8917 = vmatmul.mubr.bf16.gmra.mrb[0].mxu0 %v166
    %v8918 = vpop.f32.mrb[0].mxu0
    %v8919 = vadd.f32 %v8878, %v8918
    %v8920 = vpop.f32.mrb[0].mxu0
    %v8921 = vadd.f32 %v8880, %v8920
    %v8922 = vpop.f32.mrb[0].mxu0
    %v8923 = vpop.f32.mrb[0].mxu0
    %8924 = vdwg.mxu0
    %8925 = vmatprep.subr.bf16.mxu0 %v5944
    %8926 = vmatpush1.bf16.msra.mxu0 %v5943
    %8927 = vmatprep.subr.bf16.mxu0 %v5952
    %8928 = vmatpush1.bf16.msra.mxu0 %v5951
    %8929 = vmatprep.subr.bf16.mxu0 %v5960
    %8930 = vmatpush1.bf16.msra.mxu0 %v5959
    %8931 = vmatprep.subr.bf16.mxu0 %v5968
    %8932 = vmatpush1.bf16.msra.mxu0 %v5967
    %8933 = vmatprep.subr.bf16.mxu0 %v5976
    %8934 = vmatpush1.bf16.msra.mxu0 %v5975
    %8935 = vmatprep.subr.bf16.mxu0 %v5984
    %8936 = vmatpush1.bf16.msra.mxu0 %v5983
    %8937 = vmatprep.subr.bf16.mxu0 %v5992
    %8938 = vmatpush1.bf16.msra.mxu0 %v5991
    %8939 = vmatprep.subr.bf16.mxu0 %v6000
    %8940 = vmatpush1.bf16.msra.mxu0 %v5999
    %8941 = vmatprep.subr.bf16.mxu0 %v6008
    %8942 = vmatpush1.bf16.msra.mxu0 %v6007
    %8943 = vmatprep.subr.bf16.mxu0 %v6016
    %8944 = vmatpush1.bf16.msra.mxu0 %v6015
    %8945 = vmatprep.subr.bf16.mxu0 %v6024
    %8946 = vmatpush1.bf16.msra.mxu0 %v6023
    %8947 = vmatprep.subr.bf16.mxu0 %v6032
    %8948 = vmatpush1.bf16.msra.mxu0 %v6031
    %8949 = vmatprep.subr.bf16.mxu0 %v6040
    %8950 = vmatpush1.bf16.msra.mxu0 %v6039
    %8951 = vmatprep.subr.bf16.mxu0 %v6048
    %8952 = vmatpush1.bf16.msra.mxu0 %v6047
    %8953 = vmatprep.subr.bf16.mxu0 %v6056
    %8954 = vmatpush1.bf16.msra.mxu0 %v6055
    %8955 = vmatprep.subr.bf16.mxu0 %v6064
    %8956 = vmatpush1.bf16.msra.mxu0 %v6063
    %8957 = vmatprep.mubr.bf16.mxu0 %v169
    %8958 = vmatmul.mubr.bf16.gmra.mrb[0].mxu0 %v168
    %v8959 = vpop.f32.mrb[0].mxu0
    %v8960 = vadd.f32 %v8919, %v8959
    %v8961 = vpop.f32.mrb[0].mxu0
    %v8962 = vadd.f32 %v8921, %v8961
    %v8963 = vpop.f32.mrb[0].mxu0
    %v8964 = vpop.f32.mrb[0].mxu0
    %8965 = vdwg.mxu0
    %8966 = vmatprep.subr.bf16.mxu0 %v6072
    %8967 = vmatpush1.bf16.msra.mxu0 %v6071
    %8968 = vmatprep.subr.bf16.mxu0 %v6080
    %8969 = vmatpush1.bf16.msra.mxu0 %v6079
    %8970 = vmatprep.subr.bf16.mxu0 %v6088
    %8971 = vmatpush1.bf16.msra.mxu0 %v6087
    %8972 = vmatprep.subr.bf16.mxu0 %v6096
    %8973 = vmatpush1.bf16.msra.mxu0 %v6095
    %8974 = vmatprep.subr.bf16.mxu0 %v6104
    %8975 = vmatpush1.bf16.msra.mxu0 %v6103
    %8976 = vmatprep.subr.bf16.mxu0 %v6112
    %8977 = vmatpush1.bf16.msra.mxu0 %v6111
    %8978 = vmatprep.subr.bf16.mxu0 %v6120
    %8979 = vmatpush1.bf16.msra.mxu0 %v6119
    %8980 = vmatprep.subr.bf16.mxu0 %v6128
    %8981 = vmatpush1.bf16.msra.mxu0 %v6127
    %8982 = vmatprep.subr.bf16.mxu0 %v6136
    %8983 = vmatpush1.bf16.msra.mxu0 %v6135
    %8984 = vmatprep.subr.bf16.mxu0 %v6144
    %8985 = vmatpush1.bf16.msra.mxu0 %v6143
    %8986 = vmatprep.subr.bf16.mxu0 %v6152
    %8987 = vmatpush1.bf16.msra.mxu0 %v6151
    %8988 = vmatprep.subr.bf16.mxu0 %v6160
    %8989 = vmatpush1.bf16.msra.mxu0 %v6159
    %8990 = vmatprep.subr.bf16.mxu0 %v6168
    %8991 = vmatpush1.bf16.msra.mxu0 %v6167
    %8992 = vmatprep.subr.bf16.mxu0 %v6176
    %8993 = vmatpush1.bf16.msra.mxu0 %v6175
    %8994 = vmatprep.subr.bf16.mxu0 %v6184
    %8995 = vmatpush1.bf16.msra.mxu0 %v6183
    %8996 = vmatprep.subr.bf16.mxu0 %v6192
    %8997 = vmatpush1.bf16.msra.mxu0 %v6191
    %8998 = vmatprep.mubr.bf16.mxu0 %v171
    %8999 = vmatmul.mubr.bf16.gmra.mrb[0].mxu0 %v170
    %v9000 = vpop.f32.mrb[0].mxu0
    %v9001 = vadd.f32 %v8960, %v9000
    %v9002 = vpop.f32.mrb[0].mxu0
    %v9003 = vadd.f32 %v8962, %v9002
    %v9004 = vpop.f32.mrb[0].mxu0
    %v9005 = vpop.f32.mrb[0].mxu0
    %9006 = vdwg.mxu0
    %9007 = vmatprep.subr.bf16.mxu0 %v6200
    %9008 = vmatpush1.bf16.msra.mxu0 %v6199
    %9009 = vmatprep.subr.bf16.mxu0 %v6208
    %9010 = vmatpush1.bf16.msra.mxu0 %v6207
    %9011 = vmatprep.subr.bf16.mxu0 %v6216
    %9012 = vmatpush1.bf16.msra.mxu0 %v6215
    %9013 = vmatprep.subr.bf16.mxu0 %v6224
    %9014 = vmatpush1.bf16.msra.mxu0 %v6223
    %9015 = vmatprep.subr.bf16.mxu0 %v6232
    %9016 = vmatpush1.bf16.msra.mxu0 %v6231
    %9017 = vmatprep.subr.bf16.mxu0 %v6240
    %9018 = vmatpush1.bf16.msra.mxu0 %v6239
    %9019 = vmatprep.subr.bf16.mxu0 %v6248
    %9020 = vmatpush1.bf16.msra.mxu0 %v6247
    %9021 = vmatprep.subr.bf16.mxu0 %v6256
    %9022 = vmatpush1.bf16.msra.mxu0 %v6255
    %9023 = vmatprep.subr.bf16.mxu0 %v6264
    %9024 = vmatpush1.bf16.msra.mxu0 %v6263
    %9025 = vmatprep.subr.bf16.mxu0 %v6272
    %9026 = vmatpush1.bf16.msra.mxu0 %v6271
    %9027 = vmatprep.subr.bf16.mxu0 %v6280
    %9028 = vmatpush1.bf16.msra.mxu0 %v6279
    %9029 = vmatprep.subr.bf16.mxu0 %v6288
    %9030 = vmatpush1.bf16.msra.mxu0 %v6287
    %9031 = vmatprep.subr.bf16.mxu0 %v6296
    %9032 = vmatpush1.bf16.msra.mxu0 %v6295
    %9033 = vmatprep.subr.bf16.mxu0 %v6304
    %9034 = vmatpush1.bf16.msra.mxu0 %v6303
    %9035 = vmatprep.subr.bf16.mxu0 %v6312
    %9036 = vmatpush1.bf16.msra.mxu0 %v6311
    %9037 = vmatprep.subr.bf16.mxu0 %v6320
    %9038 = vmatpush1.bf16.msra.mxu0 %v6319
    %9039 = vmatprep.mubr.bf16.mxu0 %v173
    %9040 = vmatmul.mubr.bf16.gmra.mrb[0].mxu0 %v172
    %v9041 = vpop.f32.mrb[0].mxu0
    %v9042 = vadd.f32 %v9001, %v9041
    %v9043 = vpop.f32.mrb[0].mxu0
    %v9044 = vadd.f32 %v9003, %v9043
    %v9045 = vpop.f32.mrb[0].mxu0
    %v9046 = vpop.f32.mrb[0].mxu0
    %9047 = vdwg.mxu0
    %9048 = vmatprep.subr.bf16.mxu0 %v6328
    %9049 = vmatpush1.bf16.msra.mxu0 %v6327
    %9050 = vmatprep.subr.bf16.mxu0 %v6336
    %9051 = vmatpush1.bf16.msra.mxu0 %v6335
    %9052 = vmatprep.subr.bf16.mxu0 %v6344
    %9053 = vmatpush1.bf16.msra.mxu0 %v6343
    %9054 = vmatprep.subr.bf16.mxu0 %v6352
    %9055 = vmatpush1.bf16.msra.mxu0 %v6351
    %9056 = vmatprep.subr.bf16.mxu0 %v6360
    %9057 = vmatpush1.bf16.msra.mxu0 %v6359
    %9058 = vmatprep.subr.bf16.mxu0 %v6368
    %9059 = vmatpush1.bf16.msra.mxu0 %v6367
    %9060 = vmatprep.subr.bf16.mxu0 %v6376
    %9061 = vmatpush1.bf16.msra.mxu0 %v6375
    %9062 = vmatprep.subr.bf16.mxu0 %v6384
    %9063 = vmatpush1.bf16.msra.mxu0 %v6383
    %9064 = vmatprep.subr.bf16.mxu0 %v6392
    %9065 = vmatpush1.bf16.msra.mxu0 %v6391
    %9066 = vmatprep.subr.bf16.mxu0 %v6400
    %9067 = vmatpush1.bf16.msra.mxu0 %v6399
    %9068 = vmatprep.subr.bf16.mxu0 %v6408
    %9069 = vmatpush1.bf16.msra.mxu0 %v6407
    %9070 = vmatprep.subr.bf16.mxu0 %v6416
    %9071 = vmatpush1.bf16.msra.mxu0 %v6415
    %9072 = vmatprep.subr.bf16.mxu0 %v6424
    %9073 = vmatpush1.bf16.msra.mxu0 %v6423
    %9074 = vmatprep.subr.bf16.mxu0 %v6432
    %9075 = vmatpush1.bf16.msra.mxu0 %v6431
    %9076 = vmatprep.subr.bf16.mxu0 %v6440
    %9077 = vmatpush1.bf16.msra.mxu0 %v6439
    %9078 = vmatprep.subr.bf16.mxu0 %v6448
    %9079 = vmatpush1.bf16.msra.mxu0 %v6447
    %9080 = vmatprep.mubr.bf16.mxu0 %v175
    %9081 = vmatmul.mubr.bf16.gmra.mrb[0].mxu0 %v174
    %v9082 = vpop.f32.mrb[0].mxu0
    %v9083 = vadd.f32 %v9042, %v9082
    %v9084 = vpop.f32.mrb[0].mxu0
    %v9085 = vadd.f32 %v9044, %v9084
    %v9086 = vpop.f32.mrb[0].mxu0
    %v9087 = vpop.f32.mrb[0].mxu0
    %9088 = vdwg.mxu0
    %9089 = vmatprep.subr.bf16.mxu0 %v6456
    %9090 = vmatpush1.bf16.msra.mxu0 %v6455
    %9091 = vmatprep.subr.bf16.mxu0 %v6464
    %9092 = vmatpush1.bf16.msra.mxu0 %v6463
    %9093 = vmatprep.subr.bf16.mxu0 %v6472
    %9094 = vmatpush1.bf16.msra.mxu0 %v6471
    %9095 = vmatprep.subr.bf16.mxu0 %v6480
    %9096 = vmatpush1.bf16.msra.mxu0 %v6479
    %9097 = vmatprep.subr.bf16.mxu0 %v6488
    %9098 = vmatpush1.bf16.msra.mxu0 %v6487
    %9099 = vmatprep.subr.bf16.mxu0 %v6496
    %9100 = vmatpush1.bf16.msra.mxu0 %v6495
    %9101 = vmatprep.subr.bf16.mxu0 %v6504
    %9102 = vmatpush1.bf16.msra.mxu0 %v6503
    %9103 = vmatprep.subr.bf16.mxu0 %v6512
    %9104 = vmatpush1.bf16.msra.mxu0 %v6511
    %9105 = vmatprep.subr.bf16.mxu0 %v6520
    %9106 = vmatpush1.bf16.msra.mxu0 %v6519
    %9107 = vmatprep.subr.bf16.mxu0 %v6528
    %9108 = vmatpush1.bf16.msra.mxu0 %v6527
    %9109 = vmatprep.subr.bf16.mxu0 %v6536
    %9110 = vmatpush1.bf16.msra.mxu0 %v6535
    %9111 = vmatprep.subr.bf16.mxu0 %v6544
    %9112 = vmatpush1.bf16.msra.mxu0 %v6543
    %9113 = vmatprep.subr.bf16.mxu0 %v6552
    %9114 = vmatpush1.bf16.msra.mxu0 %v6551
    %9115 = vmatprep.subr.bf16.mxu0 %v6560
    %9116 = vmatpush1.bf16.msra.mxu0 %v6559
    %9117 = vmatprep.subr.bf16.mxu0 %v6568
    %9118 = vmatpush1.bf16.msra.mxu0 %v6567
    %9119 = vmatprep.subr.bf16.mxu0 %v6576
    %9120 = vmatpush1.bf16.msra.mxu0 %v6575
    %9121 = vmatprep.mubr.bf16.mxu0 %v177
    %9122 = vmatmul.mubr.bf16.gmra.mrb[0].mxu0 %v176
    %v9123 = vpop.f32.mrb[0].mxu0
    %v9124 = vadd.f32 %v9083, %v9123
    %v9125 = vpop.f32.mrb[0].mxu0
    %v9126 = vadd.f32 %v9085, %v9125
    %v9127 = vpop.f32.mrb[0].mxu0
    %v9128 = vpop.f32.mrb[0].mxu0
    %9129 = vdwg.mxu0
    %9130 = vmatprep.subr.bf16.mxu0 %v5306
    %9131 = vmatpush1.bf16.msra.mxu0 %v5305
    %9132 = vmatprep.subr.bf16.mxu0 %v5314
    %9133 = vmatpush1.bf16.msra.mxu0 %v5313
    %9134 = vmatprep.subr.bf16.mxu0 %v5322
    %9135 = vmatpush1.bf16.msra.mxu0 %v5321
    %9136 = vmatprep.subr.bf16.mxu0 %v5330
    %9137 = vmatpush1.bf16.msra.mxu0 %v5329
    %9138 = vmatprep.subr.bf16.mxu0 %v5338
    %9139 = vmatpush1.bf16.msra.mxu0 %v5337
    %9140 = vmatprep.subr.bf16.mxu0 %v5346
    %9141 = vmatpush1.bf16.msra.mxu0 %v5345
    %9142 = vmatprep.subr.bf16.mxu0 %v5354
    %9143 = vmatpush1.bf16.msra.mxu0 %v5353
    %9144 = vmatprep.subr.bf16.mxu0 %v5362
    %9145 = vmatpush1.bf16.msra.mxu0 %v5361
    %9146 = vmatprep.subr.bf16.mxu0 %v5370
    %9147 = vmatpush1.bf16.msra.mxu0 %v5369
    %9148 = vmatprep.subr.bf16.mxu0 %v5378
    %9149 = vmatpush1.bf16.msra.mxu0 %v5377
    %9150 = vmatprep.subr.bf16.mxu0 %v5386
    %9151 = vmatpush1.bf16.msra.mxu0 %v5385
    %9152 = vmatprep.subr.bf16.mxu0 %v5394
    %9153 = vmatpush1.bf16.msra.mxu0 %v5393
    %9154 = vmatprep.subr.bf16.mxu0 %v5402
    %9155 = vmatpush1.bf16.msra.mxu0 %v5401
    %9156 = vmatprep.subr.bf16.mxu0 %v5410
    %9157 = vmatpush1.bf16.msra.mxu0 %v5409
    %9158 = vmatprep.subr.bf16.mxu0 %v5418
    %9159 = vmatpush1.bf16.msra.mxu0 %v5417
    %9160 = vmatprep.subr.bf16.mxu0 %v5426
    %9161 = vmatpush1.bf16.msra.mxu0 %v5425
    %9162 = vmatprep.mubr.bf16.mxu0 %v159
    %9163 = vmatmul.mubr.bf16.gmra.mrb[0].mxu0 %v158
    %v9164 = vpop.f32.mrb[0].mxu0
    %v9165 = vadd.f32 %v7887, %v9164
    %v9166 = vpop.f32.mrb[0].mxu0
    %v9167 = vadd.f32 %v7891, %v9166
    %v9168 = vpop.f32.mrb[0].mxu0
    %v9169 = vpop.f32.mrb[0].mxu0
    %9170 = vdwg.mxu0
    %9171 = vmatprep.subr.bf16.mxu0 %v5434
    %9172 = vmatpush1.bf16.msra.mxu0 %v5433
    %9173 = vmatprep.subr.bf16.mxu0 %v5442
    %9174 = vmatpush1.bf16.msra.mxu0 %v5441
    %9175 = vmatprep.subr.bf16.mxu0 %v5450
    %9176 = vmatpush1.bf16.msra.mxu0 %v5449
    %9177 = vmatprep.subr.bf16.mxu0 %v5458
    %9178 = vmatpush1.bf16.msra.mxu0 %v5457
    %9179 = vmatprep.subr.bf16.mxu0 %v5466
    %9180 = vmatpush1.bf16.msra.mxu0 %v5465
    %9181 = vmatprep.subr.bf16.mxu0 %v5474
    %9182 = vmatpush1.bf16.msra.mxu0 %v5473
    %9183 = vmatprep.subr.bf16.mxu0 %v5482
    %9184 = vmatpush1.bf16.msra.mxu0 %v5481
    %9185 = vmatprep.subr.bf16.mxu0 %v5490
    %9186 = vmatpush1.bf16.msra.mxu0 %v5489
    %9187 = vmatprep.subr.bf16.mxu0 %v5498
    %9188 = vmatpush1.bf16.msra.mxu0 %v5497
    %9189 = vmatprep.subr.bf16.mxu0 %v5506
    %9190 = vmatpush1.bf16.msra.mxu0 %v5505
    %9191 = vmatprep.subr.bf16.mxu0 %v5514
    %9192 = vmatpush1.bf16.msra.mxu0 %v5513
    %9193 = vmatprep.subr.bf16.mxu0 %v5522
    %9194 = vmatpush1.bf16.msra.mxu0 %v5521
    %9195 = vmatprep.subr.bf16.mxu0 %v5530
    %9196 = vmatpush1.bf16.msra.mxu0 %v5529
    %9197 = vmatprep.subr.bf16.mxu0 %v5538
    %9198 = vmatpush1.bf16.msra.mxu0 %v5537
    %9199 = vmatprep.subr.bf16.mxu0 %v5546
    %9200 = vmatpush1.bf16.msra.mxu0 %v5545
    %9201 = vmatprep.subr.bf16.mxu0 %v5554
    %9202 = vmatpush1.bf16.msra.mxu0 %v5553
    %9203 = vmatprep.mubr.bf16.mxu0 %v161
    %9204 = vmatmul.mubr.bf16.gmra.mrb[0].mxu0 %v160
    %v9205 = vpop.f32.mrb[0].mxu0
    %v9206 = vadd.f32 %v9165, %v9205
    %v9207 = vpop.f32.mrb[0].mxu0
    %v9208 = vadd.f32 %v9167, %v9207
    %v9209 = vpop.f32.mrb[0].mxu0
    %v9210 = vpop.f32.mrb[0].mxu0
    %9211 = vdwg.mxu0
    %9212 = vmatprep.subr.bf16.mxu0 %v5562
    %9213 = vmatpush1.bf16.msra.mxu0 %v5561
    %9214 = vmatprep.subr.bf16.mxu0 %v5570
    %9215 = vmatpush1.bf16.msra.mxu0 %v5569
    %9216 = vmatprep.subr.bf16.mxu0 %v5578
    %9217 = vmatpush1.bf16.msra.mxu0 %v5577
    %9218 = vmatprep.subr.bf16.mxu0 %v5586
    %9219 = vmatpush1.bf16.msra.mxu0 %v5585
    %9220 = vmatprep.subr.bf16.mxu0 %v5594
    %9221 = vmatpush1.bf16.msra.mxu0 %v5593
    %9222 = vmatprep.subr.bf16.mxu0 %v5602
    %9223 = vmatpush1.bf16.msra.mxu0 %v5601
    %9224 = vmatprep.subr.bf16.mxu0 %v5610
    %9225 = vmatpush1.bf16.msra.mxu0 %v5609
    %9226 = vmatprep.subr.bf16.mxu0 %v5618
    %9227 = vmatpush1.bf16.msra.mxu0 %v5617
    %9228 = vmatprep.subr.bf16.mxu0 %v5626
    %9229 = vmatpush1.bf16.msra.mxu0 %v5625
    %9230 = vmatprep.subr.bf16.mxu0 %v5634
    %9231 = vmatpush1.bf16.msra.mxu0 %v5633
    %9232 = vmatprep.subr.bf16.mxu0 %v5642
    %9233 = vmatpush1.bf16.msra.mxu0 %v5641
    %9234 = vmatprep.subr.bf16.mxu0 %v5650
    %9235 = vmatpush1.bf16.msra.mxu0 %v5649
    %9236 = vmatprep.subr.bf16.mxu0 %v5658
    %9237 = vmatpush1.bf16.msra.mxu0 %v5657
    %9238 = vmatprep.subr.bf16.mxu0 %v5666
    %9239 = vmatpush1.bf16.msra.mxu0 %v5665
    %9240 = vmatprep.subr.bf16.mxu0 %v5674
    %9241 = vmatpush1.bf16.msra.mxu0 %v5673
    %9242 = vmatprep.subr.bf16.mxu0 %v5682
    %9243 = vmatpush1.bf16.msra.mxu0 %v5681
    %9244 = vmatprep.mubr.bf16.mxu0 %v163
    %9245 = vmatmul.mubr.bf16.gmra.mrb[0].mxu0 %v162
    %v9246 = vpop.f32.mrb[0].mxu0
    %v9247 = vadd.f32 %v9206, %v9246
    %v9248 = vpop.f32.mrb[0].mxu0
    %v9249 = vadd.f32 %v9208, %v9248
    %v9250 = vpop.f32.mrb[0].mxu0
    %v9251 = vpop.f32.mrb[0].mxu0
    %9252 = vdwg.mxu0
    %9253 = vmatprep.subr.bf16.mxu0 %v5690
    %9254 = vmatpush1.bf16.msra.mxu0 %v5689
    %9255 = vmatprep.subr.bf16.mxu0 %v5698
    %9256 = vmatpush1.bf16.msra.mxu0 %v5697
    %9257 = vmatprep.subr.bf16.mxu0 %v5706
    %9258 = vmatpush1.bf16.msra.mxu0 %v5705
    %9259 = vmatprep.subr.bf16.mxu0 %v5714
    %9260 = vmatpush1.bf16.msra.mxu0 %v5713
    %9261 = vmatprep.subr.bf16.mxu0 %v5722
    %9262 = vmatpush1.bf16.msra.mxu0 %v5721
    %9263 = vmatprep.subr.bf16.mxu0 %v5730
    %9264 = vmatpush1.bf16.msra.mxu0 %v5729
    %9265 = vmatprep.subr.bf16.mxu0 %v5738
    %9266 = vmatpush1.bf16.msra.mxu0 %v5737
    %9267 = vmatprep.subr.bf16.mxu0 %v5746
    %9268 = vmatpush1.bf16.msra.mxu0 %v5745
    %9269 = vmatprep.subr.bf16.mxu0 %v5754
    %9270 = vmatpush1.bf16.msra.mxu0 %v5753
    %9271 = vmatprep.subr.bf16.mxu0 %v5762
    %9272 = vmatpush1.bf16.msra.mxu0 %v5761
    %9273 = vmatprep.subr.bf16.mxu0 %v5770
    %9274 = vmatpush1.bf16.msra.mxu0 %v5769
    %9275 = vmatprep.subr.bf16.mxu0 %v5778
    %9276 = vmatpush1.bf16.msra.mxu0 %v5777
    %9277 = vmatprep.subr.bf16.mxu0 %v5786
    %9278 = vmatpush1.bf16.msra.mxu0 %v5785
    %9279 = vmatprep.subr.bf16.mxu0 %v5794
    %9280 = vmatpush1.bf16.msra.mxu0 %v5793
    %9281 = vmatprep.subr.bf16.mxu0 %v5802
    %9282 = vmatpush1.bf16.msra.mxu0 %v5801
    %9283 = vmatprep.subr.bf16.mxu0 %v5810
    %9284 = vmatpush1.bf16.msra.mxu0 %v5809
    %9285 = vmatprep.mubr.bf16.mxu0 %v165
    %9286 = vmatmul.mubr.bf16.gmra.mrb[0].mxu0 %v164
    %v9287 = vpop.f32.mrb[0].mxu0
    %v9288 = vadd.f32 %v9247, %v9287
    %v9289 = vpop.f32.mrb[0].mxu0
    %v9290 = vadd.f32 %v9249, %v9289
    %v9291 = vpop.f32.mrb[0].mxu0
    %v9292 = vpop.f32.mrb[0].mxu0
    %9293 = vdwg.mxu0
    %9294 = vmatprep.subr.bf16.mxu0 %v5818
    %9295 = vmatpush1.bf16.msra.mxu0 %v5817
    %9296 = vmatprep.subr.bf16.mxu0 %v5826
    %9297 = vmatpush1.bf16.msra.mxu0 %v5825
    %9298 = vmatprep.subr.bf16.mxu0 %v5834
    %9299 = vmatpush1.bf16.msra.mxu0 %v5833
    %9300 = vmatprep.subr.bf16.mxu0 %v5842
    %9301 = vmatpush1.bf16.msra.mxu0 %v5841
    %9302 = vmatprep.subr.bf16.mxu0 %v5850
    %9303 = vmatpush1.bf16.msra.mxu0 %v5849
    %9304 = vmatprep.subr.bf16.mxu0 %v5858
    %9305 = vmatpush1.bf16.msra.mxu0 %v5857
    %9306 = vmatprep.subr.bf16.mxu0 %v5866
    %9307 = vmatpush1.bf16.msra.mxu0 %v5865
    %9308 = vmatprep.subr.bf16.mxu0 %v5874
    %9309 = vmatpush1.bf16.msra.mxu0 %v5873
    %9310 = vmatprep.subr.bf16.mxu0 %v5882
    %9311 = vmatpush1.bf16.msra.mxu0 %v5881
    %9312 = vmatprep.subr.bf16.mxu0 %v5890
    %9313 = vmatpush1.bf16.msra.mxu0 %v5889
    %9314 = vmatprep.subr.bf16.mxu0 %v5898
    %9315 = vmatpush1.bf16.msra.mxu0 %v5897
    %9316 = vmatprep.subr.bf16.mxu0 %v5906
    %9317 = vmatpush1.bf16.msra.mxu0 %v5905
    %9318 = vmatprep.subr.bf16.mxu0 %v5914
    %9319 = vmatpush1.bf16.msra.mxu0 %v5913
    %9320 = vmatprep.subr.bf16.mxu0 %v5922
    %9321 = vmatpush1.bf16.msra.mxu0 %v5921
    %9322 = vmatprep.subr.bf16.mxu0 %v5930
    %9323 = vmatpush1.bf16.msra.mxu0 %v5929
    %9324 = vmatprep.subr.bf16.mxu0 %v5938
    %9325 = vmatpush1.bf16.msra.mxu0 %v5937
    %9326 = vmatprep.mubr.bf16.mxu0 %v167
    %9327 = vmatmul.mubr.bf16.gmra.mrb[0].mxu0 %v166
    %v9328 = vpop.f32.mrb[0].mxu0
    %v9329 = vadd.f32 %v9288, %v9328
    %v9330 = vpop.f32.mrb[0].mxu0
    %v9331 = vadd.f32 %v9290, %v9330
    %v9332 = vpop.f32.mrb[0].mxu0
    %v9333 = vpop.f32.mrb[0].mxu0
    %9334 = vdwg.mxu0
    %9335 = vmatprep.subr.bf16.mxu0 %v5946
    %9336 = vmatpush1.bf16.msra.mxu0 %v5945
    %9337 = vmatprep.subr.bf16.mxu0 %v5954
    %9338 = vmatpush1.bf16.msra.mxu0 %v5953
    %9339 = vmatprep.subr.bf16.mxu0 %v5962
    %9340 = vmatpush1.bf16.msra.mxu0 %v5961
    %9341 = vmatprep.subr.bf16.mxu0 %v5970
    %9342 = vmatpush1.bf16.msra.mxu0 %v5969
    %9343 = vmatprep.subr.bf16.mxu0 %v5978
    %9344 = vmatpush1.bf16.msra.mxu0 %v5977
    %9345 = vmatprep.subr.bf16.mxu0 %v5986
    %9346 = vmatpush1.bf16.msra.mxu0 %v5985
    %9347 = vmatprep.subr.bf16.mxu0 %v5994
    %9348 = vmatpush1.bf16.msra.mxu0 %v5993
    %9349 = vmatprep.subr.bf16.mxu0 %v6002
    %9350 = vmatpush1.bf16.msra.mxu0 %v6001
    %9351 = vmatprep.subr.bf16.mxu0 %v6010
    %9352 = vmatpush1.bf16.msra.mxu0 %v6009
    %9353 = vmatprep.subr.bf16.mxu0 %v6018
    %9354 = vmatpush1.bf16.msra.mxu0 %v6017
    %9355 = vmatprep.subr.bf16.mxu0 %v6026
    %9356 = vmatpush1.bf16.msra.mxu0 %v6025
    %9357 = vmatprep.subr.bf16.mxu0 %v6034
    %9358 = vmatpush1.bf16.msra.mxu0 %v6033
    %9359 = vmatprep.subr.bf16.mxu0 %v6042
    %9360 = vmatpush1.bf16.msra.mxu0 %v6041
    %9361 = vmatprep.subr.bf16.mxu0 %v6050
    %9362 = vmatpush1.bf16.msra.mxu0 %v6049
    %9363 = vmatprep.subr.bf16.mxu0 %v6058
    %9364 = vmatpush1.bf16.msra.mxu0 %v6057
    %9365 = vmatprep.subr.bf16.mxu0 %v6066
    %9366 = vmatpush1.bf16.msra.mxu0 %v6065
    %9367 = vmatprep.mubr.bf16.mxu0 %v169
    %9368 = vmatmul.mubr.bf16.gmra.mrb[0].mxu0 %v168
    %v9369 = vpop.f32.mrb[0].mxu0
    %v9370 = vadd.f32 %v9329, %v9369
    %v9371 = vpop.f32.mrb[0].mxu0
    %v9372 = vadd.f32 %v9331, %v9371
    %v9373 = vpop.f32.mrb[0].mxu0
    %v9374 = vpop.f32.mrb[0].mxu0
    %9375 = vdwg.mxu0
    %9376 = vmatprep.subr.bf16.mxu0 %v6074
    %9377 = vmatpush1.bf16.msra.mxu0 %v6073
    %9378 = vmatprep.subr.bf16.mxu0 %v6082
    %9379 = vmatpush1.bf16.msra.mxu0 %v6081
    %9380 = vmatprep.subr.bf16.mxu0 %v6090
    %9381 = vmatpush1.bf16.msra.mxu0 %v6089
    %9382 = vmatprep.subr.bf16.mxu0 %v6098
    %9383 = vmatpush1.bf16.msra.mxu0 %v6097
    %9384 = vmatprep.subr.bf16.mxu0 %v6106
    %9385 = vmatpush1.bf16.msra.mxu0 %v6105
    %9386 = vmatprep.subr.bf16.mxu0 %v6114
    %9387 = vmatpush1.bf16.msra.mxu0 %v6113
    %9388 = vmatprep.subr.bf16.mxu0 %v6122
    %9389 = vmatpush1.bf16.msra.mxu0 %v6121
    %9390 = vmatprep.subr.bf16.mxu0 %v6130
    %9391 = vmatpush1.bf16.msra.mxu0 %v6129
    %9392 = vmatprep.subr.bf16.mxu0 %v6138
    %9393 = vmatpush1.bf16.msra.mxu0 %v6137
    %9394 = vmatprep.subr.bf16.mxu0 %v6146
    %9395 = vmatpush1.bf16.msra.mxu0 %v6145
    %9396 = vmatprep.subr.bf16.mxu0 %v6154
    %9397 = vmatpush1.bf16.msra.mxu0 %v6153
    %9398 = vmatprep.subr.bf16.mxu0 %v6162
    %9399 = vmatpush1.bf16.msra.mxu0 %v6161
    %9400 = vmatprep.subr.bf16.mxu0 %v6170
    %9401 = vmatpush1.bf16.msra.mxu0 %v6169
    %9402 = vmatprep.subr.bf16.mxu0 %v6178
    %9403 = vmatpush1.bf16.msra.mxu0 %v6177
    %9404 = vmatprep.subr.bf16.mxu0 %v6186
    %9405 = vmatpush1.bf16.msra.mxu0 %v6185
    %9406 = vmatprep.subr.bf16.mxu0 %v6194
    %9407 = vmatpush1.bf16.msra.mxu0 %v6193
    %9408 = vmatprep.mubr.bf16.mxu0 %v171
    %9409 = vmatmul.mubr.bf16.gmra.mrb[0].mxu0 %v170
    %v9410 = vpop.f32.mrb[0].mxu0
    %v9411 = vadd.f32 %v9370, %v9410
    %v9412 = vpop.f32.mrb[0].mxu0
    %v9413 = vadd.f32 %v9372, %v9412
    %v9414 = vpop.f32.mrb[0].mxu0
    %v9415 = vpop.f32.mrb[0].mxu0
    %9416 = vdwg.mxu0
    %9417 = vmatprep.subr.bf16.mxu0 %v6202
    %9418 = vmatpush1.bf16.msra.mxu0 %v6201
    %9419 = vmatprep.subr.bf16.mxu0 %v6210
    %9420 = vmatpush1.bf16.msra.mxu0 %v6209
    %9421 = vmatprep.subr.bf16.mxu0 %v6218
    %9422 = vmatpush1.bf16.msra.mxu0 %v6217
    %9423 = vmatprep.subr.bf16.mxu0 %v6226
    %9424 = vmatpush1.bf16.msra.mxu0 %v6225
    %9425 = vmatprep.subr.bf16.mxu0 %v6234
    %9426 = vmatpush1.bf16.msra.mxu0 %v6233
    %9427 = vmatprep.subr.bf16.mxu0 %v6242
    %9428 = vmatpush1.bf16.msra.mxu0 %v6241
    %9429 = vmatprep.subr.bf16.mxu0 %v6250
    %9430 = vmatpush1.bf16.msra.mxu0 %v6249
    %9431 = vmatprep.subr.bf16.mxu0 %v6258
    %9432 = vmatpush1.bf16.msra.mxu0 %v6257
    %9433 = vmatprep.subr.bf16.mxu0 %v6266
    %9434 = vmatpush1.bf16.msra.mxu0 %v6265
    %9435 = vmatprep.subr.bf16.mxu0 %v6274
    %9436 = vmatpush1.bf16.msra.mxu0 %v6273
    %9437 = vmatprep.subr.bf16.mxu0 %v6282
    %9438 = vmatpush1.bf16.msra.mxu0 %v6281
    %9439 = vmatprep.subr.bf16.mxu0 %v6290
    %9440 = vmatpush1.bf16.msra.mxu0 %v6289
    %9441 = vmatprep.subr.bf16.mxu0 %v6298
    %9442 = vmatpush1.bf16.msra.mxu0 %v6297
    %9443 = vmatprep.subr.bf16.mxu0 %v6306
    %9444 = vmatpush1.bf16.msra.mxu0 %v6305
    %9445 = vmatprep.subr.bf16.mxu0 %v6314
    %9446 = vmatpush1.bf16.msra.mxu0 %v6313
    %9447 = vmatprep.subr.bf16.mxu0 %v6322
    %9448 = vmatpush1.bf16.msra.mxu0 %v6321
    %9449 = vmatprep.mubr.bf16.mxu0 %v173
    %9450 = vmatmul.mubr.bf16.gmra.mrb[0].mxu0 %v172
    %v9451 = vpop.f32.mrb[0].mxu0
    %v9452 = vadd.f32 %v9411, %v9451
    %v9453 = vpop.f32.mrb[0].mxu0
    %v9454 = vadd.f32 %v9413, %v9453
    %v9455 = vpop.f32.mrb[0].mxu0
    %v9456 = vpop.f32.mrb[0].mxu0
    %9457 = vdwg.mxu0
    %9458 = vmatprep.subr.bf16.mxu0 %v6330
    %9459 = vmatpush1.bf16.msra.mxu0 %v6329
    %9460 = vmatprep.subr.bf16.mxu0 %v6338
    %9461 = vmatpush1.bf16.msra.mxu0 %v6337
    %9462 = vmatprep.subr.bf16.mxu0 %v6346
    %9463 = vmatpush1.bf16.msra.mxu0 %v6345
    %9464 = vmatprep.subr.bf16.mxu0 %v6354
    %9465 = vmatpush1.bf16.msra.mxu0 %v6353
    %9466 = vmatprep.subr.bf16.mxu0 %v6362
    %9467 = vmatpush1.bf16.msra.mxu0 %v6361
    %9468 = vmatprep.subr.bf16.mxu0 %v6370
    %9469 = vmatpush1.bf16.msra.mxu0 %v6369
    %9470 = vmatprep.subr.bf16.mxu0 %v6378
    %9471 = vmatpush1.bf16.msra.mxu0 %v6377
    %9472 = vmatprep.subr.bf16.mxu0 %v6386
    %9473 = vmatpush1.bf16.msra.mxu0 %v6385
    %9474 = vmatprep.subr.bf16.mxu0 %v6394
    %9475 = vmatpush1.bf16.msra.mxu0 %v6393
    %9476 = vmatprep.subr.bf16.mxu0 %v6402
    %9477 = vmatpush1.bf16.msra.mxu0 %v6401
    %9478 = vmatprep.subr.bf16.mxu0 %v6410
    %9479 = vmatpush1.bf16.msra.mxu0 %v6409
    %9480 = vmatprep.subr.bf16.mxu0 %v6418
    %9481 = vmatpush1.bf16.msra.mxu0 %v6417
    %9482 = vmatprep.subr.bf16.mxu0 %v6426
    %9483 = vmatpush1.bf16.msra.mxu0 %v6425
    %9484 = vmatprep.subr.bf16.mxu0 %v6434
    %9485 = vmatpush1.bf16.msra.mxu0 %v6433
    %9486 = vmatprep.subr.bf16.mxu0 %v6442
    %9487 = vmatpush1.bf16.msra.mxu0 %v6441
    %9488 = vmatprep.subr.bf16.mxu0 %v6450
    %9489 = vmatpush1.bf16.msra.mxu0 %v6449
    %9490 = vmatprep.mubr.bf16.mxu0 %v175
    %9491 = vmatmul.mubr.bf16.gmra.mrb[0].mxu0 %v174
    %v9492 = vpop.f32.mrb[0].mxu0
    %v9493 = vadd.f32 %v9452, %v9492
    %v9494 = vpop.f32.mrb[0].mxu0
    %v9495 = vadd.f32 %v9454, %v9494
    %v9496 = vpop.f32.mrb[0].mxu0
    %v9497 = vpop.f32.mrb[0].mxu0
    %9498 = vdwg.mxu0
    %9499 = vmatprep.subr.bf16.mxu0 %v6458
    %9500 = vmatpush1.bf16.msra.mxu0 %v6457
    %9501 = vmatprep.subr.bf16.mxu0 %v6466
    %9502 = vmatpush1.bf16.msra.mxu0 %v6465
    %9503 = vmatprep.subr.bf16.mxu0 %v6474
    %9504 = vmatpush1.bf16.msra.mxu0 %v6473
    %9505 = vmatprep.subr.bf16.mxu0 %v6482
    %9506 = vmatpush1.bf16.msra.mxu0 %v6481
    %9507 = vmatprep.subr.bf16.mxu0 %v6490
    %9508 = vmatpush1.bf16.msra.mxu0 %v6489
    %9509 = vmatprep.subr.bf16.mxu0 %v6498
    %9510 = vmatpush1.bf16.msra.mxu0 %v6497
    %9511 = vmatprep.subr.bf16.mxu0 %v6506
    %9512 = vmatpush1.bf16.msra.mxu0 %v6505
    %9513 = vmatprep.subr.bf16.mxu0 %v6514
    %9514 = vmatpush1.bf16.msra.mxu0 %v6513
    %9515 = vmatprep.subr.bf16.mxu0 %v6522
    %9516 = vmatpush1.bf16.msra.mxu0 %v6521
    %9517 = vmatprep.subr.bf16.mxu0 %v6530
    %9518 = vmatpush1.bf16.msra.mxu0 %v6529
    %9519 = vmatprep.subr.bf16.mxu0 %v6538
    %9520 = vmatpush1.bf16.msra.mxu0 %v6537
    %9521 = vmatprep.subr.bf16.mxu0 %v6546
    %9522 = vmatpush1.bf16.msra.mxu0 %v6545
    %9523 = vmatprep.subr.bf16.mxu0 %v6554
    %9524 = vmatpush1.bf16.msra.mxu0 %v6553
    %9525 = vmatprep.subr.bf16.mxu0 %v6562
    %9526 = vmatpush1.bf16.msra.mxu0 %v6561
    %9527 = vmatprep.subr.bf16.mxu0 %v6570
    %9528 = vmatpush1.bf16.msra.mxu0 %v6569
    %9529 = vmatprep.subr.bf16.mxu0 %v6578
    %9530 = vmatpush1.bf16.msra.mxu0 %v6577
    %9531 = vmatprep.mubr.bf16.mxu0 %v177
    %9532 = vmatmul.mubr.bf16.gmra.mrb[0].mxu0 %v176
    %v9533 = vpop.f32.mrb[0].mxu0
    %v9534 = vadd.f32 %v9493, %v9533
    %v9535 = vpop.f32.mrb[0].mxu0
    %v9536 = vadd.f32 %v9495, %v9535
    %v9537 = vpop.f32.mrb[0].mxu0
    %v9538 = vpop.f32.mrb[0].mxu0
    %9539 = vdwg.mxu0
    %v9548 = vcombine.low %v8304, %v8306
    %v9549 = vcombine.low %v8714, %v8716
    %v9550 = vcombine.low %v9124, %v9126
    %v9551 = vcombine.low %v9534, %v9536
    %v9553 = vunpack.c.l.s4 1966171168
    %v9554 = vunpack.c.0.s8 %v9553
    %v9555 = vlaneseq
    %v9556 = vshrl.u32 %v9555, 7
    %v9557 = vsub.s32 %v9554, %v9556
    %v9558 = vrot.slane %v9548, %v9557
    %v9560 = vunpack.c.l.s4 1966171168
    %v9561 = vunpack.c.0.s8 %v9560
    %v9562 = vlaneseq
    %v9563 = vshrl.u32 %v9562, 7
    %v9564 = vsub.s32 %v9561, %v9563
    %v9565 = vrot.slane %v9549, %v9564
    %v9567 = vunpack.c.l.s4 1966171168
    %v9568 = vunpack.c.0.s8 %v9567
    %v9569 = vlaneseq
    %v9570 = vshrl.u32 %v9569, 7
    %v9571 = vsub.s32 %v9568, %v9570
    %v9572 = vrot.slane %v9550, %v9571
    %v9574 = vunpack.c.l.s4 1966171168
    %v9575 = vunpack.c.0.s8 %v9574
    %v9576 = vlaneseq
    %v9577 = vshrl.u32 %v9576, 7
    %v9578 = vsub.s32 %v9575, %v9577
    %v9579 = vrot.slane %v9551, %v9578
    %v9580 = vcombine.low %v9558, %v9565
    %v9581 = vcombine.low %v9572, %v9579
    %v9583 = vunpack.c.l.s4 1966171168
    %v9584 = vunpack.c.0.s8 %v9583
    %v9585 = vlaneseq
    %v9586 = vshrl.u32 %v9585, 7
    %v9587 = vsub.s32 %v9584, %v9586
    %v9588 = vrot.slane %v9580, %v9587
    %v9590 = vunpack.c.l.s4 1966171168
    %v9591 = vunpack.c.0.s8 %v9590
    %v9592 = vlaneseq
    %v9593 = vshrl.u32 %v9592, 7
    %v9594 = vsub.s32 %v9591, %v9593
    %v9595 = vrot.slane %v9581, %v9594
    %v9596 = vcombine.low %v9588, %v9595
    %9598 = vst [vmem:[#allocation8] sm:$0xff] %v9596
    // Predicated region
    $region26: #{model_forward.1} parent=1 // pred_check
      _
    $region27: #{model_forward.1} parent=1 // pred_check_branch
      %9600 = sbr.rel (0) target = $region29
    $region28: #{model_forward.1} parent=1 // pred_region
      %s9602 = ssub.s32 128, 128
      %9603 = vsyncadd [#allocation4], %s9602
      %s9605 = sshll.u32 [#allocation8], 4
      %s9606 = int_to_ptr.vmem [resolvable:$true] %s9605
      %9608 = dma.vmem_to_hbm [thread:$0]  %s9606, 128, %s3, [#allocation4]
    $region29: #{model_forward.1} parent=1 // pred_fallthru
      _
    // Predicated region
    $region30: #{model_forward.1} parent=1 // pred_check
      _
    $region31: #{model_forward.1} parent=1 // pred_check_branch
      %9610 = sbr.rel (0) target = $region33
    $region32: #{model_forward.1} parent=1 // pred_region
      %9611 = dma.done [#allocation4], 128
    $region33: #{model_forward.1} parent=1 // pred_fallthru
      _
    %9612 = vsyncpa [#allocation3], 1
    %9613 = vsyncpa [#allocation6], 1
    %9614 = vsyncpa [#allocation4], 1

</llo_original>
